<compile_context>
chip_gen: v7x
topology: tpu7x:2x2x1
jax: 0.10.0
libtpu: 0.0.40
codegen_flags: <defaults>
</compile_context>

<pallas_src>
import functools
import math

import jax
import jax.numpy as jnp
import numpy as np
from jax.experimental import pallas as pl
from jax.experimental.pallas import tpu as pltpu


# --------------------------- in-kernel math helpers ---------------------------

def _mm(a, w):
    """a @ w with f32 accumulation.

    K <= 8 : unrolled broadcast FMAs on the VPU (a degenerate-K MXU pass would waste it).
    K >  8 : bf16 MXU matmul, f32 accumulation.
    """
    K = a.shape[1]
    if K <= 8:
        acc = a[:, 0:1].astype(jnp.float32) * w[0:1, :].astype(jnp.float32)
        for c in range(1, K):
            acc = acc + a[:, c:c + 1].astype(jnp.float32) * w[c:c + 1, :].astype(jnp.float32)
        return acc
    return jnp.dot(a.astype(jnp.bfloat16), w.astype(jnp.bfloat16),
                   preferred_element_type=jnp.float32)


def _bn_relu(x, eps):
    """Training-mode BatchNorm (gamma=1, beta=0, biased batch variance) + ReLU, rows=pixels."""
    mu = jnp.mean(x, axis=0, keepdims=True)
    var = jnp.mean(jnp.square(x - mu), axis=0, keepdims=True)
    return jnp.maximum((x - mu) * jax.lax.rsqrt(var + eps), 0.0)


# ------------------------ fused 3-involution kernel (A) ------------------------

def _i2d_fused_kernel(xunf1_ref, wi1_ref, wr1_ref, ws1_ref,
                      wi2_ref, wr2_ref, ws2_ref,
                      wi3_ref, wr3_ref, ws3_ref,
                      s3_ref, o_ref, *, eps):
    """involution1 -> involution2 -> involution3 (groups=1, reduce_ratio=1, bias-free convs).

    xunf1_ref : (KK1*P1, C0) bf16  layer-1 unfolded input; row k1*P1 + (k2*P2 + r) is input
                                   tap k1 of the layer-1 output pixel that is layer-2 unfold
                                   tap k2 of layer-2/3 pixel r = (b, i, j).
    wi*/wr*   : (Cin, Cout)  bf16  initial / reduce 1x1 convs (no bias)
    ws*       : (Cout, KK)   bf16  span 1x1 convs (no bias)
    s3_ref    : (KK3*P2, P2) f32   0/1 neighbour-selection matrices for the 3x3 pad-1 unfold
                                   of layer 3 (all-zero rows == zero padding)
    o_ref     : (P2, C3)     f32   involution3 output, rows (b, i, j), channels last
    """
    KK1 = ws1_ref.shape[1]
    KK2 = ws2_ref.shape[1]
    KK3 = ws3_ref.shape[1]
    P2 = o_ref.shape[0]
    P1 = xunf1_ref.shape[0] // KK1

    # ---------------- involution1 : kernel=stride=(2,2), pad 0 ----------------
    xunf1 = xunf1_ref[...]
    pool1 = xunf1[0:P1, :].astype(jnp.float32)
    for k in range(1, KK1):                                   # AvgPool2d(2,2) == tap mean
        pool1 = pool1 + xunf1[k * P1:(k + 1) * P1, :].astype(jnp.float32)
    pool1 = pool1 * (1.0 / KK1)
    kern1 = _mm(_bn_relu(_mm(pool1, wr1_ref[...]), eps), ws1_ref[...])      # (P1, KK1)
    init1 = _mm(xunf1, wi1_ref[...])                                        # (KK1*P1, C1)
    acc1 = init1[0:P1, :] * kern1[:, 0:1]
    for k in range(1, KK1):
        acc1 = acc1 + init1[k * P1:(k + 1) * P1, :] * kern1[:, k:k + 1]
    # acc1 rows are ordered (tap2, b, i2, j2): layer 2's unfold is plain row slicing.

    # ---------------- involution2 : kernel=stride=(2,2), pad 0 ----------------
    pool2 = acc1[0:P2, :]
    for k in range(1, KK2):                                   # AvgPool2d(2,2) == tap mean
        pool2 = pool2 + acc1[k * P2:(k + 1) * P2, :]
    pool2 = pool2 * (1.0 / KK2)
    kern2 = _mm(_bn_relu(_mm(pool2, wr2_ref[...]), eps), ws2_ref[...])      # (P2, KK2)
    init2 = _mm(acc1, wi2_ref[...])                                         # (KK2*P2, C2)
    acc2 = init2[0:P2, :] * kern2[:, 0:1]
    for k in range(1, KK2):
        acc2 = acc2 + init2[k * P2:(k + 1) * P2, :] * kern2[:, k:k + 1]
    # acc2: (P2, C2) f32, rows (b, i, j).

    # ---------------- involution3 : kernel=(3,3), stride=1, pad=1 ----------------
    # AvgPool2d(1,1) is the identity, so the kernel-generation branch reads acc2 directly.
    kern3 = _mm(_bn_relu(_mm(acc2, wr3_ref[...]), eps), ws3_ref[...])       # (P2, KK3)
    init3 = _mm(acc2, wi3_ref[...])                                         # (P2, C3)
    s3 = s3_ref[...]
    gmat = kern3[:, 0:1] * s3[0:P2, :]
    for k in range(1, KK3):
        gmat = gmat + kern3[:, k:k + 1] * s3[k * P2:(k + 1) * P2, :]
    # out[r, :] = sum_k kern3[r, k] * init3[neighbour_k(r), :]  ==  (G @ init3)[r, :]
    o_ref[...] = jnp.dot(gmat, init3, preferred_element_type=jnp.float32)


# ------------------------------ final FC kernel (B) ----------------------------

def _fc_kernel(x_ref, w_ref, b_ref, o_ref):
    o_ref[...] = jnp.dot(x_ref[...], w_ref[...],
                         preferred_element_type=jnp.float32) + b_ref[...]


def pallas_fc(x, w, b):
    """y = x @ w + b, bf16 operands, f32 accumulate.  (M,K)=(2,4096), (K,N)=(4096,10)."""
    M, K = x.shape
    N = w.shape[1]
    return pl.pallas_call(
        _fc_kernel,
        grid=(1,),
        in_specs=[
            pl.BlockSpec((M, K), lambda i: (0, 0)),
            pl.BlockSpec((K, N), lambda i: (0, 0)),
            pl.BlockSpec((1, N), lambda i: (0, 0)),
        ],
        out_specs=pl.BlockSpec((M, N), lambda i: (0, 0)),
        out_shape=jax.ShapeDtypeStruct((M, N), jnp.float32),
        compiler_params=pltpu.CompilerParams(dimension_semantics=("arbitrary",)),
    )(x.astype(jnp.bfloat16), w.astype(jnp.bfloat16), b.reshape(1, N).astype(jnp.float32))


# ------------------------------- host-side glue --------------------------------

def _unfold_layer1(x_nhwc, s2):
    """Unfold for involution1 (2x2, stride 2), rows pre-permuted for involution2.

    Returns (16 * B*s2*s2, C0): row  k1*(4*P2) + k2*P2 + (b*s2*s2 + i2*s2 + j2)  is input
    tap k1 of the layer-1 output pixel (b, 2*i2+ki2, 2*j2+kj2), i.e. layer-2 unfold tap k2
    of layer-2/3 output pixel (b, i2, j2).
    """
    B, _, _, C0 = x_nhwc.shape
    P2 = B * s2 * s2
    blocks = []
    for k1 in range(4):
        ki1, kj1 = divmod(k1, 2)
        sub = []
        for k2 in range(4):
            ki2, kj2 = divmod(k2, 2)
            slab = x_nhwc[:, 2 * ki2 + ki1::4, 2 * kj2 + kj1::4, :]      # (B, s2, s2, C0)
            sub.append(slab.reshape(P2, C0))                             # rows (b, i2, j2)
        blocks.append(jnp.concatenate(sub, axis=0))                      # (4*P2, C0)
    return jnp.concatenate(blocks, axis=0)                               # (16*P2, C0)


def _build_s3(batch, s2):
    """0/1 neighbour-selection matrices for a 3x3 / stride-1 / pad-1 unfold on (s2, s2)."""
    nsp = s2 * s2
    p2 = batch * nsp
    s = np.zeros((9 * p2, p2), np.float32)
    for k in range(9):
        di, dj = k // 3 - 1, k % 3 - 1
        for b in range(batch):
            for i in range(s2):
                for j in range(s2):
                    si, sj = i + di, j + dj
                    if 0 <= si < s2 and 0 <= sj < s2:
                        s[k * p2 + b * nsp + i * s2 + j, b * nsp + si * s2 + sj] = 1.0
    return s


# ----------------------------------- params ------------------------------------

def _kaiming(key, fan_in, shape):
    return jax.random.normal(key, shape, jnp.float32) * math.sqrt(2.0 / fan_in)


def init_params(key, input_channels=4, n_classes=10, patch_size=16):
    ks = jax.random.split(key, 10)

    def inv_p(k0, k1, k2, cin, cout, kk):
        return dict(
            initial_w=_kaiming(k0, cin, (cin, cout)),   # 1x1 conv, no bias
            reduce_w=_kaiming(k1, cin, (cin, cout)),    # 1x1 conv, no bias
            span_w=_kaiming(k2, cout, (cout, kk)),      # 1x1 conv, no bias
        )

    p = {
        "inv1": inv_p(ks[0], ks[1], ks[2], input_channels, 64, 4),
        "inv2": inv_p(ks[3], ks[4], ks[5], 64, 128, 4),
        "inv3": inv_p(ks[6], ks[7], ks[8], 128, 256, 9),
    }
    # spatial: patch -> /2 -> /2 -> same  =>  features = 256 * (patch/4)^2
    features = 256 * (patch_size // 4) * (patch_size // 4)
    p["fc_w"] = _kaiming(ks[9], features, (features, n_classes))
    p["fc_b"] = jnp.zeros((n_classes,), jnp.float32)
    return p


# ----------------------------------- forward -----------------------------------

def i2d_forward(x, p, eps=1e-5):
    # PyTorch does x.squeeze(); at (B=2, C=4, 16, 16) there are no size-1 dims, so it is a
    # no-op and is skipped (avoids silently dropping the batch dim for a batch of 1).
    B, _, H, W = x.shape
    assert H == W and H % 4 == 0
    s2 = H // 4                                    # spatial size after the two stride-2 layers
    nsp = s2 * s2
    P2 = B * nsp
    C3 = p["inv3"]["initial_w"].shape[1]

    x_nhwc = jnp.transpose(x, (0, 2, 3, 1))        # the only activation transpose
    xunf1 = _unfold_layer1(x_nhwc, s2).astype(jnp.bfloat16)
    s3 = jnp.asarray(_build_s3(B, s2))

    args = (xunf1,
            p["inv1"]["initial_w"].astype(jnp.bfloat16),
            p["inv1"]["reduce_w"].astype(jnp.bfloat16),
            p["inv1"]["span_w"].astype(jnp.bfloat16),
            p["inv2"]["initial_w"].astype(jnp.bfloat16),
            p["inv2"]["reduce_w"].astype(jnp.bfloat16),
            p["inv2"]["span_w"].astype(jnp.bfloat16),
            p["inv3"]["initial_w"].astype(jnp.bfloat16),
            p["inv3"]["reduce_w"].astype(jnp.bfloat16),
            p["inv3"]["span_w"].astype(jnp.bfloat16),
            s3)
    out3 = pl.pallas_call(
        functools.partial(_i2d_fused_kernel, eps=eps),
        grid=(1,),
        in_specs=[pl.BlockSpec(a.shape, lambda i: (0, 0)) for a in args],
        out_specs=pl.BlockSpec((P2, C3), lambda i: (0, 0)),
        out_shape=jax.ShapeDtypeStruct((P2, C3), jnp.float32),
        compiler_params=pltpu.CompilerParams(dimension_semantics=("arbitrary",)),
    )(*args)

    # nn.Flatten flattens NCHW; fold that permutation into the FC weights so the kernel-A
    # output only needs a FREE row-major reshape (rows (b,i,j) x channels -> (B, nsp*C3)).
    feats = out3.reshape(B, nsp * C3)
    n_classes = p["fc_w"].shape[1]
    fc_w_perm = jnp.transpose(p["fc_w"].reshape(C3, nsp, n_classes), (1, 0, 2))
    fc_w_perm = fc_w_perm.reshape(nsp * C3, n_classes)
    return pallas_fc(feats, fc_w_perm, p["fc_b"])                 # out_finetune logits


if __name__ == "__main__":
    key = jax.random.PRNGKey(0)
    kp, kx = jax.random.split(key)
    input_channels, n_classes, patch_size, batch = 4, 10, 16, 2
    params = init_params(kp, input_channels, n_classes, patch_size)
    x = jax.random.normal(kx, (batch, input_channels, patch_size, patch_size), jnp.float32)

    fwd = jax.jit(i2d_forward)
    logits = fwd(x, params)
    jax.block_until_ready(logits)
    assert logits.shape == (batch, n_classes), logits.shape
    assert bool(jnp.all(jnp.isfinite(logits)))
    print("KERNEL_OK")
</pallas_src>

<mosaic_0001>
module attributes {stable_mosaic.version = 11 : i64} {
  func.func @_i2d_fused_kernel(%arg0: i32, %arg1: memref<512x4xbf16, #tpu.memory_space<vmem>>, %arg2: memref<4x64xbf16, #tpu.memory_space<vmem>>, %arg3: memref<4x64xbf16, #tpu.memory_space<vmem>>, %arg4: memref<64x4xbf16, #tpu.memory_space<vmem>>, %arg5: memref<64x128xbf16, #tpu.memory_space<vmem>>, %arg6: memref<64x128xbf16, #tpu.memory_space<vmem>>, %arg7: memref<128x4xbf16, #tpu.memory_space<vmem>>, %arg8: memref<128x256xbf16, #tpu.memory_space<vmem>>, %arg9: memref<128x256xbf16, #tpu.memory_space<vmem>>, %arg10: memref<256x9xbf16, #tpu.memory_space<vmem>>, %arg11: memref<288x32xf32, #tpu.memory_space<vmem>>, %arg12: memref<32x256xf32, #tpu.memory_space<vmem>>) attributes {dimension_semantics = [#tpu.dimension_semantics<arbitrary>], iteration_bounds = array<i64: 1>, scalar_prefetch = 0 : i64, scratch_operands = 0 : i64, tpu.core_type = #tpu.core_type<tc>, window_params = [{pipeline_mode = #tpu.pipeline_mode<synchronous>, transform_indices = @transform_0, window_bounds = array<i64: 512, 4>}, {pipeline_mode = #tpu.pipeline_mode<synchronous>, transform_indices = @transform_1, window_bounds = array<i64: 4, 64>}, {pipeline_mode = #tpu.pipeline_mode<synchronous>, transform_indices = @transform_2, window_bounds = array<i64: 4, 64>}, {pipeline_mode = #tpu.pipeline_mode<synchronous>, transform_indices = @transform_3, window_bounds = array<i64: 64, 4>}, {pipeline_mode = #tpu.pipeline_mode<synchronous>, transform_indices = @transform_4, window_bounds = array<i64: 64, 128>}, {pipeline_mode = #tpu.pipeline_mode<synchronous>, transform_indices = @transform_5, window_bounds = array<i64: 64, 128>}, {pipeline_mode = #tpu.pipeline_mode<synchronous>, transform_indices = @transform_6, window_bounds = array<i64: 128, 4>}, {pipeline_mode = #tpu.pipeline_mode<synchronous>, transform_indices = @transform_7, window_bounds = array<i64: 128, 256>}, {pipeline_mode = #tpu.pipeline_mode<synchronous>, transform_indices = @transform_8, window_bounds = array<i64: 128, 256>}, {pipeline_mode = #tpu.pipeline_mode<synchronous>, transform_indices = @transform_9, window_bounds = array<i64: 256, 9>}, {pipeline_mode = #tpu.pipeline_mode<synchronous>, transform_indices = @transform_10, window_bounds = array<i64: 288, 32>}, {pipeline_mode = #tpu.pipeline_mode<synchronous>, transform_indices = @transform_11, window_bounds = array<i64: 32, 256>}]} {
    %c0 = arith.constant 0 : index
    %c0_0 = arith.constant 0 : index
    %0 = vector.load %arg1[%c0, %c0_0] : memref<512x4xbf16, #tpu.memory_space<vmem>>, vector<512x4xbf16>
    %1 = vector.extract_strided_slice %0 {offsets = [0, 0], sizes = [128, 4], strides = [1, 1]} : vector<512x4xbf16> to vector<128x4xbf16>
    %2 = arith.extf %1 : vector<128x4xbf16> to vector<128x4xf32>
    %3 = vector.extract_strided_slice %0 {offsets = [128, 0], sizes = [128, 4], strides = [1, 1]} : vector<512x4xbf16> to vector<128x4xbf16>
    %4 = arith.extf %3 : vector<128x4xbf16> to vector<128x4xf32>
    %5 = arith.addf %2, %4 : vector<128x4xf32>
    %6 = vector.extract_strided_slice %0 {offsets = [256, 0], sizes = [128, 4], strides = [1, 1]} : vector<512x4xbf16> to vector<128x4xbf16>
    %7 = arith.extf %6 : vector<128x4xbf16> to vector<128x4xf32>
    %8 = arith.addf %5, %7 : vector<128x4xf32>
    %9 = vector.extract_strided_slice %0 {offsets = [384, 0], sizes = [128, 4], strides = [1, 1]} : vector<512x4xbf16> to vector<128x4xbf16>
    %10 = arith.extf %9 : vector<128x4xbf16> to vector<128x4xf32>
    %11 = arith.addf %8, %10 : vector<128x4xf32>
    %cst = arith.constant 2.500000e-01 : f32
    %12 = vector.broadcast %cst : f32 to vector<128x4xf32>
    %13 = arith.mulf %11, %12 : vector<128x4xf32>
    %c0_1 = arith.constant 0 : index
    %c0_2 = arith.constant 0 : index
    %14 = vector.load %arg3[%c0_1, %c0_2] : memref<4x64xbf16, #tpu.memory_space<vmem>>, vector<4x64xbf16>
    %15 = vector.extract_strided_slice %13 {offsets = [0, 0], sizes = [128, 1], strides = [1, 1]} : vector<128x4xf32> to vector<128x1xf32>
    %16 = vector.extract_strided_slice %14 {offsets = [0, 0], sizes = [1, 64], strides = [1, 1]} : vector<4x64xbf16> to vector<1x64xbf16>
    %17 = arith.extf %16 : vector<1x64xbf16> to vector<1x64xf32>
    %18 = vector.broadcast %15 : vector<128x1xf32> to vector<128x64xf32>
    %19 = vector.broadcast %17 : vector<1x64xf32> to vector<128x64xf32>
    %20 = arith.mulf %18, %19 : vector<128x64xf32>
    %21 = vector.extract_strided_slice %13 {offsets = [0, 1], sizes = [128, 1], strides = [1, 1]} : vector<128x4xf32> to vector<128x1xf32>
    %22 = vector.extract_strided_slice %14 {offsets = [1, 0], sizes = [1, 64], strides = [1, 1]} : vector<4x64xbf16> to vector<1x64xbf16>
    %23 = arith.extf %22 : vector<1x64xbf16> to vector<1x64xf32>
    %24 = vector.broadcast %21 : vector<128x1xf32> to vector<128x64xf32>
    %25 = vector.broadcast %23 : vector<1x64xf32> to vector<128x64xf32>
    %26 = arith.mulf %24, %25 : vector<128x64xf32>
    %27 = arith.addf %20, %26 : vector<128x64xf32>
    %28 = vector.extract_strided_slice %13 {offsets = [0, 2], sizes = [128, 1], strides = [1, 1]} : vector<128x4xf32> to vector<128x1xf32>
    %29 = vector.extract_strided_slice %14 {offsets = [2, 0], sizes = [1, 64], strides = [1, 1]} : vector<4x64xbf16> to vector<1x64xbf16>
    %30 = arith.extf %29 : vector<1x64xbf16> to vector<1x64xf32>
    %31 = vector.broadcast %28 : vector<128x1xf32> to vector<128x64xf32>
    %32 = vector.broadcast %30 : vector<1x64xf32> to vector<128x64xf32>
    %33 = arith.mulf %31, %32 : vector<128x64xf32>
    %34 = arith.addf %27, %33 : vector<128x64xf32>
    %35 = vector.extract_strided_slice %13 {offsets = [0, 3], sizes = [128, 1], strides = [1, 1]} : vector<128x4xf32> to vector<128x1xf32>
    %36 = vector.extract_strided_slice %14 {offsets = [3, 0], sizes = [1, 64], strides = [1, 1]} : vector<4x64xbf16> to vector<1x64xbf16>
    %37 = arith.extf %36 : vector<1x64xbf16> to vector<1x64xf32>
    %38 = vector.broadcast %35 : vector<128x1xf32> to vector<128x64xf32>
    %39 = vector.broadcast %37 : vector<1x64xf32> to vector<128x64xf32>
    %40 = arith.mulf %38, %39 : vector<128x64xf32>
    %41 = arith.addf %34, %40 : vector<128x64xf32>
    %cst_3 = arith.constant dense<0.000000e+00> : vector<64xf32>
    %42 = vector.multi_reduction <add>, %41, %cst_3 [0] : vector<128x64xf32> to vector<64xf32>
    %43 = vector.shape_cast %42 : vector<64xf32> to vector<1x64xf32>
    %cst_4 = arith.constant 1.280000e+02 : f32
    %44 = vector.broadcast %cst_4 : f32 to vector<1x64xf32>
    %45 = arith.divf %43, %44 : vector<1x64xf32>
    %46 = vector.broadcast %45 : vector<1x64xf32> to vector<128x64xf32>
    %47 = arith.subf %41, %46 : vector<128x64xf32>
    %48 = arith.mulf %47, %47 : vector<128x64xf32>
    %cst_5 = arith.constant dense<0.000000e+00> : vector<64xf32>
    %49 = vector.multi_reduction <add>, %48, %cst_5 [0] : vector<128x64xf32> to vector<64xf32>
    %50 = vector.shape_cast %49 : vector<64xf32> to vector<1x64xf32>
    %cst_6 = arith.constant 1.280000e+02 : f32
    %51 = vector.broadcast %cst_6 : f32 to vector<1x64xf32>
    %52 = arith.divf %50, %51 : vector<1x64xf32>
    %53 = vector.broadcast %45 : vector<1x64xf32> to vector<128x64xf32>
    %54 = arith.subf %41, %53 : vector<128x64xf32>
    %cst_7 = arith.constant 9.99999974E-6 : f32
    %55 = vector.broadcast %cst_7 : f32 to vector<1x64xf32>
    %56 = arith.addf %52, %55 : vector<1x64xf32>
    %57 = math.rsqrt %56 : vector<1x64xf32>
    %58 = vector.broadcast %57 : vector<1x64xf32> to vector<128x64xf32>
    %59 = arith.mulf %54, %58 : vector<128x64xf32>
    %cst_8 = arith.constant 0.000000e+00 : f32
    %60 = vector.broadcast %cst_8 : f32 to vector<128x64xf32>
    %61 = arith.maximumf %59, %60 : vector<128x64xf32>
    %c0_9 = arith.constant 0 : index
    %c0_10 = arith.constant 0 : index
    %62 = vector.load %arg4[%c0_9, %c0_10] : memref<64x4xbf16, #tpu.memory_space<vmem>>, vector<64x4xbf16>
    %63 = arith.truncf %61 : vector<128x64xf32> to vector<128x64xbf16>
    %cst_11 = arith.constant dense<0.000000e+00> : vector<128x4xf32>
    %64 = tpu.matmul %63, %62, %cst_11 {dimension_numbers = #tpu.dot_dimension_numbers<[1], [0], [0], [1], [0, 0, 1, 1], [], []>} : vector<128x64xbf16>, vector<64x4xbf16>, vector<128x4xf32> -> vector<128x4xf32>
    %c0_12 = arith.constant 0 : index
    %c0_13 = arith.constant 0 : index
    %65 = vector.load %arg2[%c0_12, %c0_13] : memref<4x64xbf16, #tpu.memory_space<vmem>>, vector<4x64xbf16>
    %66 = vector.extract_strided_slice %0 {offsets = [0, 0], sizes = [512, 1], strides = [1, 1]} : vector<512x4xbf16> to vector<512x1xbf16>
    %67 = arith.extf %66 : vector<512x1xbf16> to vector<512x1xf32>
    %68 = vector.extract_strided_slice %65 {offsets = [0, 0], sizes = [1, 64], strides = [1, 1]} : vector<4x64xbf16> to vector<1x64xbf16>
    %69 = arith.extf %68 : vector<1x64xbf16> to vector<1x64xf32>
    %70 = vector.broadcast %67 : vector<512x1xf32> to vector<512x64xf32>
    %71 = vector.broadcast %69 : vector<1x64xf32> to vector<512x64xf32>
    %72 = arith.mulf %70, %71 : vector<512x64xf32>
    %73 = vector.extract_strided_slice %0 {offsets = [0, 1], sizes = [512, 1], strides = [1, 1]} : vector<512x4xbf16> to vector<512x1xbf16>
    %74 = arith.extf %73 : vector<512x1xbf16> to vector<512x1xf32>
    %75 = vector.extract_strided_slice %65 {offsets = [1, 0], sizes = [1, 64], strides = [1, 1]} : vector<4x64xbf16> to vector<1x64xbf16>
    %76 = arith.extf %75 : vector<1x64xbf16> to vector<1x64xf32>
    %77 = vector.broadcast %74 : vector<512x1xf32> to vector<512x64xf32>
    %78 = vector.broadcast %76 : vector<1x64xf32> to vector<512x64xf32>
    %79 = arith.mulf %77, %78 : vector<512x64xf32>
    %80 = arith.addf %72, %79 : vector<512x64xf32>
    %81 = vector.extract_strided_slice %0 {offsets = [0, 2], sizes = [512, 1], strides = [1, 1]} : vector<512x4xbf16> to vector<512x1xbf16>
    %82 = arith.extf %81 : vector<512x1xbf16> to vector<512x1xf32>
    %83 = vector.extract_strided_slice %65 {offsets = [2, 0], sizes = [1, 64], strides = [1, 1]} : vector<4x64xbf16> to vector<1x64xbf16>
    %84 = arith.extf %83 : vector<1x64xbf16> to vector<1x64xf32>
    %85 = vector.broadcast %82 : vector<512x1xf32> to vector<512x64xf32>
    %86 = vector.broadcast %84 : vector<1x64xf32> to vector<512x64xf32>
    %87 = arith.mulf %85, %86 : vector<512x64xf32>
    %88 = arith.addf %80, %87 : vector<512x64xf32>
    %89 = vector.extract_strided_slice %0 {offsets = [0, 3], sizes = [512, 1], strides = [1, 1]} : vector<512x4xbf16> to vector<512x1xbf16>
    %90 = arith.extf %89 : vector<512x1xbf16> to vector<512x1xf32>
    %91 = vector.extract_strided_slice %65 {offsets = [3, 0], sizes = [1, 64], strides = [1, 1]} : vector<4x64xbf16> to vector<1x64xbf16>
    %92 = arith.extf %91 : vector<1x64xbf16> to vector<1x64xf32>
    %93 = vector.broadcast %90 : vector<512x1xf32> to vector<512x64xf32>
    %94 = vector.broadcast %92 : vector<1x64xf32> to vector<512x64xf32>
    %95 = arith.mulf %93, %94 : vector<512x64xf32>
    %96 = arith.addf %88, %95 : vector<512x64xf32>
    %97 = vector.extract_strided_slice %96 {offsets = [0, 0], sizes = [128, 64], strides = [1, 1]} : vector<512x64xf32> to vector<128x64xf32>
    %98 = vector.extract_strided_slice %64 {offsets = [0, 0], sizes = [128, 1], strides = [1, 1]} : vector<128x4xf32> to vector<128x1xf32>
    %99 = vector.broadcast %98 : vector<128x1xf32> to vector<128x64xf32>
    %100 = arith.mulf %97, %99 : vector<128x64xf32>
    %101 = vector.extract_strided_slice %96 {offsets = [128, 0], sizes = [128, 64], strides = [1, 1]} : vector<512x64xf32> to vector<128x64xf32>
    %102 = vector.extract_strided_slice %64 {offsets = [0, 1], sizes = [128, 1], strides = [1, 1]} : vector<128x4xf32> to vector<128x1xf32>
    %103 = vector.broadcast %102 : vector<128x1xf32> to vector<128x64xf32>
    %104 = arith.mulf %101, %103 : vector<128x64xf32>
    %105 = arith.addf %100, %104 : vector<128x64xf32>
    %106 = vector.extract_strided_slice %96 {offsets = [256, 0], sizes = [128, 64], strides = [1, 1]} : vector<512x64xf32> to vector<128x64xf32>
    %107 = vector.extract_strided_slice %64 {offsets = [0, 2], sizes = [128, 1], strides = [1, 1]} : vector<128x4xf32> to vector<128x1xf32>
    %108 = vector.broadcast %107 : vector<128x1xf32> to vector<128x64xf32>
    %109 = arith.mulf %106, %108 : vector<128x64xf32>
    %110 = arith.addf %105, %109 : vector<128x64xf32>
    %111 = vector.extract_strided_slice %96 {offsets = [384, 0], sizes = [128, 64], strides = [1, 1]} : vector<512x64xf32> to vector<128x64xf32>
    %112 = vector.extract_strided_slice %64 {offsets = [0, 3], sizes = [128, 1], strides = [1, 1]} : vector<128x4xf32> to vector<128x1xf32>
    %113 = vector.broadcast %112 : vector<128x1xf32> to vector<128x64xf32>
    %114 = arith.mulf %111, %113 : vector<128x64xf32>
    %115 = arith.addf %110, %114 : vector<128x64xf32>
    %116 = vector.extract_strided_slice %115 {offsets = [0, 0], sizes = [32, 64], strides = [1, 1]} : vector<128x64xf32> to vector<32x64xf32>
    %117 = vector.extract_strided_slice %115 {offsets = [32, 0], sizes = [32, 64], strides = [1, 1]} : vector<128x64xf32> to vector<32x64xf32>
    %118 = arith.addf %116, %117 : vector<32x64xf32>
    %119 = vector.extract_strided_slice %115 {offsets = [64, 0], sizes = [32, 64], strides = [1, 1]} : vector<128x64xf32> to vector<32x64xf32>
    %120 = arith.addf %118, %119 : vector<32x64xf32>
    %121 = vector.extract_strided_slice %115 {offsets = [96, 0], sizes = [32, 64], strides = [1, 1]} : vector<128x64xf32> to vector<32x64xf32>
    %122 = arith.addf %120, %121 : vector<32x64xf32>
    %cst_14 = arith.constant 2.500000e-01 : f32
    %123 = vector.broadcast %cst_14 : f32 to vector<32x64xf32>
    %124 = arith.mulf %122, %123 : vector<32x64xf32>
    %c0_15 = arith.constant 0 : index
    %c0_16 = arith.constant 0 : index
    %125 = vector.load %arg6[%c0_15, %c0_16] : memref<64x128xbf16, #tpu.memory_space<vmem>>, vector<64x128xbf16>
    %126 = arith.truncf %124 : vector<32x64xf32> to vector<32x64xbf16>
    %cst_17 = arith.constant dense<0.000000e+00> : vector<32x128xf32>
    %127 = tpu.matmul %126, %125, %cst_17 {dimension_numbers = #tpu.dot_dimension_numbers<[1], [0], [0], [1], [0, 0, 1, 1], [], []>} : vector<32x64xbf16>, vector<64x128xbf16>, vector<32x128xf32> -> vector<32x128xf32>
    %cst_18 = arith.constant dense<0.000000e+00> : vector<128xf32>
    %128 = vector.multi_reduction <add>, %127, %cst_18 [0] : vector<32x128xf32> to vector<128xf32>
    %129 = vector.shape_cast %128 : vector<128xf32> to vector<1x128xf32>
    %cst_19 = arith.constant 3.200000e+01 : f32
    %130 = vector.broadcast %cst_19 : f32 to vector<1x128xf32>
    %131 = arith.divf %129, %130 : vector<1x128xf32>
    %132 = vector.broadcast %131 : vector<1x128xf32> to vector<32x128xf32>
    %133 = arith.subf %127, %132 : vector<32x128xf32>
    %134 = arith.mulf %133, %133 : vector<32x128xf32>
    %cst_20 = arith.constant dense<0.000000e+00> : vector<128xf32>
    %135 = vector.multi_reduction <add>, %134, %cst_20 [0] : vector<32x128xf32> to vector<128xf32>
    %136 = vector.shape_cast %135 : vector<128xf32> to vector<1x128xf32>
    %cst_21 = arith.constant 3.200000e+01 : f32
    %137 = vector.broadcast %cst_21 : f32 to vector<1x128xf32>
    %138 = arith.divf %136, %137 : vector<1x128xf32>
    %139 = vector.broadcast %131 : vector<1x128xf32> to vector<32x128xf32>
    %140 = arith.subf %127, %139 : vector<32x128xf32>
    %cst_22 = arith.constant 9.99999974E-6 : f32
    %141 = vector.broadcast %cst_22 : f32 to vector<1x128xf32>
    %142 = arith.addf %138, %141 : vector<1x128xf32>
    %143 = math.rsqrt %142 : vector<1x128xf32>
    %144 = vector.broadcast %143 : vector<1x128xf32> to vector<32x128xf32>
    %145 = arith.mulf %140, %144 : vector<32x128xf32>
    %cst_23 = arith.constant 0.000000e+00 : f32
    %146 = vector.broadcast %cst_23 : f32 to vector<32x128xf32>
    %147 = arith.maximumf %145, %146 : vector<32x128xf32>
    %c0_24 = arith.constant 0 : index
    %c0_25 = arith.constant 0 : index
    %148 = vector.load %arg7[%c0_24, %c0_25] : memref<128x4xbf16, #tpu.memory_space<vmem>>, vector<128x4xbf16>
    %149 = arith.truncf %147 : vector<32x128xf32> to vector<32x128xbf16>
    %cst_26 = arith.constant dense<0.000000e+00> : vector<32x4xf32>
    %150 = tpu.matmul %149, %148, %cst_26 {dimension_numbers = #tpu.dot_dimension_numbers<[1], [0], [0], [1], [0, 0, 1, 1], [], []>} : vector<32x128xbf16>, vector<128x4xbf16>, vector<32x4xf32> -> vector<32x4xf32>
    %c0_27 = arith.constant 0 : index
    %c0_28 = arith.constant 0 : index
    %151 = vector.load %arg5[%c0_27, %c0_28] : memref<64x128xbf16, #tpu.memory_space<vmem>>, vector<64x128xbf16>
    %152 = arith.truncf %115 : vector<128x64xf32> to vector<128x64xbf16>
    %cst_29 = arith.constant dense<0.000000e+00> : vector<128x128xf32>
    %153 = tpu.matmul %152, %151, %cst_29 {dimension_numbers = #tpu.dot_dimension_numbers<[1], [0], [0], [1], [0, 0, 1, 1], [], []>} : vector<128x64xbf16>, vector<64x128xbf16>, vector<128x128xf32> -> vector<128x128xf32>
    %154 = vector.extract_strided_slice %153 {offsets = [0, 0], sizes = [32, 128], strides = [1, 1]} : vector<128x128xf32> to vector<32x128xf32>
    %155 = vector.extract_strided_slice %150 {offsets = [0, 0], sizes = [32, 1], strides = [1, 1]} : vector<32x4xf32> to vector<32x1xf32>
    %156 = vector.broadcast %155 : vector<32x1xf32> to vector<32x128xf32>
    %157 = arith.mulf %154, %156 : vector<32x128xf32>
    %158 = vector.extract_strided_slice %153 {offsets = [32, 0], sizes = [32, 128], strides = [1, 1]} : vector<128x128xf32> to vector<32x128xf32>
    %159 = vector.extract_strided_slice %150 {offsets = [0, 1], sizes = [32, 1], strides = [1, 1]} : vector<32x4xf32> to vector<32x1xf32>
    %160 = vector.broadcast %159 : vector<32x1xf32> to vector<32x128xf32>
    %161 = arith.mulf %158, %160 : vector<32x128xf32>
    %162 = arith.addf %157, %161 : vector<32x128xf32>
    %163 = vector.extract_strided_slice %153 {offsets = [64, 0], sizes = [32, 128], strides = [1, 1]} : vector<128x128xf32> to vector<32x128xf32>
    %164 = vector.extract_strided_slice %150 {offsets = [0, 2], sizes = [32, 1], strides = [1, 1]} : vector<32x4xf32> to vector<32x1xf32>
    %165 = vector.broadcast %164 : vector<32x1xf32> to vector<32x128xf32>
    %166 = arith.mulf %163, %165 : vector<32x128xf32>
    %167 = arith.addf %162, %166 : vector<32x128xf32>
    %168 = vector.extract_strided_slice %153 {offsets = [96, 0], sizes = [32, 128], strides = [1, 1]} : vector<128x128xf32> to vector<32x128xf32>
    %169 = vector.extract_strided_slice %150 {offsets = [0, 3], sizes = [32, 1], strides = [1, 1]} : vector<32x4xf32> to vector<32x1xf32>
    %170 = vector.broadcast %169 : vector<32x1xf32> to vector<32x128xf32>
    %171 = arith.mulf %168, %170 : vector<32x128xf32>
    %172 = arith.addf %167, %171 : vector<32x128xf32>
    %c0_30 = arith.constant 0 : index
    %c0_31 = arith.constant 0 : index
    %173 = vector.load %arg9[%c0_30, %c0_31] : memref<128x256xbf16, #tpu.memory_space<vmem>>, vector<128x256xbf16>
    %174 = arith.truncf %172 : vector<32x128xf32> to vector<32x128xbf16>
    %cst_32 = arith.constant dense<0.000000e+00> : vector<32x256xf32>
    %175 = tpu.matmul %174, %173, %cst_32 {dimension_numbers = #tpu.dot_dimension_numbers<[1], [0], [0], [1], [0, 0, 1, 1], [], []>} : vector<32x128xbf16>, vector<128x256xbf16>, vector<32x256xf32> -> vector<32x256xf32>
    %cst_33 = arith.constant dense<0.000000e+00> : vector<256xf32>
    %176 = vector.multi_reduction <add>, %175, %cst_33 [0] : vector<32x256xf32> to vector<256xf32>
    %177 = vector.shape_cast %176 : vector<256xf32> to vector<1x256xf32>
    %cst_34 = arith.constant 3.200000e+01 : f32
    %178 = vector.broadcast %cst_34 : f32 to vector<1x256xf32>
    %179 = arith.divf %177, %178 : vector<1x256xf32>
    %180 = vector.broadcast %179 : vector<1x256xf32> to vector<32x256xf32>
    %181 = arith.subf %175, %180 : vector<32x256xf32>
    %182 = arith.mulf %181, %181 : vector<32x256xf32>
    %cst_35 = arith.constant dense<0.000000e+00> : vector<256xf32>
    %183 = vector.multi_reduction <add>, %182, %cst_35 [0] : vector<32x256xf32> to vector<256xf32>
    %184 = vector.shape_cast %183 : vector<256xf32> to vector<1x256xf32>
    %cst_36 = arith.constant 3.200000e+01 : f32
    %185 = vector.broadcast %cst_36 : f32 to vector<1x256xf32>
    %186 = arith.divf %184, %185 : vector<1x256xf32>
    %187 = vector.broadcast %179 : vector<1x256xf32> to vector<32x256xf32>
    %188 = arith.subf %175, %187 : vector<32x256xf32>
    %cst_37 = arith.constant 9.99999974E-6 : f32
    %189 = vector.broadcast %cst_37 : f32 to vector<1x256xf32>
    %190 = arith.addf %186, %189 : vector<1x256xf32>
    %191 = math.rsqrt %190 : vector<1x256xf32>
    %192 = vector.broadcast %191 : vector<1x256xf32> to vector<32x256xf32>
    %193 = arith.mulf %188, %192 : vector<32x256xf32>
    %cst_38 = arith.constant 0.000000e+00 : f32
    %194 = vector.broadcast %cst_38 : f32 to vector<32x256xf32>
    %195 = arith.maximumf %193, %194 : vector<32x256xf32>
    %c0_39 = arith.constant 0 : index
    %c0_40 = arith.constant 0 : index
    %196 = vector.load %arg10[%c0_39, %c0_40] : memref<256x9xbf16, #tpu.memory_space<vmem>>, vector<256x9xbf16>
    %197 = arith.truncf %195 : vector<32x256xf32> to vector<32x256xbf16>
    %cst_41 = arith.constant dense<0.000000e+00> : vector<32x9xf32>
    %198 = tpu.matmul %197, %196, %cst_41 {dimension_numbers = #tpu.dot_dimension_numbers<[1], [0], [0], [1], [0, 0, 1, 1], [], []>} : vector<32x256xbf16>, vector<256x9xbf16>, vector<32x9xf32> -> vector<32x9xf32>
    %c0_42 = arith.constant 0 : index
    %c0_43 = arith.constant 0 : index
    %199 = vector.load %arg8[%c0_42, %c0_43] : memref<128x256xbf16, #tpu.memory_space<vmem>>, vector<128x256xbf16>
    %200 = arith.truncf %172 : vector<32x128xf32> to vector<32x128xbf16>
    %cst_44 = arith.constant dense<0.000000e+00> : vector<32x256xf32>
    %201 = tpu.matmul %200, %199, %cst_44 {dimension_numbers = #tpu.dot_dimension_numbers<[1], [0], [0], [1], [0, 0, 1, 1], [], []>} : vector<32x128xbf16>, vector<128x256xbf16>, vector<32x256xf32> -> vector<32x256xf32>
    %c0_45 = arith.constant 0 : index
    %c0_46 = arith.constant 0 : index
    %202 = vector.load %arg11[%c0_45, %c0_46] : memref<288x32xf32, #tpu.memory_space<vmem>>, vector<288x32xf32>
    %203 = vector.extract_strided_slice %198 {offsets = [0, 0], sizes = [32, 1], strides = [1, 1]} : vector<32x9xf32> to vector<32x1xf32>
    %204 = vector.extract_strided_slice %202 {offsets = [0, 0], sizes = [32, 32], strides = [1, 1]} : vector<288x32xf32> to vector<32x32xf32>
    %205 = vector.broadcast %203 : vector<32x1xf32> to vector<32x32xf32>
    %206 = arith.mulf %205, %204 : vector<32x32xf32>
    %207 = vector.extract_strided_slice %198 {offsets = [0, 1], sizes = [32, 1], strides = [1, 1]} : vector<32x9xf32> to vector<32x1xf32>
    %208 = vector.extract_strided_slice %202 {offsets = [32, 0], sizes = [32, 32], strides = [1, 1]} : vector<288x32xf32> to vector<32x32xf32>
    %209 = vector.broadcast %207 : vector<32x1xf32> to vector<32x32xf32>
    %210 = arith.mulf %209, %208 : vector<32x32xf32>
    %211 = arith.addf %206, %210 : vector<32x32xf32>
    %212 = vector.extract_strided_slice %198 {offsets = [0, 2], sizes = [32, 1], strides = [1, 1]} : vector<32x9xf32> to vector<32x1xf32>
    %213 = vector.extract_strided_slice %202 {offsets = [64, 0], sizes = [32, 32], strides = [1, 1]} : vector<288x32xf32> to vector<32x32xf32>
    %214 = vector.broadcast %212 : vector<32x1xf32> to vector<32x32xf32>
    %215 = arith.mulf %214, %213 : vector<32x32xf32>
    %216 = arith.addf %211, %215 : vector<32x32xf32>
    %217 = vector.extract_strided_slice %198 {offsets = [0, 3], sizes = [32, 1], strides = [1, 1]} : vector<32x9xf32> to vector<32x1xf32>
    %218 = vector.extract_strided_slice %202 {offsets = [96, 0], sizes = [32, 32], strides = [1, 1]} : vector<288x32xf32> to vector<32x32xf32>
    %219 = vector.broadcast %217 : vector<32x1xf32> to vector<32x32xf32>
    %220 = arith.mulf %219, %218 : vector<32x32xf32>
    %221 = arith.addf %216, %220 : vector<32x32xf32>
    %222 = vector.extract_strided_slice %198 {offsets = [0, 4], sizes = [32, 1], strides = [1, 1]} : vector<32x9xf32> to vector<32x1xf32>
    %223 = vector.extract_strided_slice %202 {offsets = [128, 0], sizes = [32, 32], strides = [1, 1]} : vector<288x32xf32> to vector<32x32xf32>
    %224 = vector.broadcast %222 : vector<32x1xf32> to vector<32x32xf32>
    %225 = arith.mulf %224, %223 : vector<32x32xf32>
    %226 = arith.addf %221, %225 : vector<32x32xf32>
    %227 = vector.extract_strided_slice %198 {offsets = [0, 5], sizes = [32, 1], strides = [1, 1]} : vector<32x9xf32> to vector<32x1xf32>
    %228 = vector.extract_strided_slice %202 {offsets = [160, 0], sizes = [32, 32], strides = [1, 1]} : vector<288x32xf32> to vector<32x32xf32>
    %229 = vector.broadcast %227 : vector<32x1xf32> to vector<32x32xf32>
    %230 = arith.mulf %229, %228 : vector<32x32xf32>
    %231 = arith.addf %226, %230 : vector<32x32xf32>
    %232 = vector.extract_strided_slice %198 {offsets = [0, 6], sizes = [32, 1], strides = [1, 1]} : vector<32x9xf32> to vector<32x1xf32>
    %233 = vector.extract_strided_slice %202 {offsets = [192, 0], sizes = [32, 32], strides = [1, 1]} : vector<288x32xf32> to vector<32x32xf32>
    %234 = vector.broadcast %232 : vector<32x1xf32> to vector<32x32xf32>
    %235 = arith.mulf %234, %233 : vector<32x32xf32>
    %236 = arith.addf %231, %235 : vector<32x32xf32>
    %237 = vector.extract_strided_slice %198 {offsets = [0, 7], sizes = [32, 1], strides = [1, 1]} : vector<32x9xf32> to vector<32x1xf32>
    %238 = vector.extract_strided_slice %202 {offsets = [224, 0], sizes = [32, 32], strides = [1, 1]} : vector<288x32xf32> to vector<32x32xf32>
    %239 = vector.broadcast %237 : vector<32x1xf32> to vector<32x32xf32>
    %240 = arith.mulf %239, %238 : vector<32x32xf32>
    %241 = arith.addf %236, %240 : vector<32x32xf32>
    %242 = vector.extract_strided_slice %198 {offsets = [0, 8], sizes = [32, 1], strides = [1, 1]} : vector<32x9xf32> to vector<32x1xf32>
    %243 = vector.extract_strided_slice %202 {offsets = [256, 0], sizes = [32, 32], strides = [1, 1]} : vector<288x32xf32> to vector<32x32xf32>
    %244 = vector.broadcast %242 : vector<32x1xf32> to vector<32x32xf32>
    %245 = arith.mulf %244, %243 : vector<32x32xf32>
    %246 = arith.addf %241, %245 : vector<32x32xf32>
    %cst_47 = arith.constant dense<0.000000e+00> : vector<32x256xf32>
    %247 = tpu.matmul %246, %201, %cst_47 {dimension_numbers = #tpu.dot_dimension_numbers<[1], [0], [0], [1], [0, 0, 1, 1], [], []>} : vector<32x32xf32>, vector<32x256xf32>, vector<32x256xf32> -> vector<32x256xf32>
    %c0_48 = arith.constant 0 : index
    %c0_49 = arith.constant 0 : index
    %248 = vector.load %arg12[%c0_48, %c0_49] : memref<32x256xf32, #tpu.memory_space<vmem>>, vector<32x256xf32>
    tpu.vector_store %arg12[%c0_48, %c0_49], %247 {strides = array<i32>} : memref<32x256xf32, #tpu.memory_space<vmem>>, vector<32x256xf32>,
    return
  }
  func.func @transform_0(%arg0: i32) -> (i32, i32) {
    %c0_i32 = arith.constant 0 : i32
    %c0_i32_0 = arith.constant 0 : i32
    %c0_i32_1 = arith.constant 0 : i32
    return %c0_i32, %c0_i32_0 : i32, i32
  }
  func.func @transform_1(%arg0: i32) -> (i32, i32) {
    %c0_i32 = arith.constant 0 : i32
    %c0_i32_0 = arith.constant 0 : i32
    %c0_i32_1 = arith.constant 0 : i32
    return %c0_i32, %c0_i32_0 : i32, i32
  }
  func.func @transform_2(%arg0: i32) -> (i32, i32) {
    %c0_i32 = arith.constant 0 : i32
    %c0_i32_0 = arith.constant 0 : i32
    %c0_i32_1 = arith.constant 0 : i32
    return %c0_i32, %c0_i32_0 : i32, i32
  }
  func.func @transform_3(%arg0: i32) -> (i32, i32) {
    %c0_i32 = arith.constant 0 : i32
    %c0_i32_0 = arith.constant 0 : i32
    %c0_i32_1 = arith.constant 0 : i32
    return %c0_i32, %c0_i32_0 : i32, i32
  }
  func.func @transform_4(%arg0: i32) -> (i32, i32) {
    %c0_i32 = arith.constant 0 : i32
    %c0_i32_0 = arith.constant 0 : i32
    %c0_i32_1 = arith.constant 0 : i32
    return %c0_i32, %c0_i32_0 : i32, i32
  }
  func.func @transform_5(%arg0: i32) -> (i32, i32) {
    %c0_i32 = arith.constant 0 : i32
    %c0_i32_0 = arith.constant 0 : i32
    %c0_i32_1 = arith.constant 0 : i32
    return %c0_i32, %c0_i32_0 : i32, i32
  }
  func.func @transform_6(%arg0: i32) -> (i32, i32) {
    %c0_i32 = arith.constant 0 : i32
    %c0_i32_0 = arith.constant 0 : i32
    %c0_i32_1 = arith.constant 0 : i32
    return %c0_i32, %c0_i32_0 : i32, i32
  }
  func.func @transform_7(%arg0: i32) -> (i32, i32) {
    %c0_i32 = arith.constant 0 : i32
    %c0_i32_0 = arith.constant 0 : i32
    %c0_i32_1 = arith.constant 0 : i32
    return %c0_i32, %c0_i32_0 : i32, i32
  }
  func.func @transform_8(%arg0: i32) -> (i32, i32) {
    %c0_i32 = arith.constant 0 : i32
    %c0_i32_0 = arith.constant 0 : i32
    %c0_i32_1 = arith.constant 0 : i32
    return %c0_i32, %c0_i32_0 : i32, i32
  }
  func.func @transform_9(%arg0: i32) -> (i32, i32) {
    %c0_i32 = arith.constant 0 : i32
    %c0_i32_0 = arith.constant 0 : i32
    %c0_i32_1 = arith.constant 0 : i32
    return %c0_i32, %c0_i32_0 : i32, i32
  }
  func.func @transform_10(%arg0: i32) -> (i32, i32) {
    %c0_i32 = arith.constant 0 : i32
    %c0_i32_0 = arith.constant 0 : i32
    %c0_i32_1 = arith.constant 0 : i32
    return %c0_i32, %c0_i32_0 : i32, i32
  }
  func.func @transform_11(%arg0: i32) -> (i32, i32) {
    %c0_i32 = arith.constant 0 : i32
    %c0_i32_0 = arith.constant 0 : i32
    %c0_i32_1 = arith.constant 0 : i32
    return %c0_i32, %c0_i32_0 : i32, i32
  }
}

module attributes {stable_mosaic.version = 11 : i64} {
  func.func @_fc_kernel(%arg0: i32, %arg1: memref<2x4096xbf16, #tpu.memory_space<vmem>>, %arg2: memref<4096x10xbf16, #tpu.memory_space<vmem>>, %arg3: memref<1x10xf32, #tpu.memory_space<vmem>>, %arg4: memref<2x10xf32, #tpu.memory_space<vmem>>) attributes {dimension_semantics = [#tpu.dimension_semantics<arbitrary>], iteration_bounds = array<i64: 1>, scalar_prefetch = 0 : i64, scratch_operands = 0 : i64, tpu.core_type = #tpu.core_type<tc>, window_params = [{pipeline_mode = #tpu.pipeline_mode<synchronous>, transform_indices = @transform_0, window_bounds = array<i64: 2, 4096>}, {pipeline_mode = #tpu.pipeline_mode<synchronous>, transform_indices = @transform_1, window_bounds = array<i64: 4096, 10>}, {pipeline_mode = #tpu.pipeline_mode<synchronous>, transform_indices = @transform_2, window_bounds = array<i64: 1, 10>}, {pipeline_mode = #tpu.pipeline_mode<synchronous>, transform_indices = @transform_3, window_bounds = array<i64: 2, 10>}]} {
    %c0 = arith.constant 0 : index
    %c0_0 = arith.constant 0 : index
    %0 = vector.load %arg1[%c0, %c0_0] : memref<2x4096xbf16, #tpu.memory_space<vmem>>, vector<2x4096xbf16>
    %c0_1 = arith.constant 0 : index
    %c0_2 = arith.constant 0 : index
    %1 = vector.load %arg2[%c0_1, %c0_2] : memref<4096x10xbf16, #tpu.memory_space<vmem>>, vector<4096x10xbf16>
    %cst = arith.constant dense<0.000000e+00> : vector<2x10xf32>
    %2 = tpu.matmul %0, %1, %cst {dimension_numbers = #tpu.dot_dimension_numbers<[1], [0], [0], [1], [0, 0, 1, 1], [], []>} : vector<2x4096xbf16>, vector<4096x10xbf16>, vector<2x10xf32> -> vector<2x10xf32>
    %c0_3 = arith.constant 0 : index
    %c0_4 = arith.constant 0 : index
    %3 = vector.load %arg3[%c0_3, %c0_4] : memref<1x10xf32, #tpu.memory_space<vmem>>, vector<1x10xf32>
    %4 = vector.broadcast %3 : vector<1x10xf32> to vector<2x10xf32>
    %5 = arith.addf %2, %4 : vector<2x10xf32>
    %c0_5 = arith.constant 0 : index
    %c0_6 = arith.constant 0 : index
    %6 = vector.load %arg4[%c0_5, %c0_6] : memref<2x10xf32, #tpu.memory_space<vmem>>, vector<2x10xf32>
    tpu.vector_store %arg4[%c0_5, %c0_6], %5 {strides = array<i32>} : memref<2x10xf32, #tpu.memory_space<vmem>>, vector<2x10xf32>,
    return
  }
  func.func @transform_0(%arg0: i32) -> (i32, i32) {
    %c0_i32 = arith.constant 0 : i32
    %c0_i32_0 = arith.constant 0 : i32
    %c0_i32_1 = arith.constant 0 : i32
    return %c0_i32, %c0_i32_0 : i32, i32
  }
  func.func @transform_1(%arg0: i32) -> (i32, i32) {
    %c0_i32 = arith.constant 0 : i32
    %c0_i32_0 = arith.constant 0 : i32
    %c0_i32_1 = arith.constant 0 : i32
    return %c0_i32, %c0_i32_0 : i32, i32
  }
  func.func @transform_2(%arg0: i32) -> (i32, i32) {
    %c0_i32 = arith.constant 0 : i32
    %c0_i32_0 = arith.constant 0 : i32
    %c0_i32_1 = arith.constant 0 : i32
    return %c0_i32, %c0_i32_0 : i32, i32
  }
  func.func @transform_3(%arg0: i32) -> (i32, i32) {
    %c0_i32 = arith.constant 0 : i32
    %c0_i32_0 = arith.constant 0 : i32
    %c0_i32_1 = arith.constant 0 : i32
    return %c0_i32, %c0_i32_0 : i32, i32
  }
}

</mosaic_0001>

<llo_original>
// kernel: i2d_forward.3
$region0: #{i2d_forward.3}
  #allocation0 [shape = 'u32[]', space=smem, size = 0x4, offset = 0x4, fixed_abs, tag = 'smem constant byte address 0x4 - core index']
  #allocation1 [shape = 'u32[144,128]{1,0:T(1,128)}', space=vmem, size = 0x12000, scoped, tag = 'internal scratch']
  %s0 = inlined_call_operand.vmem [shape: bf16[2,4096], index: 0, kind: input, shape index: {}]
  %s1 = inlined_call_operand.vmem [shape: bf16[4096,10], index: 1, kind: input, shape index: {}]
  %s2 = inlined_call_operand.vmem [shape: f32[1,10], index: 2, kind: input, shape index: {}]
  %s3 = inlined_call_operand.hbm [shape: f32[2,10], index: 3, kind: output, shape index: {}]
  %s4 = sld [smem:[#allocation0]]
  $region22: #{i2d_forward.3} parent=0
    _
  %s6 = ssub.s32 1, %s4
  %s7 = scalar_select 0, %s6, %s4
  $region1: #{i2d_forward.3} parent=0
    #allocation2 [shape = 'u8[1024]{0}', space=vmem, size = 0x400, scoped, tag = 'output window, operand 0, single buffered']
    #allocation3 [shape = 's32[1]{0}', space=sflag, size = 0x4, scoped, tag = 'scoped memory for i2d_forward.3']
    %8 = vsyncpa [#allocation3], 0
    // Predicated region
    $region2: #{i2d_forward.3} parent=1 // pred_check
      _
    $region3: #{i2d_forward.3} parent=1 // pred_check_branch
      %10 = sbr.rel (0) target = $region5
    $region4: #{i2d_forward.3} parent=1 // pred_region
      _
    $region5: #{i2d_forward.3} parent=1 // pred_fallthru
      _
    // Predicated region
    $region6: #{i2d_forward.3} parent=1 // pred_check
      _
    $region7: #{i2d_forward.3} parent=1 // pred_check_branch
      %12 = sbr.rel (0) target = $region9
    $region8: #{i2d_forward.3} parent=1 // pred_region
      _
    $region9: #{i2d_forward.3} parent=1 // pred_fallthru
      _
    // Predicated region
    $region10: #{i2d_forward.3} parent=1 // pred_check
      _
    $region11: #{i2d_forward.3} parent=1 // pred_check_branch
      %14 = sbr.rel (0) target = $region13
    $region12: #{i2d_forward.3} parent=1 // pred_region
      _
    $region13: #{i2d_forward.3} parent=1 // pred_fallthru
      _
    %v16 = vld [vmem:[%s0] sm:$0xff]
    %v17 = vld [vmem:[%s0 + $0x8] sm:$0xff]
    %v18 = vld [vmem:[%s0 + $0x10] sm:$0xff]
    %v19 = vld [vmem:[%s0 + $0x18] sm:$0xff]
    %v20 = vld [vmem:[%s1] sm:$0xf]
    %v21 = vld [vmem:[%s1 + $0x4] sm:$0xf]
    %v22 = vld [vmem:[%s1 + $0x8] sm:$0xf]
    %v23 = vld [vmem:[%s1 + $0xc] sm:$0xf]
    %v24 = vld [vmem:[%s1 + $0x10] sm:$0xf]
    %v25 = vld [vmem:[%s1 + $0x14] sm:$0xf]
    %v26 = vld [vmem:[%s1 + $0x18] sm:$0xf]
    %v27 = vld [vmem:[%s1 + $0x1c] sm:$0xf]
    %v28 = vld [vmem:[%s1 + $0x20] sm:$0xf]
    %v29 = vld [vmem:[%s1 + $0x24] sm:$0xf]
    %v30 = vld [vmem:[%s1 + $0x28] sm:$0xf]
    %v31 = vld [vmem:[%s1 + $0x2c] sm:$0xf]
    %v32 = vld [vmem:[%s1 + $0x30] sm:$0xf]
    %v33 = vld [vmem:[%s1 + $0x34] sm:$0xf]
    %v34 = vld [vmem:[%s1 + $0x38] sm:$0xf]
    %v35 = vld [vmem:[%s1 + $0x3c] sm:$0xf]
    %v36 = vld [vmem:[%s1 + $0x40] sm:$0xf]
    %v37 = vld [vmem:[%s1 + $0x44] sm:$0xf]
    %v38 = vld [vmem:[%s1 + $0x48] sm:$0xf]
    %v39 = vld [vmem:[%s1 + $0x4c] sm:$0xf]
    %v40 = vld [vmem:[%s1 + $0x50] sm:$0xf]
    %v41 = vld [vmem:[%s1 + $0x54] sm:$0xf]
    %v42 = vld [vmem:[%s1 + $0x58] sm:$0xf]
    %v43 = vld [vmem:[%s1 + $0x5c] sm:$0xf]
    %v44 = vld [vmem:[%s1 + $0x60] sm:$0xf]
    %v45 = vld [vmem:[%s1 + $0x64] sm:$0xf]
    %v46 = vld [vmem:[%s1 + $0x68] sm:$0xf]
    %v47 = vld [vmem:[%s1 + $0x6c] sm:$0xf]
    %v48 = vld [vmem:[%s1 + $0x70] sm:$0xf]
    %v49 = vld [vmem:[%s1 + $0x74] sm:$0xf]
    %v50 = vld [vmem:[%s1 + $0x78] sm:$0xf]
    %v51 = vld [vmem:[%s1 + $0x7c] sm:$0xf]
    %v52 = vld [vmem:[%s1 + $0x80] sm:$0xf]
    %v53 = vld [vmem:[%s1 + $0x84] sm:$0xf]
    %v54 = vld [vmem:[%s1 + $0x88] sm:$0xf]
    %v55 = vld [vmem:[%s1 + $0x8c] sm:$0xf]
    %v56 = vld [vmem:[%s1 + $0x90] sm:$0xf]
    %v57 = vld [vmem:[%s1 + $0x94] sm:$0xf]
    %v58 = vld [vmem:[%s1 + $0x98] sm:$0xf]
    %v59 = vld [vmem:[%s1 + $0x9c] sm:$0xf]
    %v60 = vld [vmem:[%s1 + $0xa0] sm:$0xf]
    %v61 = vld [vmem:[%s1 + $0xa4] sm:$0xf]
    %v62 = vld [vmem:[%s1 + $0xa8] sm:$0xf]
    %v63 = vld [vmem:[%s1 + $0xac] sm:$0xf]
    %v64 = vld [vmem:[%s1 + $0xb0] sm:$0xf]
    %v65 = vld [vmem:[%s1 + $0xb4] sm:$0xf]
    %v66 = vld [vmem:[%s1 + $0xb8] sm:$0xf]
    %v67 = vld [vmem:[%s1 + $0xbc] sm:$0xf]
    %v68 = vld [vmem:[%s1 + $0xc0] sm:$0xf]
    %v69 = vld [vmem:[%s1 + $0xc4] sm:$0xf]
    %v70 = vld [vmem:[%s1 + $0xc8] sm:$0xf]
    %v71 = vld [vmem:[%s1 + $0xcc] sm:$0xf]
    %v72 = vld [vmem:[%s1 + $0xd0] sm:$0xf]
    %v73 = vld [vmem:[%s1 + $0xd4] sm:$0xf]
    %v74 = vld [vmem:[%s1 + $0xd8] sm:$0xf]
    %v75 = vld [vmem:[%s1 + $0xdc] sm:$0xf]
    %v76 = vld [vmem:[%s1 + $0xe0] sm:$0xf]
    %v77 = vld [vmem:[%s1 + $0xe4] sm:$0xf]
    %v78 = vld [vmem:[%s1 + $0xe8] sm:$0xf]
    %v79 = vld [vmem:[%s1 + $0xec] sm:$0xf]
    %v80 = vld [vmem:[%s1 + $0xf0] sm:$0xf]
    %v81 = vld [vmem:[%s1 + $0xf4] sm:$0xf]
    %v82 = vld [vmem:[%s1 + $0xf8] sm:$0xf]
    %v83 = vld [vmem:[%s1 + $0xfc] sm:$0xf]
    %v84 = vld [vmem:[%s1 + $0x100] sm:$0xf]
    %v85 = vld [vmem:[%s1 + $0x104] sm:$0xf]
    %v86 = vld [vmem:[%s1 + $0x108] sm:$0xf]
    %v87 = vld [vmem:[%s1 + $0x10c] sm:$0xf]
    %v88 = vld [vmem:[%s1 + $0x110] sm:$0xf]
    %v89 = vld [vmem:[%s1 + $0x114] sm:$0xf]
    %v90 = vld [vmem:[%s1 + $0x118] sm:$0xf]
    %v91 = vld [vmem:[%s1 + $0x11c] sm:$0xf]
    %v92 = vld [vmem:[%s1 + $0x120] sm:$0xf]
    %v93 = vld [vmem:[%s1 + $0x124] sm:$0xf]
    %v94 = vld [vmem:[%s1 + $0x128] sm:$0xf]
    %v95 = vld [vmem:[%s1 + $0x12c] sm:$0xf]
    %v96 = vld [vmem:[%s1 + $0x130] sm:$0xf]
    %v97 = vld [vmem:[%s1 + $0x134] sm:$0xf]
    %v98 = vld [vmem:[%s1 + $0x138] sm:$0xf]
    %v99 = vld [vmem:[%s1 + $0x13c] sm:$0xf]
    %v100 = vld [vmem:[%s1 + $0x140] sm:$0xf]
    %v101 = vld [vmem:[%s1 + $0x144] sm:$0xf]
    %v102 = vld [vmem:[%s1 + $0x148] sm:$0xf]
    %v103 = vld [vmem:[%s1 + $0x14c] sm:$0xf]
    %v104 = vld [vmem:[%s1 + $0x150] sm:$0xf]
    %v105 = vld [vmem:[%s1 + $0x154] sm:$0xf]
    %v106 = vld [vmem:[%s1 + $0x158] sm:$0xf]
    %v107 = vld [vmem:[%s1 + $0x15c] sm:$0xf]
    %v108 = vld [vmem:[%s1 + $0x160] sm:$0xf]
    %v109 = vld [vmem:[%s1 + $0x164] sm:$0xf]
    %v110 = vld [vmem:[%s1 + $0x168] sm:$0xf]
    %v111 = vld [vmem:[%s1 + $0x16c] sm:$0xf]
    %v112 = vld [vmem:[%s1 + $0x170] sm:$0xf]
    %v113 = vld [vmem:[%s1 + $0x174] sm:$0xf]
    %v114 = vld [vmem:[%s1 + $0x178] sm:$0xf]
    %v115 = vld [vmem:[%s1 + $0x17c] sm:$0xf]
    %v116 = vld [vmem:[%s1 + $0x180] sm:$0xf]
    %v117 = vld [vmem:[%s1 + $0x184] sm:$0xf]
    %v118 = vld [vmem:[%s1 + $0x188] sm:$0xf]
    %v119 = vld [vmem:[%s1 + $0x18c] sm:$0xf]
    %v120 = vld [vmem:[%s1 + $0x190] sm:$0xf]
    %v121 = vld [vmem:[%s1 + $0x194] sm:$0xf]
    %v122 = vld [vmem:[%s1 + $0x198] sm:$0xf]
    %v123 = vld [vmem:[%s1 + $0x19c] sm:$0xf]
    %v124 = vld [vmem:[%s1 + $0x1a0] sm:$0xf]
    %v125 = vld [vmem:[%s1 + $0x1a4] sm:$0xf]
    %v126 = vld [vmem:[%s1 + $0x1a8] sm:$0xf]
    %v127 = vld [vmem:[%s1 + $0x1ac] sm:$0xf]
    %v128 = vld [vmem:[%s1 + $0x1b0] sm:$0xf]
    %v129 = vld [vmem:[%s1 + $0x1b4] sm:$0xf]
    %v130 = vld [vmem:[%s1 + $0x1b8] sm:$0xf]
    %v131 = vld [vmem:[%s1 + $0x1bc] sm:$0xf]
    %v132 = vld [vmem:[%s1 + $0x1c0] sm:$0xf]
    %v133 = vld [vmem:[%s1 + $0x1c4] sm:$0xf]
    %v134 = vld [vmem:[%s1 + $0x1c8] sm:$0xf]
    %v135 = vld [vmem:[%s1 + $0x1cc] sm:$0xf]
    %v136 = vld [vmem:[%s1 + $0x1d0] sm:$0xf]
    %v137 = vld [vmem:[%s1 + $0x1d4] sm:$0xf]
    %v138 = vld [vmem:[%s1 + $0x1d8] sm:$0xf]
    %v139 = vld [vmem:[%s1 + $0x1dc] sm:$0xf]
    %v140 = vld [vmem:[%s1 + $0x1e0] sm:$0xf]
    %v141 = vld [vmem:[%s1 + $0x1e4] sm:$0xf]
    %v142 = vld [vmem:[%s1 + $0x1e8] sm:$0xf]
    %v143 = vld [vmem:[%s1 + $0x1ec] sm:$0xf]
    %v144 = vld [vmem:[%s1 + $0x1f0] sm:$0xf]
    %v145 = vld [vmem:[%s1 + $0x1f4] sm:$0xf]
    %v146 = vld [vmem:[%s1 + $0x1f8] sm:$0xf]
    %v147 = vld [vmem:[%s1 + $0x1fc] sm:$0xf]
    %v148 = vld [vmem:[%s1 + $0x200] sm:$0xf]
    %v149 = vld [vmem:[%s1 + $0x204] sm:$0xf]
    %v150 = vld [vmem:[%s1 + $0x208] sm:$0xf]
    %v151 = vld [vmem:[%s1 + $0x20c] sm:$0xf]
    %v152 = vld [vmem:[%s1 + $0x210] sm:$0xf]
    %v153 = vld [vmem:[%s1 + $0x214] sm:$0xf]
    %v154 = vld [vmem:[%s1 + $0x218] sm:$0xf]
    %v155 = vld [vmem:[%s1 + $0x21c] sm:$0xf]
    %v156 = vld [vmem:[%s1 + $0x220] sm:$0xf]
    %v157 = vld [vmem:[%s1 + $0x224] sm:$0xf]
    %v158 = vld [vmem:[%s1 + $0x228] sm:$0xf]
    %v159 = vld [vmem:[%s1 + $0x22c] sm:$0xf]
    %v160 = vld [vmem:[%s1 + $0x230] sm:$0xf]
    %v161 = vld [vmem:[%s1 + $0x234] sm:$0xf]
    %v162 = vld [vmem:[%s1 + $0x238] sm:$0xf]
    %v163 = vld [vmem:[%s1 + $0x23c] sm:$0xf]
    %v164 = vld [vmem:[%s1 + $0x240] sm:$0xf]
    %v165 = vld [vmem:[%s1 + $0x244] sm:$0xf]
    %v166 = vld [vmem:[%s1 + $0x248] sm:$0xf]
    %v167 = vld [vmem:[%s1 + $0x24c] sm:$0xf]
    %v168 = vld [vmem:[%s1 + $0x250] sm:$0xf]
    %v169 = vld [vmem:[%s1 + $0x254] sm:$0xf]
    %v170 = vld [vmem:[%s1 + $0x258] sm:$0xf]
    %v171 = vld [vmem:[%s1 + $0x25c] sm:$0xf]
    %v172 = vld [vmem:[%s1 + $0x260] sm:$0xf]
    %v173 = vld [vmem:[%s1 + $0x264] sm:$0xf]
    %v174 = vld [vmem:[%s1 + $0x268] sm:$0xf]
    %v175 = vld [vmem:[%s1 + $0x26c] sm:$0xf]
    %v176 = vld [vmem:[%s1 + $0x270] sm:$0xf]
    %v177 = vld [vmem:[%s1 + $0x274] sm:$0xf]
    %v178 = vld [vmem:[%s1 + $0x278] sm:$0xf]
    %v179 = vld [vmem:[%s1 + $0x27c] sm:$0xf]
    %v180 = vld [vmem:[%s1 + $0x280] sm:$0xf]
    %v181 = vld [vmem:[%s1 + $0x284] sm:$0xf]
    %v182 = vld [vmem:[%s1 + $0x288] sm:$0xf]
    %v183 = vld [vmem:[%s1 + $0x28c] sm:$0xf]
    %v184 = vld [vmem:[%s1 + $0x290] sm:$0xf]
    %v185 = vld [vmem:[%s1 + $0x294] sm:$0xf]
    %v186 = vld [vmem:[%s1 + $0x298] sm:$0xf]
    %v187 = vld [vmem:[%s1 + $0x29c] sm:$0xf]
    %v188 = vld [vmem:[%s1 + $0x2a0] sm:$0xf]
    %v189 = vld [vmem:[%s1 + $0x2a4] sm:$0xf]
    %v190 = vld [vmem:[%s1 + $0x2a8] sm:$0xf]
    %v191 = vld [vmem:[%s1 + $0x2ac] sm:$0xf]
    %v192 = vld [vmem:[%s1 + $0x2b0] sm:$0xf]
    %v193 = vld [vmem:[%s1 + $0x2b4] sm:$0xf]
    %v194 = vld [vmem:[%s1 + $0x2b8] sm:$0xf]
    %v195 = vld [vmem:[%s1 + $0x2bc] sm:$0xf]
    %v196 = vld [vmem:[%s1 + $0x2c0] sm:$0xf]
    %v197 = vld [vmem:[%s1 + $0x2c4] sm:$0xf]
    %v198 = vld [vmem:[%s1 + $0x2c8] sm:$0xf]
    %v199 = vld [vmem:[%s1 + $0x2cc] sm:$0xf]
    %v200 = vld [vmem:[%s1 + $0x2d0] sm:$0xf]
    %v201 = vld [vmem:[%s1 + $0x2d4] sm:$0xf]
    %v202 = vld [vmem:[%s1 + $0x2d8] sm:$0xf]
    %v203 = vld [vmem:[%s1 + $0x2dc] sm:$0xf]
    %v204 = vld [vmem:[%s1 + $0x2e0] sm:$0xf]
    %v205 = vld [vmem:[%s1 + $0x2e4] sm:$0xf]
    %v206 = vld [vmem:[%s1 + $0x2e8] sm:$0xf]
    %v207 = vld [vmem:[%s1 + $0x2ec] sm:$0xf]
    %v208 = vld [vmem:[%s1 + $0x2f0] sm:$0xf]
    %v209 = vld [vmem:[%s1 + $0x2f4] sm:$0xf]
    %v210 = vld [vmem:[%s1 + $0x2f8] sm:$0xf]
    %v211 = vld [vmem:[%s1 + $0x2fc] sm:$0xf]
    %v212 = vld [vmem:[%s1 + $0x300] sm:$0xf]
    %v213 = vld [vmem:[%s1 + $0x304] sm:$0xf]
    %v214 = vld [vmem:[%s1 + $0x308] sm:$0xf]
    %v215 = vld [vmem:[%s1 + $0x30c] sm:$0xf]
    %v216 = vld [vmem:[%s1 + $0x310] sm:$0xf]
    %v217 = vld [vmem:[%s1 + $0x314] sm:$0xf]
    %v218 = vld [vmem:[%s1 + $0x318] sm:$0xf]
    %v219 = vld [vmem:[%s1 + $0x31c] sm:$0xf]
    %v220 = vld [vmem:[%s1 + $0x320] sm:$0xf]
    %v221 = vld [vmem:[%s1 + $0x324] sm:$0xf]
    %v222 = vld [vmem:[%s1 + $0x328] sm:$0xf]
    %v223 = vld [vmem:[%s1 + $0x32c] sm:$0xf]
    %v224 = vld [vmem:[%s1 + $0x330] sm:$0xf]
    %v225 = vld [vmem:[%s1 + $0x334] sm:$0xf]
    %v226 = vld [vmem:[%s1 + $0x338] sm:$0xf]
    %v227 = vld [vmem:[%s1 + $0x33c] sm:$0xf]
    %v228 = vld [vmem:[%s1 + $0x340] sm:$0xf]
    %v229 = vld [vmem:[%s1 + $0x344] sm:$0xf]
    %v230 = vld [vmem:[%s1 + $0x348] sm:$0xf]
    %v231 = vld [vmem:[%s1 + $0x34c] sm:$0xf]
    %v232 = vld [vmem:[%s1 + $0x350] sm:$0xf]
    %v233 = vld [vmem:[%s1 + $0x354] sm:$0xf]
    %v234 = vld [vmem:[%s1 + $0x358] sm:$0xf]
    %v235 = vld [vmem:[%s1 + $0x35c] sm:$0xf]
    %v236 = vld [vmem:[%s1 + $0x360] sm:$0xf]
    %v237 = vld [vmem:[%s1 + $0x364] sm:$0xf]
    %v238 = vld [vmem:[%s1 + $0x368] sm:$0xf]
    %v239 = vld [vmem:[%s1 + $0x36c] sm:$0xf]
    %v240 = vld [vmem:[%s1 + $0x370] sm:$0xf]
    %v241 = vld [vmem:[%s1 + $0x374] sm:$0xf]
    %v242 = vld [vmem:[%s1 + $0x378] sm:$0xf]
    %v243 = vld [vmem:[%s1 + $0x37c] sm:$0xf]
    %v244 = vld [vmem:[%s1 + $0x380] sm:$0xf]
    %v245 = vld [vmem:[%s1 + $0x384] sm:$0xf]
    %v246 = vld [vmem:[%s1 + $0x388] sm:$0xf]
    %v247 = vld [vmem:[%s1 + $0x38c] sm:$0xf]
    %v248 = vld [vmem:[%s1 + $0x390] sm:$0xf]
    %v249 = vld [vmem:[%s1 + $0x394] sm:$0xf]
    %v250 = vld [vmem:[%s1 + $0x398] sm:$0xf]
    %v251 = vld [vmem:[%s1 + $0x39c] sm:$0xf]
    %v252 = vld [vmem:[%s1 + $0x3a0] sm:$0xf]
    %v253 = vld [vmem:[%s1 + $0x3a4] sm:$0xf]
    %v254 = vld [vmem:[%s1 + $0x3a8] sm:$0xf]
    %v255 = vld [vmem:[%s1 + $0x3ac] sm:$0xf]
    %v256 = vld [vmem:[%s1 + $0x3b0] sm:$0xf]
    %v257 = vld [vmem:[%s1 + $0x3b4] sm:$0xf]
    %v258 = vld [vmem:[%s1 + $0x3b8] sm:$0xf]
    %v259 = vld [vmem:[%s1 + $0x3bc] sm:$0xf]
    %v260 = vld [vmem:[%s1 + $0x3c0] sm:$0xf]
    %v261 = vld [vmem:[%s1 + $0x3c4] sm:$0xf]
    %v262 = vld [vmem:[%s1 + $0x3c8] sm:$0xf]
    %v263 = vld [vmem:[%s1 + $0x3cc] sm:$0xf]
    %v264 = vld [vmem:[%s1 + $0x3d0] sm:$0xf]
    %v265 = vld [vmem:[%s1 + $0x3d4] sm:$0xf]
    %v266 = vld [vmem:[%s1 + $0x3d8] sm:$0xf]
    %v267 = vld [vmem:[%s1 + $0x3dc] sm:$0xf]
    %v268 = vld [vmem:[%s1 + $0x3e0] sm:$0xf]
    %v269 = vld [vmem:[%s1 + $0x3e4] sm:$0xf]
    %v270 = vld [vmem:[%s1 + $0x3e8] sm:$0xf]
    %v271 = vld [vmem:[%s1 + $0x3ec] sm:$0xf]
    %v272 = vld [vmem:[%s1 + $0x3f0] sm:$0xf]
    %v273 = vld [vmem:[%s1 + $0x3f4] sm:$0xf]
    %v274 = vld [vmem:[%s1 + $0x3f8] sm:$0xf]
    %v275 = vld [vmem:[%s1 + $0x3fc] sm:$0xf]
    %v276 = vld [vmem:[%s1 + $0x400] sm:$0xf]
    %v277 = vld [vmem:[%s1 + $0x404] sm:$0xf]
    %v278 = vld [vmem:[%s1 + $0x408] sm:$0xf]
    %v279 = vld [vmem:[%s1 + $0x40c] sm:$0xf]
    %v280 = vld [vmem:[%s1 + $0x410] sm:$0xf]
    %v281 = vld [vmem:[%s1 + $0x414] sm:$0xf]
    %v282 = vld [vmem:[%s1 + $0x418] sm:$0xf]
    %v283 = vld [vmem:[%s1 + $0x41c] sm:$0xf]
    %v284 = vld [vmem:[%s1 + $0x420] sm:$0xf]
    %v285 = vld [vmem:[%s1 + $0x424] sm:$0xf]
    %v286 = vld [vmem:[%s1 + $0x428] sm:$0xf]
    %v287 = vld [vmem:[%s1 + $0x42c] sm:$0xf]
    %v288 = vld [vmem:[%s1 + $0x430] sm:$0xf]
    %v289 = vld [vmem:[%s1 + $0x434] sm:$0xf]
    %v290 = vld [vmem:[%s1 + $0x438] sm:$0xf]
    %v291 = vld [vmem:[%s1 + $0x43c] sm:$0xf]
    %v292 = vld [vmem:[%s1 + $0x440] sm:$0xf]
    %v293 = vld [vmem:[%s1 + $0x444] sm:$0xf]
    %v294 = vld [vmem:[%s1 + $0x448] sm:$0xf]
    %v295 = vld [vmem:[%s1 + $0x44c] sm:$0xf]
    %v296 = vld [vmem:[%s1 + $0x450] sm:$0xf]
    %v297 = vld [vmem:[%s1 + $0x454] sm:$0xf]
    %v298 = vld [vmem:[%s1 + $0x458] sm:$0xf]
    %v299 = vld [vmem:[%s1 + $0x45c] sm:$0xf]
    %v300 = vld [vmem:[%s1 + $0x460] sm:$0xf]
    %v301 = vld [vmem:[%s1 + $0x464] sm:$0xf]
    %v302 = vld [vmem:[%s1 + $0x468] sm:$0xf]
    %v303 = vld [vmem:[%s1 + $0x46c] sm:$0xf]
    %v304 = vld [vmem:[%s1 + $0x470] sm:$0xf]
    %v305 = vld [vmem:[%s1 + $0x474] sm:$0xf]
    %v306 = vld [vmem:[%s1 + $0x478] sm:$0xf]
    %v307 = vld [vmem:[%s1 + $0x47c] sm:$0xf]
    %v308 = vld [vmem:[%s1 + $0x480] sm:$0xf]
    %v309 = vld [vmem:[%s1 + $0x484] sm:$0xf]
    %v310 = vld [vmem:[%s1 + $0x488] sm:$0xf]
    %v311 = vld [vmem:[%s1 + $0x48c] sm:$0xf]
    %v312 = vld [vmem:[%s1 + $0x490] sm:$0xf]
    %v313 = vld [vmem:[%s1 + $0x494] sm:$0xf]
    %v314 = vld [vmem:[%s1 + $0x498] sm:$0xf]
    %v315 = vld [vmem:[%s1 + $0x49c] sm:$0xf]
    %v316 = vld [vmem:[%s1 + $0x4a0] sm:$0xf]
    %v317 = vld [vmem:[%s1 + $0x4a4] sm:$0xf]
    %v318 = vld [vmem:[%s1 + $0x4a8] sm:$0xf]
    %v319 = vld [vmem:[%s1 + $0x4ac] sm:$0xf]
    %v320 = vld [vmem:[%s1 + $0x4b0] sm:$0xf]
    %v321 = vld [vmem:[%s1 + $0x4b4] sm:$0xf]
    %v322 = vld [vmem:[%s1 + $0x4b8] sm:$0xf]
    %v323 = vld [vmem:[%s1 + $0x4bc] sm:$0xf]
    %v324 = vld [vmem:[%s1 + $0x4c0] sm:$0xf]
    %v325 = vld [vmem:[%s1 + $0x4c4] sm:$0xf]
    %v326 = vld [vmem:[%s1 + $0x4c8] sm:$0xf]
    %v327 = vld [vmem:[%s1 + $0x4cc] sm:$0xf]
    %v328 = vld [vmem:[%s1 + $0x4d0] sm:$0xf]
    %v329 = vld [vmem:[%s1 + $0x4d4] sm:$0xf]
    %v330 = vld [vmem:[%s1 + $0x4d8] sm:$0xf]
    %v331 = vld [vmem:[%s1 + $0x4dc] sm:$0xf]
    %v332 = vld [vmem:[%s1 + $0x4e0] sm:$0xf]
    %v333 = vld [vmem:[%s1 + $0x4e4] sm:$0xf]
    %v334 = vld [vmem:[%s1 + $0x4e8] sm:$0xf]
    %v335 = vld [vmem:[%s1 + $0x4ec] sm:$0xf]
    %v336 = vld [vmem:[%s1 + $0x4f0] sm:$0xf]
    %v337 = vld [vmem:[%s1 + $0x4f4] sm:$0xf]
    %v338 = vld [vmem:[%s1 + $0x4f8] sm:$0xf]
    %v339 = vld [vmem:[%s1 + $0x4fc] sm:$0xf]
    %v340 = vld [vmem:[%s1 + $0x500] sm:$0xf]
    %v341 = vld [vmem:[%s1 + $0x504] sm:$0xf]
    %v342 = vld [vmem:[%s1 + $0x508] sm:$0xf]
    %v343 = vld [vmem:[%s1 + $0x50c] sm:$0xf]
    %v344 = vld [vmem:[%s1 + $0x510] sm:$0xf]
    %v345 = vld [vmem:[%s1 + $0x514] sm:$0xf]
    %v346 = vld [vmem:[%s1 + $0x518] sm:$0xf]
    %v347 = vld [vmem:[%s1 + $0x51c] sm:$0xf]
    %v348 = vld [vmem:[%s1 + $0x520] sm:$0xf]
    %v349 = vld [vmem:[%s1 + $0x524] sm:$0xf]
    %v350 = vld [vmem:[%s1 + $0x528] sm:$0xf]
    %v351 = vld [vmem:[%s1 + $0x52c] sm:$0xf]
    %v352 = vld [vmem:[%s1 + $0x530] sm:$0xf]
    %v353 = vld [vmem:[%s1 + $0x534] sm:$0xf]
    %v354 = vld [vmem:[%s1 + $0x538] sm:$0xf]
    %v355 = vld [vmem:[%s1 + $0x53c] sm:$0xf]
    %v356 = vld [vmem:[%s1 + $0x540] sm:$0xf]
    %v357 = vld [vmem:[%s1 + $0x544] sm:$0xf]
    %v358 = vld [vmem:[%s1 + $0x548] sm:$0xf]
    %v359 = vld [vmem:[%s1 + $0x54c] sm:$0xf]
    %v360 = vld [vmem:[%s1 + $0x550] sm:$0xf]
    %v361 = vld [vmem:[%s1 + $0x554] sm:$0xf]
    %v362 = vld [vmem:[%s1 + $0x558] sm:$0xf]
    %v363 = vld [vmem:[%s1 + $0x55c] sm:$0xf]
    %v364 = vld [vmem:[%s1 + $0x560] sm:$0xf]
    %v365 = vld [vmem:[%s1 + $0x564] sm:$0xf]
    %v366 = vld [vmem:[%s1 + $0x568] sm:$0xf]
    %v367 = vld [vmem:[%s1 + $0x56c] sm:$0xf]
    %v368 = vld [vmem:[%s1 + $0x570] sm:$0xf]
    %v369 = vld [vmem:[%s1 + $0x574] sm:$0xf]
    %v370 = vld [vmem:[%s1 + $0x578] sm:$0xf]
    %v371 = vld [vmem:[%s1 + $0x57c] sm:$0xf]
    %v372 = vld [vmem:[%s1 + $0x580] sm:$0xf]
    %v373 = vld [vmem:[%s1 + $0x584] sm:$0xf]
    %v374 = vld [vmem:[%s1 + $0x588] sm:$0xf]
    %v375 = vld [vmem:[%s1 + $0x58c] sm:$0xf]
    %v376 = vld [vmem:[%s1 + $0x590] sm:$0xf]
    %v377 = vld [vmem:[%s1 + $0x594] sm:$0xf]
    %v378 = vld [vmem:[%s1 + $0x598] sm:$0xf]
    %v379 = vld [vmem:[%s1 + $0x59c] sm:$0xf]
    %v380 = vld [vmem:[%s1 + $0x5a0] sm:$0xf]
    %v381 = vld [vmem:[%s1 + $0x5a4] sm:$0xf]
    %v382 = vld [vmem:[%s1 + $0x5a8] sm:$0xf]
    %v383 = vld [vmem:[%s1 + $0x5ac] sm:$0xf]
    %v384 = vld [vmem:[%s1 + $0x5b0] sm:$0xf]
    %v385 = vld [vmem:[%s1 + $0x5b4] sm:$0xf]
    %v386 = vld [vmem:[%s1 + $0x5b8] sm:$0xf]
    %v387 = vld [vmem:[%s1 + $0x5bc] sm:$0xf]
    %v388 = vld [vmem:[%s1 + $0x5c0] sm:$0xf]
    %v389 = vld [vmem:[%s1 + $0x5c4] sm:$0xf]
    %v390 = vld [vmem:[%s1 + $0x5c8] sm:$0xf]
    %v391 = vld [vmem:[%s1 + $0x5cc] sm:$0xf]
    %v392 = vld [vmem:[%s1 + $0x5d0] sm:$0xf]
    %v393 = vld [vmem:[%s1 + $0x5d4] sm:$0xf]
    %v394 = vld [vmem:[%s1 + $0x5d8] sm:$0xf]
    %v395 = vld [vmem:[%s1 + $0x5dc] sm:$0xf]
    %v396 = vld [vmem:[%s1 + $0x5e0] sm:$0xf]
    %v397 = vld [vmem:[%s1 + $0x5e4] sm:$0xf]
    %v398 = vld [vmem:[%s1 + $0x5e8] sm:$0xf]
    %v399 = vld [vmem:[%s1 + $0x5ec] sm:$0xf]
    %v400 = vld [vmem:[%s1 + $0x5f0] sm:$0xf]
    %v401 = vld [vmem:[%s1 + $0x5f4] sm:$0xf]
    %v402 = vld [vmem:[%s1 + $0x5f8] sm:$0xf]
    %v403 = vld [vmem:[%s1 + $0x5fc] sm:$0xf]
    %v404 = vld [vmem:[%s1 + $0x600] sm:$0xf]
    %v405 = vld [vmem:[%s1 + $0x604] sm:$0xf]
    %v406 = vld [vmem:[%s1 + $0x608] sm:$0xf]
    %v407 = vld [vmem:[%s1 + $0x60c] sm:$0xf]
    %v408 = vld [vmem:[%s1 + $0x610] sm:$0xf]
    %v409 = vld [vmem:[%s1 + $0x614] sm:$0xf]
    %v410 = vld [vmem:[%s1 + $0x618] sm:$0xf]
    %v411 = vld [vmem:[%s1 + $0x61c] sm:$0xf]
    %v412 = vld [vmem:[%s1 + $0x620] sm:$0xf]
    %v413 = vld [vmem:[%s1 + $0x624] sm:$0xf]
    %v414 = vld [vmem:[%s1 + $0x628] sm:$0xf]
    %v415 = vld [vmem:[%s1 + $0x62c] sm:$0xf]
    %v416 = vld [vmem:[%s1 + $0x630] sm:$0xf]
    %v417 = vld [vmem:[%s1 + $0x634] sm:$0xf]
    %v418 = vld [vmem:[%s1 + $0x638] sm:$0xf]
    %v419 = vld [vmem:[%s1 + $0x63c] sm:$0xf]
    %v420 = vld [vmem:[%s1 + $0x640] sm:$0xf]
    %v421 = vld [vmem:[%s1 + $0x644] sm:$0xf]
    %v422 = vld [vmem:[%s1 + $0x648] sm:$0xf]
    %v423 = vld [vmem:[%s1 + $0x64c] sm:$0xf]
    %v424 = vld [vmem:[%s1 + $0x650] sm:$0xf]
    %v425 = vld [vmem:[%s1 + $0x654] sm:$0xf]
    %v426 = vld [vmem:[%s1 + $0x658] sm:$0xf]
    %v427 = vld [vmem:[%s1 + $0x65c] sm:$0xf]
    %v428 = vld [vmem:[%s1 + $0x660] sm:$0xf]
    %v429 = vld [vmem:[%s1 + $0x664] sm:$0xf]
    %v430 = vld [vmem:[%s1 + $0x668] sm:$0xf]
    %v431 = vld [vmem:[%s1 + $0x66c] sm:$0xf]
    %v432 = vld [vmem:[%s1 + $0x670] sm:$0xf]
    %v433 = vld [vmem:[%s1 + $0x674] sm:$0xf]
    %v434 = vld [vmem:[%s1 + $0x678] sm:$0xf]
    %v435 = vld [vmem:[%s1 + $0x67c] sm:$0xf]
    %v436 = vld [vmem:[%s1 + $0x680] sm:$0xf]
    %v437 = vld [vmem:[%s1 + $0x684] sm:$0xf]
    %v438 = vld [vmem:[%s1 + $0x688] sm:$0xf]
    %v439 = vld [vmem:[%s1 + $0x68c] sm:$0xf]
    %v440 = vld [vmem:[%s1 + $0x690] sm:$0xf]
    %v441 = vld [vmem:[%s1 + $0x694] sm:$0xf]
    %v442 = vld [vmem:[%s1 + $0x698] sm:$0xf]
    %v443 = vld [vmem:[%s1 + $0x69c] sm:$0xf]
    %v444 = vld [vmem:[%s1 + $0x6a0] sm:$0xf]
    %v445 = vld [vmem:[%s1 + $0x6a4] sm:$0xf]
    %v446 = vld [vmem:[%s1 + $0x6a8] sm:$0xf]
    %v447 = vld [vmem:[%s1 + $0x6ac] sm:$0xf]
    %v448 = vld [vmem:[%s1 + $0x6b0] sm:$0xf]
    %v449 = vld [vmem:[%s1 + $0x6b4] sm:$0xf]
    %v450 = vld [vmem:[%s1 + $0x6b8] sm:$0xf]
    %v451 = vld [vmem:[%s1 + $0x6bc] sm:$0xf]
    %v452 = vld [vmem:[%s1 + $0x6c0] sm:$0xf]
    %v453 = vld [vmem:[%s1 + $0x6c4] sm:$0xf]
    %v454 = vld [vmem:[%s1 + $0x6c8] sm:$0xf]
    %v455 = vld [vmem:[%s1 + $0x6cc] sm:$0xf]
    %v456 = vld [vmem:[%s1 + $0x6d0] sm:$0xf]
    %v457 = vld [vmem:[%s1 + $0x6d4] sm:$0xf]
    %v458 = vld [vmem:[%s1 + $0x6d8] sm:$0xf]
    %v459 = vld [vmem:[%s1 + $0x6dc] sm:$0xf]
    %v460 = vld [vmem:[%s1 + $0x6e0] sm:$0xf]
    %v461 = vld [vmem:[%s1 + $0x6e4] sm:$0xf]
    %v462 = vld [vmem:[%s1 + $0x6e8] sm:$0xf]
    %v463 = vld [vmem:[%s1 + $0x6ec] sm:$0xf]
    %v464 = vld [vmem:[%s1 + $0x6f0] sm:$0xf]
    %v465 = vld [vmem:[%s1 + $0x6f4] sm:$0xf]
    %v466 = vld [vmem:[%s1 + $0x6f8] sm:$0xf]
    %v467 = vld [vmem:[%s1 + $0x6fc] sm:$0xf]
    %v468 = vld [vmem:[%s1 + $0x700] sm:$0xf]
    %v469 = vld [vmem:[%s1 + $0x704] sm:$0xf]
    %v470 = vld [vmem:[%s1 + $0x708] sm:$0xf]
    %v471 = vld [vmem:[%s1 + $0x70c] sm:$0xf]
    %v472 = vld [vmem:[%s1 + $0x710] sm:$0xf]
    %v473 = vld [vmem:[%s1 + $0x714] sm:$0xf]
    %v474 = vld [vmem:[%s1 + $0x718] sm:$0xf]
    %v475 = vld [vmem:[%s1 + $0x71c] sm:$0xf]
    %v476 = vld [vmem:[%s1 + $0x720] sm:$0xf]
    %v477 = vld [vmem:[%s1 + $0x724] sm:$0xf]
    %v478 = vld [vmem:[%s1 + $0x728] sm:$0xf]
    %v479 = vld [vmem:[%s1 + $0x72c] sm:$0xf]
    %v480 = vld [vmem:[%s1 + $0x730] sm:$0xf]
    %v481 = vld [vmem:[%s1 + $0x734] sm:$0xf]
    %v482 = vld [vmem:[%s1 + $0x738] sm:$0xf]
    %v483 = vld [vmem:[%s1 + $0x73c] sm:$0xf]
    %v484 = vld [vmem:[%s1 + $0x740] sm:$0xf]
    %v485 = vld [vmem:[%s1 + $0x744] sm:$0xf]
    %v486 = vld [vmem:[%s1 + $0x748] sm:$0xf]
    %v487 = vld [vmem:[%s1 + $0x74c] sm:$0xf]
    %v488 = vld [vmem:[%s1 + $0x750] sm:$0xf]
    %v489 = vld [vmem:[%s1 + $0x754] sm:$0xf]
    %v490 = vld [vmem:[%s1 + $0x758] sm:$0xf]
    %v491 = vld [vmem:[%s1 + $0x75c] sm:$0xf]
    %v492 = vld [vmem:[%s1 + $0x760] sm:$0xf]
    %v493 = vld [vmem:[%s1 + $0x764] sm:$0xf]
    %v494 = vld [vmem:[%s1 + $0x768] sm:$0xf]
    %v495 = vld [vmem:[%s1 + $0x76c] sm:$0xf]
    %v496 = vld [vmem:[%s1 + $0x770] sm:$0xf]
    %v497 = vld [vmem:[%s1 + $0x774] sm:$0xf]
    %v498 = vld [vmem:[%s1 + $0x778] sm:$0xf]
    %v499 = vld [vmem:[%s1 + $0x77c] sm:$0xf]
    %v500 = vld [vmem:[%s1 + $0x780] sm:$0xf]
    %v501 = vld [vmem:[%s1 + $0x784] sm:$0xf]
    %v502 = vld [vmem:[%s1 + $0x788] sm:$0xf]
    %v503 = vld [vmem:[%s1 + $0x78c] sm:$0xf]
    %v504 = vld [vmem:[%s1 + $0x790] sm:$0xf]
    %v505 = vld [vmem:[%s1 + $0x794] sm:$0xf]
    %v506 = vld [vmem:[%s1 + $0x798] sm:$0xf]
    %v507 = vld [vmem:[%s1 + $0x79c] sm:$0xf]
    %v508 = vld [vmem:[%s1 + $0x7a0] sm:$0xf]
    %v509 = vld [vmem:[%s1 + $0x7a4] sm:$0xf]
    %v510 = vld [vmem:[%s1 + $0x7a8] sm:$0xf]
    %v511 = vld [vmem:[%s1 + $0x7ac] sm:$0xf]
    %v512 = vld [vmem:[%s1 + $0x7b0] sm:$0xf]
    %v513 = vld [vmem:[%s1 + $0x7b4] sm:$0xf]
    %v514 = vld [vmem:[%s1 + $0x7b8] sm:$0xf]
    %v515 = vld [vmem:[%s1 + $0x7bc] sm:$0xf]
    %v516 = vld [vmem:[%s1 + $0x7c0] sm:$0xf]
    %v517 = vld [vmem:[%s1 + $0x7c4] sm:$0xf]
    %v518 = vld [vmem:[%s1 + $0x7c8] sm:$0xf]
    %v519 = vld [vmem:[%s1 + $0x7cc] sm:$0xf]
    %v520 = vld [vmem:[%s1 + $0x7d0] sm:$0xf]
    %v521 = vld [vmem:[%s1 + $0x7d4] sm:$0xf]
    %v522 = vld [vmem:[%s1 + $0x7d8] sm:$0xf]
    %v523 = vld [vmem:[%s1 + $0x7dc] sm:$0xf]
    %v524 = vld [vmem:[%s1 + $0x7e0] sm:$0xf]
    %v525 = vld [vmem:[%s1 + $0x7e4] sm:$0xf]
    %v526 = vld [vmem:[%s1 + $0x7e8] sm:$0xf]
    %v527 = vld [vmem:[%s1 + $0x7ec] sm:$0xf]
    %v528 = vld [vmem:[%s1 + $0x7f0] sm:$0xf]
    %v529 = vld [vmem:[%s1 + $0x7f4] sm:$0xf]
    %v530 = vld [vmem:[%s1 + $0x7f8] sm:$0xf]
    %v531 = vld [vmem:[%s1 + $0x7fc] sm:$0xf]
    %v532 = vld [vmem:[%s2] sm:$0x1]
    %v534 = vlaneseq
    %v535 = vshrl.u32 %v534, 7
    %v536 = vsub.s32 0, %v535
    %v537 = vrot.slane %v532, %v536
    %v543 = vcombine.high %v16, %v16
    %v545 = vunpack.c.l.s4 1966171168
    %v546 = vunpack.c.0.s8 %v545
    %v547 = vlaneseq
    %v548 = vshrl.u32 %v547, 7
    %v549 = vsub.s32 %v546, %v548
    %v550 = vrot.slane %v16, %v549
    %v552 = vunpack.c.l.s4 1966171168
    %v553 = vunpack.c.0.s8 %v552
    %v554 = vlaneseq
    %v555 = vshrl.u32 %v554, 7
    %v556 = vsub.s32 %v553, %v555
    %v557 = vrot.slane %v543, %v556
    %v558 = vcombine.high %v550, %v550
    %v559 = vcombine.high %v557, %v557
    %v561 = vunpack.c.l.s4 1966171168
    %v562 = vunpack.c.0.s8 %v561
    %v563 = vlaneseq
    %v564 = vshrl.u32 %v563, 7
    %v565 = vsub.s32 %v562, %v564
    %v566 = vrot.slane %v550, %v565
    %v568 = vunpack.c.l.s4 1966171168
    %v569 = vunpack.c.0.s8 %v568
    %v570 = vlaneseq
    %v571 = vshrl.u32 %v570, 7
    %v572 = vsub.s32 %v569, %v571
    %v573 = vrot.slane %v557, %v572
    %v575 = vunpack.c.l.s4 1966171168
    %v576 = vunpack.c.0.s8 %v575
    %v577 = vlaneseq
    %v578 = vshrl.u32 %v577, 7
    %v579 = vsub.s32 %v576, %v578
    %v580 = vrot.slane %v558, %v579
    %v582 = vunpack.c.l.s4 1966171168
    %v583 = vunpack.c.0.s8 %v582
    %v584 = vlaneseq
    %v585 = vshrl.u32 %v584, 7
    %v586 = vsub.s32 %v583, %v585
    %v587 = vrot.slane %v559, %v586
    %v588 = vcombine.high %v566, %v566
    %v589 = vcombine.high %v573, %v573
    %v590 = vcombine.high %v580, %v580
    %v591 = vcombine.high %v587, %v587
    %v592 = vcombine.high %v17, %v17
    %v594 = vunpack.c.l.s4 1966171168
    %v595 = vunpack.c.0.s8 %v594
    %v596 = vlaneseq
    %v597 = vshrl.u32 %v596, 7
    %v598 = vsub.s32 %v595, %v597
    %v599 = vrot.slane %v17, %v598
    %v601 = vunpack.c.l.s4 1966171168
    %v602 = vunpack.c.0.s8 %v601
    %v603 = vlaneseq
    %v604 = vshrl.u32 %v603, 7
    %v605 = vsub.s32 %v602, %v604
    %v606 = vrot.slane %v592, %v605
    %v607 = vcombine.high %v599, %v599
    %v608 = vcombine.high %v606, %v606
    %v610 = vunpack.c.l.s4 1966171168
    %v611 = vunpack.c.0.s8 %v610
    %v612 = vlaneseq
    %v613 = vshrl.u32 %v612, 7
    %v614 = vsub.s32 %v611, %v613
    %v615 = vrot.slane %v599, %v614
    %v617 = vunpack.c.l.s4 1966171168
    %v618 = vunpack.c.0.s8 %v617
    %v619 = vlaneseq
    %v620 = vshrl.u32 %v619, 7
    %v621 = vsub.s32 %v618, %v620
    %v622 = vrot.slane %v606, %v621
    %v624 = vunpack.c.l.s4 1966171168
    %v625 = vunpack.c.0.s8 %v624
    %v626 = vlaneseq
    %v627 = vshrl.u32 %v626, 7
    %v628 = vsub.s32 %v625, %v627
    %v629 = vrot.slane %v607, %v628
    %v631 = vunpack.c.l.s4 1966171168
    %v632 = vunpack.c.0.s8 %v631
    %v633 = vlaneseq
    %v634 = vshrl.u32 %v633, 7
    %v635 = vsub.s32 %v632, %v634
    %v636 = vrot.slane %v608, %v635
    %v637 = vcombine.high %v615, %v615
    %v638 = vcombine.high %v622, %v622
    %v639 = vcombine.high %v629, %v629
    %v640 = vcombine.high %v636, %v636
    %v641 = vcombine.high %v18, %v18
    %v643 = vunpack.c.l.s4 1966171168
    %v644 = vunpack.c.0.s8 %v643
    %v645 = vlaneseq
    %v646 = vshrl.u32 %v645, 7
    %v647 = vsub.s32 %v644, %v646
    %v648 = vrot.slane %v18, %v647
    %v650 = vunpack.c.l.s4 1966171168
    %v651 = vunpack.c.0.s8 %v650
    %v652 = vlaneseq
    %v653 = vshrl.u32 %v652, 7
    %v654 = vsub.s32 %v651, %v653
    %v655 = vrot.slane %v641, %v654
    %v656 = vcombine.high %v648, %v648
    %v657 = vcombine.high %v655, %v655
    %v659 = vunpack.c.l.s4 1966171168
    %v660 = vunpack.c.0.s8 %v659
    %v661 = vlaneseq
    %v662 = vshrl.u32 %v661, 7
    %v663 = vsub.s32 %v660, %v662
    %v664 = vrot.slane %v648, %v663
    %v666 = vunpack.c.l.s4 1966171168
    %v667 = vunpack.c.0.s8 %v666
    %v668 = vlaneseq
    %v669 = vshrl.u32 %v668, 7
    %v670 = vsub.s32 %v667, %v669
    %v671 = vrot.slane %v655, %v670
    %v673 = vunpack.c.l.s4 1966171168
    %v674 = vunpack.c.0.s8 %v673
    %v675 = vlaneseq
    %v676 = vshrl.u32 %v675, 7
    %v677 = vsub.s32 %v674, %v676
    %v678 = vrot.slane %v656, %v677
    %v680 = vunpack.c.l.s4 1966171168
    %v681 = vunpack.c.0.s8 %v680
    %v682 = vlaneseq
    %v683 = vshrl.u32 %v682, 7
    %v684 = vsub.s32 %v681, %v683
    %v685 = vrot.slane %v657, %v684
    %v686 = vcombine.high %v664, %v664
    %v687 = vcombine.high %v671, %v671
    %v688 = vcombine.high %v678, %v678
    %v689 = vcombine.high %v685, %v685
    %v690 = vcombine.high %v19, %v19
    %v692 = vunpack.c.l.s4 1966171168
    %v693 = vunpack.c.0.s8 %v692
    %v694 = vlaneseq
    %v695 = vshrl.u32 %v694, 7
    %v696 = vsub.s32 %v693, %v695
    %v697 = vrot.slane %v19, %v696
    %v699 = vunpack.c.l.s4 1966171168
    %v700 = vunpack.c.0.s8 %v699
    %v701 = vlaneseq
    %v702 = vshrl.u32 %v701, 7
    %v703 = vsub.s32 %v700, %v702
    %v704 = vrot.slane %v690, %v703
    %v705 = vcombine.high %v697, %v697
    %v706 = vcombine.high %v704, %v704
    %v708 = vunpack.c.l.s4 1966171168
    %v709 = vunpack.c.0.s8 %v708
    %v710 = vlaneseq
    %v711 = vshrl.u32 %v710, 7
    %v712 = vsub.s32 %v709, %v711
    %v713 = vrot.slane %v697, %v712
    %v715 = vunpack.c.l.s4 1966171168
    %v716 = vunpack.c.0.s8 %v715
    %v717 = vlaneseq
    %v718 = vshrl.u32 %v717, 7
    %v719 = vsub.s32 %v716, %v718
    %v720 = vrot.slane %v704, %v719
    %v722 = vunpack.c.l.s4 1966171168
    %v723 = vunpack.c.0.s8 %v722
    %v724 = vlaneseq
    %v725 = vshrl.u32 %v724, 7
    %v726 = vsub.s32 %v723, %v725
    %v727 = vrot.slane %v705, %v726
    %v729 = vunpack.c.l.s4 1966171168
    %v730 = vunpack.c.0.s8 %v729
    %v731 = vlaneseq
    %v732 = vshrl.u32 %v731, 7
    %v733 = vsub.s32 %v730, %v732
    %v734 = vrot.slane %v706, %v733
    %v735 = vcombine.high %v713, %v713
    %v736 = vcombine.high %v720, %v720
    %v737 = vcombine.high %v727, %v727
    %v738 = vcombine.high %v734, %v734
    %v1283 = vunpack.c.l.b16 %v20
    %v1284 = vunpack.c.l.b16 %v21
    %v1285 = vunpack.c.l.b16 %v22
    %v1286 = vunpack.c.l.b16 %v23
    %v1287 = vunpack.c.l.b16 %v24
    %v1288 = vunpack.c.l.b16 %v25
    %v1289 = vunpack.c.l.b16 %v26
    %v1290 = vunpack.c.l.b16 %v27
    %v1291 = vunpack.c.l.b16 %v28
    %v1292 = vunpack.c.l.b16 %v29
    %v1293 = vunpack.c.l.b16 %v30
    %v1294 = vunpack.c.l.b16 %v31
    %v1295 = vunpack.c.l.b16 %v32
    %v1296 = vunpack.c.l.b16 %v33
    %v1297 = vunpack.c.l.b16 %v34
    %v1298 = vunpack.c.l.b16 %v35
    %v1299 = vunpack.c.l.b16 %v36
    %v1300 = vunpack.c.l.b16 %v37
    %v1301 = vunpack.c.l.b16 %v38
    %v1302 = vunpack.c.l.b16 %v39
    %v1303 = vunpack.c.l.b16 %v40
    %v1304 = vunpack.c.l.b16 %v41
    %v1305 = vunpack.c.l.b16 %v42
    %v1306 = vunpack.c.l.b16 %v43
    %v1307 = vunpack.c.l.b16 %v44
    %v1308 = vunpack.c.l.b16 %v45
    %v1309 = vunpack.c.l.b16 %v46
    %v1310 = vunpack.c.l.b16 %v47
    %v1311 = vunpack.c.l.b16 %v48
    %v1312 = vunpack.c.l.b16 %v49
    %v1313 = vunpack.c.l.b16 %v50
    %v1314 = vunpack.c.l.b16 %v51
    %v1315 = vunpack.c.l.b16 %v52
    %v1316 = vunpack.c.l.b16 %v53
    %v1317 = vunpack.c.l.b16 %v54
    %v1318 = vunpack.c.l.b16 %v55
    %v1319 = vunpack.c.l.b16 %v56
    %v1320 = vunpack.c.l.b16 %v57
    %v1321 = vunpack.c.l.b16 %v58
    %v1322 = vunpack.c.l.b16 %v59
    %v1323 = vunpack.c.l.b16 %v60
    %v1324 = vunpack.c.l.b16 %v61
    %v1325 = vunpack.c.l.b16 %v62
    %v1326 = vunpack.c.l.b16 %v63
    %v1327 = vunpack.c.l.b16 %v64
    %v1328 = vunpack.c.l.b16 %v65
    %v1329 = vunpack.c.l.b16 %v66
    %v1330 = vunpack.c.l.b16 %v67
    %v1331 = vunpack.c.l.b16 %v68
    %v1332 = vunpack.c.l.b16 %v69
    %v1333 = vunpack.c.l.b16 %v70
    %v1334 = vunpack.c.l.b16 %v71
    %v1335 = vunpack.c.l.b16 %v72
    %v1336 = vunpack.c.l.b16 %v73
    %v1337 = vunpack.c.l.b16 %v74
    %v1338 = vunpack.c.l.b16 %v75
    %v1339 = vunpack.c.l.b16 %v76
    %v1340 = vunpack.c.l.b16 %v77
    %v1341 = vunpack.c.l.b16 %v78
    %v1342 = vunpack.c.l.b16 %v79
    %v1343 = vunpack.c.l.b16 %v80
    %v1344 = vunpack.c.l.b16 %v81
    %v1345 = vunpack.c.l.b16 %v82
    %v1346 = vunpack.c.l.b16 %v83
    %v1347 = vunpack.c.l.b16 %v84
    %v1348 = vunpack.c.l.b16 %v85
    %v1349 = vunpack.c.l.b16 %v86
    %v1350 = vunpack.c.l.b16 %v87
    %v1351 = vunpack.c.l.b16 %v88
    %v1352 = vunpack.c.l.b16 %v89
    %v1353 = vunpack.c.l.b16 %v90
    %v1354 = vunpack.c.l.b16 %v91
    %v1355 = vunpack.c.l.b16 %v92
    %v1356 = vunpack.c.l.b16 %v93
    %v1357 = vunpack.c.l.b16 %v94
    %v1358 = vunpack.c.l.b16 %v95
    %v1359 = vunpack.c.l.b16 %v96
    %v1360 = vunpack.c.l.b16 %v97
    %v1361 = vunpack.c.l.b16 %v98
    %v1362 = vunpack.c.l.b16 %v99
    %v1363 = vunpack.c.l.b16 %v100
    %v1364 = vunpack.c.l.b16 %v101
    %v1365 = vunpack.c.l.b16 %v102
    %v1366 = vunpack.c.l.b16 %v103
    %v1367 = vunpack.c.l.b16 %v104
    %v1368 = vunpack.c.l.b16 %v105
    %v1369 = vunpack.c.l.b16 %v106
    %v1370 = vunpack.c.l.b16 %v107
    %v1371 = vunpack.c.l.b16 %v108
    %v1372 = vunpack.c.l.b16 %v109
    %v1373 = vunpack.c.l.b16 %v110
    %v1374 = vunpack.c.l.b16 %v111
    %v1375 = vunpack.c.l.b16 %v112
    %v1376 = vunpack.c.l.b16 %v113
    %v1377 = vunpack.c.l.b16 %v114
    %v1378 = vunpack.c.l.b16 %v115
    %v1379 = vunpack.c.l.b16 %v116
    %v1380 = vunpack.c.l.b16 %v117
    %v1381 = vunpack.c.l.b16 %v118
    %v1382 = vunpack.c.l.b16 %v119
    %v1383 = vunpack.c.l.b16 %v120
    %v1384 = vunpack.c.l.b16 %v121
    %v1385 = vunpack.c.l.b16 %v122
    %v1386 = vunpack.c.l.b16 %v123
    %v1387 = vunpack.c.l.b16 %v124
    %v1388 = vunpack.c.l.b16 %v125
    %v1389 = vunpack.c.l.b16 %v126
    %v1390 = vunpack.c.l.b16 %v127
    %v1391 = vunpack.c.l.b16 %v128
    %v1392 = vunpack.c.l.b16 %v129
    %v1393 = vunpack.c.l.b16 %v130
    %v1394 = vunpack.c.l.b16 %v131
    %v1395 = vunpack.c.l.b16 %v132
    %v1396 = vunpack.c.l.b16 %v133
    %v1397 = vunpack.c.l.b16 %v134
    %v1398 = vunpack.c.l.b16 %v135
    %v1399 = vunpack.c.l.b16 %v136
    %v1400 = vunpack.c.l.b16 %v137
    %v1401 = vunpack.c.l.b16 %v138
    %v1402 = vunpack.c.l.b16 %v139
    %v1403 = vunpack.c.l.b16 %v140
    %v1404 = vunpack.c.l.b16 %v141
    %v1405 = vunpack.c.l.b16 %v142
    %v1406 = vunpack.c.l.b16 %v143
    %v1407 = vunpack.c.l.b16 %v144
    %v1408 = vunpack.c.l.b16 %v145
    %v1409 = vunpack.c.l.b16 %v146
    %v1410 = vunpack.c.l.b16 %v147
    %v1411 = vunpack.c.l.b16 %v148
    %v1412 = vunpack.c.l.b16 %v149
    %v1413 = vunpack.c.l.b16 %v150
    %v1414 = vunpack.c.l.b16 %v151
    %v1415 = vunpack.c.l.b16 %v152
    %v1416 = vunpack.c.l.b16 %v153
    %v1417 = vunpack.c.l.b16 %v154
    %v1418 = vunpack.c.l.b16 %v155
    %v1419 = vunpack.c.l.b16 %v156
    %v1420 = vunpack.c.l.b16 %v157
    %v1421 = vunpack.c.l.b16 %v158
    %v1422 = vunpack.c.l.b16 %v159
    %v1423 = vunpack.c.l.b16 %v160
    %v1424 = vunpack.c.l.b16 %v161
    %v1425 = vunpack.c.l.b16 %v162
    %v1426 = vunpack.c.l.b16 %v163
    %v1427 = vunpack.c.l.b16 %v164
    %v1428 = vunpack.c.l.b16 %v165
    %v1429 = vunpack.c.l.b16 %v166
    %v1430 = vunpack.c.l.b16 %v167
    %v1431 = vunpack.c.l.b16 %v168
    %v1432 = vunpack.c.l.b16 %v169
    %v1433 = vunpack.c.l.b16 %v170
    %v1434 = vunpack.c.l.b16 %v171
    %v1435 = vunpack.c.l.b16 %v172
    %v1436 = vunpack.c.l.b16 %v173
    %v1437 = vunpack.c.l.b16 %v174
    %v1438 = vunpack.c.l.b16 %v175
    %v1439 = vunpack.c.l.b16 %v176
    %v1440 = vunpack.c.l.b16 %v177
    %v1441 = vunpack.c.l.b16 %v178
    %v1442 = vunpack.c.l.b16 %v179
    %v1443 = vunpack.c.l.b16 %v180
    %v1444 = vunpack.c.l.b16 %v181
    %v1445 = vunpack.c.l.b16 %v182
    %v1446 = vunpack.c.l.b16 %v183
    %v1447 = vunpack.c.l.b16 %v184
    %v1448 = vunpack.c.l.b16 %v185
    %v1449 = vunpack.c.l.b16 %v186
    %v1450 = vunpack.c.l.b16 %v187
    %v1451 = vunpack.c.l.b16 %v188
    %v1452 = vunpack.c.l.b16 %v189
    %v1453 = vunpack.c.l.b16 %v190
    %v1454 = vunpack.c.l.b16 %v191
    %v1455 = vunpack.c.l.b16 %v192
    %v1456 = vunpack.c.l.b16 %v193
    %v1457 = vunpack.c.l.b16 %v194
    %v1458 = vunpack.c.l.b16 %v195
    %v1459 = vunpack.c.l.b16 %v196
    %v1460 = vunpack.c.l.b16 %v197
    %v1461 = vunpack.c.l.b16 %v198
    %v1462 = vunpack.c.l.b16 %v199
    %v1463 = vunpack.c.l.b16 %v200
    %v1464 = vunpack.c.l.b16 %v201
    %v1465 = vunpack.c.l.b16 %v202
    %v1466 = vunpack.c.l.b16 %v203
    %v1467 = vunpack.c.l.b16 %v204
    %v1468 = vunpack.c.l.b16 %v205
    %v1469 = vunpack.c.l.b16 %v206
    %v1470 = vunpack.c.l.b16 %v207
    %v1471 = vunpack.c.l.b16 %v208
    %v1472 = vunpack.c.l.b16 %v209
    %v1473 = vunpack.c.l.b16 %v210
    %v1474 = vunpack.c.l.b16 %v211
    %v1475 = vunpack.c.l.b16 %v212
    %v1476 = vunpack.c.l.b16 %v213
    %v1477 = vunpack.c.l.b16 %v214
    %v1478 = vunpack.c.l.b16 %v215
    %v1479 = vunpack.c.l.b16 %v216
    %v1480 = vunpack.c.l.b16 %v217
    %v1481 = vunpack.c.l.b16 %v218
    %v1482 = vunpack.c.l.b16 %v219
    %v1483 = vunpack.c.l.b16 %v220
    %v1484 = vunpack.c.l.b16 %v221
    %v1485 = vunpack.c.l.b16 %v222
    %v1486 = vunpack.c.l.b16 %v223
    %v1487 = vunpack.c.l.b16 %v224
    %v1488 = vunpack.c.l.b16 %v225
    %v1489 = vunpack.c.l.b16 %v226
    %v1490 = vunpack.c.l.b16 %v227
    %v1491 = vunpack.c.l.b16 %v228
    %v1492 = vunpack.c.l.b16 %v229
    %v1493 = vunpack.c.l.b16 %v230
    %v1494 = vunpack.c.l.b16 %v231
    %v1495 = vunpack.c.l.b16 %v232
    %v1496 = vunpack.c.l.b16 %v233
    %v1497 = vunpack.c.l.b16 %v234
    %v1498 = vunpack.c.l.b16 %v235
    %v1499 = vunpack.c.l.b16 %v236
    %v1500 = vunpack.c.l.b16 %v237
    %v1501 = vunpack.c.l.b16 %v238
    %v1502 = vunpack.c.l.b16 %v239
    %v1503 = vunpack.c.l.b16 %v240
    %v1504 = vunpack.c.l.b16 %v241
    %v1505 = vunpack.c.l.b16 %v242
    %v1506 = vunpack.c.l.b16 %v243
    %v1507 = vunpack.c.l.b16 %v244
    %v1508 = vunpack.c.l.b16 %v245
    %v1509 = vunpack.c.l.b16 %v246
    %v1510 = vunpack.c.l.b16 %v247
    %v1511 = vunpack.c.l.b16 %v248
    %v1512 = vunpack.c.l.b16 %v249
    %v1513 = vunpack.c.l.b16 %v250
    %v1514 = vunpack.c.l.b16 %v251
    %v1515 = vunpack.c.l.b16 %v252
    %v1516 = vunpack.c.l.b16 %v253
    %v1517 = vunpack.c.l.b16 %v254
    %v1518 = vunpack.c.l.b16 %v255
    %v1519 = vunpack.c.l.b16 %v256
    %v1520 = vunpack.c.l.b16 %v257
    %v1521 = vunpack.c.l.b16 %v258
    %v1522 = vunpack.c.l.b16 %v259
    %v1523 = vunpack.c.l.b16 %v260
    %v1524 = vunpack.c.l.b16 %v261
    %v1525 = vunpack.c.l.b16 %v262
    %v1526 = vunpack.c.l.b16 %v263
    %v1527 = vunpack.c.l.b16 %v264
    %v1528 = vunpack.c.l.b16 %v265
    %v1529 = vunpack.c.l.b16 %v266
    %v1530 = vunpack.c.l.b16 %v267
    %v1531 = vunpack.c.l.b16 %v268
    %v1532 = vunpack.c.l.b16 %v269
    %v1533 = vunpack.c.l.b16 %v270
    %v1534 = vunpack.c.l.b16 %v271
    %v1535 = vunpack.c.l.b16 %v272
    %v1536 = vunpack.c.l.b16 %v273
    %v1537 = vunpack.c.l.b16 %v274
    %v1538 = vunpack.c.l.b16 %v275
    %v1539 = vunpack.c.l.b16 %v276
    %v1540 = vunpack.c.l.b16 %v277
    %v1541 = vunpack.c.l.b16 %v278
    %v1542 = vunpack.c.l.b16 %v279
    %v1543 = vunpack.c.l.b16 %v280
    %v1544 = vunpack.c.l.b16 %v281
    %v1545 = vunpack.c.l.b16 %v282
    %v1546 = vunpack.c.l.b16 %v283
    %v1547 = vunpack.c.l.b16 %v284
    %v1548 = vunpack.c.l.b16 %v285
    %v1549 = vunpack.c.l.b16 %v286
    %v1550 = vunpack.c.l.b16 %v287
    %v1551 = vunpack.c.l.b16 %v288
    %v1552 = vunpack.c.l.b16 %v289
    %v1553 = vunpack.c.l.b16 %v290
    %v1554 = vunpack.c.l.b16 %v291
    %v1555 = vunpack.c.l.b16 %v292
    %v1556 = vunpack.c.l.b16 %v293
    %v1557 = vunpack.c.l.b16 %v294
    %v1558 = vunpack.c.l.b16 %v295
    %v1559 = vunpack.c.l.b16 %v296
    %v1560 = vunpack.c.l.b16 %v297
    %v1561 = vunpack.c.l.b16 %v298
    %v1562 = vunpack.c.l.b16 %v299
    %v1563 = vunpack.c.l.b16 %v300
    %v1564 = vunpack.c.l.b16 %v301
    %v1565 = vunpack.c.l.b16 %v302
    %v1566 = vunpack.c.l.b16 %v303
    %v1567 = vunpack.c.l.b16 %v304
    %v1568 = vunpack.c.l.b16 %v305
    %v1569 = vunpack.c.l.b16 %v306
    %v1570 = vunpack.c.l.b16 %v307
    %v1571 = vunpack.c.l.b16 %v308
    %v1572 = vunpack.c.l.b16 %v309
    %v1573 = vunpack.c.l.b16 %v310
    %v1574 = vunpack.c.l.b16 %v311
    %v1575 = vunpack.c.l.b16 %v312
    %v1576 = vunpack.c.l.b16 %v313
    %v1577 = vunpack.c.l.b16 %v314
    %v1578 = vunpack.c.l.b16 %v315
    %v1579 = vunpack.c.l.b16 %v316
    %v1580 = vunpack.c.l.b16 %v317
    %v1581 = vunpack.c.l.b16 %v318
    %v1582 = vunpack.c.l.b16 %v319
    %v1583 = vunpack.c.l.b16 %v320
    %v1584 = vunpack.c.l.b16 %v321
    %v1585 = vunpack.c.l.b16 %v322
    %v1586 = vunpack.c.l.b16 %v323
    %v1587 = vunpack.c.l.b16 %v324
    %v1588 = vunpack.c.l.b16 %v325
    %v1589 = vunpack.c.l.b16 %v326
    %v1590 = vunpack.c.l.b16 %v327
    %v1591 = vunpack.c.l.b16 %v328
    %v1592 = vunpack.c.l.b16 %v329
    %v1593 = vunpack.c.l.b16 %v330
    %v1594 = vunpack.c.l.b16 %v331
    %v1595 = vunpack.c.l.b16 %v332
    %v1596 = vunpack.c.l.b16 %v333
    %v1597 = vunpack.c.l.b16 %v334
    %v1598 = vunpack.c.l.b16 %v335
    %v1599 = vunpack.c.l.b16 %v336
    %v1600 = vunpack.c.l.b16 %v337
    %v1601 = vunpack.c.l.b16 %v338
    %v1602 = vunpack.c.l.b16 %v339
    %v1603 = vunpack.c.l.b16 %v340
    %v1604 = vunpack.c.l.b16 %v341
    %v1605 = vunpack.c.l.b16 %v342
    %v1606 = vunpack.c.l.b16 %v343
    %v1607 = vunpack.c.l.b16 %v344
    %v1608 = vunpack.c.l.b16 %v345
    %v1609 = vunpack.c.l.b16 %v346
    %v1610 = vunpack.c.l.b16 %v347
    %v1611 = vunpack.c.l.b16 %v348
    %v1612 = vunpack.c.l.b16 %v349
    %v1613 = vunpack.c.l.b16 %v350
    %v1614 = vunpack.c.l.b16 %v351
    %v1615 = vunpack.c.l.b16 %v352
    %v1616 = vunpack.c.l.b16 %v353
    %v1617 = vunpack.c.l.b16 %v354
    %v1618 = vunpack.c.l.b16 %v355
    %v1619 = vunpack.c.l.b16 %v356
    %v1620 = vunpack.c.l.b16 %v357
    %v1621 = vunpack.c.l.b16 %v358
    %v1622 = vunpack.c.l.b16 %v359
    %v1623 = vunpack.c.l.b16 %v360
    %v1624 = vunpack.c.l.b16 %v361
    %v1625 = vunpack.c.l.b16 %v362
    %v1626 = vunpack.c.l.b16 %v363
    %v1627 = vunpack.c.l.b16 %v364
    %v1628 = vunpack.c.l.b16 %v365
    %v1629 = vunpack.c.l.b16 %v366
    %v1630 = vunpack.c.l.b16 %v367
    %v1631 = vunpack.c.l.b16 %v368
    %v1632 = vunpack.c.l.b16 %v369
    %v1633 = vunpack.c.l.b16 %v370
    %v1634 = vunpack.c.l.b16 %v371
    %v1635 = vunpack.c.l.b16 %v372
    %v1636 = vunpack.c.l.b16 %v373
    %v1637 = vunpack.c.l.b16 %v374
    %v1638 = vunpack.c.l.b16 %v375
    %v1639 = vunpack.c.l.b16 %v376
    %v1640 = vunpack.c.l.b16 %v377
    %v1641 = vunpack.c.l.b16 %v378
    %v1642 = vunpack.c.l.b16 %v379
    %v1643 = vunpack.c.l.b16 %v380
    %v1644 = vunpack.c.l.b16 %v381
    %v1645 = vunpack.c.l.b16 %v382
    %v1646 = vunpack.c.l.b16 %v383
    %v1647 = vunpack.c.l.b16 %v384
    %v1648 = vunpack.c.l.b16 %v385
    %v1649 = vunpack.c.l.b16 %v386
    %v1650 = vunpack.c.l.b16 %v387
    %v1651 = vunpack.c.l.b16 %v388
    %v1652 = vunpack.c.l.b16 %v389
    %v1653 = vunpack.c.l.b16 %v390
    %v1654 = vunpack.c.l.b16 %v391
    %v1655 = vunpack.c.l.b16 %v392
    %v1656 = vunpack.c.l.b16 %v393
    %v1657 = vunpack.c.l.b16 %v394
    %v1658 = vunpack.c.l.b16 %v395
    %v1659 = vunpack.c.l.b16 %v396
    %v1660 = vunpack.c.l.b16 %v397
    %v1661 = vunpack.c.l.b16 %v398
    %v1662 = vunpack.c.l.b16 %v399
    %v1663 = vunpack.c.l.b16 %v400
    %v1664 = vunpack.c.l.b16 %v401
    %v1665 = vunpack.c.l.b16 %v402
    %v1666 = vunpack.c.l.b16 %v403
    %v1667 = vunpack.c.l.b16 %v404
    %v1668 = vunpack.c.l.b16 %v405
    %v1669 = vunpack.c.l.b16 %v406
    %v1670 = vunpack.c.l.b16 %v407
    %v1671 = vunpack.c.l.b16 %v408
    %v1672 = vunpack.c.l.b16 %v409
    %v1673 = vunpack.c.l.b16 %v410
    %v1674 = vunpack.c.l.b16 %v411
    %v1675 = vunpack.c.l.b16 %v412
    %v1676 = vunpack.c.l.b16 %v413
    %v1677 = vunpack.c.l.b16 %v414
    %v1678 = vunpack.c.l.b16 %v415
    %v1679 = vunpack.c.l.b16 %v416
    %v1680 = vunpack.c.l.b16 %v417
    %v1681 = vunpack.c.l.b16 %v418
    %v1682 = vunpack.c.l.b16 %v419
    %v1683 = vunpack.c.l.b16 %v420
    %v1684 = vunpack.c.l.b16 %v421
    %v1685 = vunpack.c.l.b16 %v422
    %v1686 = vunpack.c.l.b16 %v423
    %v1687 = vunpack.c.l.b16 %v424
    %v1688 = vunpack.c.l.b16 %v425
    %v1689 = vunpack.c.l.b16 %v426
    %v1690 = vunpack.c.l.b16 %v427
    %v1691 = vunpack.c.l.b16 %v428
    %v1692 = vunpack.c.l.b16 %v429
    %v1693 = vunpack.c.l.b16 %v430
    %v1694 = vunpack.c.l.b16 %v431
    %v1695 = vunpack.c.l.b16 %v432
    %v1696 = vunpack.c.l.b16 %v433
    %v1697 = vunpack.c.l.b16 %v434
    %v1698 = vunpack.c.l.b16 %v435
    %v1699 = vunpack.c.l.b16 %v436
    %v1700 = vunpack.c.l.b16 %v437
    %v1701 = vunpack.c.l.b16 %v438
    %v1702 = vunpack.c.l.b16 %v439
    %v1703 = vunpack.c.l.b16 %v440
    %v1704 = vunpack.c.l.b16 %v441
    %v1705 = vunpack.c.l.b16 %v442
    %v1706 = vunpack.c.l.b16 %v443
    %v1707 = vunpack.c.l.b16 %v444
    %v1708 = vunpack.c.l.b16 %v445
    %v1709 = vunpack.c.l.b16 %v446
    %v1710 = vunpack.c.l.b16 %v447
    %v1711 = vunpack.c.l.b16 %v448
    %v1712 = vunpack.c.l.b16 %v449
    %v1713 = vunpack.c.l.b16 %v450
    %v1714 = vunpack.c.l.b16 %v451
    %v1715 = vunpack.c.l.b16 %v452
    %v1716 = vunpack.c.l.b16 %v453
    %v1717 = vunpack.c.l.b16 %v454
    %v1718 = vunpack.c.l.b16 %v455
    %v1719 = vunpack.c.l.b16 %v456
    %v1720 = vunpack.c.l.b16 %v457
    %v1721 = vunpack.c.l.b16 %v458
    %v1722 = vunpack.c.l.b16 %v459
    %v1723 = vunpack.c.l.b16 %v460
    %v1724 = vunpack.c.l.b16 %v461
    %v1725 = vunpack.c.l.b16 %v462
    %v1726 = vunpack.c.l.b16 %v463
    %v1727 = vunpack.c.l.b16 %v464
    %v1728 = vunpack.c.l.b16 %v465
    %v1729 = vunpack.c.l.b16 %v466
    %v1730 = vunpack.c.l.b16 %v467
    %v1731 = vunpack.c.l.b16 %v468
    %v1732 = vunpack.c.l.b16 %v469
    %v1733 = vunpack.c.l.b16 %v470
    %v1734 = vunpack.c.l.b16 %v471
    %v1735 = vunpack.c.l.b16 %v472
    %v1736 = vunpack.c.l.b16 %v473
    %v1737 = vunpack.c.l.b16 %v474
    %v1738 = vunpack.c.l.b16 %v475
    %v1739 = vunpack.c.l.b16 %v476
    %v1740 = vunpack.c.l.b16 %v477
    %v1741 = vunpack.c.l.b16 %v478
    %v1742 = vunpack.c.l.b16 %v479
    %v1743 = vunpack.c.l.b16 %v480
    %v1744 = vunpack.c.l.b16 %v481
    %v1745 = vunpack.c.l.b16 %v482
    %v1746 = vunpack.c.l.b16 %v483
    %v1747 = vunpack.c.l.b16 %v484
    %v1748 = vunpack.c.l.b16 %v485
    %v1749 = vunpack.c.l.b16 %v486
    %v1750 = vunpack.c.l.b16 %v487
    %v1751 = vunpack.c.l.b16 %v488
    %v1752 = vunpack.c.l.b16 %v489
    %v1753 = vunpack.c.l.b16 %v490
    %v1754 = vunpack.c.l.b16 %v491
    %v1755 = vunpack.c.l.b16 %v492
    %v1756 = vunpack.c.l.b16 %v493
    %v1757 = vunpack.c.l.b16 %v494
    %v1758 = vunpack.c.l.b16 %v495
    %v1759 = vunpack.c.l.b16 %v496
    %v1760 = vunpack.c.l.b16 %v497
    %v1761 = vunpack.c.l.b16 %v498
    %v1762 = vunpack.c.l.b16 %v499
    %v1763 = vunpack.c.l.b16 %v500
    %v1764 = vunpack.c.l.b16 %v501
    %v1765 = vunpack.c.l.b16 %v502
    %v1766 = vunpack.c.l.b16 %v503
    %v1767 = vunpack.c.l.b16 %v504
    %v1768 = vunpack.c.l.b16 %v505
    %v1769 = vunpack.c.l.b16 %v506
    %v1770 = vunpack.c.l.b16 %v507
    %v1771 = vunpack.c.l.b16 %v508
    %v1772 = vunpack.c.l.b16 %v509
    %v1773 = vunpack.c.l.b16 %v510
    %v1774 = vunpack.c.l.b16 %v511
    %v1775 = vunpack.c.l.b16 %v512
    %v1776 = vunpack.c.l.b16 %v513
    %v1777 = vunpack.c.l.b16 %v514
    %v1778 = vunpack.c.l.b16 %v515
    %v1779 = vunpack.c.l.b16 %v516
    %v1780 = vunpack.c.l.b16 %v517
    %v1781 = vunpack.c.l.b16 %v518
    %v1782 = vunpack.c.l.b16 %v519
    %v1783 = vunpack.c.l.b16 %v520
    %v1784 = vunpack.c.l.b16 %v521
    %v1785 = vunpack.c.l.b16 %v522
    %v1786 = vunpack.c.l.b16 %v523
    %v1787 = vunpack.c.l.b16 %v524
    %v1788 = vunpack.c.l.b16 %v525
    %v1789 = vunpack.c.l.b16 %v526
    %v1790 = vunpack.c.l.b16 %v527
    %v1791 = vunpack.c.l.b16 %v528
    %v1792 = vunpack.c.l.b16 %v529
    %v1793 = vunpack.c.l.b16 %v530
    %v1794 = vunpack.c.l.b16 %v531
    %v1795 = vpack.c.b16 %v1284, %v1283
    %v1796 = vpack.c.b16 %v1286, %v1285
    %v1797 = vpack.c.b16 %v1288, %v1287
    %v1798 = vpack.c.b16 %v1290, %v1289
    %v1799 = vpack.c.b16 %v1292, %v1291
    %v1800 = vpack.c.b16 %v1294, %v1293
    %v1801 = vpack.c.b16 %v1296, %v1295
    %v1802 = vpack.c.b16 %v1298, %v1297
    %v1803 = vpack.c.b16 %v1300, %v1299
    %v1804 = vpack.c.b16 %v1302, %v1301
    %v1805 = vpack.c.b16 %v1304, %v1303
    %v1806 = vpack.c.b16 %v1306, %v1305
    %v1807 = vpack.c.b16 %v1308, %v1307
    %v1808 = vpack.c.b16 %v1310, %v1309
    %v1809 = vpack.c.b16 %v1312, %v1311
    %v1810 = vpack.c.b16 %v1314, %v1313
    %v1811 = vpack.c.b16 %v1316, %v1315
    %v1812 = vpack.c.b16 %v1318, %v1317
    %v1813 = vpack.c.b16 %v1320, %v1319
    %v1814 = vpack.c.b16 %v1322, %v1321
    %v1815 = vpack.c.b16 %v1324, %v1323
    %v1816 = vpack.c.b16 %v1326, %v1325
    %v1817 = vpack.c.b16 %v1328, %v1327
    %v1818 = vpack.c.b16 %v1330, %v1329
    %v1819 = vpack.c.b16 %v1332, %v1331
    %v1820 = vpack.c.b16 %v1334, %v1333
    %v1821 = vpack.c.b16 %v1336, %v1335
    %v1822 = vpack.c.b16 %v1338, %v1337
    %v1823 = vpack.c.b16 %v1340, %v1339
    %v1824 = vpack.c.b16 %v1342, %v1341
    %v1825 = vpack.c.b16 %v1344, %v1343
    %v1826 = vpack.c.b16 %v1346, %v1345
    %v1827 = vpack.c.b16 %v1348, %v1347
    %v1828 = vpack.c.b16 %v1350, %v1349
    %v1829 = vpack.c.b16 %v1352, %v1351
    %v1830 = vpack.c.b16 %v1354, %v1353
    %v1831 = vpack.c.b16 %v1356, %v1355
    %v1832 = vpack.c.b16 %v1358, %v1357
    %v1833 = vpack.c.b16 %v1360, %v1359
    %v1834 = vpack.c.b16 %v1362, %v1361
    %v1835 = vpack.c.b16 %v1364, %v1363
    %v1836 = vpack.c.b16 %v1366, %v1365
    %v1837 = vpack.c.b16 %v1368, %v1367
    %v1838 = vpack.c.b16 %v1370, %v1369
    %v1839 = vpack.c.b16 %v1372, %v1371
    %v1840 = vpack.c.b16 %v1374, %v1373
    %v1841 = vpack.c.b16 %v1376, %v1375
    %v1842 = vpack.c.b16 %v1378, %v1377
    %v1843 = vpack.c.b16 %v1380, %v1379
    %v1844 = vpack.c.b16 %v1382, %v1381
    %v1845 = vpack.c.b16 %v1384, %v1383
    %v1846 = vpack.c.b16 %v1386, %v1385
    %v1847 = vpack.c.b16 %v1388, %v1387
    %v1848 = vpack.c.b16 %v1390, %v1389
    %v1849 = vpack.c.b16 %v1392, %v1391
    %v1850 = vpack.c.b16 %v1394, %v1393
    %v1851 = vpack.c.b16 %v1396, %v1395
    %v1852 = vpack.c.b16 %v1398, %v1397
    %v1853 = vpack.c.b16 %v1400, %v1399
    %v1854 = vpack.c.b16 %v1402, %v1401
    %v1855 = vpack.c.b16 %v1404, %v1403
    %v1856 = vpack.c.b16 %v1406, %v1405
    %v1857 = vpack.c.b16 %v1408, %v1407
    %v1858 = vpack.c.b16 %v1410, %v1409
    %v1859 = vpack.c.b16 %v1412, %v1411
    %v1860 = vpack.c.b16 %v1414, %v1413
    %v1861 = vpack.c.b16 %v1416, %v1415
    %v1862 = vpack.c.b16 %v1418, %v1417
    %v1863 = vpack.c.b16 %v1420, %v1419
    %v1864 = vpack.c.b16 %v1422, %v1421
    %v1865 = vpack.c.b16 %v1424, %v1423
    %v1866 = vpack.c.b16 %v1426, %v1425
    %v1867 = vpack.c.b16 %v1428, %v1427
    %v1868 = vpack.c.b16 %v1430, %v1429
    %v1869 = vpack.c.b16 %v1432, %v1431
    %v1870 = vpack.c.b16 %v1434, %v1433
    %v1871 = vpack.c.b16 %v1436, %v1435
    %v1872 = vpack.c.b16 %v1438, %v1437
    %v1873 = vpack.c.b16 %v1440, %v1439
    %v1874 = vpack.c.b16 %v1442, %v1441
    %v1875 = vpack.c.b16 %v1444, %v1443
    %v1876 = vpack.c.b16 %v1446, %v1445
    %v1877 = vpack.c.b16 %v1448, %v1447
    %v1878 = vpack.c.b16 %v1450, %v1449
    %v1879 = vpack.c.b16 %v1452, %v1451
    %v1880 = vpack.c.b16 %v1454, %v1453
    %v1881 = vpack.c.b16 %v1456, %v1455
    %v1882 = vpack.c.b16 %v1458, %v1457
    %v1883 = vpack.c.b16 %v1460, %v1459
    %v1884 = vpack.c.b16 %v1462, %v1461
    %v1885 = vpack.c.b16 %v1464, %v1463
    %v1886 = vpack.c.b16 %v1466, %v1465
    %v1887 = vpack.c.b16 %v1468, %v1467
    %v1888 = vpack.c.b16 %v1470, %v1469
    %v1889 = vpack.c.b16 %v1472, %v1471
    %v1890 = vpack.c.b16 %v1474, %v1473
    %v1891 = vpack.c.b16 %v1476, %v1475
    %v1892 = vpack.c.b16 %v1478, %v1477
    %v1893 = vpack.c.b16 %v1480, %v1479
    %v1894 = vpack.c.b16 %v1482, %v1481
    %v1895 = vpack.c.b16 %v1484, %v1483
    %v1896 = vpack.c.b16 %v1486, %v1485
    %v1897 = vpack.c.b16 %v1488, %v1487
    %v1898 = vpack.c.b16 %v1490, %v1489
    %v1899 = vpack.c.b16 %v1492, %v1491
    %v1900 = vpack.c.b16 %v1494, %v1493
    %v1901 = vpack.c.b16 %v1496, %v1495
    %v1902 = vpack.c.b16 %v1498, %v1497
    %v1903 = vpack.c.b16 %v1500, %v1499
    %v1904 = vpack.c.b16 %v1502, %v1501
    %v1905 = vpack.c.b16 %v1504, %v1503
    %v1906 = vpack.c.b16 %v1506, %v1505
    %v1907 = vpack.c.b16 %v1508, %v1507
    %v1908 = vpack.c.b16 %v1510, %v1509
    %v1909 = vpack.c.b16 %v1512, %v1511
    %v1910 = vpack.c.b16 %v1514, %v1513
    %v1911 = vpack.c.b16 %v1516, %v1515
    %v1912 = vpack.c.b16 %v1518, %v1517
    %v1913 = vpack.c.b16 %v1520, %v1519
    %v1914 = vpack.c.b16 %v1522, %v1521
    %v1915 = vpack.c.b16 %v1524, %v1523
    %v1916 = vpack.c.b16 %v1526, %v1525
    %v1917 = vpack.c.b16 %v1528, %v1527
    %v1918 = vpack.c.b16 %v1530, %v1529
    %v1919 = vpack.c.b16 %v1532, %v1531
    %v1920 = vpack.c.b16 %v1534, %v1533
    %v1921 = vpack.c.b16 %v1536, %v1535
    %v1922 = vpack.c.b16 %v1538, %v1537
    %v1923 = vpack.c.b16 %v1540, %v1539
    %v1924 = vpack.c.b16 %v1542, %v1541
    %v1925 = vpack.c.b16 %v1544, %v1543
    %v1926 = vpack.c.b16 %v1546, %v1545
    %v1927 = vpack.c.b16 %v1548, %v1547
    %v1928 = vpack.c.b16 %v1550, %v1549
    %v1929 = vpack.c.b16 %v1552, %v1551
    %v1930 = vpack.c.b16 %v1554, %v1553
    %v1931 = vpack.c.b16 %v1556, %v1555
    %v1932 = vpack.c.b16 %v1558, %v1557
    %v1933 = vpack.c.b16 %v1560, %v1559
    %v1934 = vpack.c.b16 %v1562, %v1561
    %v1935 = vpack.c.b16 %v1564, %v1563
    %v1936 = vpack.c.b16 %v1566, %v1565
    %v1937 = vpack.c.b16 %v1568, %v1567
    %v1938 = vpack.c.b16 %v1570, %v1569
    %v1939 = vpack.c.b16 %v1572, %v1571
    %v1940 = vpack.c.b16 %v1574, %v1573
    %v1941 = vpack.c.b16 %v1576, %v1575
    %v1942 = vpack.c.b16 %v1578, %v1577
    %v1943 = vpack.c.b16 %v1580, %v1579
    %v1944 = vpack.c.b16 %v1582, %v1581
    %v1945 = vpack.c.b16 %v1584, %v1583
    %v1946 = vpack.c.b16 %v1586, %v1585
    %v1947 = vpack.c.b16 %v1588, %v1587
    %v1948 = vpack.c.b16 %v1590, %v1589
    %v1949 = vpack.c.b16 %v1592, %v1591
    %v1950 = vpack.c.b16 %v1594, %v1593
    %v1951 = vpack.c.b16 %v1596, %v1595
    %v1952 = vpack.c.b16 %v1598, %v1597
    %v1953 = vpack.c.b16 %v1600, %v1599
    %v1954 = vpack.c.b16 %v1602, %v1601
    %v1955 = vpack.c.b16 %v1604, %v1603
    %v1956 = vpack.c.b16 %v1606, %v1605
    %v1957 = vpack.c.b16 %v1608, %v1607
    %v1958 = vpack.c.b16 %v1610, %v1609
    %v1959 = vpack.c.b16 %v1612, %v1611
    %v1960 = vpack.c.b16 %v1614, %v1613
    %v1961 = vpack.c.b16 %v1616, %v1615
    %v1962 = vpack.c.b16 %v1618, %v1617
    %v1963 = vpack.c.b16 %v1620, %v1619
    %v1964 = vpack.c.b16 %v1622, %v1621
    %v1965 = vpack.c.b16 %v1624, %v1623
    %v1966 = vpack.c.b16 %v1626, %v1625
    %v1967 = vpack.c.b16 %v1628, %v1627
    %v1968 = vpack.c.b16 %v1630, %v1629
    %v1969 = vpack.c.b16 %v1632, %v1631
    %v1970 = vpack.c.b16 %v1634, %v1633
    %v1971 = vpack.c.b16 %v1636, %v1635
    %v1972 = vpack.c.b16 %v1638, %v1637
    %v1973 = vpack.c.b16 %v1640, %v1639
    %v1974 = vpack.c.b16 %v1642, %v1641
    %v1975 = vpack.c.b16 %v1644, %v1643
    %v1976 = vpack.c.b16 %v1646, %v1645
    %v1977 = vpack.c.b16 %v1648, %v1647
    %v1978 = vpack.c.b16 %v1650, %v1649
    %v1979 = vpack.c.b16 %v1652, %v1651
    %v1980 = vpack.c.b16 %v1654, %v1653
    %v1981 = vpack.c.b16 %v1656, %v1655
    %v1982 = vpack.c.b16 %v1658, %v1657
    %v1983 = vpack.c.b16 %v1660, %v1659
    %v1984 = vpack.c.b16 %v1662, %v1661
    %v1985 = vpack.c.b16 %v1664, %v1663
    %v1986 = vpack.c.b16 %v1666, %v1665
    %v1987 = vpack.c.b16 %v1668, %v1667
    %v1988 = vpack.c.b16 %v1670, %v1669
    %v1989 = vpack.c.b16 %v1672, %v1671
    %v1990 = vpack.c.b16 %v1674, %v1673
    %v1991 = vpack.c.b16 %v1676, %v1675
    %v1992 = vpack.c.b16 %v1678, %v1677
    %v1993 = vpack.c.b16 %v1680, %v1679
    %v1994 = vpack.c.b16 %v1682, %v1681
    %v1995 = vpack.c.b16 %v1684, %v1683
    %v1996 = vpack.c.b16 %v1686, %v1685
    %v1997 = vpack.c.b16 %v1688, %v1687
    %v1998 = vpack.c.b16 %v1690, %v1689
    %v1999 = vpack.c.b16 %v1692, %v1691
    %v2000 = vpack.c.b16 %v1694, %v1693
    %v2001 = vpack.c.b16 %v1696, %v1695
    %v2002 = vpack.c.b16 %v1698, %v1697
    %v2003 = vpack.c.b16 %v1700, %v1699
    %v2004 = vpack.c.b16 %v1702, %v1701
    %v2005 = vpack.c.b16 %v1704, %v1703
    %v2006 = vpack.c.b16 %v1706, %v1705
    %v2007 = vpack.c.b16 %v1708, %v1707
    %v2008 = vpack.c.b16 %v1710, %v1709
    %v2009 = vpack.c.b16 %v1712, %v1711
    %v2010 = vpack.c.b16 %v1714, %v1713
    %v2011 = vpack.c.b16 %v1716, %v1715
    %v2012 = vpack.c.b16 %v1718, %v1717
    %v2013 = vpack.c.b16 %v1720, %v1719
    %v2014 = vpack.c.b16 %v1722, %v1721
    %v2015 = vpack.c.b16 %v1724, %v1723
    %v2016 = vpack.c.b16 %v1726, %v1725
    %v2017 = vpack.c.b16 %v1728, %v1727
    %v2018 = vpack.c.b16 %v1730, %v1729
    %v2019 = vpack.c.b16 %v1732, %v1731
    %v2020 = vpack.c.b16 %v1734, %v1733
    %v2021 = vpack.c.b16 %v1736, %v1735
    %v2022 = vpack.c.b16 %v1738, %v1737
    %v2023 = vpack.c.b16 %v1740, %v1739
    %v2024 = vpack.c.b16 %v1742, %v1741
    %v2025 = vpack.c.b16 %v1744, %v1743
    %v2026 = vpack.c.b16 %v1746, %v1745
    %v2027 = vpack.c.b16 %v1748, %v1747
    %v2028 = vpack.c.b16 %v1750, %v1749
    %v2029 = vpack.c.b16 %v1752, %v1751
    %v2030 = vpack.c.b16 %v1754, %v1753
    %v2031 = vpack.c.b16 %v1756, %v1755
    %v2032 = vpack.c.b16 %v1758, %v1757
    %v2033 = vpack.c.b16 %v1760, %v1759
    %v2034 = vpack.c.b16 %v1762, %v1761
    %v2035 = vpack.c.b16 %v1764, %v1763
    %v2036 = vpack.c.b16 %v1766, %v1765
    %v2037 = vpack.c.b16 %v1768, %v1767
    %v2038 = vpack.c.b16 %v1770, %v1769
    %v2039 = vpack.c.b16 %v1772, %v1771
    %v2040 = vpack.c.b16 %v1774, %v1773
    %v2041 = vpack.c.b16 %v1776, %v1775
    %v2042 = vpack.c.b16 %v1778, %v1777
    %v2043 = vpack.c.b16 %v1780, %v1779
    %v2044 = vpack.c.b16 %v1782, %v1781
    %v2045 = vpack.c.b16 %v1784, %v1783
    %v2046 = vpack.c.b16 %v1786, %v1785
    %v2047 = vpack.c.b16 %v1788, %v1787
    %v2048 = vpack.c.b16 %v1790, %v1789
    %v2049 = vpack.c.b16 %v1792, %v1791
    %v2050 = vpack.c.b16 %v1794, %v1793
    %2307 = vmatprep.subr.bf16.mxu0 0
    %2308 = vmatpush1.bf16.msra.mxu0 %v1795
    %2309 = vmatprep.subr.bf16.mxu0 0
    %2310 = vmatpush1.bf16.msra.mxu0 %v1796
    %2311 = vmatprep.subr.bf16.mxu0 0
    %2312 = vmatpush1.bf16.msra.mxu0 %v1797
    %2313 = vmatprep.subr.bf16.mxu0 0
    %2314 = vmatpush1.bf16.msra.mxu0 %v1798
    %2315 = vmatprep.subr.bf16.mxu0 0
    %2316 = vmatpush1.bf16.msra.mxu0 %v1799
    %2317 = vmatprep.subr.bf16.mxu0 0
    %2318 = vmatpush1.bf16.msra.mxu0 %v1800
    %2319 = vmatprep.subr.bf16.mxu0 0
    %2320 = vmatpush1.bf16.msra.mxu0 %v1801
    %2321 = vmatprep.subr.bf16.mxu0 0
    %2322 = vmatpush1.bf16.msra.mxu0 %v1802
    %2323 = vmatprep.subr.bf16.mxu0 0
    %2324 = vmatpush1.bf16.msra.mxu0 %v1803
    %2325 = vmatprep.subr.bf16.mxu0 0
    %2326 = vmatpush1.bf16.msra.mxu0 %v1804
    %2327 = vmatprep.subr.bf16.mxu0 0
    %2328 = vmatpush1.bf16.msra.mxu0 %v1805
    %2329 = vmatprep.subr.bf16.mxu0 0
    %2330 = vmatpush1.bf16.msra.mxu0 %v1806
    %2331 = vmatprep.subr.bf16.mxu0 0
    %2332 = vmatpush1.bf16.msra.mxu0 %v1807
    %2333 = vmatprep.subr.bf16.mxu0 0
    %2334 = vmatpush1.bf16.msra.mxu0 %v1808
    %2335 = vmatprep.subr.bf16.mxu0 0
    %2336 = vmatpush1.bf16.msra.mxu0 %v1809
    %2337 = vmatprep.subr.bf16.mxu0 0
    %2338 = vmatpush1.bf16.msra.mxu0 %v1810
    %2339 = vmatprep.mubr.bf16.mxu0 %v580
    %2340 = vmatmul.mubr.bf16.gmra.mrb[0].mxu0 %v566
    %v2341 = vpop.f32.mrb[0].mxu0
    %v2342 = vadd.f32 %v537, %v2341
    %v2343 = vpop.f32.mrb[0].mxu0
    %v2344 = vpop.f32.mrb[0].mxu0
    %v2345 = vpop.f32.mrb[0].mxu0
    %2346 = vdwg.mxu0
    %2347 = vmatprep.subr.bf16.mxu0 0
    %2348 = vmatpush1.bf16.msra.mxu0 %v1811
    %2349 = vmatprep.subr.bf16.mxu0 0
    %2350 = vmatpush1.bf16.msra.mxu0 %v1812
    %2351 = vmatprep.subr.bf16.mxu0 0
    %2352 = vmatpush1.bf16.msra.mxu0 %v1813
    %2353 = vmatprep.subr.bf16.mxu0 0
    %2354 = vmatpush1.bf16.msra.mxu0 %v1814
    %2355 = vmatprep.subr.bf16.mxu0 0
    %2356 = vmatpush1.bf16.msra.mxu0 %v1815
    %2357 = vmatprep.subr.bf16.mxu0 0
    %2358 = vmatpush1.bf16.msra.mxu0 %v1816
    %2359 = vmatprep.subr.bf16.mxu0 0
    %2360 = vmatpush1.bf16.msra.mxu0 %v1817
    %2361 = vmatprep.subr.bf16.mxu0 0
    %2362 = vmatpush1.bf16.msra.mxu0 %v1818
    %2363 = vmatprep.subr.bf16.mxu0 0
    %2364 = vmatpush1.bf16.msra.mxu0 %v1819
    %2365 = vmatprep.subr.bf16.mxu0 0
    %2366 = vmatpush1.bf16.msra.mxu0 %v1820
    %2367 = vmatprep.subr.bf16.mxu0 0
    %2368 = vmatpush1.bf16.msra.mxu0 %v1821
    %2369 = vmatprep.subr.bf16.mxu0 0
    %2370 = vmatpush1.bf16.msra.mxu0 %v1822
    %2371 = vmatprep.subr.bf16.mxu0 0
    %2372 = vmatpush1.bf16.msra.mxu0 %v1823
    %2373 = vmatprep.subr.bf16.mxu0 0
    %2374 = vmatpush1.bf16.msra.mxu0 %v1824
    %2375 = vmatprep.subr.bf16.mxu0 0
    %2376 = vmatpush1.bf16.msra.mxu0 %v1825
    %2377 = vmatprep.subr.bf16.mxu0 0
    %2378 = vmatpush1.bf16.msra.mxu0 %v1826
    %2379 = vmatprep.mubr.bf16.mxu0 %v590
    %2380 = vmatmul.mubr.bf16.gmra.mrb[0].mxu0 %v588
    %v2381 = vpop.f32.mrb[0].mxu0
    %v2382 = vadd.f32 %v2342, %v2381
    %v2383 = vpop.f32.mrb[0].mxu0
    %v2384 = vpop.f32.mrb[0].mxu0
    %v2385 = vpop.f32.mrb[0].mxu0
    %2386 = vdwg.mxu0
    %2387 = vmatprep.subr.bf16.mxu0 0
    %2388 = vmatpush1.bf16.msra.mxu0 %v1827
    %2389 = vmatprep.subr.bf16.mxu0 0
    %2390 = vmatpush1.bf16.msra.mxu0 %v1828
    %2391 = vmatprep.subr.bf16.mxu0 0
    %2392 = vmatpush1.bf16.msra.mxu0 %v1829
    %2393 = vmatprep.subr.bf16.mxu0 0
    %2394 = vmatpush1.bf16.msra.mxu0 %v1830
    %2395 = vmatprep.subr.bf16.mxu0 0
    %2396 = vmatpush1.bf16.msra.mxu0 %v1831
    %2397 = vmatprep.subr.bf16.mxu0 0
    %2398 = vmatpush1.bf16.msra.mxu0 %v1832
    %2399 = vmatprep.subr.bf16.mxu0 0
    %2400 = vmatpush1.bf16.msra.mxu0 %v1833
    %2401 = vmatprep.subr.bf16.mxu0 0
    %2402 = vmatpush1.bf16.msra.mxu0 %v1834
    %2403 = vmatprep.subr.bf16.mxu0 0
    %2404 = vmatpush1.bf16.msra.mxu0 %v1835
    %2405 = vmatprep.subr.bf16.mxu0 0
    %2406 = vmatpush1.bf16.msra.mxu0 %v1836
    %2407 = vmatprep.subr.bf16.mxu0 0
    %2408 = vmatpush1.bf16.msra.mxu0 %v1837
    %2409 = vmatprep.subr.bf16.mxu0 0
    %2410 = vmatpush1.bf16.msra.mxu0 %v1838
    %2411 = vmatprep.subr.bf16.mxu0 0
    %2412 = vmatpush1.bf16.msra.mxu0 %v1839
    %2413 = vmatprep.subr.bf16.mxu0 0
    %2414 = vmatpush1.bf16.msra.mxu0 %v1840
    %2415 = vmatprep.subr.bf16.mxu0 0
    %2416 = vmatpush1.bf16.msra.mxu0 %v1841
    %2417 = vmatprep.subr.bf16.mxu0 0
    %2418 = vmatpush1.bf16.msra.mxu0 %v1842
    %2419 = vmatprep.mubr.bf16.mxu0 %v587
    %2420 = vmatmul.mubr.bf16.gmra.mrb[0].mxu0 %v573
    %v2421 = vpop.f32.mrb[0].mxu0
    %v2422 = vadd.f32 %v2382, %v2421
    %v2423 = vpop.f32.mrb[0].mxu0
    %v2424 = vpop.f32.mrb[0].mxu0
    %v2425 = vpop.f32.mrb[0].mxu0
    %2426 = vdwg.mxu0
    %2427 = vmatprep.subr.bf16.mxu0 0
    %2428 = vmatpush1.bf16.msra.mxu0 %v1843
    %2429 = vmatprep.subr.bf16.mxu0 0
    %2430 = vmatpush1.bf16.msra.mxu0 %v1844
    %2431 = vmatprep.subr.bf16.mxu0 0
    %2432 = vmatpush1.bf16.msra.mxu0 %v1845
    %2433 = vmatprep.subr.bf16.mxu0 0
    %2434 = vmatpush1.bf16.msra.mxu0 %v1846
    %2435 = vmatprep.subr.bf16.mxu0 0
    %2436 = vmatpush1.bf16.msra.mxu0 %v1847
    %2437 = vmatprep.subr.bf16.mxu0 0
    %2438 = vmatpush1.bf16.msra.mxu0 %v1848
    %2439 = vmatprep.subr.bf16.mxu0 0
    %2440 = vmatpush1.bf16.msra.mxu0 %v1849
    %2441 = vmatprep.subr.bf16.mxu0 0
    %2442 = vmatpush1.bf16.msra.mxu0 %v1850
    %2443 = vmatprep.subr.bf16.mxu0 0
    %2444 = vmatpush1.bf16.msra.mxu0 %v1851
    %2445 = vmatprep.subr.bf16.mxu0 0
    %2446 = vmatpush1.bf16.msra.mxu0 %v1852
    %2447 = vmatprep.subr.bf16.mxu0 0
    %2448 = vmatpush1.bf16.msra.mxu0 %v1853
    %2449 = vmatprep.subr.bf16.mxu0 0
    %2450 = vmatpush1.bf16.msra.mxu0 %v1854
    %2451 = vmatprep.subr.bf16.mxu0 0
    %2452 = vmatpush1.bf16.msra.mxu0 %v1855
    %2453 = vmatprep.subr.bf16.mxu0 0
    %2454 = vmatpush1.bf16.msra.mxu0 %v1856
    %2455 = vmatprep.subr.bf16.mxu0 0
    %2456 = vmatpush1.bf16.msra.mxu0 %v1857
    %2457 = vmatprep.subr.bf16.mxu0 0
    %2458 = vmatpush1.bf16.msra.mxu0 %v1858
    %2459 = vmatprep.mubr.bf16.mxu0 %v591
    %2460 = vmatmul.mubr.bf16.gmra.mrb[0].mxu0 %v589
    %v2461 = vpop.f32.mrb[0].mxu0
    %v2462 = vadd.f32 %v2422, %v2461
    %v2463 = vpop.f32.mrb[0].mxu0
    %v2464 = vpop.f32.mrb[0].mxu0
    %v2465 = vpop.f32.mrb[0].mxu0
    %2466 = vdwg.mxu0
    %2467 = vmatprep.subr.bf16.mxu0 0
    %2468 = vmatpush1.bf16.msra.mxu0 %v1859
    %2469 = vmatprep.subr.bf16.mxu0 0
    %2470 = vmatpush1.bf16.msra.mxu0 %v1860
    %2471 = vmatprep.subr.bf16.mxu0 0
    %2472 = vmatpush1.bf16.msra.mxu0 %v1861
    %2473 = vmatprep.subr.bf16.mxu0 0
    %2474 = vmatpush1.bf16.msra.mxu0 %v1862
    %2475 = vmatprep.subr.bf16.mxu0 0
    %2476 = vmatpush1.bf16.msra.mxu0 %v1863
    %2477 = vmatprep.subr.bf16.mxu0 0
    %2478 = vmatpush1.bf16.msra.mxu0 %v1864
    %2479 = vmatprep.subr.bf16.mxu0 0
    %2480 = vmatpush1.bf16.msra.mxu0 %v1865
    %2481 = vmatprep.subr.bf16.mxu0 0
    %2482 = vmatpush1.bf16.msra.mxu0 %v1866
    %2483 = vmatprep.subr.bf16.mxu0 0
    %2484 = vmatpush1.bf16.msra.mxu0 %v1867
    %2485 = vmatprep.subr.bf16.mxu0 0
    %2486 = vmatpush1.bf16.msra.mxu0 %v1868
    %2487 = vmatprep.subr.bf16.mxu0 0
    %2488 = vmatpush1.bf16.msra.mxu0 %v1869
    %2489 = vmatprep.subr.bf16.mxu0 0
    %2490 = vmatpush1.bf16.msra.mxu0 %v1870
    %2491 = vmatprep.subr.bf16.mxu0 0
    %2492 = vmatpush1.bf16.msra.mxu0 %v1871
    %2493 = vmatprep.subr.bf16.mxu0 0
    %2494 = vmatpush1.bf16.msra.mxu0 %v1872
    %2495 = vmatprep.subr.bf16.mxu0 0
    %2496 = vmatpush1.bf16.msra.mxu0 %v1873
    %2497 = vmatprep.subr.bf16.mxu0 0
    %2498 = vmatpush1.bf16.msra.mxu0 %v1874
    %2499 = vmatprep.mubr.bf16.mxu0 %v629
    %2500 = vmatmul.mubr.bf16.gmra.mrb[0].mxu0 %v615
    %v2501 = vpop.f32.mrb[0].mxu0
    %v2502 = vadd.f32 %v2462, %v2501
    %v2503 = vpop.f32.mrb[0].mxu0
    %v2504 = vpop.f32.mrb[0].mxu0
    %v2505 = vpop.f32.mrb[0].mxu0
    %2506 = vdwg.mxu0
    %2507 = vmatprep.subr.bf16.mxu0 0
    %2508 = vmatpush1.bf16.msra.mxu0 %v1875
    %2509 = vmatprep.subr.bf16.mxu0 0
    %2510 = vmatpush1.bf16.msra.mxu0 %v1876
    %2511 = vmatprep.subr.bf16.mxu0 0
    %2512 = vmatpush1.bf16.msra.mxu0 %v1877
    %2513 = vmatprep.subr.bf16.mxu0 0
    %2514 = vmatpush1.bf16.msra.mxu0 %v1878
    %2515 = vmatprep.subr.bf16.mxu0 0
    %2516 = vmatpush1.bf16.msra.mxu0 %v1879
    %2517 = vmatprep.subr.bf16.mxu0 0
    %2518 = vmatpush1.bf16.msra.mxu0 %v1880
    %2519 = vmatprep.subr.bf16.mxu0 0
    %2520 = vmatpush1.bf16.msra.mxu0 %v1881
    %2521 = vmatprep.subr.bf16.mxu0 0
    %2522 = vmatpush1.bf16.msra.mxu0 %v1882
    %2523 = vmatprep.subr.bf16.mxu0 0
    %2524 = vmatpush1.bf16.msra.mxu0 %v1883
    %2525 = vmatprep.subr.bf16.mxu0 0
    %2526 = vmatpush1.bf16.msra.mxu0 %v1884
    %2527 = vmatprep.subr.bf16.mxu0 0
    %2528 = vmatpush1.bf16.msra.mxu0 %v1885
    %2529 = vmatprep.subr.bf16.mxu0 0
    %2530 = vmatpush1.bf16.msra.mxu0 %v1886
    %2531 = vmatprep.subr.bf16.mxu0 0
    %2532 = vmatpush1.bf16.msra.mxu0 %v1887
    %2533 = vmatprep.subr.bf16.mxu0 0
    %2534 = vmatpush1.bf16.msra.mxu0 %v1888
    %2535 = vmatprep.subr.bf16.mxu0 0
    %2536 = vmatpush1.bf16.msra.mxu0 %v1889
    %2537 = vmatprep.subr.bf16.mxu0 0
    %2538 = vmatpush1.bf16.msra.mxu0 %v1890
    %2539 = vmatprep.mubr.bf16.mxu0 %v639
    %2540 = vmatmul.mubr.bf16.gmra.mrb[0].mxu0 %v637
    %v2541 = vpop.f32.mrb[0].mxu0
    %v2542 = vadd.f32 %v2502, %v2541
    %v2543 = vpop.f32.mrb[0].mxu0
    %v2544 = vpop.f32.mrb[0].mxu0
    %v2545 = vpop.f32.mrb[0].mxu0
    %2546 = vdwg.mxu0
    %2547 = vmatprep.subr.bf16.mxu0 0
    %2548 = vmatpush1.bf16.msra.mxu0 %v1891
    %2549 = vmatprep.subr.bf16.mxu0 0
    %2550 = vmatpush1.bf16.msra.mxu0 %v1892
    %2551 = vmatprep.subr.bf16.mxu0 0
    %2552 = vmatpush1.bf16.msra.mxu0 %v1893
    %2553 = vmatprep.subr.bf16.mxu0 0
    %2554 = vmatpush1.bf16.msra.mxu0 %v1894
    %2555 = vmatprep.subr.bf16.mxu0 0
    %2556 = vmatpush1.bf16.msra.mxu0 %v1895
    %2557 = vmatprep.subr.bf16.mxu0 0
    %2558 = vmatpush1.bf16.msra.mxu0 %v1896
    %2559 = vmatprep.subr.bf16.mxu0 0
    %2560 = vmatpush1.bf16.msra.mxu0 %v1897
    %2561 = vmatprep.subr.bf16.mxu0 0
    %2562 = vmatpush1.bf16.msra.mxu0 %v1898
    %2563 = vmatprep.subr.bf16.mxu0 0
    %2564 = vmatpush1.bf16.msra.mxu0 %v1899
    %2565 = vmatprep.subr.bf16.mxu0 0
    %2566 = vmatpush1.bf16.msra.mxu0 %v1900
    %2567 = vmatprep.subr.bf16.mxu0 0
    %2568 = vmatpush1.bf16.msra.mxu0 %v1901
    %2569 = vmatprep.subr.bf16.mxu0 0
    %2570 = vmatpush1.bf16.msra.mxu0 %v1902
    %2571 = vmatprep.subr.bf16.mxu0 0
    %2572 = vmatpush1.bf16.msra.mxu0 %v1903
    %2573 = vmatprep.subr.bf16.mxu0 0
    %2574 = vmatpush1.bf16.msra.mxu0 %v1904
    %2575 = vmatprep.subr.bf16.mxu0 0
    %2576 = vmatpush1.bf16.msra.mxu0 %v1905
    %2577 = vmatprep.subr.bf16.mxu0 0
    %2578 = vmatpush1.bf16.msra.mxu0 %v1906
    %2579 = vmatprep.mubr.bf16.mxu0 %v636
    %2580 = vmatmul.mubr.bf16.gmra.mrb[0].mxu0 %v622
    %v2581 = vpop.f32.mrb[0].mxu0
    %v2582 = vadd.f32 %v2542, %v2581
    %v2583 = vpop.f32.mrb[0].mxu0
    %v2584 = vpop.f32.mrb[0].mxu0
    %v2585 = vpop.f32.mrb[0].mxu0
    %2586 = vdwg.mxu0
    %2587 = vmatprep.subr.bf16.mxu0 0
    %2588 = vmatpush1.bf16.msra.mxu0 %v1907
    %2589 = vmatprep.subr.bf16.mxu0 0
    %2590 = vmatpush1.bf16.msra.mxu0 %v1908
    %2591 = vmatprep.subr.bf16.mxu0 0
    %2592 = vmatpush1.bf16.msra.mxu0 %v1909
    %2593 = vmatprep.subr.bf16.mxu0 0
    %2594 = vmatpush1.bf16.msra.mxu0 %v1910
    %2595 = vmatprep.subr.bf16.mxu0 0
    %2596 = vmatpush1.bf16.msra.mxu0 %v1911
    %2597 = vmatprep.subr.bf16.mxu0 0
    %2598 = vmatpush1.bf16.msra.mxu0 %v1912
    %2599 = vmatprep.subr.bf16.mxu0 0
    %2600 = vmatpush1.bf16.msra.mxu0 %v1913
    %2601 = vmatprep.subr.bf16.mxu0 0
    %2602 = vmatpush1.bf16.msra.mxu0 %v1914
    %2603 = vmatprep.subr.bf16.mxu0 0
    %2604 = vmatpush1.bf16.msra.mxu0 %v1915
    %2605 = vmatprep.subr.bf16.mxu0 0
    %2606 = vmatpush1.bf16.msra.mxu0 %v1916
    %2607 = vmatprep.subr.bf16.mxu0 0
    %2608 = vmatpush1.bf16.msra.mxu0 %v1917
    %2609 = vmatprep.subr.bf16.mxu0 0
    %2610 = vmatpush1.bf16.msra.mxu0 %v1918
    %2611 = vmatprep.subr.bf16.mxu0 0
    %2612 = vmatpush1.bf16.msra.mxu0 %v1919
    %2613 = vmatprep.subr.bf16.mxu0 0
    %2614 = vmatpush1.bf16.msra.mxu0 %v1920
    %2615 = vmatprep.subr.bf16.mxu0 0
    %2616 = vmatpush1.bf16.msra.mxu0 %v1921
    %2617 = vmatprep.subr.bf16.mxu0 0
    %2618 = vmatpush1.bf16.msra.mxu0 %v1922
    %2619 = vmatprep.mubr.bf16.mxu0 %v640
    %2620 = vmatmul.mubr.bf16.gmra.mrb[0].mxu0 %v638
    %v2621 = vpop.f32.mrb[0].mxu0
    %v2622 = vadd.f32 %v2582, %v2621
    %v2623 = vpop.f32.mrb[0].mxu0
    %v2624 = vpop.f32.mrb[0].mxu0
    %v2625 = vpop.f32.mrb[0].mxu0
    %2626 = vdwg.mxu0
    %2627 = vmatprep.subr.bf16.mxu0 0
    %2628 = vmatpush1.bf16.msra.mxu0 %v1923
    %2629 = vmatprep.subr.bf16.mxu0 0
    %2630 = vmatpush1.bf16.msra.mxu0 %v1924
    %2631 = vmatprep.subr.bf16.mxu0 0
    %2632 = vmatpush1.bf16.msra.mxu0 %v1925
    %2633 = vmatprep.subr.bf16.mxu0 0
    %2634 = vmatpush1.bf16.msra.mxu0 %v1926
    %2635 = vmatprep.subr.bf16.mxu0 0
    %2636 = vmatpush1.bf16.msra.mxu0 %v1927
    %2637 = vmatprep.subr.bf16.mxu0 0
    %2638 = vmatpush1.bf16.msra.mxu0 %v1928
    %2639 = vmatprep.subr.bf16.mxu0 0
    %2640 = vmatpush1.bf16.msra.mxu0 %v1929
    %2641 = vmatprep.subr.bf16.mxu0 0
    %2642 = vmatpush1.bf16.msra.mxu0 %v1930
    %2643 = vmatprep.subr.bf16.mxu0 0
    %2644 = vmatpush1.bf16.msra.mxu0 %v1931
    %2645 = vmatprep.subr.bf16.mxu0 0
    %2646 = vmatpush1.bf16.msra.mxu0 %v1932
    %2647 = vmatprep.subr.bf16.mxu0 0
    %2648 = vmatpush1.bf16.msra.mxu0 %v1933
    %2649 = vmatprep.subr.bf16.mxu0 0
    %2650 = vmatpush1.bf16.msra.mxu0 %v1934
    %2651 = vmatprep.subr.bf16.mxu0 0
    %2652 = vmatpush1.bf16.msra.mxu0 %v1935
    %2653 = vmatprep.subr.bf16.mxu0 0
    %2654 = vmatpush1.bf16.msra.mxu0 %v1936
    %2655 = vmatprep.subr.bf16.mxu0 0
    %2656 = vmatpush1.bf16.msra.mxu0 %v1937
    %2657 = vmatprep.subr.bf16.mxu0 0
    %2658 = vmatpush1.bf16.msra.mxu0 %v1938
    %2659 = vmatprep.mubr.bf16.mxu0 %v678
    %2660 = vmatmul.mubr.bf16.gmra.mrb[0].mxu0 %v664
    %v2661 = vpop.f32.mrb[0].mxu0
    %v2662 = vadd.f32 %v2622, %v2661
    %v2663 = vpop.f32.mrb[0].mxu0
    %v2664 = vpop.f32.mrb[0].mxu0
    %v2665 = vpop.f32.mrb[0].mxu0
    %2666 = vdwg.mxu0
    %2667 = vmatprep.subr.bf16.mxu0 0
    %2668 = vmatpush1.bf16.msra.mxu0 %v1939
    %2669 = vmatprep.subr.bf16.mxu0 0
    %2670 = vmatpush1.bf16.msra.mxu0 %v1940
    %2671 = vmatprep.subr.bf16.mxu0 0
    %2672 = vmatpush1.bf16.msra.mxu0 %v1941
    %2673 = vmatprep.subr.bf16.mxu0 0
    %2674 = vmatpush1.bf16.msra.mxu0 %v1942
    %2675 = vmatprep.subr.bf16.mxu0 0
    %2676 = vmatpush1.bf16.msra.mxu0 %v1943
    %2677 = vmatprep.subr.bf16.mxu0 0
    %2678 = vmatpush1.bf16.msra.mxu0 %v1944
    %2679 = vmatprep.subr.bf16.mxu0 0
    %2680 = vmatpush1.bf16.msra.mxu0 %v1945
    %2681 = vmatprep.subr.bf16.mxu0 0
    %2682 = vmatpush1.bf16.msra.mxu0 %v1946
    %2683 = vmatprep.subr.bf16.mxu0 0
    %2684 = vmatpush1.bf16.msra.mxu0 %v1947
    %2685 = vmatprep.subr.bf16.mxu0 0
    %2686 = vmatpush1.bf16.msra.mxu0 %v1948
    %2687 = vmatprep.subr.bf16.mxu0 0
    %2688 = vmatpush1.bf16.msra.mxu0 %v1949
    %2689 = vmatprep.subr.bf16.mxu0 0
    %2690 = vmatpush1.bf16.msra.mxu0 %v1950
    %2691 = vmatprep.subr.bf16.mxu0 0
    %2692 = vmatpush1.bf16.msra.mxu0 %v1951
    %2693 = vmatprep.subr.bf16.mxu0 0
    %2694 = vmatpush1.bf16.msra.mxu0 %v1952
    %2695 = vmatprep.subr.bf16.mxu0 0
    %2696 = vmatpush1.bf16.msra.mxu0 %v1953
    %2697 = vmatprep.subr.bf16.mxu0 0
    %2698 = vmatpush1.bf16.msra.mxu0 %v1954
    %2699 = vmatprep.mubr.bf16.mxu0 %v688
    %2700 = vmatmul.mubr.bf16.gmra.mrb[0].mxu0 %v686
    %v2701 = vpop.f32.mrb[0].mxu0
    %v2702 = vadd.f32 %v2662, %v2701
    %v2703 = vpop.f32.mrb[0].mxu0
    %v2704 = vpop.f32.mrb[0].mxu0
    %v2705 = vpop.f32.mrb[0].mxu0
    %2706 = vdwg.mxu0
    %2707 = vmatprep.subr.bf16.mxu0 0
    %2708 = vmatpush1.bf16.msra.mxu0 %v1955
    %2709 = vmatprep.subr.bf16.mxu0 0
    %2710 = vmatpush1.bf16.msra.mxu0 %v1956
    %2711 = vmatprep.subr.bf16.mxu0 0
    %2712 = vmatpush1.bf16.msra.mxu0 %v1957
    %2713 = vmatprep.subr.bf16.mxu0 0
    %2714 = vmatpush1.bf16.msra.mxu0 %v1958
    %2715 = vmatprep.subr.bf16.mxu0 0
    %2716 = vmatpush1.bf16.msra.mxu0 %v1959
    %2717 = vmatprep.subr.bf16.mxu0 0
    %2718 = vmatpush1.bf16.msra.mxu0 %v1960
    %2719 = vmatprep.subr.bf16.mxu0 0
    %2720 = vmatpush1.bf16.msra.mxu0 %v1961
    %2721 = vmatprep.subr.bf16.mxu0 0
    %2722 = vmatpush1.bf16.msra.mxu0 %v1962
    %2723 = vmatprep.subr.bf16.mxu0 0
    %2724 = vmatpush1.bf16.msra.mxu0 %v1963
    %2725 = vmatprep.subr.bf16.mxu0 0
    %2726 = vmatpush1.bf16.msra.mxu0 %v1964
    %2727 = vmatprep.subr.bf16.mxu0 0
    %2728 = vmatpush1.bf16.msra.mxu0 %v1965
    %2729 = vmatprep.subr.bf16.mxu0 0
    %2730 = vmatpush1.bf16.msra.mxu0 %v1966
    %2731 = vmatprep.subr.bf16.mxu0 0
    %2732 = vmatpush1.bf16.msra.mxu0 %v1967
    %2733 = vmatprep.subr.bf16.mxu0 0
    %2734 = vmatpush1.bf16.msra.mxu0 %v1968
    %2735 = vmatprep.subr.bf16.mxu0 0
    %2736 = vmatpush1.bf16.msra.mxu0 %v1969
    %2737 = vmatprep.subr.bf16.mxu0 0
    %2738 = vmatpush1.bf16.msra.mxu0 %v1970
    %2739 = vmatprep.mubr.bf16.mxu0 %v685
    %2740 = vmatmul.mubr.bf16.gmra.mrb[0].mxu0 %v671
    %v2741 = vpop.f32.mrb[0].mxu0
    %v2742 = vadd.f32 %v2702, %v2741
    %v2743 = vpop.f32.mrb[0].mxu0
    %v2744 = vpop.f32.mrb[0].mxu0
    %v2745 = vpop.f32.mrb[0].mxu0
    %2746 = vdwg.mxu0
    %2747 = vmatprep.subr.bf16.mxu0 0
    %2748 = vmatpush1.bf16.msra.mxu0 %v1971
    %2749 = vmatprep.subr.bf16.mxu0 0
    %2750 = vmatpush1.bf16.msra.mxu0 %v1972
    %2751 = vmatprep.subr.bf16.mxu0 0
    %2752 = vmatpush1.bf16.msra.mxu0 %v1973
    %2753 = vmatprep.subr.bf16.mxu0 0
    %2754 = vmatpush1.bf16.msra.mxu0 %v1974
    %2755 = vmatprep.subr.bf16.mxu0 0
    %2756 = vmatpush1.bf16.msra.mxu0 %v1975
    %2757 = vmatprep.subr.bf16.mxu0 0
    %2758 = vmatpush1.bf16.msra.mxu0 %v1976
    %2759 = vmatprep.subr.bf16.mxu0 0
    %2760 = vmatpush1.bf16.msra.mxu0 %v1977
    %2761 = vmatprep.subr.bf16.mxu0 0
    %2762 = vmatpush1.bf16.msra.mxu0 %v1978
    %2763 = vmatprep.subr.bf16.mxu0 0
    %2764 = vmatpush1.bf16.msra.mxu0 %v1979
    %2765 = vmatprep.subr.bf16.mxu0 0
    %2766 = vmatpush1.bf16.msra.mxu0 %v1980
    %2767 = vmatprep.subr.bf16.mxu0 0
    %2768 = vmatpush1.bf16.msra.mxu0 %v1981
    %2769 = vmatprep.subr.bf16.mxu0 0
    %2770 = vmatpush1.bf16.msra.mxu0 %v1982
    %2771 = vmatprep.subr.bf16.mxu0 0
    %2772 = vmatpush1.bf16.msra.mxu0 %v1983
    %2773 = vmatprep.subr.bf16.mxu0 0
    %2774 = vmatpush1.bf16.msra.mxu0 %v1984
    %2775 = vmatprep.subr.bf16.mxu0 0
    %2776 = vmatpush1.bf16.msra.mxu0 %v1985
    %2777 = vmatprep.subr.bf16.mxu0 0
    %2778 = vmatpush1.bf16.msra.mxu0 %v1986
    %2779 = vmatprep.mubr.bf16.mxu0 %v689
    %2780 = vmatmul.mubr.bf16.gmra.mrb[0].mxu0 %v687
    %v2781 = vpop.f32.mrb[0].mxu0
    %v2782 = vadd.f32 %v2742, %v2781
    %v2783 = vpop.f32.mrb[0].mxu0
    %v2784 = vpop.f32.mrb[0].mxu0
    %v2785 = vpop.f32.mrb[0].mxu0
    %2786 = vdwg.mxu0
    %2787 = vmatprep.subr.bf16.mxu0 0
    %2788 = vmatpush1.bf16.msra.mxu0 %v1987
    %2789 = vmatprep.subr.bf16.mxu0 0
    %2790 = vmatpush1.bf16.msra.mxu0 %v1988
    %2791 = vmatprep.subr.bf16.mxu0 0
    %2792 = vmatpush1.bf16.msra.mxu0 %v1989
    %2793 = vmatprep.subr.bf16.mxu0 0
    %2794 = vmatpush1.bf16.msra.mxu0 %v1990
    %2795 = vmatprep.subr.bf16.mxu0 0
    %2796 = vmatpush1.bf16.msra.mxu0 %v1991
    %2797 = vmatprep.subr.bf16.mxu0 0
    %2798 = vmatpush1.bf16.msra.mxu0 %v1992
    %2799 = vmatprep.subr.bf16.mxu0 0
    %2800 = vmatpush1.bf16.msra.mxu0 %v1993
    %2801 = vmatprep.subr.bf16.mxu0 0
    %2802 = vmatpush1.bf16.msra.mxu0 %v1994
    %2803 = vmatprep.subr.bf16.mxu0 0
    %2804 = vmatpush1.bf16.msra.mxu0 %v1995
    %2805 = vmatprep.subr.bf16.mxu0 0
    %2806 = vmatpush1.bf16.msra.mxu0 %v1996
    %2807 = vmatprep.subr.bf16.mxu0 0
    %2808 = vmatpush1.bf16.msra.mxu0 %v1997
    %2809 = vmatprep.subr.bf16.mxu0 0
    %2810 = vmatpush1.bf16.msra.mxu0 %v1998
    %2811 = vmatprep.subr.bf16.mxu0 0
    %2812 = vmatpush1.bf16.msra.mxu0 %v1999
    %2813 = vmatprep.subr.bf16.mxu0 0
    %2814 = vmatpush1.bf16.msra.mxu0 %v2000
    %2815 = vmatprep.subr.bf16.mxu0 0
    %2816 = vmatpush1.bf16.msra.mxu0 %v2001
    %2817 = vmatprep.subr.bf16.mxu0 0
    %2818 = vmatpush1.bf16.msra.mxu0 %v2002
    %2819 = vmatprep.mubr.bf16.mxu0 %v727
    %2820 = vmatmul.mubr.bf16.gmra.mrb[0].mxu0 %v713
    %v2821 = vpop.f32.mrb[0].mxu0
    %v2822 = vadd.f32 %v2782, %v2821
    %v2823 = vpop.f32.mrb[0].mxu0
    %v2824 = vpop.f32.mrb[0].mxu0
    %v2825 = vpop.f32.mrb[0].mxu0
    %2826 = vdwg.mxu0
    %2827 = vmatprep.subr.bf16.mxu0 0
    %2828 = vmatpush1.bf16.msra.mxu0 %v2003
    %2829 = vmatprep.subr.bf16.mxu0 0
    %2830 = vmatpush1.bf16.msra.mxu0 %v2004
    %2831 = vmatprep.subr.bf16.mxu0 0
    %2832 = vmatpush1.bf16.msra.mxu0 %v2005
    %2833 = vmatprep.subr.bf16.mxu0 0
    %2834 = vmatpush1.bf16.msra.mxu0 %v2006
    %2835 = vmatprep.subr.bf16.mxu0 0
    %2836 = vmatpush1.bf16.msra.mxu0 %v2007
    %2837 = vmatprep.subr.bf16.mxu0 0
    %2838 = vmatpush1.bf16.msra.mxu0 %v2008
    %2839 = vmatprep.subr.bf16.mxu0 0
    %2840 = vmatpush1.bf16.msra.mxu0 %v2009
    %2841 = vmatprep.subr.bf16.mxu0 0
    %2842 = vmatpush1.bf16.msra.mxu0 %v2010
    %2843 = vmatprep.subr.bf16.mxu0 0
    %2844 = vmatpush1.bf16.msra.mxu0 %v2011
    %2845 = vmatprep.subr.bf16.mxu0 0
    %2846 = vmatpush1.bf16.msra.mxu0 %v2012
    %2847 = vmatprep.subr.bf16.mxu0 0
    %2848 = vmatpush1.bf16.msra.mxu0 %v2013
    %2849 = vmatprep.subr.bf16.mxu0 0
    %2850 = vmatpush1.bf16.msra.mxu0 %v2014
    %2851 = vmatprep.subr.bf16.mxu0 0
    %2852 = vmatpush1.bf16.msra.mxu0 %v2015
    %2853 = vmatprep.subr.bf16.mxu0 0
    %2854 = vmatpush1.bf16.msra.mxu0 %v2016
    %2855 = vmatprep.subr.bf16.mxu0 0
    %2856 = vmatpush1.bf16.msra.mxu0 %v2017
    %2857 = vmatprep.subr.bf16.mxu0 0
    %2858 = vmatpush1.bf16.msra.mxu0 %v2018
    %2859 = vmatprep.mubr.bf16.mxu0 %v737
    %2860 = vmatmul.mubr.bf16.gmra.mrb[0].mxu0 %v735
    %v2861 = vpop.f32.mrb[0].mxu0
    %v2862 = vadd.f32 %v2822, %v2861
    %v2863 = vpop.f32.mrb[0].mxu0
    %v2864 = vpop.f32.mrb[0].mxu0
    %v2865 = vpop.f32.mrb[0].mxu0
    %2866 = vdwg.mxu0
    %2867 = vmatprep.subr.bf16.mxu0 0
    %2868 = vmatpush1.bf16.msra.mxu0 %v2019
    %2869 = vmatprep.subr.bf16.mxu0 0
    %2870 = vmatpush1.bf16.msra.mxu0 %v2020
    %2871 = vmatprep.subr.bf16.mxu0 0
    %2872 = vmatpush1.bf16.msra.mxu0 %v2021
    %2873 = vmatprep.subr.bf16.mxu0 0
    %2874 = vmatpush1.bf16.msra.mxu0 %v2022
    %2875 = vmatprep.subr.bf16.mxu0 0
    %2876 = vmatpush1.bf16.msra.mxu0 %v2023
    %2877 = vmatprep.subr.bf16.mxu0 0
    %2878 = vmatpush1.bf16.msra.mxu0 %v2024
    %2879 = vmatprep.subr.bf16.mxu0 0
    %2880 = vmatpush1.bf16.msra.mxu0 %v2025
    %2881 = vmatprep.subr.bf16.mxu0 0
    %2882 = vmatpush1.bf16.msra.mxu0 %v2026
    %2883 = vmatprep.subr.bf16.mxu0 0
    %2884 = vmatpush1.bf16.msra.mxu0 %v2027
    %2885 = vmatprep.subr.bf16.mxu0 0
    %2886 = vmatpush1.bf16.msra.mxu0 %v2028
    %2887 = vmatprep.subr.bf16.mxu0 0
    %2888 = vmatpush1.bf16.msra.mxu0 %v2029
    %2889 = vmatprep.subr.bf16.mxu0 0
    %2890 = vmatpush1.bf16.msra.mxu0 %v2030
    %2891 = vmatprep.subr.bf16.mxu0 0
    %2892 = vmatpush1.bf16.msra.mxu0 %v2031
    %2893 = vmatprep.subr.bf16.mxu0 0
    %2894 = vmatpush1.bf16.msra.mxu0 %v2032
    %2895 = vmatprep.subr.bf16.mxu0 0
    %2896 = vmatpush1.bf16.msra.mxu0 %v2033
    %2897 = vmatprep.subr.bf16.mxu0 0
    %2898 = vmatpush1.bf16.msra.mxu0 %v2034
    %2899 = vmatprep.mubr.bf16.mxu0 %v734
    %2900 = vmatmul.mubr.bf16.gmra.mrb[0].mxu0 %v720
    %v2901 = vpop.f32.mrb[0].mxu0
    %v2902 = vadd.f32 %v2862, %v2901
    %v2903 = vpop.f32.mrb[0].mxu0
    %v2904 = vpop.f32.mrb[0].mxu0
    %v2905 = vpop.f32.mrb[0].mxu0
    %2906 = vdwg.mxu0
    %2907 = vmatprep.subr.bf16.mxu0 0
    %2908 = vmatpush1.bf16.msra.mxu0 %v2035
    %2909 = vmatprep.subr.bf16.mxu0 0
    %2910 = vmatpush1.bf16.msra.mxu0 %v2036
    %2911 = vmatprep.subr.bf16.mxu0 0
    %2912 = vmatpush1.bf16.msra.mxu0 %v2037
    %2913 = vmatprep.subr.bf16.mxu0 0
    %2914 = vmatpush1.bf16.msra.mxu0 %v2038
    %2915 = vmatprep.subr.bf16.mxu0 0
    %2916 = vmatpush1.bf16.msra.mxu0 %v2039
    %2917 = vmatprep.subr.bf16.mxu0 0
    %2918 = vmatpush1.bf16.msra.mxu0 %v2040
    %2919 = vmatprep.subr.bf16.mxu0 0
    %2920 = vmatpush1.bf16.msra.mxu0 %v2041
    %2921 = vmatprep.subr.bf16.mxu0 0
    %2922 = vmatpush1.bf16.msra.mxu0 %v2042
    %2923 = vmatprep.subr.bf16.mxu0 0
    %2924 = vmatpush1.bf16.msra.mxu0 %v2043
    %2925 = vmatprep.subr.bf16.mxu0 0
    %2926 = vmatpush1.bf16.msra.mxu0 %v2044
    %2927 = vmatprep.subr.bf16.mxu0 0
    %2928 = vmatpush1.bf16.msra.mxu0 %v2045
    %2929 = vmatprep.subr.bf16.mxu0 0
    %2930 = vmatpush1.bf16.msra.mxu0 %v2046
    %2931 = vmatprep.subr.bf16.mxu0 0
    %2932 = vmatpush1.bf16.msra.mxu0 %v2047
    %2933 = vmatprep.subr.bf16.mxu0 0
    %2934 = vmatpush1.bf16.msra.mxu0 %v2048
    %2935 = vmatprep.subr.bf16.mxu0 0
    %2936 = vmatpush1.bf16.msra.mxu0 %v2049
    %2937 = vmatprep.subr.bf16.mxu0 0
    %2938 = vmatpush1.bf16.msra.mxu0 %v2050
    %2939 = vmatprep.mubr.bf16.mxu0 %v738
    %2940 = vmatmul.mubr.bf16.gmra.mrb[0].mxu0 %v736
    %v2941 = vpop.f32.mrb[0].mxu0
    %v2942 = vadd.f32 %v2902, %v2941
    %v2943 = vpop.f32.mrb[0].mxu0
    %v2944 = vpop.f32.mrb[0].mxu0
    %v2945 = vpop.f32.mrb[0].mxu0
    %2946 = vdwg.mxu0
    %vm2947 = vcmask 74752
    %2948 = vst.msk [vmem:[#allocation2] sm:$0x3] %vm2947, %v2942
    // Predicated region
    $region14: #{i2d_forward.3} parent=1 // pred_check
      _
    $region15: #{i2d_forward.3} parent=1 // pred_check_branch
      %2950 = sbr.rel (0) target = $region17
    $region16: #{i2d_forward.3} parent=1 // pred_region
      %s2952 = ssub.s32 32, 32
      %2953 = vsyncadd [#allocation3], %s2952
      %s2955 = sshll.u32 [#allocation2], 4
      %s2956 = int_to_ptr.vmem [resolvable:$true] %s2955
      %2958 = dma.vmem_to_hbm [thread:$0]  %s2956, 32, %s3, [#allocation3]
    $region17: #{i2d_forward.3} parent=1 // pred_fallthru
      _
    // Predicated region
    $region18: #{i2d_forward.3} parent=1 // pred_check
      _
    $region19: #{i2d_forward.3} parent=1 // pred_check_branch
      %2960 = sbr.rel (0) target = $region21
    $region20: #{i2d_forward.3} parent=1 // pred_region
      %2961 = dma.done [#allocation3], 32
    $region21: #{i2d_forward.3} parent=1 // pred_fallthru
      _
    %2962 = vsyncpa [#allocation3], 1

// kernel: i2d_forward.2
$region0: #{i2d_forward.2}
  #allocation0 [shape = 'u32[]', space=smem, size = 0x4, offset = 0x4, fixed_abs, tag = 'smem constant byte address 0x4 - core index']
  #allocation1 [shape = 'u32[144,128]{1,0:T(1,128)}', space=vmem, size = 0x12000, scoped, tag = 'internal scratch']
  %s0 = inlined_call_operand.vmem [shape: bf16[512,4], index: 0, kind: input, shape index: {}]
  %s1 = inlined_call_operand.vmem [shape: bf16[4,64], index: 1, kind: input, shape index: {}]
  %s2 = inlined_call_operand.vmem [shape: bf16[4,64], index: 2, kind: input, shape index: {}]
  %s3 = inlined_call_operand.vmem [shape: bf16[64,4], index: 3, kind: input, shape index: {}]
  %s4 = inlined_call_operand.vmem [shape: bf16[64,128], index: 4, kind: input, shape index: {}]
  %s5 = inlined_call_operand.vmem [shape: bf16[64,128], index: 5, kind: input, shape index: {}]
  %s6 = inlined_call_operand.vmem [shape: bf16[128,4], index: 6, kind: input, shape index: {}]
  %s7 = inlined_call_operand.vmem [shape: bf16[128,256], index: 7, kind: input, shape index: {}]
  %s8 = inlined_call_operand.vmem [shape: bf16[128,256], index: 8, kind: input, shape index: {}]
  %s9 = inlined_call_operand.vmem [shape: bf16[256,9], index: 9, kind: input, shape index: {}]
  %s10 = inlined_call_operand.vmem [shape: f32[288,32], index: 10, kind: input, shape index: {}]
  %s11 = inlined_call_operand.vmem [shape: f32[32,256], index: 11, kind: output, shape index: {}]
  %s12 = sld [smem:[#allocation0]]
  $region54: #{i2d_forward.2} parent=0
    _
  %s14 = ssub.s32 1, %s12
  %s15 = scalar_select 0, %s14, %s12
  // Predicated region
  $region2: #{i2d_forward.2} parent=0 // pred_check
    _
  $region3: #{i2d_forward.2} parent=0 // pred_check_branch
    %17 = sbr.rel (0) target = $region5
  $region4: #{i2d_forward.2} parent=0 // pred_region
    _
  $region5: #{i2d_forward.2} parent=0 // pred_fallthru
    _
  // Predicated region
  $region6: #{i2d_forward.2} parent=0 // pred_check
    _
  $region7: #{i2d_forward.2} parent=0 // pred_check_branch
    %19 = sbr.rel (0) target = $region9
  $region8: #{i2d_forward.2} parent=0 // pred_region
    _
  $region9: #{i2d_forward.2} parent=0 // pred_fallthru
    _
  // Predicated region
  $region10: #{i2d_forward.2} parent=0 // pred_check
    _
  $region11: #{i2d_forward.2} parent=0 // pred_check_branch
    %21 = sbr.rel (0) target = $region13
  $region12: #{i2d_forward.2} parent=0 // pred_region
    _
  $region13: #{i2d_forward.2} parent=0 // pred_fallthru
    _
  // Predicated region
  $region14: #{i2d_forward.2} parent=0 // pred_check
    _
  $region15: #{i2d_forward.2} parent=0 // pred_check_branch
    %23 = sbr.rel (0) target = $region17
  $region16: #{i2d_forward.2} parent=0 // pred_region
    _
  $region17: #{i2d_forward.2} parent=0 // pred_fallthru
    _
  // Predicated region
  $region18: #{i2d_forward.2} parent=0 // pred_check
    _
  $region19: #{i2d_forward.2} parent=0 // pred_check_branch
    %25 = sbr.rel (0) target = $region21
  $region20: #{i2d_forward.2} parent=0 // pred_region
    _
  $region21: #{i2d_forward.2} parent=0 // pred_fallthru
    _
  // Predicated region
  $region22: #{i2d_forward.2} parent=0 // pred_check
    _
  $region23: #{i2d_forward.2} parent=0 // pred_check_branch
    %27 = sbr.rel (0) target = $region25
  $region24: #{i2d_forward.2} parent=0 // pred_region
    _
  $region25: #{i2d_forward.2} parent=0 // pred_fallthru
    _
  // Predicated region
  $region26: #{i2d_forward.2} parent=0 // pred_check
    _
  $region27: #{i2d_forward.2} parent=0 // pred_check_branch
    %29 = sbr.rel (0) target = $region29
  $region28: #{i2d_forward.2} parent=0 // pred_region
    _
  $region29: #{i2d_forward.2} parent=0 // pred_fallthru
    _
  // Predicated region
  $region30: #{i2d_forward.2} parent=0 // pred_check
    _
  $region31: #{i2d_forward.2} parent=0 // pred_check_branch
    %31 = sbr.rel (0) target = $region33
  $region32: #{i2d_forward.2} parent=0 // pred_region
    _
  $region33: #{i2d_forward.2} parent=0 // pred_fallthru
    _
  // Predicated region
  $region34: #{i2d_forward.2} parent=0 // pred_check
    _
  $region35: #{i2d_forward.2} parent=0 // pred_check_branch
    %33 = sbr.rel (0) target = $region37
  $region36: #{i2d_forward.2} parent=0 // pred_region
    _
  $region37: #{i2d_forward.2} parent=0 // pred_fallthru
    _
  // Predicated region
  $region38: #{i2d_forward.2} parent=0 // pred_check
    _
  $region39: #{i2d_forward.2} parent=0 // pred_check_branch
    %35 = sbr.rel (0) target = $region41
  $region40: #{i2d_forward.2} parent=0 // pred_region
    _
  $region41: #{i2d_forward.2} parent=0 // pred_fallthru
    _
  // Predicated region
  $region42: #{i2d_forward.2} parent=0 // pred_check
    _
  $region43: #{i2d_forward.2} parent=0 // pred_check_branch
    %37 = sbr.rel (0) target = $region45
  $region44: #{i2d_forward.2} parent=0 // pred_region
    _
  $region45: #{i2d_forward.2} parent=0 // pred_fallthru
    _
  %v39 = vld [vmem:[%s0] sm:$0xf]
  %v40 = vld [vmem:[%s0 + $0x4] sm:$0xf]
  %v41 = vld [vmem:[%s0 + $0x8] sm:$0xf]
  %v42 = vld [vmem:[%s0 + $0xc] sm:$0xf]
  %v43 = vld [vmem:[%s0 + $0x10] sm:$0xf]
  %v44 = vld [vmem:[%s0 + $0x14] sm:$0xf]
  %v45 = vld [vmem:[%s0 + $0x18] sm:$0xf]
  %v46 = vld [vmem:[%s0 + $0x1c] sm:$0xf]
  %v47 = vld [vmem:[%s0 + $0x20] sm:$0xf]
  %v48 = vld [vmem:[%s0 + $0x24] sm:$0xf]
  %v49 = vld [vmem:[%s0 + $0x28] sm:$0xf]
  %v50 = vld [vmem:[%s0 + $0x2c] sm:$0xf]
  %v51 = vld [vmem:[%s0 + $0x30] sm:$0xf]
  %v52 = vld [vmem:[%s0 + $0x34] sm:$0xf]
  %v53 = vld [vmem:[%s0 + $0x38] sm:$0xf]
  %v54 = vld [vmem:[%s0 + $0x3c] sm:$0xf]
  %v55 = vld [vmem:[%s0 + $0x40] sm:$0xf]
  %v56 = vld [vmem:[%s0 + $0x44] sm:$0xf]
  %v57 = vld [vmem:[%s0 + $0x48] sm:$0xf]
  %v58 = vld [vmem:[%s0 + $0x4c] sm:$0xf]
  %v59 = vld [vmem:[%s0 + $0x50] sm:$0xf]
  %v60 = vld [vmem:[%s0 + $0x54] sm:$0xf]
  %v61 = vld [vmem:[%s0 + $0x58] sm:$0xf]
  %v62 = vld [vmem:[%s0 + $0x5c] sm:$0xf]
  %v63 = vld [vmem:[%s0 + $0x60] sm:$0xf]
  %v64 = vld [vmem:[%s0 + $0x64] sm:$0xf]
  %v65 = vld [vmem:[%s0 + $0x68] sm:$0xf]
  %v66 = vld [vmem:[%s0 + $0x6c] sm:$0xf]
  %v67 = vld [vmem:[%s0 + $0x70] sm:$0xf]
  %v68 = vld [vmem:[%s0 + $0x74] sm:$0xf]
  %v69 = vld [vmem:[%s0 + $0x78] sm:$0xf]
  %v70 = vld [vmem:[%s0 + $0x7c] sm:$0xf]
  %v71 = vld [vmem:[%s0 + $0x80] sm:$0xf]
  %v72 = vld [vmem:[%s0 + $0x84] sm:$0xf]
  %v73 = vld [vmem:[%s0 + $0x88] sm:$0xf]
  %v74 = vld [vmem:[%s0 + $0x8c] sm:$0xf]
  %v75 = vld [vmem:[%s0 + $0x90] sm:$0xf]
  %v76 = vld [vmem:[%s0 + $0x94] sm:$0xf]
  %v77 = vld [vmem:[%s0 + $0x98] sm:$0xf]
  %v78 = vld [vmem:[%s0 + $0x9c] sm:$0xf]
  %v79 = vld [vmem:[%s0 + $0xa0] sm:$0xf]
  %v80 = vld [vmem:[%s0 + $0xa4] sm:$0xf]
  %v81 = vld [vmem:[%s0 + $0xa8] sm:$0xf]
  %v82 = vld [vmem:[%s0 + $0xac] sm:$0xf]
  %v83 = vld [vmem:[%s0 + $0xb0] sm:$0xf]
  %v84 = vld [vmem:[%s0 + $0xb4] sm:$0xf]
  %v85 = vld [vmem:[%s0 + $0xb8] sm:$0xf]
  %v86 = vld [vmem:[%s0 + $0xbc] sm:$0xf]
  %v87 = vld [vmem:[%s0 + $0xc0] sm:$0xf]
  %v88 = vld [vmem:[%s0 + $0xc4] sm:$0xf]
  %v89 = vld [vmem:[%s0 + $0xc8] sm:$0xf]
  %v90 = vld [vmem:[%s0 + $0xcc] sm:$0xf]
  %v91 = vld [vmem:[%s0 + $0xd0] sm:$0xf]
  %v92 = vld [vmem:[%s0 + $0xd4] sm:$0xf]
  %v93 = vld [vmem:[%s0 + $0xd8] sm:$0xf]
  %v94 = vld [vmem:[%s0 + $0xdc] sm:$0xf]
  %v95 = vld [vmem:[%s0 + $0xe0] sm:$0xf]
  %v96 = vld [vmem:[%s0 + $0xe4] sm:$0xf]
  %v97 = vld [vmem:[%s0 + $0xe8] sm:$0xf]
  %v98 = vld [vmem:[%s0 + $0xec] sm:$0xf]
  %v99 = vld [vmem:[%s0 + $0xf0] sm:$0xf]
  %v100 = vld [vmem:[%s0 + $0xf4] sm:$0xf]
  %v101 = vld [vmem:[%s0 + $0xf8] sm:$0xf]
  %v102 = vld [vmem:[%s0 + $0xfc] sm:$0xf]
  %v103 = vunpack.c.l.bf16 %v39
  %v104 = vunpack.c.l.bf16 %v40
  %v105 = vunpack.c.l.bf16 %v41
  %v106 = vunpack.c.l.bf16 %v42
  %v107 = vunpack.c.l.bf16 %v43
  %v108 = vunpack.c.l.bf16 %v44
  %v109 = vunpack.c.l.bf16 %v45
  %v110 = vunpack.c.l.bf16 %v46
  %v111 = vunpack.c.l.bf16 %v47
  %v112 = vunpack.c.l.bf16 %v48
  %v113 = vunpack.c.l.bf16 %v49
  %v114 = vunpack.c.l.bf16 %v50
  %v115 = vunpack.c.l.bf16 %v51
  %v116 = vunpack.c.l.bf16 %v52
  %v117 = vunpack.c.l.bf16 %v53
  %v118 = vunpack.c.l.bf16 %v54
  %v119 = vunpack.c.l.bf16 %v55
  %v120 = vunpack.c.l.bf16 %v56
  %v121 = vunpack.c.l.bf16 %v57
  %v122 = vunpack.c.l.bf16 %v58
  %v123 = vunpack.c.l.bf16 %v59
  %v124 = vunpack.c.l.bf16 %v60
  %v125 = vunpack.c.l.bf16 %v61
  %v126 = vunpack.c.l.bf16 %v62
  %v127 = vunpack.c.l.bf16 %v63
  %v128 = vunpack.c.l.bf16 %v64
  %v129 = vunpack.c.l.bf16 %v65
  %v130 = vunpack.c.l.bf16 %v66
  %v131 = vunpack.c.l.bf16 %v67
  %v132 = vunpack.c.l.bf16 %v68
  %v133 = vunpack.c.l.bf16 %v69
  %v134 = vunpack.c.l.bf16 %v70
  %v135 = vadd.f32 %v103, %v119
  %v136 = vadd.f32 %v104, %v120
  %v137 = vadd.f32 %v105, %v121
  %v138 = vadd.f32 %v106, %v122
  %v139 = vadd.f32 %v107, %v123
  %v140 = vadd.f32 %v108, %v124
  %v141 = vadd.f32 %v109, %v125
  %v142 = vadd.f32 %v110, %v126
  %v143 = vadd.f32 %v111, %v127
  %v144 = vadd.f32 %v112, %v128
  %v145 = vadd.f32 %v113, %v129
  %v146 = vadd.f32 %v114, %v130
  %v147 = vadd.f32 %v115, %v131
  %v148 = vadd.f32 %v116, %v132
  %v149 = vadd.f32 %v117, %v133
  %v150 = vadd.f32 %v118, %v134
  %v151 = vunpack.c.l.bf16 %v71
  %v152 = vunpack.c.l.bf16 %v72
  %v153 = vunpack.c.l.bf16 %v73
  %v154 = vunpack.c.l.bf16 %v74
  %v155 = vunpack.c.l.bf16 %v75
  %v156 = vunpack.c.l.bf16 %v76
  %v157 = vunpack.c.l.bf16 %v77
  %v158 = vunpack.c.l.bf16 %v78
  %v159 = vunpack.c.l.bf16 %v79
  %v160 = vunpack.c.l.bf16 %v80
  %v161 = vunpack.c.l.bf16 %v81
  %v162 = vunpack.c.l.bf16 %v82
  %v163 = vunpack.c.l.bf16 %v83
  %v164 = vunpack.c.l.bf16 %v84
  %v165 = vunpack.c.l.bf16 %v85
  %v166 = vunpack.c.l.bf16 %v86
  %v167 = vadd.f32 %v135, %v151
  %v168 = vadd.f32 %v136, %v152
  %v169 = vadd.f32 %v137, %v153
  %v170 = vadd.f32 %v138, %v154
  %v171 = vadd.f32 %v139, %v155
  %v172 = vadd.f32 %v140, %v156
  %v173 = vadd.f32 %v141, %v157
  %v174 = vadd.f32 %v142, %v158
  %v175 = vadd.f32 %v143, %v159
  %v176 = vadd.f32 %v144, %v160
  %v177 = vadd.f32 %v145, %v161
  %v178 = vadd.f32 %v146, %v162
  %v179 = vadd.f32 %v147, %v163
  %v180 = vadd.f32 %v148, %v164
  %v181 = vadd.f32 %v149, %v165
  %v182 = vadd.f32 %v150, %v166
  %v183 = vunpack.c.l.bf16 %v87
  %v184 = vunpack.c.l.bf16 %v88
  %v185 = vunpack.c.l.bf16 %v89
  %v186 = vunpack.c.l.bf16 %v90
  %v187 = vunpack.c.l.bf16 %v91
  %v188 = vunpack.c.l.bf16 %v92
  %v189 = vunpack.c.l.bf16 %v93
  %v190 = vunpack.c.l.bf16 %v94
  %v191 = vunpack.c.l.bf16 %v95
  %v192 = vunpack.c.l.bf16 %v96
  %v193 = vunpack.c.l.bf16 %v97
  %v194 = vunpack.c.l.bf16 %v98
  %v195 = vunpack.c.l.bf16 %v99
  %v196 = vunpack.c.l.bf16 %v100
  %v197 = vunpack.c.l.bf16 %v101
  %v198 = vunpack.c.l.bf16 %v102
  %v199 = vadd.f32 %v167, %v183
  %v200 = vadd.f32 %v168, %v184
  %v201 = vadd.f32 %v169, %v185
  %v202 = vadd.f32 %v170, %v186
  %v203 = vadd.f32 %v171, %v187
  %v204 = vadd.f32 %v172, %v188
  %v205 = vadd.f32 %v173, %v189
  %v206 = vadd.f32 %v174, %v190
  %v207 = vadd.f32 %v175, %v191
  %v208 = vadd.f32 %v176, %v192
  %v209 = vadd.f32 %v177, %v193
  %v210 = vadd.f32 %v178, %v194
  %v211 = vadd.f32 %v179, %v195
  %v212 = vadd.f32 %v180, %v196
  %v213 = vadd.f32 %v181, %v197
  %v214 = vadd.f32 %v182, %v198
  %v215 = vmul.f32 %v199, 0.25
  %v216 = vmul.f32 %v200, 0.25
  %v217 = vmul.f32 %v201, 0.25
  %v218 = vmul.f32 %v202, 0.25
  %v219 = vmul.f32 %v203, 0.25
  %v220 = vmul.f32 %v204, 0.25
  %v221 = vmul.f32 %v205, 0.25
  %v222 = vmul.f32 %v206, 0.25
  %v223 = vmul.f32 %v207, 0.25
  %v224 = vmul.f32 %v208, 0.25
  %v225 = vmul.f32 %v209, 0.25
  %v226 = vmul.f32 %v210, 0.25
  %v227 = vmul.f32 %v211, 0.25
  %v228 = vmul.f32 %v212, 0.25
  %v229 = vmul.f32 %v213, 0.25
  %v230 = vmul.f32 %v214, 0.25
  %v231 = vld [vmem:[%s2] sm:$0x3]
  %v232 = vunpack.c.l.bf16 %v231
  %234 = vset.pattern.permute.xlu0 0
  %235 = vperm.xlu0 %234, %v215
  %v236 = vpop.permute.xlu0 %235
  %239 = vset.pattern.permute.xlu0 0
  %240 = vperm.xlu0 %239, %v216
  %v241 = vpop.permute.xlu0 %240
  %244 = vset.pattern.permute.xlu0 0
  %245 = vperm.xlu0 %244, %v217
  %v246 = vpop.permute.xlu0 %245
  %249 = vset.pattern.permute.xlu0 0
  %250 = vperm.xlu0 %249, %v218
  %v251 = vpop.permute.xlu0 %250
  %254 = vset.pattern.permute.xlu0 0
  %255 = vperm.xlu0 %254, %v219
  %v256 = vpop.permute.xlu0 %255
  %259 = vset.pattern.permute.xlu0 0
  %260 = vperm.xlu0 %259, %v220
  %v261 = vpop.permute.xlu0 %260
  %264 = vset.pattern.permute.xlu0 0
  %265 = vperm.xlu0 %264, %v221
  %v266 = vpop.permute.xlu0 %265
  %269 = vset.pattern.permute.xlu0 0
  %270 = vperm.xlu0 %269, %v222
  %v271 = vpop.permute.xlu0 %270
  %274 = vset.pattern.permute.xlu0 0
  %275 = vperm.xlu0 %274, %v223
  %v276 = vpop.permute.xlu0 %275
  %279 = vset.pattern.permute.xlu0 0
  %280 = vperm.xlu0 %279, %v224
  %v281 = vpop.permute.xlu0 %280
  %284 = vset.pattern.permute.xlu0 0
  %285 = vperm.xlu0 %284, %v225
  %v286 = vpop.permute.xlu0 %285
  %289 = vset.pattern.permute.xlu0 0
  %290 = vperm.xlu0 %289, %v226
  %v291 = vpop.permute.xlu0 %290
  %294 = vset.pattern.permute.xlu0 0
  %295 = vperm.xlu0 %294, %v227
  %v296 = vpop.permute.xlu0 %295
  %299 = vset.pattern.permute.xlu0 0
  %300 = vperm.xlu0 %299, %v228
  %v301 = vpop.permute.xlu0 %300
  %304 = vset.pattern.permute.xlu0 0
  %305 = vperm.xlu0 %304, %v229
  %v306 = vpop.permute.xlu0 %305
  %309 = vset.pattern.permute.xlu0 0
  %310 = vperm.xlu0 %309, %v230
  %v311 = vpop.permute.xlu0 %310
  %v313 = vlaneseq
  %v314 = vshrl.u32 %v313, 7
  %v315 = vsub.s32 0, %v314
  %v316 = vrot.slane %v232, %v315
  %v317 = vmul.f32 %v236, %v316
  %v318 = vmul.f32 %v241, %v316
  %v319 = vmul.f32 %v246, %v316
  %v320 = vmul.f32 %v251, %v316
  %v321 = vmul.f32 %v256, %v316
  %v322 = vmul.f32 %v261, %v316
  %v323 = vmul.f32 %v266, %v316
  %v324 = vmul.f32 %v271, %v316
  %v325 = vmul.f32 %v276, %v316
  %v326 = vmul.f32 %v281, %v316
  %v327 = vmul.f32 %v286, %v316
  %v328 = vmul.f32 %v291, %v316
  %v329 = vmul.f32 %v296, %v316
  %v330 = vmul.f32 %v301, %v316
  %v331 = vmul.f32 %v306, %v316
  %v332 = vmul.f32 %v311, %v316
  %333 = vset.pattern.permute.xlu0 1
  %334 = vperm.xlu0 %333, %v215
  %v335 = vpop.permute.xlu0 %334
  %337 = vset.pattern.permute.xlu0 1
  %338 = vperm.xlu0 %337, %v216
  %v339 = vpop.permute.xlu0 %338
  %341 = vset.pattern.permute.xlu0 1
  %342 = vperm.xlu0 %341, %v217
  %v343 = vpop.permute.xlu0 %342
  %345 = vset.pattern.permute.xlu0 1
  %346 = vperm.xlu0 %345, %v218
  %v347 = vpop.permute.xlu0 %346
  %349 = vset.pattern.permute.xlu0 1
  %350 = vperm.xlu0 %349, %v219
  %v351 = vpop.permute.xlu0 %350
  %353 = vset.pattern.permute.xlu0 1
  %354 = vperm.xlu0 %353, %v220
  %v355 = vpop.permute.xlu0 %354
  %357 = vset.pattern.permute.xlu0 1
  %358 = vperm.xlu0 %357, %v221
  %v359 = vpop.permute.xlu0 %358
  %361 = vset.pattern.permute.xlu0 1
  %362 = vperm.xlu0 %361, %v222
  %v363 = vpop.permute.xlu0 %362
  %365 = vset.pattern.permute.xlu0 1
  %366 = vperm.xlu0 %365, %v223
  %v367 = vpop.permute.xlu0 %366
  %369 = vset.pattern.permute.xlu0 1
  %370 = vperm.xlu0 %369, %v224
  %v371 = vpop.permute.xlu0 %370
  %373 = vset.pattern.permute.xlu0 1
  %374 = vperm.xlu0 %373, %v225
  %v375 = vpop.permute.xlu0 %374
  %377 = vset.pattern.permute.xlu0 1
  %378 = vperm.xlu0 %377, %v226
  %v379 = vpop.permute.xlu0 %378
  %381 = vset.pattern.permute.xlu0 1
  %382 = vperm.xlu0 %381, %v227
  %v383 = vpop.permute.xlu0 %382
  %385 = vset.pattern.permute.xlu0 1
  %386 = vperm.xlu0 %385, %v228
  %v387 = vpop.permute.xlu0 %386
  %389 = vset.pattern.permute.xlu0 1
  %390 = vperm.xlu0 %389, %v229
  %v391 = vpop.permute.xlu0 %390
  %393 = vset.pattern.permute.xlu0 1
  %394 = vperm.xlu0 %393, %v230
  %v395 = vpop.permute.xlu0 %394
  %v397 = vlaneseq
  %v398 = vshrl.u32 %v397, 7
  %v399 = vsub.s32 1, %v398
  %v400 = vrot.slane %v232, %v399
  %v401 = vmul.f32 %v335, %v400
  %v402 = vmul.f32 %v339, %v400
  %v403 = vmul.f32 %v343, %v400
  %v404 = vmul.f32 %v347, %v400
  %v405 = vmul.f32 %v351, %v400
  %v406 = vmul.f32 %v355, %v400
  %v407 = vmul.f32 %v359, %v400
  %v408 = vmul.f32 %v363, %v400
  %v409 = vmul.f32 %v367, %v400
  %v410 = vmul.f32 %v371, %v400
  %v411 = vmul.f32 %v375, %v400
  %v412 = vmul.f32 %v379, %v400
  %v413 = vmul.f32 %v383, %v400
  %v414 = vmul.f32 %v387, %v400
  %v415 = vmul.f32 %v391, %v400
  %v416 = vmul.f32 %v395, %v400
  %v417 = vadd.f32 %v317, %v401
  %v418 = vadd.f32 %v318, %v402
  %v419 = vadd.f32 %v319, %v403
  %v420 = vadd.f32 %v320, %v404
  %v421 = vadd.f32 %v321, %v405
  %v422 = vadd.f32 %v322, %v406
  %v423 = vadd.f32 %v323, %v407
  %v424 = vadd.f32 %v324, %v408
  %v425 = vadd.f32 %v325, %v409
  %v426 = vadd.f32 %v326, %v410
  %v427 = vadd.f32 %v327, %v411
  %v428 = vadd.f32 %v328, %v412
  %v429 = vadd.f32 %v329, %v413
  %v430 = vadd.f32 %v330, %v414
  %v431 = vadd.f32 %v331, %v415
  %v432 = vadd.f32 %v332, %v416
  %433 = vset.pattern.permute.xlu0 2
  %434 = vperm.xlu0 %433, %v215
  %v435 = vpop.permute.xlu0 %434
  %437 = vset.pattern.permute.xlu0 2
  %438 = vperm.xlu0 %437, %v216
  %v439 = vpop.permute.xlu0 %438
  %441 = vset.pattern.permute.xlu0 2
  %442 = vperm.xlu0 %441, %v217
  %v443 = vpop.permute.xlu0 %442
  %445 = vset.pattern.permute.xlu0 2
  %446 = vperm.xlu0 %445, %v218
  %v447 = vpop.permute.xlu0 %446
  %449 = vset.pattern.permute.xlu0 2
  %450 = vperm.xlu0 %449, %v219
  %v451 = vpop.permute.xlu0 %450
  %453 = vset.pattern.permute.xlu0 2
  %454 = vperm.xlu0 %453, %v220
  %v455 = vpop.permute.xlu0 %454
  %457 = vset.pattern.permute.xlu0 2
  %458 = vperm.xlu0 %457, %v221
  %v459 = vpop.permute.xlu0 %458
  %461 = vset.pattern.permute.xlu0 2
  %462 = vperm.xlu0 %461, %v222
  %v463 = vpop.permute.xlu0 %462
  %465 = vset.pattern.permute.xlu0 2
  %466 = vperm.xlu0 %465, %v223
  %v467 = vpop.permute.xlu0 %466
  %469 = vset.pattern.permute.xlu0 2
  %470 = vperm.xlu0 %469, %v224
  %v471 = vpop.permute.xlu0 %470
  %473 = vset.pattern.permute.xlu0 2
  %474 = vperm.xlu0 %473, %v225
  %v475 = vpop.permute.xlu0 %474
  %477 = vset.pattern.permute.xlu0 2
  %478 = vperm.xlu0 %477, %v226
  %v479 = vpop.permute.xlu0 %478
  %481 = vset.pattern.permute.xlu0 2
  %482 = vperm.xlu0 %481, %v227
  %v483 = vpop.permute.xlu0 %482
  %485 = vset.pattern.permute.xlu0 2
  %486 = vperm.xlu0 %485, %v228
  %v487 = vpop.permute.xlu0 %486
  %489 = vset.pattern.permute.xlu0 2
  %490 = vperm.xlu0 %489, %v229
  %v491 = vpop.permute.xlu0 %490
  %493 = vset.pattern.permute.xlu0 2
  %494 = vperm.xlu0 %493, %v230
  %v495 = vpop.permute.xlu0 %494
  %v497 = vlaneseq
  %v498 = vshrl.u32 %v497, 7
  %v499 = vsub.s32 2, %v498
  %v500 = vrot.slane %v232, %v499
  %v501 = vmul.f32 %v435, %v500
  %v502 = vmul.f32 %v439, %v500
  %v503 = vmul.f32 %v443, %v500
  %v504 = vmul.f32 %v447, %v500
  %v505 = vmul.f32 %v451, %v500
  %v506 = vmul.f32 %v455, %v500
  %v507 = vmul.f32 %v459, %v500
  %v508 = vmul.f32 %v463, %v500
  %v509 = vmul.f32 %v467, %v500
  %v510 = vmul.f32 %v471, %v500
  %v511 = vmul.f32 %v475, %v500
  %v512 = vmul.f32 %v479, %v500
  %v513 = vmul.f32 %v483, %v500
  %v514 = vmul.f32 %v487, %v500
  %v515 = vmul.f32 %v491, %v500
  %v516 = vmul.f32 %v495, %v500
  %v517 = vadd.f32 %v417, %v501
  %v518 = vadd.f32 %v418, %v502
  %v519 = vadd.f32 %v419, %v503
  %v520 = vadd.f32 %v420, %v504
  %v521 = vadd.f32 %v421, %v505
  %v522 = vadd.f32 %v422, %v506
  %v523 = vadd.f32 %v423, %v507
  %v524 = vadd.f32 %v424, %v508
  %v525 = vadd.f32 %v425, %v509
  %v526 = vadd.f32 %v426, %v510
  %v527 = vadd.f32 %v427, %v511
  %v528 = vadd.f32 %v428, %v512
  %v529 = vadd.f32 %v429, %v513
  %v530 = vadd.f32 %v430, %v514
  %v531 = vadd.f32 %v431, %v515
  %v532 = vadd.f32 %v432, %v516
  %533 = vset.pattern.permute.xlu0 3
  %534 = vperm.xlu0 %533, %v215
  %v535 = vpop.permute.xlu0 %534
  %537 = vset.pattern.permute.xlu0 3
  %538 = vperm.xlu0 %537, %v216
  %v539 = vpop.permute.xlu0 %538
  %541 = vset.pattern.permute.xlu0 3
  %542 = vperm.xlu0 %541, %v217
  %v543 = vpop.permute.xlu0 %542
  %545 = vset.pattern.permute.xlu0 3
  %546 = vperm.xlu0 %545, %v218
  %v547 = vpop.permute.xlu0 %546
  %549 = vset.pattern.permute.xlu0 3
  %550 = vperm.xlu0 %549, %v219
  %v551 = vpop.permute.xlu0 %550
  %553 = vset.pattern.permute.xlu0 3
  %554 = vperm.xlu0 %553, %v220
  %v555 = vpop.permute.xlu0 %554
  %557 = vset.pattern.permute.xlu0 3
  %558 = vperm.xlu0 %557, %v221
  %v559 = vpop.permute.xlu0 %558
  %561 = vset.pattern.permute.xlu0 3
  %562 = vperm.xlu0 %561, %v222
  %v563 = vpop.permute.xlu0 %562
  %565 = vset.pattern.permute.xlu0 3
  %566 = vperm.xlu0 %565, %v223
  %v567 = vpop.permute.xlu0 %566
  %569 = vset.pattern.permute.xlu0 3
  %570 = vperm.xlu0 %569, %v224
  %v571 = vpop.permute.xlu0 %570
  %573 = vset.pattern.permute.xlu0 3
  %574 = vperm.xlu0 %573, %v225
  %v575 = vpop.permute.xlu0 %574
  %577 = vset.pattern.permute.xlu0 3
  %578 = vperm.xlu0 %577, %v226
  %v579 = vpop.permute.xlu0 %578
  %581 = vset.pattern.permute.xlu0 3
  %582 = vperm.xlu0 %581, %v227
  %v583 = vpop.permute.xlu0 %582
  %585 = vset.pattern.permute.xlu0 3
  %586 = vperm.xlu0 %585, %v228
  %v587 = vpop.permute.xlu0 %586
  %589 = vset.pattern.permute.xlu0 3
  %590 = vperm.xlu0 %589, %v229
  %v591 = vpop.permute.xlu0 %590
  %593 = vset.pattern.permute.xlu0 3
  %594 = vperm.xlu0 %593, %v230
  %v595 = vpop.permute.xlu0 %594
  %v597 = vlaneseq
  %v598 = vshrl.u32 %v597, 7
  %v599 = vsub.s32 3, %v598
  %v600 = vrot.slane %v232, %v599
  %v601 = vmul.f32 %v535, %v600
  %v602 = vmul.f32 %v539, %v600
  %v603 = vmul.f32 %v543, %v600
  %v604 = vmul.f32 %v547, %v600
  %v605 = vmul.f32 %v551, %v600
  %v606 = vmul.f32 %v555, %v600
  %v607 = vmul.f32 %v559, %v600
  %v608 = vmul.f32 %v563, %v600
  %v609 = vmul.f32 %v567, %v600
  %v610 = vmul.f32 %v571, %v600
  %v611 = vmul.f32 %v575, %v600
  %v612 = vmul.f32 %v579, %v600
  %v613 = vmul.f32 %v583, %v600
  %v614 = vmul.f32 %v587, %v600
  %v615 = vmul.f32 %v591, %v600
  %v616 = vmul.f32 %v595, %v600
  %v617 = vadd.f32 %v517, %v601
  %v618 = vadd.f32 %v518, %v602
  %v619 = vadd.f32 %v519, %v603
  %v620 = vadd.f32 %v520, %v604
  %v621 = vadd.f32 %v521, %v605
  %v622 = vadd.f32 %v522, %v606
  %v623 = vadd.f32 %v523, %v607
  %v624 = vadd.f32 %v524, %v608
  %v625 = vadd.f32 %v525, %v609
  %v626 = vadd.f32 %v526, %v610
  %v627 = vadd.f32 %v527, %v611
  %v628 = vadd.f32 %v528, %v612
  %v629 = vadd.f32 %v529, %v613
  %v630 = vadd.f32 %v530, %v614
  %v631 = vadd.f32 %v531, %v615
  %v632 = vadd.f32 %v532, %v616
  %vm633 = vcmask 523264
  %v634 = vsel %vm633, %v617, 0.0
  %v635 = vsel %vm633, %v618, 0.0
  %v636 = vadd.f32 %v634, %v635
  %v637 = vsel %vm633, %v619, 0.0
  %v638 = vadd.f32 %v636, %v637
  %v639 = vsel %vm633, %v620, 0.0
  %v640 = vadd.f32 %v638, %v639
  %v641 = vsel %vm633, %v621, 0.0
  %v642 = vadd.f32 %v640, %v641
  %v643 = vsel %vm633, %v622, 0.0
  %v644 = vadd.f32 %v642, %v643
  %v645 = vsel %vm633, %v623, 0.0
  %v646 = vadd.f32 %v644, %v645
  %v647 = vsel %vm633, %v624, 0.0
  %v648 = vadd.f32 %v646, %v647
  %v649 = vsel %vm633, %v625, 0.0
  %v650 = vadd.f32 %v648, %v649
  %v651 = vsel %vm633, %v626, 0.0
  %v652 = vadd.f32 %v650, %v651
  %v653 = vsel %vm633, %v627, 0.0
  %v654 = vadd.f32 %v652, %v653
  %v655 = vsel %vm633, %v628, 0.0
  %v656 = vadd.f32 %v654, %v655
  %v657 = vsel %vm633, %v629, 0.0
  %v658 = vadd.f32 %v656, %v657
  %v659 = vsel %vm633, %v630, 0.0
  %v660 = vadd.f32 %v658, %v659
  %v661 = vsel %vm633, %v631, 0.0
  %v662 = vadd.f32 %v660, %v661
  %v663 = vsel %vm633, %v632, 0.0
  %v664 = vadd.f32 %v662, %v663
  %v665 = vrot.slane %v664, 4
  %v666 = vadd.f32 %v664, %v665
  %v667 = vrot.slane %v666, 2
  %v668 = vadd.f32 %v666, %v667
  %v669 = vrot.slane %v668, 1
  %v670 = vadd.f32 %v668, %v669
  %v671 = vrcp.pop 128.0
  %v672 = vmul.f32 %v670, %v671
  %v673 = vsub.f32 %v617, %v672
  %v674 = vsub.f32 %v618, %v672
  %v675 = vsub.f32 %v619, %v672
  %v676 = vsub.f32 %v620, %v672
  %v677 = vsub.f32 %v621, %v672
  %v678 = vsub.f32 %v622, %v672
  %v679 = vsub.f32 %v623, %v672
  %v680 = vsub.f32 %v624, %v672
  %v681 = vsub.f32 %v625, %v672
  %v682 = vsub.f32 %v626, %v672
  %v683 = vsub.f32 %v627, %v672
  %v684 = vsub.f32 %v628, %v672
  %v685 = vsub.f32 %v629, %v672
  %v686 = vsub.f32 %v630, %v672
  %v687 = vsub.f32 %v631, %v672
  %v688 = vsub.f32 %v632, %v672
  %v689 = vmul.f32 %v673, %v673
  %v690 = vmul.f32 %v674, %v674
  %v691 = vmul.f32 %v675, %v675
  %v692 = vmul.f32 %v676, %v676
  %v693 = vmul.f32 %v677, %v677
  %v694 = vmul.f32 %v678, %v678
  %v695 = vmul.f32 %v679, %v679
  %v696 = vmul.f32 %v680, %v680
  %v697 = vmul.f32 %v681, %v681
  %v698 = vmul.f32 %v682, %v682
  %v699 = vmul.f32 %v683, %v683
  %v700 = vmul.f32 %v684, %v684
  %v701 = vmul.f32 %v685, %v685
  %v702 = vmul.f32 %v686, %v686
  %v703 = vmul.f32 %v687, %v687
  %v704 = vmul.f32 %v688, %v688
  %v705 = vsel %vm633, %v689, 0.0
  %v706 = vsel %vm633, %v690, 0.0
  %v707 = vadd.f32 %v705, %v706
  %v708 = vsel %vm633, %v691, 0.0
  %v709 = vadd.f32 %v707, %v708
  %v710 = vsel %vm633, %v692, 0.0
  %v711 = vadd.f32 %v709, %v710
  %v712 = vsel %vm633, %v693, 0.0
  %v713 = vadd.f32 %v711, %v712
  %v714 = vsel %vm633, %v694, 0.0
  %v715 = vadd.f32 %v713, %v714
  %v716 = vsel %vm633, %v695, 0.0
  %v717 = vadd.f32 %v715, %v716
  %v718 = vsel %vm633, %v696, 0.0
  %v719 = vadd.f32 %v717, %v718
  %v720 = vsel %vm633, %v697, 0.0
  %v721 = vadd.f32 %v719, %v720
  %v722 = vsel %vm633, %v698, 0.0
  %v723 = vadd.f32 %v721, %v722
  %v724 = vsel %vm633, %v699, 0.0
  %v725 = vadd.f32 %v723, %v724
  %v726 = vsel %vm633, %v700, 0.0
  %v727 = vadd.f32 %v725, %v726
  %v728 = vsel %vm633, %v701, 0.0
  %v729 = vadd.f32 %v727, %v728
  %v730 = vsel %vm633, %v702, 0.0
  %v731 = vadd.f32 %v729, %v730
  %v732 = vsel %vm633, %v703, 0.0
  %v733 = vadd.f32 %v731, %v732
  %v734 = vsel %vm633, %v704, 0.0
  %v735 = vadd.f32 %v733, %v734
  %v736 = vrot.slane %v735, 4
  %v737 = vadd.f32 %v735, %v736
  %v738 = vrot.slane %v737, 2
  %v739 = vadd.f32 %v737, %v738
  %v740 = vrot.slane %v739, 1
  %v741 = vadd.f32 %v739, %v740
  %v742 = vmul.f32 %v741, %v671
  %v743 = vadd.f32 %v742, 1e-05
  %v744 = vrsqrt.pop %v743
  %v745 = vmul.f32 %v673, %v744
  %v746 = vmul.f32 %v674, %v744
  %v747 = vmul.f32 %v675, %v744
  %v748 = vmul.f32 %v676, %v744
  %v749 = vmul.f32 %v677, %v744
  %v750 = vmul.f32 %v678, %v744
  %v751 = vmul.f32 %v679, %v744
  %v752 = vmul.f32 %v680, %v744
  %v753 = vmul.f32 %v681, %v744
  %v754 = vmul.f32 %v682, %v744
  %v755 = vmul.f32 %v683, %v744
  %v756 = vmul.f32 %v684, %v744
  %v757 = vmul.f32 %v685, %v744
  %v758 = vmul.f32 %v686, %v744
  %v759 = vmul.f32 %v687, %v744
  %v760 = vmul.f32 %v688, %v744
  %v761 = vmax.f32 %v745, 0.0
  %v762 = vmax.f32 %v746, 0.0
  %v763 = vmax.f32 %v747, 0.0
  %v764 = vmax.f32 %v748, 0.0
  %v765 = vmax.f32 %v749, 0.0
  %v766 = vmax.f32 %v750, 0.0
  %v767 = vmax.f32 %v751, 0.0
  %v768 = vmax.f32 %v752, 0.0
  %v769 = vmax.f32 %v753, 0.0
  %v770 = vmax.f32 %v754, 0.0
  %v771 = vmax.f32 %v755, 0.0
  %v772 = vmax.f32 %v756, 0.0
  %v773 = vmax.f32 %v757, 0.0
  %v774 = vmax.f32 %v758, 0.0
  %v775 = vmax.f32 %v759, 0.0
  %v776 = vmax.f32 %v760, 0.0
  %v777 = vld [vmem:[%s3] sm:$0xf]
  %v778 = vld [vmem:[%s3 + $0x4] sm:$0xf]
  %v779 = vld [vmem:[%s3 + $0x8] sm:$0xf]
  %v780 = vld [vmem:[%s3 + $0xc] sm:$0xf]
  %v781 = vld [vmem:[%s3 + $0x10] sm:$0xf]
  %v782 = vld [vmem:[%s3 + $0x14] sm:$0xf]
  %v783 = vld [vmem:[%s3 + $0x18] sm:$0xf]
  %v784 = vld [vmem:[%s3 + $0x1c] sm:$0xf]
  %v785 = vpack.c.bf16 %v762, %v761
  %v786 = vpack.c.bf16 %v764, %v763
  %v787 = vpack.c.bf16 %v766, %v765
  %v788 = vpack.c.bf16 %v768, %v767
  %v789 = vpack.c.bf16 %v770, %v769
  %v790 = vpack.c.bf16 %v772, %v771
  %v791 = vpack.c.bf16 %v774, %v773
  %v792 = vpack.c.bf16 %v776, %v775
  %v801 = vunpack.c.l.b16 %v777
  %v802 = vunpack.c.l.b16 %v778
  %v803 = vunpack.c.l.b16 %v779
  %v804 = vunpack.c.l.b16 %v780
  %v805 = vunpack.c.l.b16 %v781
  %v806 = vunpack.c.l.b16 %v782
  %v807 = vunpack.c.l.b16 %v783
  %v808 = vunpack.c.l.b16 %v784
  %v809 = vpack.c.b16 %v802, %v801
  %v810 = vpack.c.b16 %v804, %v803
  %v811 = vpack.c.b16 %v806, %v805
  %v812 = vpack.c.b16 %v808, %v807
  %v818 = vsel %vm633, %v785, 0
  %v821 = vsel %vm633, %v786, 0
  %v824 = vsel %vm633, %v787, 0
  %v827 = vsel %vm633, %v788, 0
  %v830 = vsel %vm633, %v789, 0
  %v833 = vsel %vm633, %v790, 0
  %v836 = vsel %vm633, %v791, 0
  %v839 = vsel %vm633, %v792, 0
  %841 = vmatprep.subr.bf16.mxu0 0
  %842 = vmatpush1.bf16.msra.mxu0 %v809
  %843 = vmatprep.subr.bf16.mxu0 0
  %844 = vmatpush1.bf16.msra.mxu0 %v810
  %845 = vmatprep.subr.bf16.mxu0 0
  %846 = vmatpush1.bf16.msra.mxu0 %v811
  %847 = vmatprep.subr.bf16.mxu0 0
  %848 = vmatpush1.bf16.msra.mxu0 %v812
  %849 = vmatprep.subr.bf16.mxu0 0
  %850 = vmatpush1.bf16.msra.mxu0 0
  %851 = vmatprep.subr.bf16.mxu0 0
  %852 = vmatpush1.bf16.msra.mxu0 0
  %853 = vmatprep.subr.bf16.mxu0 0
  %854 = vmatpush1.bf16.msra.mxu0 0
  %855 = vmatprep.subr.bf16.mxu0 0
  %856 = vmatpush1.bf16.msra.mxu0 0
  %857 = vmatprep.subr.bf16.mxu0 0
  %858 = vmatpush1.bf16.msra.mxu0 0
  %859 = vmatprep.subr.bf16.mxu0 0
  %860 = vmatpush1.bf16.msra.mxu0 0
  %861 = vmatprep.subr.bf16.mxu0 0
  %862 = vmatpush1.bf16.msra.mxu0 0
  %863 = vmatprep.subr.bf16.mxu0 0
  %864 = vmatpush1.bf16.msra.mxu0 0
  %865 = vmatprep.subr.bf16.mxu0 0
  %866 = vmatpush1.bf16.msra.mxu0 0
  %867 = vmatprep.subr.bf16.mxu0 0
  %868 = vmatpush1.bf16.msra.mxu0 0
  %869 = vmatprep.subr.bf16.mxu0 0
  %870 = vmatpush1.bf16.msra.mxu0 0
  %871 = vmatprep.subr.bf16.mxu0 0
  %872 = vmatpush1.bf16.msra.mxu0 0
  %873 = vmatprep.mubr.bf16.mxu0 0
  %874 = vmatmul.mubr.bf16.gmra.mrb[0].mxu0 %v818
  %v875 = vpop.f32.mrb[0].mxu0
  %v876 = vadd.f32 0.0, %v875
  %v877 = vpop.f32.mrb[0].mxu0
  %v878 = vpop.f32.mrb[0].mxu0
  %v879 = vadd.f32 0.0, %v878
  %v880 = vpop.f32.mrb[0].mxu0
  %881 = vmatprep.mubr.bf16.mxu0 0
  %882 = vmatmul.mubr.bf16.gmra.mrb[0].mxu0 %v821
  %v883 = vpop.f32.mrb[0].mxu0
  %v884 = vadd.f32 0.0, %v883
  %v885 = vpop.f32.mrb[0].mxu0
  %v886 = vpop.f32.mrb[0].mxu0
  %v887 = vadd.f32 0.0, %v886
  %v888 = vpop.f32.mrb[0].mxu0
  %889 = vmatprep.mubr.bf16.mxu0 0
  %890 = vmatmul.mubr.bf16.gmra.mrb[0].mxu0 %v824
  %v891 = vpop.f32.mrb[0].mxu0
  %v892 = vadd.f32 0.0, %v891
  %v893 = vpop.f32.mrb[0].mxu0
  %v894 = vpop.f32.mrb[0].mxu0
  %v895 = vadd.f32 0.0, %v894
  %v896 = vpop.f32.mrb[0].mxu0
  %897 = vmatprep.mubr.bf16.mxu0 0
  %898 = vmatmul.mubr.bf16.gmra.mrb[0].mxu0 %v827
  %v899 = vpop.f32.mrb[0].mxu0
  %v900 = vadd.f32 0.0, %v899
  %v901 = vpop.f32.mrb[0].mxu0
  %v902 = vpop.f32.mrb[0].mxu0
  %v903 = vadd.f32 0.0, %v902
  %v904 = vpop.f32.mrb[0].mxu0
  %905 = vmatprep.mubr.bf16.mxu0 0
  %906 = vmatmul.mubr.bf16.gmra.mrb[0].mxu0 %v830
  %v907 = vpop.f32.mrb[0].mxu0
  %v908 = vadd.f32 0.0, %v907
  %v909 = vpop.f32.mrb[0].mxu0
  %v910 = vpop.f32.mrb[0].mxu0
  %v911 = vadd.f32 0.0, %v910
  %v912 = vpop.f32.mrb[0].mxu0
  %913 = vmatprep.mubr.bf16.mxu0 0
  %914 = vmatmul.mubr.bf16.gmra.mrb[0].mxu0 %v833
  %v915 = vpop.f32.mrb[0].mxu0
  %v916 = vadd.f32 0.0, %v915
  %v917 = vpop.f32.mrb[0].mxu0
  %v918 = vpop.f32.mrb[0].mxu0
  %v919 = vadd.f32 0.0, %v918
  %v920 = vpop.f32.mrb[0].mxu0
  %921 = vmatprep.mubr.bf16.mxu0 0
  %922 = vmatmul.mubr.bf16.gmra.mrb[0].mxu0 %v836
  %v923 = vpop.f32.mrb[0].mxu0
  %v924 = vadd.f32 0.0, %v923
  %v925 = vpop.f32.mrb[0].mxu0
  %v926 = vpop.f32.mrb[0].mxu0
  %v927 = vadd.f32 0.0, %v926
  %v928 = vpop.f32.mrb[0].mxu0
  %929 = vmatprep.mubr.bf16.mxu0 0
  %930 = vmatmul.mubr.bf16.gmra.mrb[0].mxu0 %v839
  %v931 = vpop.f32.mrb[0].mxu0
  %v932 = vadd.f32 0.0, %v931
  %v933 = vpop.f32.mrb[0].mxu0
  %v934 = vpop.f32.mrb[0].mxu0
  %v935 = vadd.f32 0.0, %v934
  %v936 = vpop.f32.mrb[0].mxu0
  %937 = vdwg.mxu0
  %v938 = vld [vmem:[%s1] sm:$0x3]
  %v939 = vunpack.c.l.bf16 %v938
  %941 = vset.pattern.permute.xlu0 0
  %942 = vperm.xlu0 %941, %v103
  %v943 = vpop.permute.xlu0 %942
  %946 = vset.pattern.permute.xlu0 0
  %947 = vperm.xlu0 %946, %v104
  %v948 = vpop.permute.xlu0 %947
  %951 = vset.pattern.permute.xlu0 0
  %952 = vperm.xlu0 %951, %v105
  %v953 = vpop.permute.xlu0 %952
  %956 = vset.pattern.permute.xlu0 0
  %957 = vperm.xlu0 %956, %v106
  %v958 = vpop.permute.xlu0 %957
  %961 = vset.pattern.permute.xlu0 0
  %962 = vperm.xlu0 %961, %v107
  %v963 = vpop.permute.xlu0 %962
  %966 = vset.pattern.permute.xlu0 0
  %967 = vperm.xlu0 %966, %v108
  %v968 = vpop.permute.xlu0 %967
  %971 = vset.pattern.permute.xlu0 0
  %972 = vperm.xlu0 %971, %v109
  %v973 = vpop.permute.xlu0 %972
  %976 = vset.pattern.permute.xlu0 0
  %977 = vperm.xlu0 %976, %v110
  %v978 = vpop.permute.xlu0 %977
  %981 = vset.pattern.permute.xlu0 0
  %982 = vperm.xlu0 %981, %v111
  %v983 = vpop.permute.xlu0 %982
  %986 = vset.pattern.permute.xlu0 0
  %987 = vperm.xlu0 %986, %v112
  %v988 = vpop.permute.xlu0 %987
  %991 = vset.pattern.permute.xlu0 0
  %992 = vperm.xlu0 %991, %v113
  %v993 = vpop.permute.xlu0 %992
  %996 = vset.pattern.permute.xlu0 0
  %997 = vperm.xlu0 %996, %v114
  %v998 = vpop.permute.xlu0 %997
  %1001 = vset.pattern.permute.xlu0 0
  %1002 = vperm.xlu0 %1001, %v115
  %v1003 = vpop.permute.xlu0 %1002
  %1006 = vset.pattern.permute.xlu0 0
  %1007 = vperm.xlu0 %1006, %v116
  %v1008 = vpop.permute.xlu0 %1007
  %1011 = vset.pattern.permute.xlu0 0
  %1012 = vperm.xlu0 %1011, %v117
  %v1013 = vpop.permute.xlu0 %1012
  %1016 = vset.pattern.permute.xlu0 0
  %1017 = vperm.xlu0 %1016, %v118
  %v1018 = vpop.permute.xlu0 %1017
  %1021 = vset.pattern.permute.xlu0 0
  %1022 = vperm.xlu0 %1021, %v119
  %v1023 = vpop.permute.xlu0 %1022
  %1026 = vset.pattern.permute.xlu0 0
  %1027 = vperm.xlu0 %1026, %v120
  %v1028 = vpop.permute.xlu0 %1027
  %1031 = vset.pattern.permute.xlu0 0
  %1032 = vperm.xlu0 %1031, %v121
  %v1033 = vpop.permute.xlu0 %1032
  %1036 = vset.pattern.permute.xlu0 0
  %1037 = vperm.xlu0 %1036, %v122
  %v1038 = vpop.permute.xlu0 %1037
  %1041 = vset.pattern.permute.xlu0 0
  %1042 = vperm.xlu0 %1041, %v123
  %v1043 = vpop.permute.xlu0 %1042
  %1046 = vset.pattern.permute.xlu0 0
  %1047 = vperm.xlu0 %1046, %v124
  %v1048 = vpop.permute.xlu0 %1047
  %1051 = vset.pattern.permute.xlu0 0
  %1052 = vperm.xlu0 %1051, %v125
  %v1053 = vpop.permute.xlu0 %1052
  %1056 = vset.pattern.permute.xlu0 0
  %1057 = vperm.xlu0 %1056, %v126
  %v1058 = vpop.permute.xlu0 %1057
  %1061 = vset.pattern.permute.xlu0 0
  %1062 = vperm.xlu0 %1061, %v127
  %v1063 = vpop.permute.xlu0 %1062
  %1066 = vset.pattern.permute.xlu0 0
  %1067 = vperm.xlu0 %1066, %v128
  %v1068 = vpop.permute.xlu0 %1067
  %1071 = vset.pattern.permute.xlu0 0
  %1072 = vperm.xlu0 %1071, %v129
  %v1073 = vpop.permute.xlu0 %1072
  %1076 = vset.pattern.permute.xlu0 0
  %1077 = vperm.xlu0 %1076, %v130
  %v1078 = vpop.permute.xlu0 %1077
  %1081 = vset.pattern.permute.xlu0 0
  %1082 = vperm.xlu0 %1081, %v131
  %v1083 = vpop.permute.xlu0 %1082
  %1086 = vset.pattern.permute.xlu0 0
  %1087 = vperm.xlu0 %1086, %v132
  %v1088 = vpop.permute.xlu0 %1087
  %1091 = vset.pattern.permute.xlu0 0
  %1092 = vperm.xlu0 %1091, %v133
  %v1093 = vpop.permute.xlu0 %1092
  %1096 = vset.pattern.permute.xlu0 0
  %1097 = vperm.xlu0 %1096, %v134
  %v1098 = vpop.permute.xlu0 %1097
  %1101 = vset.pattern.permute.xlu0 0
  %1102 = vperm.xlu0 %1101, %v151
  %v1103 = vpop.permute.xlu0 %1102
  %1106 = vset.pattern.permute.xlu0 0
  %1107 = vperm.xlu0 %1106, %v152
  %v1108 = vpop.permute.xlu0 %1107
  %1111 = vset.pattern.permute.xlu0 0
  %1112 = vperm.xlu0 %1111, %v153
  %v1113 = vpop.permute.xlu0 %1112
  %1116 = vset.pattern.permute.xlu0 0
  %1117 = vperm.xlu0 %1116, %v154
  %v1118 = vpop.permute.xlu0 %1117
  %1121 = vset.pattern.permute.xlu0 0
  %1122 = vperm.xlu0 %1121, %v155
  %v1123 = vpop.permute.xlu0 %1122
  %1126 = vset.pattern.permute.xlu0 0
  %1127 = vperm.xlu0 %1126, %v156
  %v1128 = vpop.permute.xlu0 %1127
  %1131 = vset.pattern.permute.xlu0 0
  %1132 = vperm.xlu0 %1131, %v157
  %v1133 = vpop.permute.xlu0 %1132
  %1136 = vset.pattern.permute.xlu0 0
  %1137 = vperm.xlu0 %1136, %v158
  %v1138 = vpop.permute.xlu0 %1137
  %1141 = vset.pattern.permute.xlu0 0
  %1142 = vperm.xlu0 %1141, %v159
  %v1143 = vpop.permute.xlu0 %1142
  %1146 = vset.pattern.permute.xlu0 0
  %1147 = vperm.xlu0 %1146, %v160
  %v1148 = vpop.permute.xlu0 %1147
  %1151 = vset.pattern.permute.xlu0 0
  %1152 = vperm.xlu0 %1151, %v161
  %v1153 = vpop.permute.xlu0 %1152
  %1156 = vset.pattern.permute.xlu0 0
  %1157 = vperm.xlu0 %1156, %v162
  %v1158 = vpop.permute.xlu0 %1157
  %1161 = vset.pattern.permute.xlu0 0
  %1162 = vperm.xlu0 %1161, %v163
  %v1163 = vpop.permute.xlu0 %1162
  %1166 = vset.pattern.permute.xlu0 0
  %1167 = vperm.xlu0 %1166, %v164
  %v1168 = vpop.permute.xlu0 %1167
  %1171 = vset.pattern.permute.xlu0 0
  %1172 = vperm.xlu0 %1171, %v165
  %v1173 = vpop.permute.xlu0 %1172
  %1176 = vset.pattern.permute.xlu0 0
  %1177 = vperm.xlu0 %1176, %v166
  %v1178 = vpop.permute.xlu0 %1177
  %1181 = vset.pattern.permute.xlu0 0
  %1182 = vperm.xlu0 %1181, %v183
  %v1183 = vpop.permute.xlu0 %1182
  %1186 = vset.pattern.permute.xlu0 0
  %1187 = vperm.xlu0 %1186, %v184
  %v1188 = vpop.permute.xlu0 %1187
  %1191 = vset.pattern.permute.xlu0 0
  %1192 = vperm.xlu0 %1191, %v185
  %v1193 = vpop.permute.xlu0 %1192
  %1196 = vset.pattern.permute.xlu0 0
  %1197 = vperm.xlu0 %1196, %v186
  %v1198 = vpop.permute.xlu0 %1197
  %1201 = vset.pattern.permute.xlu0 0
  %1202 = vperm.xlu0 %1201, %v187
  %v1203 = vpop.permute.xlu0 %1202
  %1206 = vset.pattern.permute.xlu0 0
  %1207 = vperm.xlu0 %1206, %v188
  %v1208 = vpop.permute.xlu0 %1207
  %1211 = vset.pattern.permute.xlu0 0
  %1212 = vperm.xlu0 %1211, %v189
  %v1213 = vpop.permute.xlu0 %1212
  %1216 = vset.pattern.permute.xlu0 0
  %1217 = vperm.xlu0 %1216, %v190
  %v1218 = vpop.permute.xlu0 %1217
  %1221 = vset.pattern.permute.xlu0 0
  %1222 = vperm.xlu0 %1221, %v191
  %v1223 = vpop.permute.xlu0 %1222
  %1226 = vset.pattern.permute.xlu0 0
  %1227 = vperm.xlu0 %1226, %v192
  %v1228 = vpop.permute.xlu0 %1227
  %1231 = vset.pattern.permute.xlu0 0
  %1232 = vperm.xlu0 %1231, %v193
  %v1233 = vpop.permute.xlu0 %1232
  %1236 = vset.pattern.permute.xlu0 0
  %1237 = vperm.xlu0 %1236, %v194
  %v1238 = vpop.permute.xlu0 %1237
  %1241 = vset.pattern.permute.xlu0 0
  %1242 = vperm.xlu0 %1241, %v195
  %v1243 = vpop.permute.xlu0 %1242
  %1246 = vset.pattern.permute.xlu0 0
  %1247 = vperm.xlu0 %1246, %v196
  %v1248 = vpop.permute.xlu0 %1247
  %1251 = vset.pattern.permute.xlu0 0
  %1252 = vperm.xlu0 %1251, %v197
  %v1253 = vpop.permute.xlu0 %1252
  %1256 = vset.pattern.permute.xlu0 0
  %1257 = vperm.xlu0 %1256, %v198
  %v1258 = vpop.permute.xlu0 %1257
  %v1260 = vlaneseq
  %v1261 = vshrl.u32 %v1260, 7
  %v1262 = vsub.s32 0, %v1261
  %v1263 = vrot.slane %v939, %v1262
  %v1264 = vmul.f32 %v943, %v1263
  %v1265 = vmul.f32 %v948, %v1263
  %v1266 = vmul.f32 %v953, %v1263
  %v1267 = vmul.f32 %v958, %v1263
  %v1268 = vmul.f32 %v963, %v1263
  %v1269 = vmul.f32 %v968, %v1263
  %v1270 = vmul.f32 %v973, %v1263
  %v1271 = vmul.f32 %v978, %v1263
  %v1272 = vmul.f32 %v983, %v1263
  %v1273 = vmul.f32 %v988, %v1263
  %v1274 = vmul.f32 %v993, %v1263
  %v1275 = vmul.f32 %v998, %v1263
  %v1276 = vmul.f32 %v1003, %v1263
  %v1277 = vmul.f32 %v1008, %v1263
  %v1278 = vmul.f32 %v1013, %v1263
  %v1279 = vmul.f32 %v1018, %v1263
  %v1280 = vmul.f32 %v1023, %v1263
  %v1281 = vmul.f32 %v1028, %v1263
  %v1282 = vmul.f32 %v1033, %v1263
  %v1283 = vmul.f32 %v1038, %v1263
  %v1284 = vmul.f32 %v1043, %v1263
  %v1285 = vmul.f32 %v1048, %v1263
  %v1286 = vmul.f32 %v1053, %v1263
  %v1287 = vmul.f32 %v1058, %v1263
  %v1288 = vmul.f32 %v1063, %v1263
  %v1289 = vmul.f32 %v1068, %v1263
  %v1290 = vmul.f32 %v1073, %v1263
  %v1291 = vmul.f32 %v1078, %v1263
  %v1292 = vmul.f32 %v1083, %v1263
  %v1293 = vmul.f32 %v1088, %v1263
  %v1294 = vmul.f32 %v1093, %v1263
  %v1295 = vmul.f32 %v1098, %v1263
  %v1296 = vmul.f32 %v1103, %v1263
  %v1297 = vmul.f32 %v1108, %v1263
  %v1298 = vmul.f32 %v1113, %v1263
  %v1299 = vmul.f32 %v1118, %v1263
  %v1300 = vmul.f32 %v1123, %v1263
  %v1301 = vmul.f32 %v1128, %v1263
  %v1302 = vmul.f32 %v1133, %v1263
  %v1303 = vmul.f32 %v1138, %v1263
  %v1304 = vmul.f32 %v1143, %v1263
  %v1305 = vmul.f32 %v1148, %v1263
  %v1306 = vmul.f32 %v1153, %v1263
  %v1307 = vmul.f32 %v1158, %v1263
  %v1308 = vmul.f32 %v1163, %v1263
  %v1309 = vmul.f32 %v1168, %v1263
  %v1310 = vmul.f32 %v1173, %v1263
  %v1311 = vmul.f32 %v1178, %v1263
  %v1312 = vmul.f32 %v1183, %v1263
  %v1313 = vmul.f32 %v1188, %v1263
  %v1314 = vmul.f32 %v1193, %v1263
  %v1315 = vmul.f32 %v1198, %v1263
  %v1316 = vmul.f32 %v1203, %v1263
  %v1317 = vmul.f32 %v1208, %v1263
  %v1318 = vmul.f32 %v1213, %v1263
  %v1319 = vmul.f32 %v1218, %v1263
  %v1320 = vmul.f32 %v1223, %v1263
  %v1321 = vmul.f32 %v1228, %v1263
  %v1322 = vmul.f32 %v1233, %v1263
  %v1323 = vmul.f32 %v1238, %v1263
  %v1324 = vmul.f32 %v1243, %v1263
  %v1325 = vmul.f32 %v1248, %v1263
  %v1326 = vmul.f32 %v1253, %v1263
  %v1327 = vmul.f32 %v1258, %v1263
  %1328 = vset.pattern.permute.xlu0 1
  %1329 = vperm.xlu0 %1328, %v103
  %v1330 = vpop.permute.xlu0 %1329
  %1332 = vset.pattern.permute.xlu0 1
  %1333 = vperm.xlu0 %1332, %v104
  %v1334 = vpop.permute.xlu0 %1333
  %1336 = vset.pattern.permute.xlu0 1
  %1337 = vperm.xlu0 %1336, %v105
  %v1338 = vpop.permute.xlu0 %1337
  %1340 = vset.pattern.permute.xlu0 1
  %1341 = vperm.xlu0 %1340, %v106
  %v1342 = vpop.permute.xlu0 %1341
  %1344 = vset.pattern.permute.xlu0 1
  %1345 = vperm.xlu0 %1344, %v107
  %v1346 = vpop.permute.xlu0 %1345
  %1348 = vset.pattern.permute.xlu0 1
  %1349 = vperm.xlu0 %1348, %v108
  %v1350 = vpop.permute.xlu0 %1349
  %1352 = vset.pattern.permute.xlu0 1
  %1353 = vperm.xlu0 %1352, %v109
  %v1354 = vpop.permute.xlu0 %1353
  %1356 = vset.pattern.permute.xlu0 1
  %1357 = vperm.xlu0 %1356, %v110
  %v1358 = vpop.permute.xlu0 %1357
  %1360 = vset.pattern.permute.xlu0 1
  %1361 = vperm.xlu0 %1360, %v111
  %v1362 = vpop.permute.xlu0 %1361
  %1364 = vset.pattern.permute.xlu0 1
  %1365 = vperm.xlu0 %1364, %v112
  %v1366 = vpop.permute.xlu0 %1365
  %1368 = vset.pattern.permute.xlu0 1
  %1369 = vperm.xlu0 %1368, %v113
  %v1370 = vpop.permute.xlu0 %1369
  %1372 = vset.pattern.permute.xlu0 1
  %1373 = vperm.xlu0 %1372, %v114
  %v1374 = vpop.permute.xlu0 %1373
  %1376 = vset.pattern.permute.xlu0 1
  %1377 = vperm.xlu0 %1376, %v115
  %v1378 = vpop.permute.xlu0 %1377
  %1380 = vset.pattern.permute.xlu0 1
  %1381 = vperm.xlu0 %1380, %v116
  %v1382 = vpop.permute.xlu0 %1381
  %1384 = vset.pattern.permute.xlu0 1
  %1385 = vperm.xlu0 %1384, %v117
  %v1386 = vpop.permute.xlu0 %1385
  %1388 = vset.pattern.permute.xlu0 1
  %1389 = vperm.xlu0 %1388, %v118
  %v1390 = vpop.permute.xlu0 %1389
  %1392 = vset.pattern.permute.xlu0 1
  %1393 = vperm.xlu0 %1392, %v119
  %v1394 = vpop.permute.xlu0 %1393
  %1396 = vset.pattern.permute.xlu0 1
  %1397 = vperm.xlu0 %1396, %v120
  %v1398 = vpop.permute.xlu0 %1397
  %1400 = vset.pattern.permute.xlu0 1
  %1401 = vperm.xlu0 %1400, %v121
  %v1402 = vpop.permute.xlu0 %1401
  %1404 = vset.pattern.permute.xlu0 1
  %1405 = vperm.xlu0 %1404, %v122
  %v1406 = vpop.permute.xlu0 %1405
  %1408 = vset.pattern.permute.xlu0 1
  %1409 = vperm.xlu0 %1408, %v123
  %v1410 = vpop.permute.xlu0 %1409
  %1412 = vset.pattern.permute.xlu0 1
  %1413 = vperm.xlu0 %1412, %v124
  %v1414 = vpop.permute.xlu0 %1413
  %1416 = vset.pattern.permute.xlu0 1
  %1417 = vperm.xlu0 %1416, %v125
  %v1418 = vpop.permute.xlu0 %1417
  %1420 = vset.pattern.permute.xlu0 1
  %1421 = vperm.xlu0 %1420, %v126
  %v1422 = vpop.permute.xlu0 %1421
  %1424 = vset.pattern.permute.xlu0 1
  %1425 = vperm.xlu0 %1424, %v127
  %v1426 = vpop.permute.xlu0 %1425
  %1428 = vset.pattern.permute.xlu0 1
  %1429 = vperm.xlu0 %1428, %v128
  %v1430 = vpop.permute.xlu0 %1429
  %1432 = vset.pattern.permute.xlu0 1
  %1433 = vperm.xlu0 %1432, %v129
  %v1434 = vpop.permute.xlu0 %1433
  %1436 = vset.pattern.permute.xlu0 1
  %1437 = vperm.xlu0 %1436, %v130
  %v1438 = vpop.permute.xlu0 %1437
  %1440 = vset.pattern.permute.xlu0 1
  %1441 = vperm.xlu0 %1440, %v131
  %v1442 = vpop.permute.xlu0 %1441
  %1444 = vset.pattern.permute.xlu0 1
  %1445 = vperm.xlu0 %1444, %v132
  %v1446 = vpop.permute.xlu0 %1445
  %1448 = vset.pattern.permute.xlu0 1
  %1449 = vperm.xlu0 %1448, %v133
  %v1450 = vpop.permute.xlu0 %1449
  %1452 = vset.pattern.permute.xlu0 1
  %1453 = vperm.xlu0 %1452, %v134
  %v1454 = vpop.permute.xlu0 %1453
  %1456 = vset.pattern.permute.xlu0 1
  %1457 = vperm.xlu0 %1456, %v151
  %v1458 = vpop.permute.xlu0 %1457
  %1460 = vset.pattern.permute.xlu0 1
  %1461 = vperm.xlu0 %1460, %v152
  %v1462 = vpop.permute.xlu0 %1461
  %1464 = vset.pattern.permute.xlu0 1
  %1465 = vperm.xlu0 %1464, %v153
  %v1466 = vpop.permute.xlu0 %1465
  %1468 = vset.pattern.permute.xlu0 1
  %1469 = vperm.xlu0 %1468, %v154
  %v1470 = vpop.permute.xlu0 %1469
  %1472 = vset.pattern.permute.xlu0 1
  %1473 = vperm.xlu0 %1472, %v155
  %v1474 = vpop.permute.xlu0 %1473
  %1476 = vset.pattern.permute.xlu0 1
  %1477 = vperm.xlu0 %1476, %v156
  %v1478 = vpop.permute.xlu0 %1477
  %1480 = vset.pattern.permute.xlu0 1
  %1481 = vperm.xlu0 %1480, %v157
  %v1482 = vpop.permute.xlu0 %1481
  %1484 = vset.pattern.permute.xlu0 1
  %1485 = vperm.xlu0 %1484, %v158
  %v1486 = vpop.permute.xlu0 %1485
  %1488 = vset.pattern.permute.xlu0 1
  %1489 = vperm.xlu0 %1488, %v159
  %v1490 = vpop.permute.xlu0 %1489
  %1492 = vset.pattern.permute.xlu0 1
  %1493 = vperm.xlu0 %1492, %v160
  %v1494 = vpop.permute.xlu0 %1493
  %1496 = vset.pattern.permute.xlu0 1
  %1497 = vperm.xlu0 %1496, %v161
  %v1498 = vpop.permute.xlu0 %1497
  %1500 = vset.pattern.permute.xlu0 1
  %1501 = vperm.xlu0 %1500, %v162
  %v1502 = vpop.permute.xlu0 %1501
  %1504 = vset.pattern.permute.xlu0 1
  %1505 = vperm.xlu0 %1504, %v163
  %v1506 = vpop.permute.xlu0 %1505
  %1508 = vset.pattern.permute.xlu0 1
  %1509 = vperm.xlu0 %1508, %v164
  %v1510 = vpop.permute.xlu0 %1509
  %1512 = vset.pattern.permute.xlu0 1
  %1513 = vperm.xlu0 %1512, %v165
  %v1514 = vpop.permute.xlu0 %1513
  %1516 = vset.pattern.permute.xlu0 1
  %1517 = vperm.xlu0 %1516, %v166
  %v1518 = vpop.permute.xlu0 %1517
  %1520 = vset.pattern.permute.xlu0 1
  %1521 = vperm.xlu0 %1520, %v183
  %v1522 = vpop.permute.xlu0 %1521
  %1524 = vset.pattern.permute.xlu0 1
  %1525 = vperm.xlu0 %1524, %v184
  %v1526 = vpop.permute.xlu0 %1525
  %1528 = vset.pattern.permute.xlu0 1
  %1529 = vperm.xlu0 %1528, %v185
  %v1530 = vpop.permute.xlu0 %1529
  %1532 = vset.pattern.permute.xlu0 1
  %1533 = vperm.xlu0 %1532, %v186
  %v1534 = vpop.permute.xlu0 %1533
  %1536 = vset.pattern.permute.xlu0 1
  %1537 = vperm.xlu0 %1536, %v187
  %v1538 = vpop.permute.xlu0 %1537
  %1540 = vset.pattern.permute.xlu0 1
  %1541 = vperm.xlu0 %1540, %v188
  %v1542 = vpop.permute.xlu0 %1541
  %1544 = vset.pattern.permute.xlu0 1
  %1545 = vperm.xlu0 %1544, %v189
  %v1546 = vpop.permute.xlu0 %1545
  %1548 = vset.pattern.permute.xlu0 1
  %1549 = vperm.xlu0 %1548, %v190
  %v1550 = vpop.permute.xlu0 %1549
  %1552 = vset.pattern.permute.xlu0 1
  %1553 = vperm.xlu0 %1552, %v191
  %v1554 = vpop.permute.xlu0 %1553
  %1556 = vset.pattern.permute.xlu0 1
  %1557 = vperm.xlu0 %1556, %v192
  %v1558 = vpop.permute.xlu0 %1557
  %1560 = vset.pattern.permute.xlu0 1
  %1561 = vperm.xlu0 %1560, %v193
  %v1562 = vpop.permute.xlu0 %1561
  %1564 = vset.pattern.permute.xlu0 1
  %1565 = vperm.xlu0 %1564, %v194
  %v1566 = vpop.permute.xlu0 %1565
  %1568 = vset.pattern.permute.xlu0 1
  %1569 = vperm.xlu0 %1568, %v195
  %v1570 = vpop.permute.xlu0 %1569
  %1572 = vset.pattern.permute.xlu0 1
  %1573 = vperm.xlu0 %1572, %v196
  %v1574 = vpop.permute.xlu0 %1573
  %1576 = vset.pattern.permute.xlu0 1
  %1577 = vperm.xlu0 %1576, %v197
  %v1578 = vpop.permute.xlu0 %1577
  %1580 = vset.pattern.permute.xlu0 1
  %1581 = vperm.xlu0 %1580, %v198
  %v1582 = vpop.permute.xlu0 %1581
  %v1584 = vlaneseq
  %v1585 = vshrl.u32 %v1584, 7
  %v1586 = vsub.s32 1, %v1585
  %v1587 = vrot.slane %v939, %v1586
  %v1588 = vmul.f32 %v1330, %v1587
  %v1589 = vmul.f32 %v1334, %v1587
  %v1590 = vmul.f32 %v1338, %v1587
  %v1591 = vmul.f32 %v1342, %v1587
  %v1592 = vmul.f32 %v1346, %v1587
  %v1593 = vmul.f32 %v1350, %v1587
  %v1594 = vmul.f32 %v1354, %v1587
  %v1595 = vmul.f32 %v1358, %v1587
  %v1596 = vmul.f32 %v1362, %v1587
  %v1597 = vmul.f32 %v1366, %v1587
  %v1598 = vmul.f32 %v1370, %v1587
  %v1599 = vmul.f32 %v1374, %v1587
  %v1600 = vmul.f32 %v1378, %v1587
  %v1601 = vmul.f32 %v1382, %v1587
  %v1602 = vmul.f32 %v1386, %v1587
  %v1603 = vmul.f32 %v1390, %v1587
  %v1604 = vmul.f32 %v1394, %v1587
  %v1605 = vmul.f32 %v1398, %v1587
  %v1606 = vmul.f32 %v1402, %v1587
  %v1607 = vmul.f32 %v1406, %v1587
  %v1608 = vmul.f32 %v1410, %v1587
  %v1609 = vmul.f32 %v1414, %v1587
  %v1610 = vmul.f32 %v1418, %v1587
  %v1611 = vmul.f32 %v1422, %v1587
  %v1612 = vmul.f32 %v1426, %v1587
  %v1613 = vmul.f32 %v1430, %v1587
  %v1614 = vmul.f32 %v1434, %v1587
  %v1615 = vmul.f32 %v1438, %v1587
  %v1616 = vmul.f32 %v1442, %v1587
  %v1617 = vmul.f32 %v1446, %v1587
  %v1618 = vmul.f32 %v1450, %v1587
  %v1619 = vmul.f32 %v1454, %v1587
  %v1620 = vmul.f32 %v1458, %v1587
  %v1621 = vmul.f32 %v1462, %v1587
  %v1622 = vmul.f32 %v1466, %v1587
  %v1623 = vmul.f32 %v1470, %v1587
  %v1624 = vmul.f32 %v1474, %v1587
  %v1625 = vmul.f32 %v1478, %v1587
  %v1626 = vmul.f32 %v1482, %v1587
  %v1627 = vmul.f32 %v1486, %v1587
  %v1628 = vmul.f32 %v1490, %v1587
  %v1629 = vmul.f32 %v1494, %v1587
  %v1630 = vmul.f32 %v1498, %v1587
  %v1631 = vmul.f32 %v1502, %v1587
  %v1632 = vmul.f32 %v1506, %v1587
  %v1633 = vmul.f32 %v1510, %v1587
  %v1634 = vmul.f32 %v1514, %v1587
  %v1635 = vmul.f32 %v1518, %v1587
  %v1636 = vmul.f32 %v1522, %v1587
  %v1637 = vmul.f32 %v1526, %v1587
  %v1638 = vmul.f32 %v1530, %v1587
  %v1639 = vmul.f32 %v1534, %v1587
  %v1640 = vmul.f32 %v1538, %v1587
  %v1641 = vmul.f32 %v1542, %v1587
  %v1642 = vmul.f32 %v1546, %v1587
  %v1643 = vmul.f32 %v1550, %v1587
  %v1644 = vmul.f32 %v1554, %v1587
  %v1645 = vmul.f32 %v1558, %v1587
  %v1646 = vmul.f32 %v1562, %v1587
  %v1647 = vmul.f32 %v1566, %v1587
  %v1648 = vmul.f32 %v1570, %v1587
  %v1649 = vmul.f32 %v1574, %v1587
  %v1650 = vmul.f32 %v1578, %v1587
  %v1651 = vmul.f32 %v1582, %v1587
  %v1652 = vadd.f32 %v1264, %v1588
  %v1653 = vadd.f32 %v1265, %v1589
  %v1654 = vadd.f32 %v1266, %v1590
  %v1655 = vadd.f32 %v1267, %v1591
  %v1656 = vadd.f32 %v1268, %v1592
  %v1657 = vadd.f32 %v1269, %v1593
  %v1658 = vadd.f32 %v1270, %v1594
  %v1659 = vadd.f32 %v1271, %v1595
  %v1660 = vadd.f32 %v1272, %v1596
  %v1661 = vadd.f32 %v1273, %v1597
  %v1662 = vadd.f32 %v1274, %v1598
  %v1663 = vadd.f32 %v1275, %v1599
  %v1664 = vadd.f32 %v1276, %v1600
  %v1665 = vadd.f32 %v1277, %v1601
  %v1666 = vadd.f32 %v1278, %v1602
  %v1667 = vadd.f32 %v1279, %v1603
  %v1668 = vadd.f32 %v1280, %v1604
  %v1669 = vadd.f32 %v1281, %v1605
  %v1670 = vadd.f32 %v1282, %v1606
  %v1671 = vadd.f32 %v1283, %v1607
  %v1672 = vadd.f32 %v1284, %v1608
  %v1673 = vadd.f32 %v1285, %v1609
  %v1674 = vadd.f32 %v1286, %v1610
  %v1675 = vadd.f32 %v1287, %v1611
  %v1676 = vadd.f32 %v1288, %v1612
  %v1677 = vadd.f32 %v1289, %v1613
  %v1678 = vadd.f32 %v1290, %v1614
  %v1679 = vadd.f32 %v1291, %v1615
  %v1680 = vadd.f32 %v1292, %v1616
  %v1681 = vadd.f32 %v1293, %v1617
  %v1682 = vadd.f32 %v1294, %v1618
  %v1683 = vadd.f32 %v1295, %v1619
  %v1684 = vadd.f32 %v1296, %v1620
  %v1685 = vadd.f32 %v1297, %v1621
  %v1686 = vadd.f32 %v1298, %v1622
  %v1687 = vadd.f32 %v1299, %v1623
  %v1688 = vadd.f32 %v1300, %v1624
  %v1689 = vadd.f32 %v1301, %v1625
  %v1690 = vadd.f32 %v1302, %v1626
  %v1691 = vadd.f32 %v1303, %v1627
  %v1692 = vadd.f32 %v1304, %v1628
  %v1693 = vadd.f32 %v1305, %v1629
  %v1694 = vadd.f32 %v1306, %v1630
  %v1695 = vadd.f32 %v1307, %v1631
  %v1696 = vadd.f32 %v1308, %v1632
  %v1697 = vadd.f32 %v1309, %v1633
  %v1698 = vadd.f32 %v1310, %v1634
  %v1699 = vadd.f32 %v1311, %v1635
  %v1700 = vadd.f32 %v1312, %v1636
  %v1701 = vadd.f32 %v1313, %v1637
  %v1702 = vadd.f32 %v1314, %v1638
  %v1703 = vadd.f32 %v1315, %v1639
  %v1704 = vadd.f32 %v1316, %v1640
  %v1705 = vadd.f32 %v1317, %v1641
  %v1706 = vadd.f32 %v1318, %v1642
  %v1707 = vadd.f32 %v1319, %v1643
  %v1708 = vadd.f32 %v1320, %v1644
  %v1709 = vadd.f32 %v1321, %v1645
  %v1710 = vadd.f32 %v1322, %v1646
  %v1711 = vadd.f32 %v1323, %v1647
  %v1712 = vadd.f32 %v1324, %v1648
  %v1713 = vadd.f32 %v1325, %v1649
  %v1714 = vadd.f32 %v1326, %v1650
  %v1715 = vadd.f32 %v1327, %v1651
  %1716 = vset.pattern.permute.xlu0 2
  %1717 = vperm.xlu0 %1716, %v103
  %v1718 = vpop.permute.xlu0 %1717
  %1720 = vset.pattern.permute.xlu0 2
  %1721 = vperm.xlu0 %1720, %v104
  %v1722 = vpop.permute.xlu0 %1721
  %1724 = vset.pattern.permute.xlu0 2
  %1725 = vperm.xlu0 %1724, %v105
  %v1726 = vpop.permute.xlu0 %1725
  %1728 = vset.pattern.permute.xlu0 2
  %1729 = vperm.xlu0 %1728, %v106
  %v1730 = vpop.permute.xlu0 %1729
  %1732 = vset.pattern.permute.xlu0 2
  %1733 = vperm.xlu0 %1732, %v107
  %v1734 = vpop.permute.xlu0 %1733
  %1736 = vset.pattern.permute.xlu0 2
  %1737 = vperm.xlu0 %1736, %v108
  %v1738 = vpop.permute.xlu0 %1737
  %1740 = vset.pattern.permute.xlu0 2
  %1741 = vperm.xlu0 %1740, %v109
  %v1742 = vpop.permute.xlu0 %1741
  %1744 = vset.pattern.permute.xlu0 2
  %1745 = vperm.xlu0 %1744, %v110
  %v1746 = vpop.permute.xlu0 %1745
  %1748 = vset.pattern.permute.xlu0 2
  %1749 = vperm.xlu0 %1748, %v111
  %v1750 = vpop.permute.xlu0 %1749
  %1752 = vset.pattern.permute.xlu0 2
  %1753 = vperm.xlu0 %1752, %v112
  %v1754 = vpop.permute.xlu0 %1753
  %1756 = vset.pattern.permute.xlu0 2
  %1757 = vperm.xlu0 %1756, %v113
  %v1758 = vpop.permute.xlu0 %1757
  %1760 = vset.pattern.permute.xlu0 2
  %1761 = vperm.xlu0 %1760, %v114
  %v1762 = vpop.permute.xlu0 %1761
  %1764 = vset.pattern.permute.xlu0 2
  %1765 = vperm.xlu0 %1764, %v115
  %v1766 = vpop.permute.xlu0 %1765
  %1768 = vset.pattern.permute.xlu0 2
  %1769 = vperm.xlu0 %1768, %v116
  %v1770 = vpop.permute.xlu0 %1769
  %1772 = vset.pattern.permute.xlu0 2
  %1773 = vperm.xlu0 %1772, %v117
  %v1774 = vpop.permute.xlu0 %1773
  %1776 = vset.pattern.permute.xlu0 2
  %1777 = vperm.xlu0 %1776, %v118
  %v1778 = vpop.permute.xlu0 %1777
  %1780 = vset.pattern.permute.xlu0 2
  %1781 = vperm.xlu0 %1780, %v119
  %v1782 = vpop.permute.xlu0 %1781
  %1784 = vset.pattern.permute.xlu0 2
  %1785 = vperm.xlu0 %1784, %v120
  %v1786 = vpop.permute.xlu0 %1785
  %1788 = vset.pattern.permute.xlu0 2
  %1789 = vperm.xlu0 %1788, %v121
  %v1790 = vpop.permute.xlu0 %1789
  %1792 = vset.pattern.permute.xlu0 2
  %1793 = vperm.xlu0 %1792, %v122
  %v1794 = vpop.permute.xlu0 %1793
  %1796 = vset.pattern.permute.xlu0 2
  %1797 = vperm.xlu0 %1796, %v123
  %v1798 = vpop.permute.xlu0 %1797
  %1800 = vset.pattern.permute.xlu0 2
  %1801 = vperm.xlu0 %1800, %v124
  %v1802 = vpop.permute.xlu0 %1801
  %1804 = vset.pattern.permute.xlu0 2
  %1805 = vperm.xlu0 %1804, %v125
  %v1806 = vpop.permute.xlu0 %1805
  %1808 = vset.pattern.permute.xlu0 2
  %1809 = vperm.xlu0 %1808, %v126
  %v1810 = vpop.permute.xlu0 %1809
  %1812 = vset.pattern.permute.xlu0 2
  %1813 = vperm.xlu0 %1812, %v127
  %v1814 = vpop.permute.xlu0 %1813
  %1816 = vset.pattern.permute.xlu0 2
  %1817 = vperm.xlu0 %1816, %v128
  %v1818 = vpop.permute.xlu0 %1817
  %1820 = vset.pattern.permute.xlu0 2
  %1821 = vperm.xlu0 %1820, %v129
  %v1822 = vpop.permute.xlu0 %1821
  %1824 = vset.pattern.permute.xlu0 2
  %1825 = vperm.xlu0 %1824, %v130
  %v1826 = vpop.permute.xlu0 %1825
  %1828 = vset.pattern.permute.xlu0 2
  %1829 = vperm.xlu0 %1828, %v131
  %v1830 = vpop.permute.xlu0 %1829
  %1832 = vset.pattern.permute.xlu0 2
  %1833 = vperm.xlu0 %1832, %v132
  %v1834 = vpop.permute.xlu0 %1833
  %1836 = vset.pattern.permute.xlu0 2
  %1837 = vperm.xlu0 %1836, %v133
  %v1838 = vpop.permute.xlu0 %1837
  %1840 = vset.pattern.permute.xlu0 2
  %1841 = vperm.xlu0 %1840, %v134
  %v1842 = vpop.permute.xlu0 %1841
  %1844 = vset.pattern.permute.xlu0 2
  %1845 = vperm.xlu0 %1844, %v151
  %v1846 = vpop.permute.xlu0 %1845
  %1848 = vset.pattern.permute.xlu0 2
  %1849 = vperm.xlu0 %1848, %v152
  %v1850 = vpop.permute.xlu0 %1849
  %1852 = vset.pattern.permute.xlu0 2
  %1853 = vperm.xlu0 %1852, %v153
  %v1854 = vpop.permute.xlu0 %1853
  %1856 = vset.pattern.permute.xlu0 2
  %1857 = vperm.xlu0 %1856, %v154
  %v1858 = vpop.permute.xlu0 %1857
  %1860 = vset.pattern.permute.xlu0 2
  %1861 = vperm.xlu0 %1860, %v155
  %v1862 = vpop.permute.xlu0 %1861
  %1864 = vset.pattern.permute.xlu0 2
  %1865 = vperm.xlu0 %1864, %v156
  %v1866 = vpop.permute.xlu0 %1865
  %1868 = vset.pattern.permute.xlu0 2
  %1869 = vperm.xlu0 %1868, %v157
  %v1870 = vpop.permute.xlu0 %1869
  %1872 = vset.pattern.permute.xlu0 2
  %1873 = vperm.xlu0 %1872, %v158
  %v1874 = vpop.permute.xlu0 %1873
  %1876 = vset.pattern.permute.xlu0 2
  %1877 = vperm.xlu0 %1876, %v159
  %v1878 = vpop.permute.xlu0 %1877
  %1880 = vset.pattern.permute.xlu0 2
  %1881 = vperm.xlu0 %1880, %v160
  %v1882 = vpop.permute.xlu0 %1881
  %1884 = vset.pattern.permute.xlu0 2
  %1885 = vperm.xlu0 %1884, %v161
  %v1886 = vpop.permute.xlu0 %1885
  %1888 = vset.pattern.permute.xlu0 2
  %1889 = vperm.xlu0 %1888, %v162
  %v1890 = vpop.permute.xlu0 %1889
  %1892 = vset.pattern.permute.xlu0 2
  %1893 = vperm.xlu0 %1892, %v163
  %v1894 = vpop.permute.xlu0 %1893
  %1896 = vset.pattern.permute.xlu0 2
  %1897 = vperm.xlu0 %1896, %v164
  %v1898 = vpop.permute.xlu0 %1897
  %1900 = vset.pattern.permute.xlu0 2
  %1901 = vperm.xlu0 %1900, %v165
  %v1902 = vpop.permute.xlu0 %1901
  %1904 = vset.pattern.permute.xlu0 2
  %1905 = vperm.xlu0 %1904, %v166
  %v1906 = vpop.permute.xlu0 %1905
  %1908 = vset.pattern.permute.xlu0 2
  %1909 = vperm.xlu0 %1908, %v183
  %v1910 = vpop.permute.xlu0 %1909
  %1912 = vset.pattern.permute.xlu0 2
  %1913 = vperm.xlu0 %1912, %v184
  %v1914 = vpop.permute.xlu0 %1913
  %1916 = vset.pattern.permute.xlu0 2
  %1917 = vperm.xlu0 %1916, %v185
  %v1918 = vpop.permute.xlu0 %1917
  %1920 = vset.pattern.permute.xlu0 2
  %1921 = vperm.xlu0 %1920, %v186
  %v1922 = vpop.permute.xlu0 %1921
  %1924 = vset.pattern.permute.xlu0 2
  %1925 = vperm.xlu0 %1924, %v187
  %v1926 = vpop.permute.xlu0 %1925
  %1928 = vset.pattern.permute.xlu0 2
  %1929 = vperm.xlu0 %1928, %v188
  %v1930 = vpop.permute.xlu0 %1929
  %1932 = vset.pattern.permute.xlu0 2
  %1933 = vperm.xlu0 %1932, %v189
  %v1934 = vpop.permute.xlu0 %1933
  %1936 = vset.pattern.permute.xlu0 2
  %1937 = vperm.xlu0 %1936, %v190
  %v1938 = vpop.permute.xlu0 %1937
  %1940 = vset.pattern.permute.xlu0 2
  %1941 = vperm.xlu0 %1940, %v191
  %v1942 = vpop.permute.xlu0 %1941
  %1944 = vset.pattern.permute.xlu0 2
  %1945 = vperm.xlu0 %1944, %v192
  %v1946 = vpop.permute.xlu0 %1945
  %1948 = vset.pattern.permute.xlu0 2
  %1949 = vperm.xlu0 %1948, %v193
  %v1950 = vpop.permute.xlu0 %1949
  %1952 = vset.pattern.permute.xlu0 2
  %1953 = vperm.xlu0 %1952, %v194
  %v1954 = vpop.permute.xlu0 %1953
  %1956 = vset.pattern.permute.xlu0 2
  %1957 = vperm.xlu0 %1956, %v195
  %v1958 = vpop.permute.xlu0 %1957
  %1960 = vset.pattern.permute.xlu0 2
  %1961 = vperm.xlu0 %1960, %v196
  %v1962 = vpop.permute.xlu0 %1961
  %1964 = vset.pattern.permute.xlu0 2
  %1965 = vperm.xlu0 %1964, %v197
  %v1966 = vpop.permute.xlu0 %1965
  %1968 = vset.pattern.permute.xlu0 2
  %1969 = vperm.xlu0 %1968, %v198
  %v1970 = vpop.permute.xlu0 %1969
  %v1972 = vlaneseq
  %v1973 = vshrl.u32 %v1972, 7
  %v1974 = vsub.s32 2, %v1973
  %v1975 = vrot.slane %v939, %v1974
  %v1976 = vmul.f32 %v1718, %v1975
  %v1977 = vmul.f32 %v1722, %v1975
  %v1978 = vmul.f32 %v1726, %v1975
  %v1979 = vmul.f32 %v1730, %v1975
  %v1980 = vmul.f32 %v1734, %v1975
  %v1981 = vmul.f32 %v1738, %v1975
  %v1982 = vmul.f32 %v1742, %v1975
  %v1983 = vmul.f32 %v1746, %v1975
  %v1984 = vmul.f32 %v1750, %v1975
  %v1985 = vmul.f32 %v1754, %v1975
  %v1986 = vmul.f32 %v1758, %v1975
  %v1987 = vmul.f32 %v1762, %v1975
  %v1988 = vmul.f32 %v1766, %v1975
  %v1989 = vmul.f32 %v1770, %v1975
  %v1990 = vmul.f32 %v1774, %v1975
  %v1991 = vmul.f32 %v1778, %v1975
  %v1992 = vmul.f32 %v1782, %v1975
  %v1993 = vmul.f32 %v1786, %v1975
  %v1994 = vmul.f32 %v1790, %v1975
  %v1995 = vmul.f32 %v1794, %v1975
  %v1996 = vmul.f32 %v1798, %v1975
  %v1997 = vmul.f32 %v1802, %v1975
  %v1998 = vmul.f32 %v1806, %v1975
  %v1999 = vmul.f32 %v1810, %v1975
  %v2000 = vmul.f32 %v1814, %v1975
  %v2001 = vmul.f32 %v1818, %v1975
  %v2002 = vmul.f32 %v1822, %v1975
  %v2003 = vmul.f32 %v1826, %v1975
  %v2004 = vmul.f32 %v1830, %v1975
  %v2005 = vmul.f32 %v1834, %v1975
  %v2006 = vmul.f32 %v1838, %v1975
  %v2007 = vmul.f32 %v1842, %v1975
  %v2008 = vmul.f32 %v1846, %v1975
  %v2009 = vmul.f32 %v1850, %v1975
  %v2010 = vmul.f32 %v1854, %v1975
  %v2011 = vmul.f32 %v1858, %v1975
  %v2012 = vmul.f32 %v1862, %v1975
  %v2013 = vmul.f32 %v1866, %v1975
  %v2014 = vmul.f32 %v1870, %v1975
  %v2015 = vmul.f32 %v1874, %v1975
  %v2016 = vmul.f32 %v1878, %v1975
  %v2017 = vmul.f32 %v1882, %v1975
  %v2018 = vmul.f32 %v1886, %v1975
  %v2019 = vmul.f32 %v1890, %v1975
  %v2020 = vmul.f32 %v1894, %v1975
  %v2021 = vmul.f32 %v1898, %v1975
  %v2022 = vmul.f32 %v1902, %v1975
  %v2023 = vmul.f32 %v1906, %v1975
  %v2024 = vmul.f32 %v1910, %v1975
  %v2025 = vmul.f32 %v1914, %v1975
  %v2026 = vmul.f32 %v1918, %v1975
  %v2027 = vmul.f32 %v1922, %v1975
  %v2028 = vmul.f32 %v1926, %v1975
  %v2029 = vmul.f32 %v1930, %v1975
  %v2030 = vmul.f32 %v1934, %v1975
  %v2031 = vmul.f32 %v1938, %v1975
  %v2032 = vmul.f32 %v1942, %v1975
  %v2033 = vmul.f32 %v1946, %v1975
  %v2034 = vmul.f32 %v1950, %v1975
  %v2035 = vmul.f32 %v1954, %v1975
  %v2036 = vmul.f32 %v1958, %v1975
  %v2037 = vmul.f32 %v1962, %v1975
  %v2038 = vmul.f32 %v1966, %v1975
  %v2039 = vmul.f32 %v1970, %v1975
  %v2040 = vadd.f32 %v1652, %v1976
  %v2041 = vadd.f32 %v1653, %v1977
  %v2042 = vadd.f32 %v1654, %v1978
  %v2043 = vadd.f32 %v1655, %v1979
  %v2044 = vadd.f32 %v1656, %v1980
  %v2045 = vadd.f32 %v1657, %v1981
  %v2046 = vadd.f32 %v1658, %v1982
  %v2047 = vadd.f32 %v1659, %v1983
  %v2048 = vadd.f32 %v1660, %v1984
  %v2049 = vadd.f32 %v1661, %v1985
  %v2050 = vadd.f32 %v1662, %v1986
  %v2051 = vadd.f32 %v1663, %v1987
  %v2052 = vadd.f32 %v1664, %v1988
  %v2053 = vadd.f32 %v1665, %v1989
  %v2054 = vadd.f32 %v1666, %v1990
  %v2055 = vadd.f32 %v1667, %v1991
  %v2056 = vadd.f32 %v1668, %v1992
  %v2057 = vadd.f32 %v1669, %v1993
  %v2058 = vadd.f32 %v1670, %v1994
  %v2059 = vadd.f32 %v1671, %v1995
  %v2060 = vadd.f32 %v1672, %v1996
  %v2061 = vadd.f32 %v1673, %v1997
  %v2062 = vadd.f32 %v1674, %v1998
  %v2063 = vadd.f32 %v1675, %v1999
  %v2064 = vadd.f32 %v1676, %v2000
  %v2065 = vadd.f32 %v1677, %v2001
  %v2066 = vadd.f32 %v1678, %v2002
  %v2067 = vadd.f32 %v1679, %v2003
  %v2068 = vadd.f32 %v1680, %v2004
  %v2069 = vadd.f32 %v1681, %v2005
  %v2070 = vadd.f32 %v1682, %v2006
  %v2071 = vadd.f32 %v1683, %v2007
  %v2072 = vadd.f32 %v1684, %v2008
  %v2073 = vadd.f32 %v1685, %v2009
  %v2074 = vadd.f32 %v1686, %v2010
  %v2075 = vadd.f32 %v1687, %v2011
  %v2076 = vadd.f32 %v1688, %v2012
  %v2077 = vadd.f32 %v1689, %v2013
  %v2078 = vadd.f32 %v1690, %v2014
  %v2079 = vadd.f32 %v1691, %v2015
  %v2080 = vadd.f32 %v1692, %v2016
  %v2081 = vadd.f32 %v1693, %v2017
  %v2082 = vadd.f32 %v1694, %v2018
  %v2083 = vadd.f32 %v1695, %v2019
  %v2084 = vadd.f32 %v1696, %v2020
  %v2085 = vadd.f32 %v1697, %v2021
  %v2086 = vadd.f32 %v1698, %v2022
  %v2087 = vadd.f32 %v1699, %v2023
  %v2088 = vadd.f32 %v1700, %v2024
  %v2089 = vadd.f32 %v1701, %v2025
  %v2090 = vadd.f32 %v1702, %v2026
  %v2091 = vadd.f32 %v1703, %v2027
  %v2092 = vadd.f32 %v1704, %v2028
  %v2093 = vadd.f32 %v1705, %v2029
  %v2094 = vadd.f32 %v1706, %v2030
  %v2095 = vadd.f32 %v1707, %v2031
  %v2096 = vadd.f32 %v1708, %v2032
  %v2097 = vadd.f32 %v1709, %v2033
  %v2098 = vadd.f32 %v1710, %v2034
  %v2099 = vadd.f32 %v1711, %v2035
  %v2100 = vadd.f32 %v1712, %v2036
  %v2101 = vadd.f32 %v1713, %v2037
  %v2102 = vadd.f32 %v1714, %v2038
  %v2103 = vadd.f32 %v1715, %v2039
  %2104 = vset.pattern.permute.xlu0 3
  %2105 = vperm.xlu0 %2104, %v103
  %v2106 = vpop.permute.xlu0 %2105
  %2108 = vset.pattern.permute.xlu0 3
  %2109 = vperm.xlu0 %2108, %v104
  %v2110 = vpop.permute.xlu0 %2109
  %2112 = vset.pattern.permute.xlu0 3
  %2113 = vperm.xlu0 %2112, %v105
  %v2114 = vpop.permute.xlu0 %2113
  %2116 = vset.pattern.permute.xlu0 3
  %2117 = vperm.xlu0 %2116, %v106
  %v2118 = vpop.permute.xlu0 %2117
  %2120 = vset.pattern.permute.xlu0 3
  %2121 = vperm.xlu0 %2120, %v107
  %v2122 = vpop.permute.xlu0 %2121
  %2124 = vset.pattern.permute.xlu0 3
  %2125 = vperm.xlu0 %2124, %v108
  %v2126 = vpop.permute.xlu0 %2125
  %2128 = vset.pattern.permute.xlu0 3
  %2129 = vperm.xlu0 %2128, %v109
  %v2130 = vpop.permute.xlu0 %2129
  %2132 = vset.pattern.permute.xlu0 3
  %2133 = vperm.xlu0 %2132, %v110
  %v2134 = vpop.permute.xlu0 %2133
  %2136 = vset.pattern.permute.xlu0 3
  %2137 = vperm.xlu0 %2136, %v111
  %v2138 = vpop.permute.xlu0 %2137
  %2140 = vset.pattern.permute.xlu0 3
  %2141 = vperm.xlu0 %2140, %v112
  %v2142 = vpop.permute.xlu0 %2141
  %2144 = vset.pattern.permute.xlu0 3
  %2145 = vperm.xlu0 %2144, %v113
  %v2146 = vpop.permute.xlu0 %2145
  %2148 = vset.pattern.permute.xlu0 3
  %2149 = vperm.xlu0 %2148, %v114
  %v2150 = vpop.permute.xlu0 %2149
  %2152 = vset.pattern.permute.xlu0 3
  %2153 = vperm.xlu0 %2152, %v115
  %v2154 = vpop.permute.xlu0 %2153
  %2156 = vset.pattern.permute.xlu0 3
  %2157 = vperm.xlu0 %2156, %v116
  %v2158 = vpop.permute.xlu0 %2157
  %2160 = vset.pattern.permute.xlu0 3
  %2161 = vperm.xlu0 %2160, %v117
  %v2162 = vpop.permute.xlu0 %2161
  %2164 = vset.pattern.permute.xlu0 3
  %2165 = vperm.xlu0 %2164, %v118
  %v2166 = vpop.permute.xlu0 %2165
  %2168 = vset.pattern.permute.xlu0 3
  %2169 = vperm.xlu0 %2168, %v119
  %v2170 = vpop.permute.xlu0 %2169
  %2172 = vset.pattern.permute.xlu0 3
  %2173 = vperm.xlu0 %2172, %v120
  %v2174 = vpop.permute.xlu0 %2173
  %2176 = vset.pattern.permute.xlu0 3
  %2177 = vperm.xlu0 %2176, %v121
  %v2178 = vpop.permute.xlu0 %2177
  %2180 = vset.pattern.permute.xlu0 3
  %2181 = vperm.xlu0 %2180, %v122
  %v2182 = vpop.permute.xlu0 %2181
  %2184 = vset.pattern.permute.xlu0 3
  %2185 = vperm.xlu0 %2184, %v123
  %v2186 = vpop.permute.xlu0 %2185
  %2188 = vset.pattern.permute.xlu0 3
  %2189 = vperm.xlu0 %2188, %v124
  %v2190 = vpop.permute.xlu0 %2189
  %2192 = vset.pattern.permute.xlu0 3
  %2193 = vperm.xlu0 %2192, %v125
  %v2194 = vpop.permute.xlu0 %2193
  %2196 = vset.pattern.permute.xlu0 3
  %2197 = vperm.xlu0 %2196, %v126
  %v2198 = vpop.permute.xlu0 %2197
  %2200 = vset.pattern.permute.xlu0 3
  %2201 = vperm.xlu0 %2200, %v127
  %v2202 = vpop.permute.xlu0 %2201
  %2204 = vset.pattern.permute.xlu0 3
  %2205 = vperm.xlu0 %2204, %v128
  %v2206 = vpop.permute.xlu0 %2205
  %2208 = vset.pattern.permute.xlu0 3
  %2209 = vperm.xlu0 %2208, %v129
  %v2210 = vpop.permute.xlu0 %2209
  %2212 = vset.pattern.permute.xlu0 3
  %2213 = vperm.xlu0 %2212, %v130
  %v2214 = vpop.permute.xlu0 %2213
  %2216 = vset.pattern.permute.xlu0 3
  %2217 = vperm.xlu0 %2216, %v131
  %v2218 = vpop.permute.xlu0 %2217
  %2220 = vset.pattern.permute.xlu0 3
  %2221 = vperm.xlu0 %2220, %v132
  %v2222 = vpop.permute.xlu0 %2221
  %2224 = vset.pattern.permute.xlu0 3
  %2225 = vperm.xlu0 %2224, %v133
  %v2226 = vpop.permute.xlu0 %2225
  %2228 = vset.pattern.permute.xlu0 3
  %2229 = vperm.xlu0 %2228, %v134
  %v2230 = vpop.permute.xlu0 %2229
  %2232 = vset.pattern.permute.xlu0 3
  %2233 = vperm.xlu0 %2232, %v151
  %v2234 = vpop.permute.xlu0 %2233
  %2236 = vset.pattern.permute.xlu0 3
  %2237 = vperm.xlu0 %2236, %v152
  %v2238 = vpop.permute.xlu0 %2237
  %2240 = vset.pattern.permute.xlu0 3
  %2241 = vperm.xlu0 %2240, %v153
  %v2242 = vpop.permute.xlu0 %2241
  %2244 = vset.pattern.permute.xlu0 3
  %2245 = vperm.xlu0 %2244, %v154
  %v2246 = vpop.permute.xlu0 %2245
  %2248 = vset.pattern.permute.xlu0 3
  %2249 = vperm.xlu0 %2248, %v155
  %v2250 = vpop.permute.xlu0 %2249
  %2252 = vset.pattern.permute.xlu0 3
  %2253 = vperm.xlu0 %2252, %v156
  %v2254 = vpop.permute.xlu0 %2253
  %2256 = vset.pattern.permute.xlu0 3
  %2257 = vperm.xlu0 %2256, %v157
  %v2258 = vpop.permute.xlu0 %2257
  %2260 = vset.pattern.permute.xlu0 3
  %2261 = vperm.xlu0 %2260, %v158
  %v2262 = vpop.permute.xlu0 %2261
  %2264 = vset.pattern.permute.xlu0 3
  %2265 = vperm.xlu0 %2264, %v159
  %v2266 = vpop.permute.xlu0 %2265
  %2268 = vset.pattern.permute.xlu0 3
  %2269 = vperm.xlu0 %2268, %v160
  %v2270 = vpop.permute.xlu0 %2269
  %2272 = vset.pattern.permute.xlu0 3
  %2273 = vperm.xlu0 %2272, %v161
  %v2274 = vpop.permute.xlu0 %2273
  %2276 = vset.pattern.permute.xlu0 3
  %2277 = vperm.xlu0 %2276, %v162
  %v2278 = vpop.permute.xlu0 %2277
  %2280 = vset.pattern.permute.xlu0 3
  %2281 = vperm.xlu0 %2280, %v163
  %v2282 = vpop.permute.xlu0 %2281
  %2284 = vset.pattern.permute.xlu0 3
  %2285 = vperm.xlu0 %2284, %v164
  %v2286 = vpop.permute.xlu0 %2285
  %2288 = vset.pattern.permute.xlu0 3
  %2289 = vperm.xlu0 %2288, %v165
  %v2290 = vpop.permute.xlu0 %2289
  %2292 = vset.pattern.permute.xlu0 3
  %2293 = vperm.xlu0 %2292, %v166
  %v2294 = vpop.permute.xlu0 %2293
  %2296 = vset.pattern.permute.xlu0 3
  %2297 = vperm.xlu0 %2296, %v183
  %v2298 = vpop.permute.xlu0 %2297
  %2300 = vset.pattern.permute.xlu0 3
  %2301 = vperm.xlu0 %2300, %v184
  %v2302 = vpop.permute.xlu0 %2301
  %2304 = vset.pattern.permute.xlu0 3
  %2305 = vperm.xlu0 %2304, %v185
  %v2306 = vpop.permute.xlu0 %2305
  %2308 = vset.pattern.permute.xlu0 3
  %2309 = vperm.xlu0 %2308, %v186
  %v2310 = vpop.permute.xlu0 %2309
  %2312 = vset.pattern.permute.xlu0 3
  %2313 = vperm.xlu0 %2312, %v187
  %v2314 = vpop.permute.xlu0 %2313
  %2316 = vset.pattern.permute.xlu0 3
  %2317 = vperm.xlu0 %2316, %v188
  %v2318 = vpop.permute.xlu0 %2317
  %2320 = vset.pattern.permute.xlu0 3
  %2321 = vperm.xlu0 %2320, %v189
  %v2322 = vpop.permute.xlu0 %2321
  %2324 = vset.pattern.permute.xlu0 3
  %2325 = vperm.xlu0 %2324, %v190
  %v2326 = vpop.permute.xlu0 %2325
  %2328 = vset.pattern.permute.xlu0 3
  %2329 = vperm.xlu0 %2328, %v191
  %v2330 = vpop.permute.xlu0 %2329
  %2332 = vset.pattern.permute.xlu0 3
  %2333 = vperm.xlu0 %2332, %v192
  %v2334 = vpop.permute.xlu0 %2333
  %2336 = vset.pattern.permute.xlu0 3
  %2337 = vperm.xlu0 %2336, %v193
  %v2338 = vpop.permute.xlu0 %2337
  %2340 = vset.pattern.permute.xlu0 3
  %2341 = vperm.xlu0 %2340, %v194
  %v2342 = vpop.permute.xlu0 %2341
  %2344 = vset.pattern.permute.xlu0 3
  %2345 = vperm.xlu0 %2344, %v195
  %v2346 = vpop.permute.xlu0 %2345
  %2348 = vset.pattern.permute.xlu0 3
  %2349 = vperm.xlu0 %2348, %v196
  %v2350 = vpop.permute.xlu0 %2349
  %2352 = vset.pattern.permute.xlu0 3
  %2353 = vperm.xlu0 %2352, %v197
  %v2354 = vpop.permute.xlu0 %2353
  %2356 = vset.pattern.permute.xlu0 3
  %2357 = vperm.xlu0 %2356, %v198
  %v2358 = vpop.permute.xlu0 %2357
  %v2360 = vlaneseq
  %v2361 = vshrl.u32 %v2360, 7
  %v2362 = vsub.s32 3, %v2361
  %v2363 = vrot.slane %v939, %v2362
  %v2364 = vmul.f32 %v2106, %v2363
  %v2365 = vmul.f32 %v2110, %v2363
  %v2366 = vmul.f32 %v2114, %v2363
  %v2367 = vmul.f32 %v2118, %v2363
  %v2368 = vmul.f32 %v2122, %v2363
  %v2369 = vmul.f32 %v2126, %v2363
  %v2370 = vmul.f32 %v2130, %v2363
  %v2371 = vmul.f32 %v2134, %v2363
  %v2372 = vmul.f32 %v2138, %v2363
  %v2373 = vmul.f32 %v2142, %v2363
  %v2374 = vmul.f32 %v2146, %v2363
  %v2375 = vmul.f32 %v2150, %v2363
  %v2376 = vmul.f32 %v2154, %v2363
  %v2377 = vmul.f32 %v2158, %v2363
  %v2378 = vmul.f32 %v2162, %v2363
  %v2379 = vmul.f32 %v2166, %v2363
  %v2380 = vmul.f32 %v2170, %v2363
  %v2381 = vmul.f32 %v2174, %v2363
  %v2382 = vmul.f32 %v2178, %v2363
  %v2383 = vmul.f32 %v2182, %v2363
  %v2384 = vmul.f32 %v2186, %v2363
  %v2385 = vmul.f32 %v2190, %v2363
  %v2386 = vmul.f32 %v2194, %v2363
  %v2387 = vmul.f32 %v2198, %v2363
  %v2388 = vmul.f32 %v2202, %v2363
  %v2389 = vmul.f32 %v2206, %v2363
  %v2390 = vmul.f32 %v2210, %v2363
  %v2391 = vmul.f32 %v2214, %v2363
  %v2392 = vmul.f32 %v2218, %v2363
  %v2393 = vmul.f32 %v2222, %v2363
  %v2394 = vmul.f32 %v2226, %v2363
  %v2395 = vmul.f32 %v2230, %v2363
  %v2396 = vmul.f32 %v2234, %v2363
  %v2397 = vmul.f32 %v2238, %v2363
  %v2398 = vmul.f32 %v2242, %v2363
  %v2399 = vmul.f32 %v2246, %v2363
  %v2400 = vmul.f32 %v2250, %v2363
  %v2401 = vmul.f32 %v2254, %v2363
  %v2402 = vmul.f32 %v2258, %v2363
  %v2403 = vmul.f32 %v2262, %v2363
  %v2404 = vmul.f32 %v2266, %v2363
  %v2405 = vmul.f32 %v2270, %v2363
  %v2406 = vmul.f32 %v2274, %v2363
  %v2407 = vmul.f32 %v2278, %v2363
  %v2408 = vmul.f32 %v2282, %v2363
  %v2409 = vmul.f32 %v2286, %v2363
  %v2410 = vmul.f32 %v2290, %v2363
  %v2411 = vmul.f32 %v2294, %v2363
  %v2412 = vmul.f32 %v2298, %v2363
  %v2413 = vmul.f32 %v2302, %v2363
  %v2414 = vmul.f32 %v2306, %v2363
  %v2415 = vmul.f32 %v2310, %v2363
  %v2416 = vmul.f32 %v2314, %v2363
  %v2417 = vmul.f32 %v2318, %v2363
  %v2418 = vmul.f32 %v2322, %v2363
  %v2419 = vmul.f32 %v2326, %v2363
  %v2420 = vmul.f32 %v2330, %v2363
  %v2421 = vmul.f32 %v2334, %v2363
  %v2422 = vmul.f32 %v2338, %v2363
  %v2423 = vmul.f32 %v2342, %v2363
  %v2424 = vmul.f32 %v2346, %v2363
  %v2425 = vmul.f32 %v2350, %v2363
  %v2426 = vmul.f32 %v2354, %v2363
  %v2427 = vmul.f32 %v2358, %v2363
  %v2428 = vadd.f32 %v2040, %v2364
  %v2429 = vadd.f32 %v2041, %v2365
  %v2430 = vadd.f32 %v2042, %v2366
  %v2431 = vadd.f32 %v2043, %v2367
  %v2432 = vadd.f32 %v2044, %v2368
  %v2433 = vadd.f32 %v2045, %v2369
  %v2434 = vadd.f32 %v2046, %v2370
  %v2435 = vadd.f32 %v2047, %v2371
  %v2436 = vadd.f32 %v2048, %v2372
  %v2437 = vadd.f32 %v2049, %v2373
  %v2438 = vadd.f32 %v2050, %v2374
  %v2439 = vadd.f32 %v2051, %v2375
  %v2440 = vadd.f32 %v2052, %v2376
  %v2441 = vadd.f32 %v2053, %v2377
  %v2442 = vadd.f32 %v2054, %v2378
  %v2443 = vadd.f32 %v2055, %v2379
  %v2444 = vadd.f32 %v2056, %v2380
  %v2445 = vadd.f32 %v2057, %v2381
  %v2446 = vadd.f32 %v2058, %v2382
  %v2447 = vadd.f32 %v2059, %v2383
  %v2448 = vadd.f32 %v2060, %v2384
  %v2449 = vadd.f32 %v2061, %v2385
  %v2450 = vadd.f32 %v2062, %v2386
  %v2451 = vadd.f32 %v2063, %v2387
  %v2452 = vadd.f32 %v2064, %v2388
  %v2453 = vadd.f32 %v2065, %v2389
  %v2454 = vadd.f32 %v2066, %v2390
  %v2455 = vadd.f32 %v2067, %v2391
  %v2456 = vadd.f32 %v2068, %v2392
  %v2457 = vadd.f32 %v2069, %v2393
  %v2458 = vadd.f32 %v2070, %v2394
  %v2459 = vadd.f32 %v2071, %v2395
  %v2460 = vadd.f32 %v2072, %v2396
  %v2461 = vadd.f32 %v2073, %v2397
  %v2462 = vadd.f32 %v2074, %v2398
  %v2463 = vadd.f32 %v2075, %v2399
  %v2464 = vadd.f32 %v2076, %v2400
  %v2465 = vadd.f32 %v2077, %v2401
  %v2466 = vadd.f32 %v2078, %v2402
  %v2467 = vadd.f32 %v2079, %v2403
  %v2468 = vadd.f32 %v2080, %v2404
  %v2469 = vadd.f32 %v2081, %v2405
  %v2470 = vadd.f32 %v2082, %v2406
  %v2471 = vadd.f32 %v2083, %v2407
  %v2472 = vadd.f32 %v2084, %v2408
  %v2473 = vadd.f32 %v2085, %v2409
  %v2474 = vadd.f32 %v2086, %v2410
  %v2475 = vadd.f32 %v2087, %v2411
  %v2476 = vadd.f32 %v2088, %v2412
  %v2477 = vadd.f32 %v2089, %v2413
  %v2478 = vadd.f32 %v2090, %v2414
  %v2479 = vadd.f32 %v2091, %v2415
  %v2480 = vadd.f32 %v2092, %v2416
  %v2481 = vadd.f32 %v2093, %v2417
  %v2482 = vadd.f32 %v2094, %v2418
  %v2483 = vadd.f32 %v2095, %v2419
  %v2484 = vadd.f32 %v2096, %v2420
  %v2485 = vadd.f32 %v2097, %v2421
  %v2486 = vadd.f32 %v2098, %v2422
  %v2487 = vadd.f32 %v2099, %v2423
  %v2488 = vadd.f32 %v2100, %v2424
  %v2489 = vadd.f32 %v2101, %v2425
  %v2490 = vadd.f32 %v2102, %v2426
  %v2491 = vadd.f32 %v2103, %v2427
  %2493 = vset.pattern.permute.xlu0 0
  %2494 = vperm.xlu0 %2493, %v876
  %v2495 = vpop.permute.xlu0 %2494
  %2498 = vset.pattern.permute.xlu0 0
  %2499 = vperm.xlu0 %2498, %v879
  %v2500 = vpop.permute.xlu0 %2499
  %2503 = vset.pattern.permute.xlu0 0
  %2504 = vperm.xlu0 %2503, %v884
  %v2505 = vpop.permute.xlu0 %2504
  %2508 = vset.pattern.permute.xlu0 0
  %2509 = vperm.xlu0 %2508, %v887
  %v2510 = vpop.permute.xlu0 %2509
  %2513 = vset.pattern.permute.xlu0 0
  %2514 = vperm.xlu0 %2513, %v892
  %v2515 = vpop.permute.xlu0 %2514
  %2518 = vset.pattern.permute.xlu0 0
  %2519 = vperm.xlu0 %2518, %v895
  %v2520 = vpop.permute.xlu0 %2519
  %2523 = vset.pattern.permute.xlu0 0
  %2524 = vperm.xlu0 %2523, %v900
  %v2525 = vpop.permute.xlu0 %2524
  %2528 = vset.pattern.permute.xlu0 0
  %2529 = vperm.xlu0 %2528, %v903
  %v2530 = vpop.permute.xlu0 %2529
  %2533 = vset.pattern.permute.xlu0 0
  %2534 = vperm.xlu0 %2533, %v908
  %v2535 = vpop.permute.xlu0 %2534
  %2538 = vset.pattern.permute.xlu0 0
  %2539 = vperm.xlu0 %2538, %v911
  %v2540 = vpop.permute.xlu0 %2539
  %2543 = vset.pattern.permute.xlu0 0
  %2544 = vperm.xlu0 %2543, %v916
  %v2545 = vpop.permute.xlu0 %2544
  %2548 = vset.pattern.permute.xlu0 0
  %2549 = vperm.xlu0 %2548, %v919
  %v2550 = vpop.permute.xlu0 %2549
  %2553 = vset.pattern.permute.xlu0 0
  %2554 = vperm.xlu0 %2553, %v924
  %v2555 = vpop.permute.xlu0 %2554
  %2558 = vset.pattern.permute.xlu0 0
  %2559 = vperm.xlu0 %2558, %v927
  %v2560 = vpop.permute.xlu0 %2559
  %2563 = vset.pattern.permute.xlu0 0
  %2564 = vperm.xlu0 %2563, %v932
  %v2565 = vpop.permute.xlu0 %2564
  %2568 = vset.pattern.permute.xlu0 0
  %2569 = vperm.xlu0 %2568, %v935
  %v2570 = vpop.permute.xlu0 %2569
  %v2572 = vmul.f32 %v2428, %v2495
  %v2573 = vmul.f32 %v2429, %v2500
  %v2574 = vmul.f32 %v2430, %v2505
  %v2575 = vmul.f32 %v2431, %v2510
  %v2576 = vmul.f32 %v2432, %v2515
  %v2577 = vmul.f32 %v2433, %v2520
  %v2578 = vmul.f32 %v2434, %v2525
  %v2579 = vmul.f32 %v2435, %v2530
  %v2580 = vmul.f32 %v2436, %v2535
  %v2581 = vmul.f32 %v2437, %v2540
  %v2582 = vmul.f32 %v2438, %v2545
  %v2583 = vmul.f32 %v2439, %v2550
  %v2584 = vmul.f32 %v2440, %v2555
  %v2585 = vmul.f32 %v2441, %v2560
  %v2586 = vmul.f32 %v2442, %v2565
  %v2587 = vmul.f32 %v2443, %v2570
  %2588 = vset.pattern.permute.xlu0 1
  %2589 = vperm.xlu0 %2588, %v876
  %v2590 = vpop.permute.xlu0 %2589
  %2592 = vset.pattern.permute.xlu0 1
  %2593 = vperm.xlu0 %2592, %v879
  %v2594 = vpop.permute.xlu0 %2593
  %2596 = vset.pattern.permute.xlu0 1
  %2597 = vperm.xlu0 %2596, %v884
  %v2598 = vpop.permute.xlu0 %2597
  %2600 = vset.pattern.permute.xlu0 1
  %2601 = vperm.xlu0 %2600, %v887
  %v2602 = vpop.permute.xlu0 %2601
  %2604 = vset.pattern.permute.xlu0 1
  %2605 = vperm.xlu0 %2604, %v892
  %v2606 = vpop.permute.xlu0 %2605
  %2608 = vset.pattern.permute.xlu0 1
  %2609 = vperm.xlu0 %2608, %v895
  %v2610 = vpop.permute.xlu0 %2609
  %2612 = vset.pattern.permute.xlu0 1
  %2613 = vperm.xlu0 %2612, %v900
  %v2614 = vpop.permute.xlu0 %2613
  %2616 = vset.pattern.permute.xlu0 1
  %2617 = vperm.xlu0 %2616, %v903
  %v2618 = vpop.permute.xlu0 %2617
  %2620 = vset.pattern.permute.xlu0 1
  %2621 = vperm.xlu0 %2620, %v908
  %v2622 = vpop.permute.xlu0 %2621
  %2624 = vset.pattern.permute.xlu0 1
  %2625 = vperm.xlu0 %2624, %v911
  %v2626 = vpop.permute.xlu0 %2625
  %2628 = vset.pattern.permute.xlu0 1
  %2629 = vperm.xlu0 %2628, %v916
  %v2630 = vpop.permute.xlu0 %2629
  %2632 = vset.pattern.permute.xlu0 1
  %2633 = vperm.xlu0 %2632, %v919
  %v2634 = vpop.permute.xlu0 %2633
  %2636 = vset.pattern.permute.xlu0 1
  %2637 = vperm.xlu0 %2636, %v924
  %v2638 = vpop.permute.xlu0 %2637
  %2640 = vset.pattern.permute.xlu0 1
  %2641 = vperm.xlu0 %2640, %v927
  %v2642 = vpop.permute.xlu0 %2641
  %2644 = vset.pattern.permute.xlu0 1
  %2645 = vperm.xlu0 %2644, %v932
  %v2646 = vpop.permute.xlu0 %2645
  %2648 = vset.pattern.permute.xlu0 1
  %2649 = vperm.xlu0 %2648, %v935
  %v2650 = vpop.permute.xlu0 %2649
  %v2652 = vmul.f32 %v2444, %v2590
  %v2653 = vmul.f32 %v2445, %v2594
  %v2654 = vmul.f32 %v2446, %v2598
  %v2655 = vmul.f32 %v2447, %v2602
  %v2656 = vmul.f32 %v2448, %v2606
  %v2657 = vmul.f32 %v2449, %v2610
  %v2658 = vmul.f32 %v2450, %v2614
  %v2659 = vmul.f32 %v2451, %v2618
  %v2660 = vmul.f32 %v2452, %v2622
  %v2661 = vmul.f32 %v2453, %v2626
  %v2662 = vmul.f32 %v2454, %v2630
  %v2663 = vmul.f32 %v2455, %v2634
  %v2664 = vmul.f32 %v2456, %v2638
  %v2665 = vmul.f32 %v2457, %v2642
  %v2666 = vmul.f32 %v2458, %v2646
  %v2667 = vmul.f32 %v2459, %v2650
  %v2668 = vadd.f32 %v2572, %v2652
  %v2669 = vadd.f32 %v2573, %v2653
  %v2670 = vadd.f32 %v2574, %v2654
  %v2671 = vadd.f32 %v2575, %v2655
  %v2672 = vadd.f32 %v2576, %v2656
  %v2673 = vadd.f32 %v2577, %v2657
  %v2674 = vadd.f32 %v2578, %v2658
  %v2675 = vadd.f32 %v2579, %v2659
  %v2676 = vadd.f32 %v2580, %v2660
  %v2677 = vadd.f32 %v2581, %v2661
  %v2678 = vadd.f32 %v2582, %v2662
  %v2679 = vadd.f32 %v2583, %v2663
  %v2680 = vadd.f32 %v2584, %v2664
  %v2681 = vadd.f32 %v2585, %v2665
  %v2682 = vadd.f32 %v2586, %v2666
  %v2683 = vadd.f32 %v2587, %v2667
  %2684 = vset.pattern.permute.xlu0 2
  %2685 = vperm.xlu0 %2684, %v876
  %v2686 = vpop.permute.xlu0 %2685
  %2688 = vset.pattern.permute.xlu0 2
  %2689 = vperm.xlu0 %2688, %v879
  %v2690 = vpop.permute.xlu0 %2689
  %2692 = vset.pattern.permute.xlu0 2
  %2693 = vperm.xlu0 %2692, %v884
  %v2694 = vpop.permute.xlu0 %2693
  %2696 = vset.pattern.permute.xlu0 2
  %2697 = vperm.xlu0 %2696, %v887
  %v2698 = vpop.permute.xlu0 %2697
  %2700 = vset.pattern.permute.xlu0 2
  %2701 = vperm.xlu0 %2700, %v892
  %v2702 = vpop.permute.xlu0 %2701
  %2704 = vset.pattern.permute.xlu0 2
  %2705 = vperm.xlu0 %2704, %v895
  %v2706 = vpop.permute.xlu0 %2705
  %2708 = vset.pattern.permute.xlu0 2
  %2709 = vperm.xlu0 %2708, %v900
  %v2710 = vpop.permute.xlu0 %2709
  %2712 = vset.pattern.permute.xlu0 2
  %2713 = vperm.xlu0 %2712, %v903
  %v2714 = vpop.permute.xlu0 %2713
  %2716 = vset.pattern.permute.xlu0 2
  %2717 = vperm.xlu0 %2716, %v908
  %v2718 = vpop.permute.xlu0 %2717
  %2720 = vset.pattern.permute.xlu0 2
  %2721 = vperm.xlu0 %2720, %v911
  %v2722 = vpop.permute.xlu0 %2721
  %2724 = vset.pattern.permute.xlu0 2
  %2725 = vperm.xlu0 %2724, %v916
  %v2726 = vpop.permute.xlu0 %2725
  %2728 = vset.pattern.permute.xlu0 2
  %2729 = vperm.xlu0 %2728, %v919
  %v2730 = vpop.permute.xlu0 %2729
  %2732 = vset.pattern.permute.xlu0 2
  %2733 = vperm.xlu0 %2732, %v924
  %v2734 = vpop.permute.xlu0 %2733
  %2736 = vset.pattern.permute.xlu0 2
  %2737 = vperm.xlu0 %2736, %v927
  %v2738 = vpop.permute.xlu0 %2737
  %2740 = vset.pattern.permute.xlu0 2
  %2741 = vperm.xlu0 %2740, %v932
  %v2742 = vpop.permute.xlu0 %2741
  %2744 = vset.pattern.permute.xlu0 2
  %2745 = vperm.xlu0 %2744, %v935
  %v2746 = vpop.permute.xlu0 %2745
  %v2748 = vmul.f32 %v2460, %v2686
  %v2749 = vmul.f32 %v2461, %v2690
  %v2750 = vmul.f32 %v2462, %v2694
  %v2751 = vmul.f32 %v2463, %v2698
  %v2752 = vmul.f32 %v2464, %v2702
  %v2753 = vmul.f32 %v2465, %v2706
  %v2754 = vmul.f32 %v2466, %v2710
  %v2755 = vmul.f32 %v2467, %v2714
  %v2756 = vmul.f32 %v2468, %v2718
  %v2757 = vmul.f32 %v2469, %v2722
  %v2758 = vmul.f32 %v2470, %v2726
  %v2759 = vmul.f32 %v2471, %v2730
  %v2760 = vmul.f32 %v2472, %v2734
  %v2761 = vmul.f32 %v2473, %v2738
  %v2762 = vmul.f32 %v2474, %v2742
  %v2763 = vmul.f32 %v2475, %v2746
  %v2764 = vadd.f32 %v2668, %v2748
  %v2765 = vadd.f32 %v2669, %v2749
  %v2766 = vadd.f32 %v2670, %v2750
  %v2767 = vadd.f32 %v2671, %v2751
  %v2768 = vadd.f32 %v2672, %v2752
  %v2769 = vadd.f32 %v2673, %v2753
  %v2770 = vadd.f32 %v2674, %v2754
  %v2771 = vadd.f32 %v2675, %v2755
  %v2772 = vadd.f32 %v2676, %v2756
  %v2773 = vadd.f32 %v2677, %v2757
  %v2774 = vadd.f32 %v2678, %v2758
  %v2775 = vadd.f32 %v2679, %v2759
  %v2776 = vadd.f32 %v2680, %v2760
  %v2777 = vadd.f32 %v2681, %v2761
  %v2778 = vadd.f32 %v2682, %v2762
  %v2779 = vadd.f32 %v2683, %v2763
  %2780 = vset.pattern.permute.xlu0 3
  %2781 = vperm.xlu0 %2780, %v876
  %v2782 = vpop.permute.xlu0 %2781
  %2784 = vset.pattern.permute.xlu0 3
  %2785 = vperm.xlu0 %2784, %v879
  %v2786 = vpop.permute.xlu0 %2785
  %2788 = vset.pattern.permute.xlu0 3
  %2789 = vperm.xlu0 %2788, %v884
  %v2790 = vpop.permute.xlu0 %2789
  %2792 = vset.pattern.permute.xlu0 3
  %2793 = vperm.xlu0 %2792, %v887
  %v2794 = vpop.permute.xlu0 %2793
  %2796 = vset.pattern.permute.xlu0 3
  %2797 = vperm.xlu0 %2796, %v892
  %v2798 = vpop.permute.xlu0 %2797
  %2800 = vset.pattern.permute.xlu0 3
  %2801 = vperm.xlu0 %2800, %v895
  %v2802 = vpop.permute.xlu0 %2801
  %2804 = vset.pattern.permute.xlu0 3
  %2805 = vperm.xlu0 %2804, %v900
  %v2806 = vpop.permute.xlu0 %2805
  %2808 = vset.pattern.permute.xlu0 3
  %2809 = vperm.xlu0 %2808, %v903
  %v2810 = vpop.permute.xlu0 %2809
  %2812 = vset.pattern.permute.xlu0 3
  %2813 = vperm.xlu0 %2812, %v908
  %v2814 = vpop.permute.xlu0 %2813
  %2816 = vset.pattern.permute.xlu0 3
  %2817 = vperm.xlu0 %2816, %v911
  %v2818 = vpop.permute.xlu0 %2817
  %2820 = vset.pattern.permute.xlu0 3
  %2821 = vperm.xlu0 %2820, %v916
  %v2822 = vpop.permute.xlu0 %2821
  %2824 = vset.pattern.permute.xlu0 3
  %2825 = vperm.xlu0 %2824, %v919
  %v2826 = vpop.permute.xlu0 %2825
  %2828 = vset.pattern.permute.xlu0 3
  %2829 = vperm.xlu0 %2828, %v924
  %v2830 = vpop.permute.xlu0 %2829
  %2832 = vset.pattern.permute.xlu0 3
  %2833 = vperm.xlu0 %2832, %v927
  %v2834 = vpop.permute.xlu0 %2833
  %2836 = vset.pattern.permute.xlu0 3
  %2837 = vperm.xlu0 %2836, %v932
  %v2838 = vpop.permute.xlu0 %2837
  %2840 = vset.pattern.permute.xlu0 3
  %2841 = vperm.xlu0 %2840, %v935
  %v2842 = vpop.permute.xlu0 %2841
  %v2844 = vmul.f32 %v2476, %v2782
  %v2845 = vmul.f32 %v2477, %v2786
  %v2846 = vmul.f32 %v2478, %v2790
  %v2847 = vmul.f32 %v2479, %v2794
  %v2848 = vmul.f32 %v2480, %v2798
  %v2849 = vmul.f32 %v2481, %v2802
  %v2850 = vmul.f32 %v2482, %v2806
  %v2851 = vmul.f32 %v2483, %v2810
  %v2852 = vmul.f32 %v2484, %v2814
  %v2853 = vmul.f32 %v2485, %v2818
  %v2854 = vmul.f32 %v2486, %v2822
  %v2855 = vmul.f32 %v2487, %v2826
  %v2856 = vmul.f32 %v2488, %v2830
  %v2857 = vmul.f32 %v2489, %v2834
  %v2858 = vmul.f32 %v2490, %v2838
  %v2859 = vmul.f32 %v2491, %v2842
  %v2860 = vadd.f32 %v2764, %v2844
  %v2861 = vadd.f32 %v2765, %v2845
  %v2862 = vadd.f32 %v2766, %v2846
  %v2863 = vadd.f32 %v2767, %v2847
  %v2864 = vadd.f32 %v2768, %v2848
  %v2865 = vadd.f32 %v2769, %v2849
  %v2866 = vadd.f32 %v2770, %v2850
  %v2867 = vadd.f32 %v2771, %v2851
  %v2868 = vadd.f32 %v2772, %v2852
  %v2869 = vadd.f32 %v2773, %v2853
  %v2870 = vadd.f32 %v2774, %v2854
  %v2871 = vadd.f32 %v2775, %v2855
  %v2872 = vadd.f32 %v2776, %v2856
  %v2873 = vadd.f32 %v2777, %v2857
  %v2874 = vadd.f32 %v2778, %v2858
  %v2875 = vadd.f32 %v2779, %v2859
  %v2876 = vadd.f32 %v2860, %v2864
  %v2877 = vadd.f32 %v2861, %v2865
  %v2878 = vadd.f32 %v2862, %v2866
  %v2879 = vadd.f32 %v2863, %v2867
  %v2880 = vadd.f32 %v2876, %v2868
  %v2881 = vadd.f32 %v2877, %v2869
  %v2882 = vadd.f32 %v2878, %v2870
  %v2883 = vadd.f32 %v2879, %v2871
  %v2884 = vadd.f32 %v2880, %v2872
  %v2885 = vadd.f32 %v2881, %v2873
  %v2886 = vadd.f32 %v2882, %v2874
  %v2887 = vadd.f32 %v2883, %v2875
  %v2888 = vmul.f32 %v2884, 0.25
  %v2889 = vmul.f32 %v2885, 0.25
  %v2890 = vmul.f32 %v2886, 0.25
  %v2891 = vmul.f32 %v2887, 0.25
  %v2892 = vld [vmem:[%s5] sm:$0xf]
  %v2893 = vld [vmem:[%s5 + $0x4] sm:$0xf]
  %v2894 = vld [vmem:[%s5 + $0x8] sm:$0xf]
  %v2895 = vld [vmem:[%s5 + $0xc] sm:$0xf]
  %v2896 = vld [vmem:[%s5 + $0x10] sm:$0xf]
  %v2897 = vld [vmem:[%s5 + $0x14] sm:$0xf]
  %v2898 = vld [vmem:[%s5 + $0x18] sm:$0xf]
  %v2899 = vld [vmem:[%s5 + $0x1c] sm:$0xf]
  %v2900 = vpack.c.bf16 %v2889, %v2888
  %v2901 = vpack.c.bf16 %v2891, %v2890
  %v2910 = vunpack.c.l.b16 %v2892
  %v2911 = vunpack.c.l.b16 %v2893
  %v2912 = vunpack.c.l.b16 %v2894
  %v2913 = vunpack.c.l.b16 %v2895
  %v2914 = vunpack.c.l.b16 %v2896
  %v2915 = vunpack.c.l.b16 %v2897
  %v2916 = vunpack.c.l.b16 %v2898
  %v2917 = vunpack.c.l.b16 %v2899
  %v2918 = vpack.c.b16 %v2911, %v2910
  %v2919 = vpack.c.b16 %v2913, %v2912
  %v2920 = vpack.c.b16 %v2915, %v2914
  %v2921 = vpack.c.b16 %v2917, %v2916
  %v2927 = vsel %vm633, %v2900, 0
  %v2930 = vsel %vm633, %v2901, 0
  %2932 = vmatprep.subr.bf16.mxu0 0
  %2933 = vmatpush1.bf16.msra.mxu0 %v2918
  %2934 = vmatprep.subr.bf16.mxu0 0
  %2935 = vmatpush1.bf16.msra.mxu0 %v2919
  %2936 = vmatprep.subr.bf16.mxu0 0
  %2937 = vmatpush1.bf16.msra.mxu0 %v2920
  %2938 = vmatprep.subr.bf16.mxu0 0
  %2939 = vmatpush1.bf16.msra.mxu0 %v2921
  %2940 = vmatprep.subr.bf16.mxu0 0
  %2941 = vmatpush1.bf16.msra.mxu0 0
  %2942 = vmatprep.subr.bf16.mxu0 0
  %2943 = vmatpush1.bf16.msra.mxu0 0
  %2944 = vmatprep.subr.bf16.mxu0 0
  %2945 = vmatpush1.bf16.msra.mxu0 0
  %2946 = vmatprep.subr.bf16.mxu0 0
  %2947 = vmatpush1.bf16.msra.mxu0 0
  %2948 = vmatprep.subr.bf16.mxu0 0
  %2949 = vmatpush1.bf16.msra.mxu0 0
  %2950 = vmatprep.subr.bf16.mxu0 0
  %2951 = vmatpush1.bf16.msra.mxu0 0
  %2952 = vmatprep.subr.bf16.mxu0 0
  %2953 = vmatpush1.bf16.msra.mxu0 0
  %2954 = vmatprep.subr.bf16.mxu0 0
  %2955 = vmatpush1.bf16.msra.mxu0 0
  %2956 = vmatprep.subr.bf16.mxu0 0
  %2957 = vmatpush1.bf16.msra.mxu0 0
  %2958 = vmatprep.subr.bf16.mxu0 0
  %2959 = vmatpush1.bf16.msra.mxu0 0
  %2960 = vmatprep.subr.bf16.mxu0 0
  %2961 = vmatpush1.bf16.msra.mxu0 0
  %2962 = vmatprep.subr.bf16.mxu0 0
  %2963 = vmatpush1.bf16.msra.mxu0 0
  %2964 = vmatprep.mubr.bf16.mxu0 0
  %2965 = vmatmul.mubr.bf16.gmra.mrb[0].mxu0 %v2927
  %v2966 = vpop.f32.mrb[0].mxu0
  %v2967 = vadd.f32 0.0, %v2966
  %v2968 = vpop.f32.mrb[0].mxu0
  %v2969 = vpop.f32.mrb[0].mxu0
  %v2970 = vadd.f32 0.0, %v2969
  %v2971 = vpop.f32.mrb[0].mxu0
  %2972 = vmatprep.mubr.bf16.mxu0 0
  %2973 = vmatmul.mubr.bf16.gmra.mrb[0].mxu0 %v2930
  %v2974 = vpop.f32.mrb[0].mxu0
  %v2975 = vadd.f32 0.0, %v2974
  %v2976 = vpop.f32.mrb[0].mxu0
  %v2977 = vpop.f32.mrb[0].mxu0
  %v2978 = vadd.f32 0.0, %v2977
  %v2979 = vpop.f32.mrb[0].mxu0
  %2980 = vdwg.mxu0
  %v2981 = vadd.f32 %v2967, %v2970
  %v2982 = vadd.f32 %v2981, %v2975
  %v2983 = vadd.f32 %v2982, %v2978
  %v2984 = vrot.slane %v2983, 4
  %v2985 = vadd.f32 %v2983, %v2984
  %v2986 = vrot.slane %v2985, 2
  %v2987 = vadd.f32 %v2985, %v2986
  %v2988 = vrot.slane %v2987, 1
  %v2989 = vadd.f32 %v2987, %v2988
  %v2990 = vrcp.pop 32.0
  %v2991 = vmul.f32 %v2989, %v2990
  %v2992 = vsub.f32 %v2967, %v2991
  %v2993 = vsub.f32 %v2970, %v2991
  %v2994 = vsub.f32 %v2975, %v2991
  %v2995 = vsub.f32 %v2978, %v2991
  %v2996 = vmul.f32 %v2992, %v2992
  %v2997 = vmul.f32 %v2993, %v2993
  %v2998 = vmul.f32 %v2994, %v2994
  %v2999 = vmul.f32 %v2995, %v2995
  %v3000 = vadd.f32 %v2996, %v2997
  %v3001 = vadd.f32 %v3000, %v2998
  %v3002 = vadd.f32 %v3001, %v2999
  %v3003 = vrot.slane %v3002, 4
  %v3004 = vadd.f32 %v3002, %v3003
  %v3005 = vrot.slane %v3004, 2
  %v3006 = vadd.f32 %v3004, %v3005
  %v3007 = vrot.slane %v3006, 1
  %v3008 = vadd.f32 %v3006, %v3007
  %v3009 = vmul.f32 %v3008, %v2990
  %v3010 = vadd.f32 %v3009, 1e-05
  %v3011 = vrsqrt.pop %v3010
  %v3012 = vmul.f32 %v2992, %v3011
  %v3013 = vmul.f32 %v2993, %v3011
  %v3014 = vmul.f32 %v2994, %v3011
  %v3015 = vmul.f32 %v2995, %v3011
  %v3016 = vmax.f32 %v3012, 0.0
  %v3017 = vmax.f32 %v3013, 0.0
  %v3018 = vmax.f32 %v3014, 0.0
  %v3019 = vmax.f32 %v3015, 0.0
  %v3020 = vld [vmem:[%s6] sm:$0xf]
  %v3021 = vld [vmem:[%s6 + $0x4] sm:$0xf]
  %v3022 = vld [vmem:[%s6 + $0x8] sm:$0xf]
  %v3023 = vld [vmem:[%s6 + $0xc] sm:$0xf]
  %v3024 = vld [vmem:[%s6 + $0x10] sm:$0xf]
  %v3025 = vld [vmem:[%s6 + $0x14] sm:$0xf]
  %v3026 = vld [vmem:[%s6 + $0x18] sm:$0xf]
  %v3027 = vld [vmem:[%s6 + $0x1c] sm:$0xf]
  %v3028 = vld [vmem:[%s6 + $0x20] sm:$0xf]
  %v3029 = vld [vmem:[%s6 + $0x24] sm:$0xf]
  %v3030 = vld [vmem:[%s6 + $0x28] sm:$0xf]
  %v3031 = vld [vmem:[%s6 + $0x2c] sm:$0xf]
  %v3032 = vld [vmem:[%s6 + $0x30] sm:$0xf]
  %v3033 = vld [vmem:[%s6 + $0x34] sm:$0xf]
  %v3034 = vld [vmem:[%s6 + $0x38] sm:$0xf]
  %v3035 = vld [vmem:[%s6 + $0x3c] sm:$0xf]
  %v3036 = vpack.c.bf16 %v3017, %v3016
  %v3037 = vpack.c.bf16 %v3019, %v3018
  %v3054 = vunpack.c.l.b16 %v3020
  %v3055 = vunpack.c.l.b16 %v3021
  %v3056 = vunpack.c.l.b16 %v3022
  %v3057 = vunpack.c.l.b16 %v3023
  %v3058 = vunpack.c.l.b16 %v3024
  %v3059 = vunpack.c.l.b16 %v3025
  %v3060 = vunpack.c.l.b16 %v3026
  %v3061 = vunpack.c.l.b16 %v3027
  %v3062 = vunpack.c.l.b16 %v3028
  %v3063 = vunpack.c.l.b16 %v3029
  %v3064 = vunpack.c.l.b16 %v3030
  %v3065 = vunpack.c.l.b16 %v3031
  %v3066 = vunpack.c.l.b16 %v3032
  %v3067 = vunpack.c.l.b16 %v3033
  %v3068 = vunpack.c.l.b16 %v3034
  %v3069 = vunpack.c.l.b16 %v3035
  %v3070 = vpack.c.b16 %v3055, %v3054
  %v3071 = vpack.c.b16 %v3057, %v3056
  %v3072 = vpack.c.b16 %v3059, %v3058
  %v3073 = vpack.c.b16 %v3061, %v3060
  %v3074 = vpack.c.b16 %v3063, %v3062
  %v3075 = vpack.c.b16 %v3065, %v3064
  %v3076 = vpack.c.b16 %v3067, %v3066
  %v3077 = vpack.c.b16 %v3069, %v3068
  %3086 = vmatprep.subr.bf16.mxu0 0
  %3087 = vmatpush1.bf16.msra.mxu0 %v3070
  %3088 = vmatprep.subr.bf16.mxu0 0
  %3089 = vmatpush1.bf16.msra.mxu0 %v3071
  %3090 = vmatprep.subr.bf16.mxu0 0
  %3091 = vmatpush1.bf16.msra.mxu0 %v3072
  %3092 = vmatprep.subr.bf16.mxu0 0
  %3093 = vmatpush1.bf16.msra.mxu0 %v3073
  %3094 = vmatprep.subr.bf16.mxu0 0
  %3095 = vmatpush1.bf16.msra.mxu0 %v3074
  %3096 = vmatprep.subr.bf16.mxu0 0
  %3097 = vmatpush1.bf16.msra.mxu0 %v3075
  %3098 = vmatprep.subr.bf16.mxu0 0
  %3099 = vmatpush1.bf16.msra.mxu0 %v3076
  %3100 = vmatprep.subr.bf16.mxu0 0
  %3101 = vmatpush1.bf16.msra.mxu0 %v3077
  %3102 = vmatprep.subr.bf16.mxu0 0
  %3103 = vmatpush1.bf16.msra.mxu0 0
  %3104 = vmatprep.subr.bf16.mxu0 0
  %3105 = vmatpush1.bf16.msra.mxu0 0
  %3106 = vmatprep.subr.bf16.mxu0 0
  %3107 = vmatpush1.bf16.msra.mxu0 0
  %3108 = vmatprep.subr.bf16.mxu0 0
  %3109 = vmatpush1.bf16.msra.mxu0 0
  %3110 = vmatprep.subr.bf16.mxu0 0
  %3111 = vmatpush1.bf16.msra.mxu0 0
  %3112 = vmatprep.subr.bf16.mxu0 0
  %3113 = vmatpush1.bf16.msra.mxu0 0
  %3114 = vmatprep.subr.bf16.mxu0 0
  %3115 = vmatpush1.bf16.msra.mxu0 0
  %3116 = vmatprep.subr.bf16.mxu0 0
  %3117 = vmatpush1.bf16.msra.mxu0 0
  %3118 = vmatprep.mubr.bf16.mxu0 0
  %3119 = vmatmul.mubr.bf16.gmra.mrb[0].mxu0 %v3036
  %v3120 = vpop.f32.mrb[0].mxu0
  %v3121 = vadd.f32 0.0, %v3120
  %v3122 = vpop.f32.mrb[0].mxu0
  %v3123 = vpop.f32.mrb[0].mxu0
  %v3124 = vadd.f32 0.0, %v3123
  %v3125 = vpop.f32.mrb[0].mxu0
  %3126 = vmatprep.mubr.bf16.mxu0 0
  %3127 = vmatmul.mubr.bf16.gmra.mrb[0].mxu0 %v3037
  %v3128 = vpop.f32.mrb[0].mxu0
  %v3129 = vadd.f32 0.0, %v3128
  %v3130 = vpop.f32.mrb[0].mxu0
  %v3131 = vpop.f32.mrb[0].mxu0
  %v3132 = vadd.f32 0.0, %v3131
  %v3133 = vpop.f32.mrb[0].mxu0
  %3134 = vdwg.mxu0
  %v3135 = vld [vmem:[%s4] sm:$0xf]
  %v3136 = vld [vmem:[%s4 + $0x4] sm:$0xf]
  %v3137 = vld [vmem:[%s4 + $0x8] sm:$0xf]
  %v3138 = vld [vmem:[%s4 + $0xc] sm:$0xf]
  %v3139 = vld [vmem:[%s4 + $0x10] sm:$0xf]
  %v3140 = vld [vmem:[%s4 + $0x14] sm:$0xf]
  %v3141 = vld [vmem:[%s4 + $0x18] sm:$0xf]
  %v3142 = vld [vmem:[%s4 + $0x1c] sm:$0xf]
  %v3143 = vpack.c.bf16 %v2861, %v2860
  %v3144 = vpack.c.bf16 %v2863, %v2862
  %v3145 = vpack.c.bf16 %v2865, %v2864
  %v3146 = vpack.c.bf16 %v2867, %v2866
  %v3147 = vpack.c.bf16 %v2869, %v2868
  %v3148 = vpack.c.bf16 %v2871, %v2870
  %v3149 = vpack.c.bf16 %v2873, %v2872
  %v3150 = vpack.c.bf16 %v2875, %v2874
  %v3159 = vunpack.c.l.b16 %v3135
  %v3160 = vunpack.c.l.b16 %v3136
  %v3161 = vunpack.c.l.b16 %v3137
  %v3162 = vunpack.c.l.b16 %v3138
  %v3163 = vunpack.c.l.b16 %v3139
  %v3164 = vunpack.c.l.b16 %v3140
  %v3165 = vunpack.c.l.b16 %v3141
  %v3166 = vunpack.c.l.b16 %v3142
  %v3167 = vpack.c.b16 %v3160, %v3159
  %v3168 = vpack.c.b16 %v3162, %v3161
  %v3169 = vpack.c.b16 %v3164, %v3163
  %v3170 = vpack.c.b16 %v3166, %v3165
  %v3176 = vsel %vm633, %v3143, 0
  %v3179 = vsel %vm633, %v3144, 0
  %v3182 = vsel %vm633, %v3145, 0
  %v3185 = vsel %vm633, %v3146, 0
  %v3188 = vsel %vm633, %v3147, 0
  %v3191 = vsel %vm633, %v3148, 0
  %v3194 = vsel %vm633, %v3149, 0
  %v3197 = vsel %vm633, %v3150, 0
  %3199 = vmatprep.subr.bf16.mxu0 0
  %3200 = vmatpush1.bf16.msra.mxu0 %v3167
  %3201 = vmatprep.subr.bf16.mxu0 0
  %3202 = vmatpush1.bf16.msra.mxu0 %v3168
  %3203 = vmatprep.subr.bf16.mxu0 0
  %3204 = vmatpush1.bf16.msra.mxu0 %v3169
  %3205 = vmatprep.subr.bf16.mxu0 0
  %3206 = vmatpush1.bf16.msra.mxu0 %v3170
  %3207 = vmatprep.subr.bf16.mxu0 0
  %3208 = vmatpush1.bf16.msra.mxu0 0
  %3209 = vmatprep.subr.bf16.mxu0 0
  %3210 = vmatpush1.bf16.msra.mxu0 0
  %3211 = vmatprep.subr.bf16.mxu0 0
  %3212 = vmatpush1.bf16.msra.mxu0 0
  %3213 = vmatprep.subr.bf16.mxu0 0
  %3214 = vmatpush1.bf16.msra.mxu0 0
  %3215 = vmatprep.subr.bf16.mxu0 0
  %3216 = vmatpush1.bf16.msra.mxu0 0
  %3217 = vmatprep.subr.bf16.mxu0 0
  %3218 = vmatpush1.bf16.msra.mxu0 0
  %3219 = vmatprep.subr.bf16.mxu0 0
  %3220 = vmatpush1.bf16.msra.mxu0 0
  %3221 = vmatprep.subr.bf16.mxu0 0
  %3222 = vmatpush1.bf16.msra.mxu0 0
  %3223 = vmatprep.subr.bf16.mxu0 0
  %3224 = vmatpush1.bf16.msra.mxu0 0
  %3225 = vmatprep.subr.bf16.mxu0 0
  %3226 = vmatpush1.bf16.msra.mxu0 0
  %3227 = vmatprep.subr.bf16.mxu0 0
  %3228 = vmatpush1.bf16.msra.mxu0 0
  %3229 = vmatprep.subr.bf16.mxu0 0
  %3230 = vmatpush1.bf16.msra.mxu0 0
  %3231 = vmatprep.mubr.bf16.mxu0 0
  %3232 = vmatmul.mubr.bf16.gmra.mrb[0].mxu0 %v3176
  %v3233 = vpop.f32.mrb[0].mxu0
  %v3234 = vadd.f32 0.0, %v3233
  %v3235 = vpop.f32.mrb[0].mxu0
  %v3236 = vpop.f32.mrb[0].mxu0
  %v3237 = vadd.f32 0.0, %v3236
  %v3238 = vpop.f32.mrb[0].mxu0
  %3239 = vmatprep.mubr.bf16.mxu0 0
  %3240 = vmatmul.mubr.bf16.gmra.mrb[0].mxu0 %v3179
  %v3241 = vpop.f32.mrb[0].mxu0
  %v3242 = vadd.f32 0.0, %v3241
  %v3243 = vpop.f32.mrb[0].mxu0
  %v3244 = vpop.f32.mrb[0].mxu0
  %v3245 = vadd.f32 0.0, %v3244
  %v3246 = vpop.f32.mrb[0].mxu0
  %3247 = vmatprep.mubr.bf16.mxu0 0
  %3248 = vmatmul.mubr.bf16.gmra.mrb[0].mxu0 %v3182
  %v3249 = vpop.f32.mrb[0].mxu0
  %v3250 = vadd.f32 0.0, %v3249
  %v3251 = vpop.f32.mrb[0].mxu0
  %v3252 = vpop.f32.mrb[0].mxu0
  %v3253 = vadd.f32 0.0, %v3252
  %v3254 = vpop.f32.mrb[0].mxu0
  %3255 = vmatprep.mubr.bf16.mxu0 0
  %3256 = vmatmul.mubr.bf16.gmra.mrb[0].mxu0 %v3185
  %v3257 = vpop.f32.mrb[0].mxu0
  %v3258 = vadd.f32 0.0, %v3257
  %v3259 = vpop.f32.mrb[0].mxu0
  %v3260 = vpop.f32.mrb[0].mxu0
  %v3261 = vadd.f32 0.0, %v3260
  %v3262 = vpop.f32.mrb[0].mxu0
  %3263 = vmatprep.mubr.bf16.mxu0 0
  %3264 = vmatmul.mubr.bf16.gmra.mrb[0].mxu0 %v3188
  %v3265 = vpop.f32.mrb[0].mxu0
  %v3266 = vadd.f32 0.0, %v3265
  %v3267 = vpop.f32.mrb[0].mxu0
  %v3268 = vpop.f32.mrb[0].mxu0
  %v3269 = vadd.f32 0.0, %v3268
  %v3270 = vpop.f32.mrb[0].mxu0
  %3271 = vmatprep.mubr.bf16.mxu0 0
  %3272 = vmatmul.mubr.bf16.gmra.mrb[0].mxu0 %v3191
  %v3273 = vpop.f32.mrb[0].mxu0
  %v3274 = vadd.f32 0.0, %v3273
  %v3275 = vpop.f32.mrb[0].mxu0
  %v3276 = vpop.f32.mrb[0].mxu0
  %v3277 = vadd.f32 0.0, %v3276
  %v3278 = vpop.f32.mrb[0].mxu0
  %3279 = vmatprep.mubr.bf16.mxu0 0
  %3280 = vmatmul.mubr.bf16.gmra.mrb[0].mxu0 %v3194
  %v3281 = vpop.f32.mrb[0].mxu0
  %v3282 = vadd.f32 0.0, %v3281
  %v3283 = vpop.f32.mrb[0].mxu0
  %v3284 = vpop.f32.mrb[0].mxu0
  %v3285 = vadd.f32 0.0, %v3284
  %v3286 = vpop.f32.mrb[0].mxu0
  %3287 = vmatprep.mubr.bf16.mxu0 0
  %3288 = vmatmul.mubr.bf16.gmra.mrb[0].mxu0 %v3197
  %v3289 = vpop.f32.mrb[0].mxu0
  %v3290 = vadd.f32 0.0, %v3289
  %v3291 = vpop.f32.mrb[0].mxu0
  %v3292 = vpop.f32.mrb[0].mxu0
  %v3293 = vadd.f32 0.0, %v3292
  %v3294 = vpop.f32.mrb[0].mxu0
  %3295 = vdwg.mxu0
  %3297 = vset.pattern.permute.xlu0 0
  %3298 = vperm.xlu0 %3297, %v3121
  %v3299 = vpop.permute.xlu0 %3298
  %3302 = vset.pattern.permute.xlu0 0
  %3303 = vperm.xlu0 %3302, %v3124
  %v3304 = vpop.permute.xlu0 %3303
  %3307 = vset.pattern.permute.xlu0 0
  %3308 = vperm.xlu0 %3307, %v3129
  %v3309 = vpop.permute.xlu0 %3308
  %3312 = vset.pattern.permute.xlu0 0
  %3313 = vperm.xlu0 %3312, %v3132
  %v3314 = vpop.permute.xlu0 %3313
  %v3316 = vmul.f32 %v3234, %v3299
  %v3317 = vmul.f32 %v3237, %v3304
  %v3318 = vmul.f32 %v3242, %v3309
  %v3319 = vmul.f32 %v3245, %v3314
  %3320 = vset.pattern.permute.xlu0 1
  %3321 = vperm.xlu0 %3320, %v3121
  %v3322 = vpop.permute.xlu0 %3321
  %3324 = vset.pattern.permute.xlu0 1
  %3325 = vperm.xlu0 %3324, %v3124
  %v3326 = vpop.permute.xlu0 %3325
  %3328 = vset.pattern.permute.xlu0 1
  %3329 = vperm.xlu0 %3328, %v3129
  %v3330 = vpop.permute.xlu0 %3329
  %3332 = vset.pattern.permute.xlu0 1
  %3333 = vperm.xlu0 %3332, %v3132
  %v3334 = vpop.permute.xlu0 %3333
  %v3336 = vmul.f32 %v3250, %v3322
  %v3337 = vmul.f32 %v3253, %v3326
  %v3338 = vmul.f32 %v3258, %v3330
  %v3339 = vmul.f32 %v3261, %v3334
  %v3340 = vadd.f32 %v3316, %v3336
  %v3341 = vadd.f32 %v3317, %v3337
  %v3342 = vadd.f32 %v3318, %v3338
  %v3343 = vadd.f32 %v3319, %v3339
  %3344 = vset.pattern.permute.xlu0 2
  %3345 = vperm.xlu0 %3344, %v3121
  %v3346 = vpop.permute.xlu0 %3345
  %3348 = vset.pattern.permute.xlu0 2
  %3349 = vperm.xlu0 %3348, %v3124
  %v3350 = vpop.permute.xlu0 %3349
  %3352 = vset.pattern.permute.xlu0 2
  %3353 = vperm.xlu0 %3352, %v3129
  %v3354 = vpop.permute.xlu0 %3353
  %3356 = vset.pattern.permute.xlu0 2
  %3357 = vperm.xlu0 %3356, %v3132
  %v3358 = vpop.permute.xlu0 %3357
  %v3360 = vmul.f32 %v3266, %v3346
  %v3361 = vmul.f32 %v3269, %v3350
  %v3362 = vmul.f32 %v3274, %v3354
  %v3363 = vmul.f32 %v3277, %v3358
  %v3364 = vadd.f32 %v3340, %v3360
  %v3365 = vadd.f32 %v3341, %v3361
  %v3366 = vadd.f32 %v3342, %v3362
  %v3367 = vadd.f32 %v3343, %v3363
  %3368 = vset.pattern.permute.xlu0 3
  %3369 = vperm.xlu0 %3368, %v3121
  %v3370 = vpop.permute.xlu0 %3369
  %3372 = vset.pattern.permute.xlu0 3
  %3373 = vperm.xlu0 %3372, %v3124
  %v3374 = vpop.permute.xlu0 %3373
  %3376 = vset.pattern.permute.xlu0 3
  %3377 = vperm.xlu0 %3376, %v3129
  %v3378 = vpop.permute.xlu0 %3377
  %3380 = vset.pattern.permute.xlu0 3
  %3381 = vperm.xlu0 %3380, %v3132
  %v3382 = vpop.permute.xlu0 %3381
  %v3384 = vmul.f32 %v3282, %v3370
  %v3385 = vmul.f32 %v3285, %v3374
  %v3386 = vmul.f32 %v3290, %v3378
  %v3387 = vmul.f32 %v3293, %v3382
  %v3388 = vadd.f32 %v3364, %v3384
  %v3389 = vadd.f32 %v3365, %v3385
  %v3390 = vadd.f32 %v3366, %v3386
  %v3391 = vadd.f32 %v3367, %v3387
  %v3392 = vld [vmem:[%s8] sm:$0xff]
  %v3393 = vld [vmem:[%s8 + $0x8] sm:$0xff]
  %v3394 = vld [vmem:[%s8 + $0x10] sm:$0xff]
  %v3395 = vld [vmem:[%s8 + $0x18] sm:$0xff]
  %v3396 = vld [vmem:[%s8 + $0x20] sm:$0xff]
  %v3397 = vld [vmem:[%s8 + $0x28] sm:$0xff]
  %v3398 = vld [vmem:[%s8 + $0x30] sm:$0xff]
  %v3399 = vld [vmem:[%s8 + $0x38] sm:$0xff]
  %v3400 = vld [vmem:[%s8 + $0x40] sm:$0xff]
  %v3401 = vld [vmem:[%s8 + $0x48] sm:$0xff]
  %v3402 = vld [vmem:[%s8 + $0x50] sm:$0xff]
  %v3403 = vld [vmem:[%s8 + $0x58] sm:$0xff]
  %v3404 = vld [vmem:[%s8 + $0x60] sm:$0xff]
  %v3405 = vld [vmem:[%s8 + $0x68] sm:$0xff]
  %v3406 = vld [vmem:[%s8 + $0x70] sm:$0xff]
  %v3407 = vld [vmem:[%s8 + $0x78] sm:$0xff]
  %v3408 = vpack.c.bf16 %v3389, %v3388
  %v3409 = vpack.c.bf16 %v3391, %v3390
  %v3426 = vunpack.c.l.b16 %v3392
  %v3427 = vunpack.c.h.b16 %v3392
  %v3428 = vunpack.c.l.b16 %v3393
  %v3429 = vunpack.c.h.b16 %v3393
  %v3430 = vunpack.c.l.b16 %v3394
  %v3431 = vunpack.c.h.b16 %v3394
  %v3432 = vunpack.c.l.b16 %v3395
  %v3433 = vunpack.c.h.b16 %v3395
  %v3434 = vunpack.c.l.b16 %v3396
  %v3435 = vunpack.c.h.b16 %v3396
  %v3436 = vunpack.c.l.b16 %v3397
  %v3437 = vunpack.c.h.b16 %v3397
  %v3438 = vunpack.c.l.b16 %v3398
  %v3439 = vunpack.c.h.b16 %v3398
  %v3440 = vunpack.c.l.b16 %v3399
  %v3441 = vunpack.c.h.b16 %v3399
  %v3442 = vunpack.c.l.b16 %v3400
  %v3443 = vunpack.c.h.b16 %v3400
  %v3444 = vunpack.c.l.b16 %v3401
  %v3445 = vunpack.c.h.b16 %v3401
  %v3446 = vunpack.c.l.b16 %v3402
  %v3447 = vunpack.c.h.b16 %v3402
  %v3448 = vunpack.c.l.b16 %v3403
  %v3449 = vunpack.c.h.b16 %v3403
  %v3450 = vunpack.c.l.b16 %v3404
  %v3451 = vunpack.c.h.b16 %v3404
  %v3452 = vunpack.c.l.b16 %v3405
  %v3453 = vunpack.c.h.b16 %v3405
  %v3454 = vunpack.c.l.b16 %v3406
  %v3455 = vunpack.c.h.b16 %v3406
  %v3456 = vunpack.c.l.b16 %v3407
  %v3457 = vunpack.c.h.b16 %v3407
  %v3458 = vpack.c.b16 %v3428, %v3426
  %v3459 = vpack.c.b16 %v3429, %v3427
  %v3460 = vpack.c.b16 %v3432, %v3430
  %v3461 = vpack.c.b16 %v3433, %v3431
  %v3462 = vpack.c.b16 %v3436, %v3434
  %v3463 = vpack.c.b16 %v3437, %v3435
  %v3464 = vpack.c.b16 %v3440, %v3438
  %v3465 = vpack.c.b16 %v3441, %v3439
  %v3466 = vpack.c.b16 %v3444, %v3442
  %v3467 = vpack.c.b16 %v3445, %v3443
  %v3468 = vpack.c.b16 %v3448, %v3446
  %v3469 = vpack.c.b16 %v3449, %v3447
  %v3470 = vpack.c.b16 %v3452, %v3450
  %v3471 = vpack.c.b16 %v3453, %v3451
  %v3472 = vpack.c.b16 %v3456, %v3454
  %v3473 = vpack.c.b16 %v3457, %v3455
  %3490 = vmatprep.subr.bf16.mxu0 %v3459
  %3491 = vmatpush1.bf16.msra.mxu0 %v3458
  %3492 = vmatprep.subr.bf16.mxu0 %v3461
  %3493 = vmatpush1.bf16.msra.mxu0 %v3460
  %3494 = vmatprep.subr.bf16.mxu0 %v3463
  %3495 = vmatpush1.bf16.msra.mxu0 %v3462
  %3496 = vmatprep.subr.bf16.mxu0 %v3465
  %3497 = vmatpush1.bf16.msra.mxu0 %v3464
  %3498 = vmatprep.subr.bf16.mxu0 %v3467
  %3499 = vmatpush1.bf16.msra.mxu0 %v3466
  %3500 = vmatprep.subr.bf16.mxu0 %v3469
  %3501 = vmatpush1.bf16.msra.mxu0 %v3468
  %3502 = vmatprep.subr.bf16.mxu0 %v3471
  %3503 = vmatpush1.bf16.msra.mxu0 %v3470
  %3504 = vmatprep.subr.bf16.mxu0 %v3473
  %3505 = vmatpush1.bf16.msra.mxu0 %v3472
  %3506 = vmatprep.subr.bf16.mxu0 0
  %3507 = vmatpush1.bf16.msra.mxu0 0
  %3508 = vmatprep.subr.bf16.mxu0 0
  %3509 = vmatpush1.bf16.msra.mxu0 0
  %3510 = vmatprep.subr.bf16.mxu0 0
  %3511 = vmatpush1.bf16.msra.mxu0 0
  %3512 = vmatprep.subr.bf16.mxu0 0
  %3513 = vmatpush1.bf16.msra.mxu0 0
  %3514 = vmatprep.subr.bf16.mxu0 0
  %3515 = vmatpush1.bf16.msra.mxu0 0
  %3516 = vmatprep.subr.bf16.mxu0 0
  %3517 = vmatpush1.bf16.msra.mxu0 0
  %3518 = vmatprep.subr.bf16.mxu0 0
  %3519 = vmatpush1.bf16.msra.mxu0 0
  %3520 = vmatprep.subr.bf16.mxu0 0
  %3521 = vmatpush1.bf16.msra.mxu0 0
  %3522 = vmatprep.mubr.bf16.mxu0 0
  %3523 = vmatmul.mubr.bf16.gmra.mrb[0].mxu0 %v3408
  %v3524 = vpop.f32.mrb[0].mxu0
  %v3525 = vadd.f32 0.0, %v3524
  %v3526 = vpop.f32.mrb[0].mxu0
  %v3527 = vadd.f32 0.0, %v3526
  %v3528 = vpop.f32.mrb[0].mxu0
  %v3529 = vadd.f32 0.0, %v3528
  %v3530 = vpop.f32.mrb[0].mxu0
  %v3531 = vadd.f32 0.0, %v3530
  %3532 = vmatprep.mubr.bf16.mxu0 0
  %3533 = vmatmul.mubr.bf16.gmra.mrb[0].mxu0 %v3409
  %v3534 = vpop.f32.mrb[0].mxu0
  %v3535 = vadd.f32 0.0, %v3534
  %v3536 = vpop.f32.mrb[0].mxu0
  %v3537 = vadd.f32 0.0, %v3536
  %v3538 = vpop.f32.mrb[0].mxu0
  %v3539 = vadd.f32 0.0, %v3538
  %v3540 = vpop.f32.mrb[0].mxu0
  %v3541 = vadd.f32 0.0, %v3540
  %3542 = vdwg.mxu0
  %v3543 = vadd.f32 %v3525, %v3529
  %v3544 = vadd.f32 %v3543, %v3535
  %v3545 = vadd.f32 %v3544, %v3539
  %v3546 = vrot.slane %v3545, 4
  %v3547 = vadd.f32 %v3545, %v3546
  %v3548 = vrot.slane %v3547, 2
  %v3549 = vadd.f32 %v3547, %v3548
  %v3550 = vrot.slane %v3549, 1
  %v3551 = vadd.f32 %v3549, %v3550
  %v3552 = vadd.f32 %v3527, %v3531
  %v3553 = vadd.f32 %v3552, %v3537
  %v3554 = vadd.f32 %v3553, %v3541
  %v3555 = vrot.slane %v3554, 4
  %v3556 = vadd.f32 %v3554, %v3555
  %v3557 = vrot.slane %v3556, 2
  %v3558 = vadd.f32 %v3556, %v3557
  %v3559 = vrot.slane %v3558, 1
  %v3560 = vadd.f32 %v3558, %v3559
  %v3561 = vmul.f32 %v3551, %v2990
  %v3562 = vmul.f32 %v3560, %v2990
  %v3563 = vsub.f32 %v3525, %v3561
  %v3564 = vsub.f32 %v3527, %v3562
  %v3565 = vsub.f32 %v3529, %v3561
  %v3566 = vsub.f32 %v3531, %v3562
  %v3567 = vsub.f32 %v3535, %v3561
  %v3568 = vsub.f32 %v3537, %v3562
  %v3569 = vsub.f32 %v3539, %v3561
  %v3570 = vsub.f32 %v3541, %v3562
  %v3571 = vmul.f32 %v3563, %v3563
  %v3572 = vmul.f32 %v3564, %v3564
  %v3573 = vmul.f32 %v3565, %v3565
  %v3574 = vmul.f32 %v3566, %v3566
  %v3575 = vmul.f32 %v3567, %v3567
  %v3576 = vmul.f32 %v3568, %v3568
  %v3577 = vmul.f32 %v3569, %v3569
  %v3578 = vmul.f32 %v3570, %v3570
  %v3579 = vadd.f32 %v3571, %v3573
  %v3580 = vadd.f32 %v3579, %v3575
  %v3581 = vadd.f32 %v3580, %v3577
  %v3582 = vrot.slane %v3581, 4
  %v3583 = vadd.f32 %v3581, %v3582
  %v3584 = vrot.slane %v3583, 2
  %v3585 = vadd.f32 %v3583, %v3584
  %v3586 = vrot.slane %v3585, 1
  %v3587 = vadd.f32 %v3585, %v3586
  %v3588 = vadd.f32 %v3572, %v3574
  %v3589 = vadd.f32 %v3588, %v3576
  %v3590 = vadd.f32 %v3589, %v3578
  %v3591 = vrot.slane %v3590, 4
  %v3592 = vadd.f32 %v3590, %v3591
  %v3593 = vrot.slane %v3592, 2
  %v3594 = vadd.f32 %v3592, %v3593
  %v3595 = vrot.slane %v3594, 1
  %v3596 = vadd.f32 %v3594, %v3595
  %v3597 = vmul.f32 %v3587, %v2990
  %v3598 = vmul.f32 %v3596, %v2990
  %v3599 = vadd.f32 %v3597, 1e-05
  %v3600 = vadd.f32 %v3598, 1e-05
  %v3601 = vrsqrt.pop %v3599
  %v3602 = vrsqrt.pop %v3600
  %v3603 = vmul.f32 %v3563, %v3601
  %v3604 = vmul.f32 %v3564, %v3602
  %v3605 = vmul.f32 %v3565, %v3601
  %v3606 = vmul.f32 %v3566, %v3602
  %v3607 = vmul.f32 %v3567, %v3601
  %v3608 = vmul.f32 %v3568, %v3602
  %v3609 = vmul.f32 %v3569, %v3601
  %v3610 = vmul.f32 %v3570, %v3602
  %v3611 = vmax.f32 %v3603, 0.0
  %v3612 = vmax.f32 %v3604, 0.0
  %v3613 = vmax.f32 %v3605, 0.0
  %v3614 = vmax.f32 %v3606, 0.0
  %v3615 = vmax.f32 %v3607, 0.0
  %v3616 = vmax.f32 %v3608, 0.0
  %v3617 = vmax.f32 %v3609, 0.0
  %v3618 = vmax.f32 %v3610, 0.0
  %v3619 = vld [vmem:[%s9] sm:$0xf]
  %v3620 = vld [vmem:[%s9 + $0x4] sm:$0xf]
  %v3621 = vld [vmem:[%s9 + $0x8] sm:$0xf]
  %v3622 = vld [vmem:[%s9 + $0xc] sm:$0xf]
  %v3623 = vld [vmem:[%s9 + $0x10] sm:$0xf]
  %v3624 = vld [vmem:[%s9 + $0x14] sm:$0xf]
  %v3625 = vld [vmem:[%s9 + $0x18] sm:$0xf]
  %v3626 = vld [vmem:[%s9 + $0x1c] sm:$0xf]
  %v3627 = vld [vmem:[%s9 + $0x20] sm:$0xf]
  %v3628 = vld [vmem:[%s9 + $0x24] sm:$0xf]
  %v3629 = vld [vmem:[%s9 + $0x28] sm:$0xf]
  %v3630 = vld [vmem:[%s9 + $0x2c] sm:$0xf]
  %v3631 = vld [vmem:[%s9 + $0x30] sm:$0xf]
  %v3632 = vld [vmem:[%s9 + $0x34] sm:$0xf]
  %v3633 = vld [vmem:[%s9 + $0x38] sm:$0xf]
  %v3634 = vld [vmem:[%s9 + $0x3c] sm:$0xf]
  %v3635 = vld [vmem:[%s9 + $0x40] sm:$0xf]
  %v3636 = vld [vmem:[%s9 + $0x44] sm:$0xf]
  %v3637 = vld [vmem:[%s9 + $0x48] sm:$0xf]
  %v3638 = vld [vmem:[%s9 + $0x4c] sm:$0xf]
  %v3639 = vld [vmem:[%s9 + $0x50] sm:$0xf]
  %v3640 = vld [vmem:[%s9 + $0x54] sm:$0xf]
  %v3641 = vld [vmem:[%s9 + $0x58] sm:$0xf]
  %v3642 = vld [vmem:[%s9 + $0x5c] sm:$0xf]
  %v3643 = vld [vmem:[%s9 + $0x60] sm:$0xf]
  %v3644 = vld [vmem:[%s9 + $0x64] sm:$0xf]
  %v3645 = vld [vmem:[%s9 + $0x68] sm:$0xf]
  %v3646 = vld [vmem:[%s9 + $0x6c] sm:$0xf]
  %v3647 = vld [vmem:[%s9 + $0x70] sm:$0xf]
  %v3648 = vld [vmem:[%s9 + $0x74] sm:$0xf]
  %v3649 = vld [vmem:[%s9 + $0x78] sm:$0xf]
  %v3650 = vld [vmem:[%s9 + $0x7c] sm:$0xf]
  %v3651 = vpack.c.bf16 %v3613, %v3611
  %v3652 = vpack.c.bf16 %v3614, %v3612
  %v3653 = vpack.c.bf16 %v3617, %v3615
  %v3654 = vpack.c.bf16 %v3618, %v3616
  %v3687 = vunpack.c.l.b16 %v3619
  %v3688 = vunpack.c.l.b16 %v3620
  %v3689 = vunpack.c.l.b16 %v3621
  %v3690 = vunpack.c.l.b16 %v3622
  %v3691 = vunpack.c.l.b16 %v3623
  %v3692 = vunpack.c.l.b16 %v3624
  %v3693 = vunpack.c.l.b16 %v3625
  %v3694 = vunpack.c.l.b16 %v3626
  %v3695 = vunpack.c.l.b16 %v3627
  %v3696 = vunpack.c.l.b16 %v3628
  %v3697 = vunpack.c.l.b16 %v3629
  %v3698 = vunpack.c.l.b16 %v3630
  %v3699 = vunpack.c.l.b16 %v3631
  %v3700 = vunpack.c.l.b16 %v3632
  %v3701 = vunpack.c.l.b16 %v3633
  %v3702 = vunpack.c.l.b16 %v3634
  %v3703 = vunpack.c.l.b16 %v3635
  %v3704 = vunpack.c.l.b16 %v3636
  %v3705 = vunpack.c.l.b16 %v3637
  %v3706 = vunpack.c.l.b16 %v3638
  %v3707 = vunpack.c.l.b16 %v3639
  %v3708 = vunpack.c.l.b16 %v3640
  %v3709 = vunpack.c.l.b16 %v3641
  %v3710 = vunpack.c.l.b16 %v3642
  %v3711 = vunpack.c.l.b16 %v3643
  %v3712 = vunpack.c.l.b16 %v3644
  %v3713 = vunpack.c.l.b16 %v3645
  %v3714 = vunpack.c.l.b16 %v3646
  %v3715 = vunpack.c.l.b16 %v3647
  %v3716 = vunpack.c.l.b16 %v3648
  %v3717 = vunpack.c.l.b16 %v3649
  %v3718 = vunpack.c.l.b16 %v3650
  %v3719 = vpack.c.b16 %v3688, %v3687
  %v3720 = vpack.c.b16 %v3690, %v3689
  %v3721 = vpack.c.b16 %v3692, %v3691
  %v3722 = vpack.c.b16 %v3694, %v3693
  %v3723 = vpack.c.b16 %v3696, %v3695
  %v3724 = vpack.c.b16 %v3698, %v3697
  %v3725 = vpack.c.b16 %v3700, %v3699
  %v3726 = vpack.c.b16 %v3702, %v3701
  %v3727 = vpack.c.b16 %v3704, %v3703
  %v3728 = vpack.c.b16 %v3706, %v3705
  %v3729 = vpack.c.b16 %v3708, %v3707
  %v3730 = vpack.c.b16 %v3710, %v3709
  %v3731 = vpack.c.b16 %v3712, %v3711
  %v3732 = vpack.c.b16 %v3714, %v3713
  %v3733 = vpack.c.b16 %v3716, %v3715
  %v3734 = vpack.c.b16 %v3718, %v3717
  %3751 = vmatprep.subr.bf16.mxu0 0
  %3752 = vmatpush1.bf16.msra.mxu0 %v3719
  %3753 = vmatprep.subr.bf16.mxu0 0
  %3754 = vmatpush1.bf16.msra.mxu0 %v3720
  %3755 = vmatprep.subr.bf16.mxu0 0
  %3756 = vmatpush1.bf16.msra.mxu0 %v3721
  %3757 = vmatprep.subr.bf16.mxu0 0
  %3758 = vmatpush1.bf16.msra.mxu0 %v3722
  %3759 = vmatprep.subr.bf16.mxu0 0
  %3760 = vmatpush1.bf16.msra.mxu0 %v3723
  %3761 = vmatprep.subr.bf16.mxu0 0
  %3762 = vmatpush1.bf16.msra.mxu0 %v3724
  %3763 = vmatprep.subr.bf16.mxu0 0
  %3764 = vmatpush1.bf16.msra.mxu0 %v3725
  %3765 = vmatprep.subr.bf16.mxu0 0
  %3766 = vmatpush1.bf16.msra.mxu0 %v3726
  %3767 = vmatprep.subr.bf16.mxu0 0
  %3768 = vmatpush1.bf16.msra.mxu0 %v3727
  %3769 = vmatprep.subr.bf16.mxu0 0
  %3770 = vmatpush1.bf16.msra.mxu0 %v3728
  %3771 = vmatprep.subr.bf16.mxu0 0
  %3772 = vmatpush1.bf16.msra.mxu0 %v3729
  %3773 = vmatprep.subr.bf16.mxu0 0
  %3774 = vmatpush1.bf16.msra.mxu0 %v3730
  %3775 = vmatprep.subr.bf16.mxu0 0
  %3776 = vmatpush1.bf16.msra.mxu0 %v3731
  %3777 = vmatprep.subr.bf16.mxu0 0
  %3778 = vmatpush1.bf16.msra.mxu0 %v3732
  %3779 = vmatprep.subr.bf16.mxu0 0
  %3780 = vmatpush1.bf16.msra.mxu0 %v3733
  %3781 = vmatprep.subr.bf16.mxu0 0
  %3782 = vmatpush1.bf16.msra.mxu0 %v3734
  %3783 = vmatprep.mubr.bf16.mxu0 %v3652
  %3784 = vmatmul.mubr.bf16.gmra.mrb[0].mxu0 %v3651
  %v3785 = vpop.f32.mrb[0].mxu0
  %v3786 = vadd.f32 0.0, %v3785
  %v3787 = vpop.f32.mrb[0].mxu0
  %v3788 = vpop.f32.mrb[0].mxu0
  %v3789 = vadd.f32 0.0, %v3788
  %v3790 = vpop.f32.mrb[0].mxu0
  %3791 = vmatprep.mubr.bf16.mxu0 %v3654
  %3792 = vmatmul.mubr.bf16.gmra.mrb[0].mxu0 %v3653
  %v3793 = vpop.f32.mrb[0].mxu0
  %v3794 = vadd.f32 0.0, %v3793
  %v3795 = vpop.f32.mrb[0].mxu0
  %v3796 = vpop.f32.mrb[0].mxu0
  %v3797 = vadd.f32 0.0, %v3796
  %v3798 = vpop.f32.mrb[0].mxu0
  %3799 = vdwg.mxu0
  %v3800 = vld [vmem:[%s7] sm:$0xff]
  %v3801 = vld [vmem:[%s7 + $0x8] sm:$0xff]
  %v3802 = vld [vmem:[%s7 + $0x10] sm:$0xff]
  %v3803 = vld [vmem:[%s7 + $0x18] sm:$0xff]
  %v3804 = vld [vmem:[%s7 + $0x20] sm:$0xff]
  %v3805 = vld [vmem:[%s7 + $0x28] sm:$0xff]
  %v3806 = vld [vmem:[%s7 + $0x30] sm:$0xff]
  %v3807 = vld [vmem:[%s7 + $0x38] sm:$0xff]
  %v3808 = vld [vmem:[%s7 + $0x40] sm:$0xff]
  %v3809 = vld [vmem:[%s7 + $0x48] sm:$0xff]
  %v3810 = vld [vmem:[%s7 + $0x50] sm:$0xff]
  %v3811 = vld [vmem:[%s7 + $0x58] sm:$0xff]
  %v3812 = vld [vmem:[%s7 + $0x60] sm:$0xff]
  %v3813 = vld [vmem:[%s7 + $0x68] sm:$0xff]
  %v3814 = vld [vmem:[%s7 + $0x70] sm:$0xff]
  %v3815 = vld [vmem:[%s7 + $0x78] sm:$0xff]
  %v3832 = vunpack.c.l.b16 %v3800
  %v3833 = vunpack.c.h.b16 %v3800
  %v3834 = vunpack.c.l.b16 %v3801
  %v3835 = vunpack.c.h.b16 %v3801
  %v3836 = vunpack.c.l.b16 %v3802
  %v3837 = vunpack.c.h.b16 %v3802
  %v3838 = vunpack.c.l.b16 %v3803
  %v3839 = vunpack.c.h.b16 %v3803
  %v3840 = vunpack.c.l.b16 %v3804
  %v3841 = vunpack.c.h.b16 %v3804
  %v3842 = vunpack.c.l.b16 %v3805
  %v3843 = vunpack.c.h.b16 %v3805
  %v3844 = vunpack.c.l.b16 %v3806
  %v3845 = vunpack.c.h.b16 %v3806
  %v3846 = vunpack.c.l.b16 %v3807
  %v3847 = vunpack.c.h.b16 %v3807
  %v3848 = vunpack.c.l.b16 %v3808
  %v3849 = vunpack.c.h.b16 %v3808
  %v3850 = vunpack.c.l.b16 %v3809
  %v3851 = vunpack.c.h.b16 %v3809
  %v3852 = vunpack.c.l.b16 %v3810
  %v3853 = vunpack.c.h.b16 %v3810
  %v3854 = vunpack.c.l.b16 %v3811
  %v3855 = vunpack.c.h.b16 %v3811
  %v3856 = vunpack.c.l.b16 %v3812
  %v3857 = vunpack.c.h.b16 %v3812
  %v3858 = vunpack.c.l.b16 %v3813
  %v3859 = vunpack.c.h.b16 %v3813
  %v3860 = vunpack.c.l.b16 %v3814
  %v3861 = vunpack.c.h.b16 %v3814
  %v3862 = vunpack.c.l.b16 %v3815
  %v3863 = vunpack.c.h.b16 %v3815
  %v3864 = vpack.c.b16 %v3834, %v3832
  %v3865 = vpack.c.b16 %v3835, %v3833
  %v3866 = vpack.c.b16 %v3838, %v3836
  %v3867 = vpack.c.b16 %v3839, %v3837
  %v3868 = vpack.c.b16 %v3842, %v3840
  %v3869 = vpack.c.b16 %v3843, %v3841
  %v3870 = vpack.c.b16 %v3846, %v3844
  %v3871 = vpack.c.b16 %v3847, %v3845
  %v3872 = vpack.c.b16 %v3850, %v3848
  %v3873 = vpack.c.b16 %v3851, %v3849
  %v3874 = vpack.c.b16 %v3854, %v3852
  %v3875 = vpack.c.b16 %v3855, %v3853
  %v3876 = vpack.c.b16 %v3858, %v3856
  %v3877 = vpack.c.b16 %v3859, %v3857
  %v3878 = vpack.c.b16 %v3862, %v3860
  %v3879 = vpack.c.b16 %v3863, %v3861
  %3896 = vmatprep.subr.bf16.mxu0 %v3865
  %3897 = vmatpush1.bf16.msra.mxu0 %v3864
  %3898 = vmatprep.subr.bf16.mxu0 %v3867
  %3899 = vmatpush1.bf16.msra.mxu0 %v3866
  %3900 = vmatprep.subr.bf16.mxu0 %v3869
  %3901 = vmatpush1.bf16.msra.mxu0 %v3868
  %3902 = vmatprep.subr.bf16.mxu0 %v3871
  %3903 = vmatpush1.bf16.msra.mxu0 %v3870
  %3904 = vmatprep.subr.bf16.mxu0 %v3873
  %3905 = vmatpush1.bf16.msra.mxu0 %v3872
  %3906 = vmatprep.subr.bf16.mxu0 %v3875
  %3907 = vmatpush1.bf16.msra.mxu0 %v3874
  %3908 = vmatprep.subr.bf16.mxu0 %v3877
  %3909 = vmatpush1.bf16.msra.mxu0 %v3876
  %3910 = vmatprep.subr.bf16.mxu0 %v3879
  %3911 = vmatpush1.bf16.msra.mxu0 %v3878
  %3912 = vmatprep.subr.bf16.mxu0 0
  %3913 = vmatpush1.bf16.msra.mxu0 0
  %3914 = vmatprep.subr.bf16.mxu0 0
  %3915 = vmatpush1.bf16.msra.mxu0 0
  %3916 = vmatprep.subr.bf16.mxu0 0
  %3917 = vmatpush1.bf16.msra.mxu0 0
  %3918 = vmatprep.subr.bf16.mxu0 0
  %3919 = vmatpush1.bf16.msra.mxu0 0
  %3920 = vmatprep.subr.bf16.mxu0 0
  %3921 = vmatpush1.bf16.msra.mxu0 0
  %3922 = vmatprep.subr.bf16.mxu0 0
  %3923 = vmatpush1.bf16.msra.mxu0 0
  %3924 = vmatprep.subr.bf16.mxu0 0
  %3925 = vmatpush1.bf16.msra.mxu0 0
  %3926 = vmatprep.subr.bf16.mxu0 0
  %3927 = vmatpush1.bf16.msra.mxu0 0
  %3928 = vmatprep.mubr.bf16.mxu0 0
  %3929 = vmatmul.mubr.bf16.gmra.mrb[0].mxu0 %v3408
  %v3930 = vpop.f32.mrb[0].mxu0
  %v3931 = vadd.f32 0.0, %v3930
  %v3932 = vpop.f32.mrb[0].mxu0
  %v3933 = vadd.f32 0.0, %v3932
  %v3934 = vpop.f32.mrb[0].mxu0
  %v3935 = vadd.f32 0.0, %v3934
  %v3936 = vpop.f32.mrb[0].mxu0
  %v3937 = vadd.f32 0.0, %v3936
  %3938 = vmatprep.mubr.bf16.mxu0 0
  %3939 = vmatmul.mubr.bf16.gmra.mrb[0].mxu0 %v3409
  %v3940 = vpop.f32.mrb[0].mxu0
  %v3941 = vadd.f32 0.0, %v3940
  %v3942 = vpop.f32.mrb[0].mxu0
  %v3943 = vadd.f32 0.0, %v3942
  %v3944 = vpop.f32.mrb[0].mxu0
  %v3945 = vadd.f32 0.0, %v3944
  %v3946 = vpop.f32.mrb[0].mxu0
  %v3947 = vadd.f32 0.0, %v3946
  %3948 = vdwg.mxu0
  %v3949 = vld [vmem:[%s10] sm:$0xff]
  %v3950 = vld [vmem:[%s10 + $0x8] sm:$0xff]
  %v3951 = vld [vmem:[%s10 + $0x10] sm:$0xff]
  %v3952 = vld [vmem:[%s10 + $0x18] sm:$0xff]
  %v3953 = vld [vmem:[%s10 + $0x20] sm:$0xff]
  %v3954 = vld [vmem:[%s10 + $0x28] sm:$0xff]
  %v3955 = vld [vmem:[%s10 + $0x30] sm:$0xff]
  %v3956 = vld [vmem:[%s10 + $0x38] sm:$0xff]
  %v3957 = vld [vmem:[%s10 + $0x40] sm:$0xff]
  %v3958 = vld [vmem:[%s10 + $0x48] sm:$0xff]
  %v3959 = vld [vmem:[%s10 + $0x50] sm:$0xff]
  %v3960 = vld [vmem:[%s10 + $0x58] sm:$0xff]
  %v3961 = vld [vmem:[%s10 + $0x60] sm:$0xff]
  %v3962 = vld [vmem:[%s10 + $0x68] sm:$0xff]
  %v3963 = vld [vmem:[%s10 + $0x70] sm:$0xff]
  %v3964 = vld [vmem:[%s10 + $0x78] sm:$0xff]
  %v3965 = vld [vmem:[%s10 + $0x80] sm:$0xff]
  %v3966 = vld [vmem:[%s10 + $0x88] sm:$0xff]
  %v3967 = vld [vmem:[%s10 + $0x90] sm:$0xff]
  %v3968 = vld [vmem:[%s10 + $0x98] sm:$0xff]
  %v3969 = vld [vmem:[%s10 + $0xa0] sm:$0xff]
  %v3970 = vld [vmem:[%s10 + $0xa8] sm:$0xff]
  %v3971 = vld [vmem:[%s10 + $0xb0] sm:$0xff]
  %v3972 = vld [vmem:[%s10 + $0xb8] sm:$0xff]
  %v3973 = vld [vmem:[%s10 + $0xc0] sm:$0xff]
  %v3974 = vld [vmem:[%s10 + $0xc8] sm:$0xff]
  %v3975 = vld [vmem:[%s10 + $0xd0] sm:$0xff]
  %v3976 = vld [vmem:[%s10 + $0xd8] sm:$0xff]
  %v3977 = vld [vmem:[%s10 + $0xe0] sm:$0xff]
  %v3978 = vld [vmem:[%s10 + $0xe8] sm:$0xff]
  %v3979 = vld [vmem:[%s10 + $0xf0] sm:$0xff]
  %v3980 = vld [vmem:[%s10 + $0xf8] sm:$0xff]
  %v3981 = vld [vmem:[%s10 + $0x100] sm:$0xff]
  %v3982 = vld [vmem:[%s10 + $0x108] sm:$0xff]
  %v3983 = vld [vmem:[%s10 + $0x110] sm:$0xff]
  %v3984 = vld [vmem:[%s10 + $0x118] sm:$0xff]
  %3986 = vset.pattern.permute.xlu0 0
  %3987 = vperm.xlu0 %3986, %v3786
  %v3988 = vpop.permute.xlu0 %3987
  %3991 = vset.pattern.permute.xlu0 0
  %3992 = vperm.xlu0 %3991, %v3789
  %v3993 = vpop.permute.xlu0 %3992
  %3996 = vset.pattern.permute.xlu0 0
  %3997 = vperm.xlu0 %3996, %v3794
  %v3998 = vpop.permute.xlu0 %3997
  %4001 = vset.pattern.permute.xlu0 0
  %4002 = vperm.xlu0 %4001, %v3797
  %v4003 = vpop.permute.xlu0 %4002
  %v4005 = vmul.f32 %v3988, %v3949
  %v4006 = vmul.f32 %v3993, %v3950
  %v4007 = vmul.f32 %v3998, %v3951
  %v4008 = vmul.f32 %v4003, %v3952
  %4009 = vset.pattern.permute.xlu0 1
  %4010 = vperm.xlu0 %4009, %v3786
  %v4011 = vpop.permute.xlu0 %4010
  %4013 = vset.pattern.permute.xlu0 1
  %4014 = vperm.xlu0 %4013, %v3789
  %v4015 = vpop.permute.xlu0 %4014
  %4017 = vset.pattern.permute.xlu0 1
  %4018 = vperm.xlu0 %4017, %v3794
  %v4019 = vpop.permute.xlu0 %4018
  %4021 = vset.pattern.permute.xlu0 1
  %4022 = vperm.xlu0 %4021, %v3797
  %v4023 = vpop.permute.xlu0 %4022
  %v4025 = vmul.f32 %v4011, %v3953
  %v4026 = vmul.f32 %v4015, %v3954
  %v4027 = vmul.f32 %v4019, %v3955
  %v4028 = vmul.f32 %v4023, %v3956
  %v4029 = vadd.f32 %v4005, %v4025
  %v4030 = vadd.f32 %v4006, %v4026
  %v4031 = vadd.f32 %v4007, %v4027
  %v4032 = vadd.f32 %v4008, %v4028
  %4033 = vset.pattern.permute.xlu0 2
  %4034 = vperm.xlu0 %4033, %v3786
  %v4035 = vpop.permute.xlu0 %4034
  %4037 = vset.pattern.permute.xlu0 2
  %4038 = vperm.xlu0 %4037, %v3789
  %v4039 = vpop.permute.xlu0 %4038
  %4041 = vset.pattern.permute.xlu0 2
  %4042 = vperm.xlu0 %4041, %v3794
  %v4043 = vpop.permute.xlu0 %4042
  %4045 = vset.pattern.permute.xlu0 2
  %4046 = vperm.xlu0 %4045, %v3797
  %v4047 = vpop.permute.xlu0 %4046
  %v4049 = vmul.f32 %v4035, %v3957
  %v4050 = vmul.f32 %v4039, %v3958
  %v4051 = vmul.f32 %v4043, %v3959
  %v4052 = vmul.f32 %v4047, %v3960
  %v4053 = vadd.f32 %v4029, %v4049
  %v4054 = vadd.f32 %v4030, %v4050
  %v4055 = vadd.f32 %v4031, %v4051
  %v4056 = vadd.f32 %v4032, %v4052
  %4057 = vset.pattern.permute.xlu0 3
  %4058 = vperm.xlu0 %4057, %v3786
  %v4059 = vpop.permute.xlu0 %4058
  %4061 = vset.pattern.permute.xlu0 3
  %4062 = vperm.xlu0 %4061, %v3789
  %v4063 = vpop.permute.xlu0 %4062
  %4065 = vset.pattern.permute.xlu0 3
  %4066 = vperm.xlu0 %4065, %v3794
  %v4067 = vpop.permute.xlu0 %4066
  %4069 = vset.pattern.permute.xlu0 3
  %4070 = vperm.xlu0 %4069, %v3797
  %v4071 = vpop.permute.xlu0 %4070
  %v4073 = vmul.f32 %v4059, %v3961
  %v4074 = vmul.f32 %v4063, %v3962
  %v4075 = vmul.f32 %v4067, %v3963
  %v4076 = vmul.f32 %v4071, %v3964
  %v4077 = vadd.f32 %v4053, %v4073
  %v4078 = vadd.f32 %v4054, %v4074
  %v4079 = vadd.f32 %v4055, %v4075
  %v4080 = vadd.f32 %v4056, %v4076
  %4081 = vset.pattern.permute.xlu0 4
  %4082 = vperm.xlu0 %4081, %v3786
  %v4083 = vpop.permute.xlu0 %4082
  %4085 = vset.pattern.permute.xlu0 4
  %4086 = vperm.xlu0 %4085, %v3789
  %v4087 = vpop.permute.xlu0 %4086
  %4089 = vset.pattern.permute.xlu0 4
  %4090 = vperm.xlu0 %4089, %v3794
  %v4091 = vpop.permute.xlu0 %4090
  %4093 = vset.pattern.permute.xlu0 4
  %4094 = vperm.xlu0 %4093, %v3797
  %v4095 = vpop.permute.xlu0 %4094
  %v4097 = vmul.f32 %v4083, %v3965
  %v4098 = vmul.f32 %v4087, %v3966
  %v4099 = vmul.f32 %v4091, %v3967
  %v4100 = vmul.f32 %v4095, %v3968
  %v4101 = vadd.f32 %v4077, %v4097
  %v4102 = vadd.f32 %v4078, %v4098
  %v4103 = vadd.f32 %v4079, %v4099
  %v4104 = vadd.f32 %v4080, %v4100
  %4105 = vset.pattern.permute.xlu0 5
  %4106 = vperm.xlu0 %4105, %v3786
  %v4107 = vpop.permute.xlu0 %4106
  %4109 = vset.pattern.permute.xlu0 5
  %4110 = vperm.xlu0 %4109, %v3789
  %v4111 = vpop.permute.xlu0 %4110
  %4113 = vset.pattern.permute.xlu0 5
  %4114 = vperm.xlu0 %4113, %v3794
  %v4115 = vpop.permute.xlu0 %4114
  %4117 = vset.pattern.permute.xlu0 5
  %4118 = vperm.xlu0 %4117, %v3797
  %v4119 = vpop.permute.xlu0 %4118
  %v4121 = vmul.f32 %v4107, %v3969
  %v4122 = vmul.f32 %v4111, %v3970
  %v4123 = vmul.f32 %v4115, %v3971
  %v4124 = vmul.f32 %v4119, %v3972
  %v4125 = vadd.f32 %v4101, %v4121
  %v4126 = vadd.f32 %v4102, %v4122
  %v4127 = vadd.f32 %v4103, %v4123
  %v4128 = vadd.f32 %v4104, %v4124
  %4129 = vset.pattern.permute.xlu0 6
  %4130 = vperm.xlu0 %4129, %v3786
  %v4131 = vpop.permute.xlu0 %4130
  %4133 = vset.pattern.permute.xlu0 6
  %4134 = vperm.xlu0 %4133, %v3789
  %v4135 = vpop.permute.xlu0 %4134
  %4137 = vset.pattern.permute.xlu0 6
  %4138 = vperm.xlu0 %4137, %v3794
  %v4139 = vpop.permute.xlu0 %4138
  %4141 = vset.pattern.permute.xlu0 6
  %4142 = vperm.xlu0 %4141, %v3797
  %v4143 = vpop.permute.xlu0 %4142
  %v4145 = vmul.f32 %v4131, %v3973
  %v4146 = vmul.f32 %v4135, %v3974
  %v4147 = vmul.f32 %v4139, %v3975
  %v4148 = vmul.f32 %v4143, %v3976
  %v4149 = vadd.f32 %v4125, %v4145
  %v4150 = vadd.f32 %v4126, %v4146
  %v4151 = vadd.f32 %v4127, %v4147
  %v4152 = vadd.f32 %v4128, %v4148
  %4153 = vset.pattern.permute.xlu0 7
  %4154 = vperm.xlu0 %4153, %v3786
  %v4155 = vpop.permute.xlu0 %4154
  %4157 = vset.pattern.permute.xlu0 7
  %4158 = vperm.xlu0 %4157, %v3789
  %v4159 = vpop.permute.xlu0 %4158
  %4161 = vset.pattern.permute.xlu0 7
  %4162 = vperm.xlu0 %4161, %v3794
  %v4163 = vpop.permute.xlu0 %4162
  %4165 = vset.pattern.permute.xlu0 7
  %4166 = vperm.xlu0 %4165, %v3797
  %v4167 = vpop.permute.xlu0 %4166
  %v4169 = vmul.f32 %v4155, %v3977
  %v4170 = vmul.f32 %v4159, %v3978
  %v4171 = vmul.f32 %v4163, %v3979
  %v4172 = vmul.f32 %v4167, %v3980
  %v4173 = vadd.f32 %v4149, %v4169
  %v4174 = vadd.f32 %v4150, %v4170
  %v4175 = vadd.f32 %v4151, %v4171
  %v4176 = vadd.f32 %v4152, %v4172
  %4177 = vset.pattern.permute.xlu0 8
  %4178 = vperm.xlu0 %4177, %v3786
  %v4179 = vpop.permute.xlu0 %4178
  %4181 = vset.pattern.permute.xlu0 8
  %4182 = vperm.xlu0 %4181, %v3789
  %v4183 = vpop.permute.xlu0 %4182
  %4185 = vset.pattern.permute.xlu0 8
  %4186 = vperm.xlu0 %4185, %v3794
  %v4187 = vpop.permute.xlu0 %4186
  %4189 = vset.pattern.permute.xlu0 8
  %4190 = vperm.xlu0 %4189, %v3797
  %v4191 = vpop.permute.xlu0 %4190
  %v4193 = vmul.f32 %v4179, %v3981
  %v4194 = vmul.f32 %v4183, %v3982
  %v4195 = vmul.f32 %v4187, %v3983
  %v4196 = vmul.f32 %v4191, %v3984
  %v4197 = vadd.f32 %v4173, %v4193
  %v4198 = vadd.f32 %v4174, %v4194
  %v4199 = vadd.f32 %v4175, %v4195
  %v4200 = vadd.f32 %v4176, %v4196
  %vm4201 = vcmask 261120
  %v4203 = vsel %vm4201, %v4197, 0
  %v4206 = vsel %vm4201, %v4198, 0
  %v4209 = vsel %vm4201, %v4199, 0
  %v4212 = vsel %vm4201, %v4200, 0
  %4214 = vmatprep.subr.mxu0 %v3933
  %4215 = vmatpush1.msra.mxu0 %v3931
  %4216 = vmatprep.subr.mxu0 %v3937
  %4217 = vmatpush1.msra.mxu0 %v3935
  %4218 = vmatprep.subr.mxu0 %v3943
  %4219 = vmatpush1.msra.mxu0 %v3941
  %4220 = vmatprep.subr.mxu0 %v3947
  %4221 = vmatpush1.msra.mxu0 %v3945
  %4222 = vmatprep.subr.mxu0 0.0
  %4223 = vmatpush1.msra.mxu0 0.0
  %4224 = vmatprep.subr.mxu0 0.0
  %4225 = vmatpush1.msra.mxu0 0.0
  %4226 = vmatprep.subr.mxu0 0.0
  %4227 = vmatpush1.msra.mxu0 0.0
  %4228 = vmatprep.subr.mxu0 0.0
  %4229 = vmatpush1.msra.mxu0 0.0
  %4230 = vmatprep.subr.mxu0 0.0
  %4231 = vmatpush1.msra.mxu0 0.0
  %4232 = vmatprep.subr.mxu0 0.0
  %4233 = vmatpush1.msra.mxu0 0.0
  %4234 = vmatprep.subr.mxu0 0.0
  %4235 = vmatpush1.msra.mxu0 0.0
  %4236 = vmatprep.subr.mxu0 0.0
  %4237 = vmatpush1.msra.mxu0 0.0
  %4238 = vmatprep.subr.mxu0 0.0
  %4239 = vmatpush1.msra.mxu0 0.0
  %4240 = vmatprep.subr.mxu0 0.0
  %4241 = vmatpush1.msra.mxu0 0.0
  %4242 = vmatprep.subr.mxu0 0.0
  %4243 = vmatpush1.msra.mxu0 0.0
  %4244 = vmatprep.subr.mxu0 0.0
  %4245 = vmatpush1.msra.mxu0 0.0
  %4246 = vmatprep.subr.mxu0 0.0
  %4247 = vmatpush1.msra.mxu0 0.0
  %4248 = vmatprep.subr.mxu0 0.0
  %4249 = vmatpush1.msra.mxu0 0.0
  %4250 = vmatprep.subr.mxu0 0.0
  %4251 = vmatpush1.msra.mxu0 0.0
  %4252 = vmatprep.subr.mxu0 0.0
  %4253 = vmatpush1.msra.mxu0 0.0
  %4254 = vmatprep.subr.mxu0 0.0
  %4255 = vmatpush1.msra.mxu0 0.0
  %4256 = vmatprep.subr.mxu0 0.0
  %4257 = vmatpush1.msra.mxu0 0.0
  %4258 = vmatprep.subr.mxu0 0.0
  %4259 = vmatpush1.msra.mxu0 0.0
  %4260 = vmatprep.subr.mxu0 0.0
  %4261 = vmatpush1.msra.mxu0 0.0
  %4262 = vmatprep.subr.mxu0 0.0
  %4263 = vmatpush1.msra.mxu0 0.0
  %4264 = vmatprep.subr.mxu0 0.0
  %4265 = vmatpush1.msra.mxu0 0.0
  %4266 = vmatprep.subr.mxu0 0.0
  %4267 = vmatpush1.msra.mxu0 0.0
  %4268 = vmatprep.subr.mxu0 0.0
  %4269 = vmatpush1.msra.mxu0 0.0
  %4270 = vmatprep.subr.mxu0 0.0
  %4271 = vmatpush1.msra.mxu0 0.0
  %4272 = vmatprep.subr.mxu0 0.0
  %4273 = vmatpush1.msra.mxu0 0.0
  %4274 = vmatprep.subr.mxu0 0.0
  %4275 = vmatpush1.msra.mxu0 0.0
  %4276 = vmatprep.subr.mxu0 0.0
  %4277 = vmatpush1.msra.mxu0 0.0
  %4278 = vmatprep.mubr.f32.mxu0 0.0
  %4279 = vmatmul.mubr.f32.gmra.mrb[0].mxu0 %v4203
  %v4280 = vpop.f32.mrb[0].mxu0
  %v4281 = vadd.f32 0.0, %v4280
  %v4282 = vpop.f32.mrb[0].mxu0
  %v4283 = vadd.f32 0.0, %v4282
  %4284 = vmatprep.mubr.f32.mxu0 0.0
  %4285 = vmatmul.mubr.f32.gmra.mrb[0].mxu0 %v4206
  %v4286 = vpop.f32.mrb[0].mxu0
  %v4287 = vadd.f32 0.0, %v4286
  %v4288 = vpop.f32.mrb[0].mxu0
  %v4289 = vadd.f32 0.0, %v4288
  %4290 = vmatprep.mubr.f32.mxu0 0.0
  %4291 = vmatmul.mubr.f32.gmra.mrb[0].mxu0 %v4209
  %v4292 = vpop.f32.mrb[0].mxu0
  %v4293 = vadd.f32 0.0, %v4292
  %v4294 = vpop.f32.mrb[0].mxu0
  %v4295 = vadd.f32 0.0, %v4294
  %4296 = vmatprep.mubr.f32.mxu0 0.0
  %4297 = vmatmul.mubr.f32.gmra.mrb[0].mxu0 %v4212
  %v4298 = vpop.f32.mrb[0].mxu0
  %v4299 = vadd.f32 0.0, %v4298
  %v4300 = vpop.f32.mrb[0].mxu0
  %v4301 = vadd.f32 0.0, %v4300
  %4302 = vdwg.mxu0
  %4303 = vst [vmem:[%s11] sm:$0xff] %v4281
  %4304 = vst [vmem:[%s11 + $0x8] sm:$0xff] %v4283
  %4305 = vst [vmem:[%s11 + $0x10] sm:$0xff] %v4287
  %4306 = vst [vmem:[%s11 + $0x18] sm:$0xff] %v4289
  %4307 = vst [vmem:[%s11 + $0x20] sm:$0xff] %v4293
  %4308 = vst [vmem:[%s11 + $0x28] sm:$0xff] %v4295
  %4309 = vst [vmem:[%s11 + $0x30] sm:$0xff] %v4299
  %4310 = vst [vmem:[%s11 + $0x38] sm:$0xff] %v4301
  // Predicated region
  $region46: #{i2d_forward.2} parent=0 // pred_check
    _
  $region47: #{i2d_forward.2} parent=0 // pred_check_branch
    %4312 = sbr.rel (0) target = $region49
  $region48: #{i2d_forward.2} parent=0 // pred_region
    _
  $region49: #{i2d_forward.2} parent=0 // pred_fallthru
    _
  // Predicated region
  $region50: #{i2d_forward.2} parent=0 // pred_check
    _
  $region51: #{i2d_forward.2} parent=0 // pred_check_branch
    %4314 = sbr.rel (0) target = $region53
  $region52: #{i2d_forward.2} parent=0 // pred_region
    _
  $region53: #{i2d_forward.2} parent=0 // pred_fallthru
    _

</llo_original>
